<compile_context>
chip_gen: v7x
topology: tpu7x:2x2x1
jax: 0.10.0
libtpu: 0.0.40
codegen_flags: <defaults>
</compile_context>

<pallas_src>
import functools

import jax
import jax.numpy as jnp
from jax.experimental import pallas as pl
from jax.experimental.pallas import tpu as pltpu


# --------------------------------------------------------------------------
# Pallas kernel
# --------------------------------------------------------------------------
def _make_kernel(n_layer, n_hidden, n_sb, tt, b_pad, n_class):
    H = n_hidden
    S = tt * n_sb          # GRU steps handled per grid chunk

    def kernel(*refs):
        # refs layout:
        #   gi0, w_hh0, b_hh0,
        #   [w_fused_l, b_fused_l] for l in 1..n_layer-1,
        #   w_fc, b_fc,
        #   out_ref, conf_ref,
        #   hid_scratch
        gi0_ref = refs[0]
        w_hh0 = refs[1][...]
        b_hh0 = refs[2][...]
        fused = [(refs[3 + 2 * l][...], refs[4 + 2 * l][...])
                 for l in range(n_layer - 1)]
        base = 3 + 2 * (n_layer - 1)
        w_fc = refs[base][...]
        b_fc = refs[base + 1][...]
        out_ref = refs[base + 2]
        conf_ref = refs[base + 3]
        hid_ref = refs[base + 4]

        @pl.when(pl.program_id(0) == 0)
        def _():
            hid_ref[...] = jnp.zeros(hid_ref.shape, jnp.float32)

        # Hidden state lives in registers for the whole chunk.
        h = [hid_ref[l] for l in range(n_layer)]

        h_tops = []
        # Statically unrolled serial recurrence over the chunk's GRU steps.
        for s in range(S):
            # layer 0: input projection gi0 was hoisted outside the kernel.
            gi0 = gi0_ref[s]                               # (Bp, 3H)
            gh0 = jnp.dot(h[0], w_hh0,
                          preferred_element_type=jnp.float32) + b_hh0
            r = jax.nn.sigmoid(gi0[:, :H] + gh0[:, :H])
            z = jax.nn.sigmoid(gi0[:, H:2 * H] + gh0[:, H:2 * H])
            n = jnp.tanh(gi0[:, 2 * H:] + r * gh0[:, 2 * H:])
            h[0] = (1.0 - z) * n + z * h[0]
            inp = h[0]
            # layers >= 1: one fused (Bp, 2H) x (2H, 4H) matmul per layer.
            for l in range(1, n_layer):
                w_f, b_f = fused[l - 1]
                g = jnp.dot(jnp.concatenate([inp, h[l]], axis=-1), w_f,
                            preferred_element_type=jnp.float32) + b_f
                r = jax.nn.sigmoid(g[:, :H])
                z = jax.nn.sigmoid(g[:, H:2 * H])
                n = jnp.tanh(g[:, 2 * H:3 * H] + r * g[:, 3 * H:])
                h[l] = (1.0 - z) * n + z * h[l]
                inp = h[l]
            h_tops.append(inp)

        # write the cross-chunk hidden carry back once per chunk
        for l in range(n_layer):
            hid_ref[l] = h[l]

        # ---- batched classification head over all (t, k) of the chunk ----
        h_all = jnp.concatenate(h_tops, axis=0)            # (S*Bp, H)
        logits = jnp.dot(h_all, w_fc,
                         preferred_element_type=jnp.float32) + b_fc
        m = jnp.max(logits, axis=-1, keepdims=True)
        e = jnp.exp(logits - m)
        p = e * pl.reciprocal(jnp.sum(e, axis=-1, keepdims=True), approx=True)
        conf_ref[...] = jnp.sum(p * p, axis=-1, keepdims=True)   # (S*Bp, 1)

        # logits of the last subband per time step (sublane-aligned slice)
        logits3 = logits.reshape(tt, n_sb * b_pad, n_class)
        out_ref[...] = logits3[:, (n_sb - 1) * b_pad:, :]        # (tt, Bp, C)

    return kernel


def _w_spec(shape):
    nd = len(shape)
    return pl.BlockSpec(shape, lambda c, _nd=nd: (0,) * _nd)


# --------------------------------------------------------------------------
# Wrapper
# --------------------------------------------------------------------------
def freq_unroll_block_forward(x, params, *, block_size, n_hidden, n_layer,
                              n_class, tt=None):
    """Training-mode 'l2_naive' forward. Returns (out, conf)."""
    x = x.astype(jnp.float32)
    B, F_, T = x.shape
    D = block_size
    n_sb = F_ // D
    H = n_hidden
    tt = T if tt is None else tt          # time steps per grid chunk
    assert T % tt == 0
    nc = T // tt
    Bp = ((B + 7) // 8) * 8               # pad batch to sublane granularity

    # (B, F, T) -> (T, n_sb, B, D) -> pad batch -> (T*n_sb*Bp, D)
    xk = jnp.transpose(x.reshape(B, n_sb, D, T), (3, 1, 0, 2))
    xk = jnp.pad(xk, ((0, 0), (0, 0), (0, Bp - B), (0, 0)))
    x2d = xk.reshape(T * n_sb * Bp, D)

    wi0, wh0, bi0, bh0 = params["gru"][0]
    # hoisted layer-0 input projection: one big MXU matmul (M = T*n_sb*Bp)
    gi0 = (x2d @ wi0 + bi0).reshape(T * n_sb, Bp, 3 * H)

    flat_args = [gi0, wh0, bh0]
    in_specs = [pl.BlockSpec((tt * n_sb, Bp, 3 * H), lambda c: (c, 0, 0)),
                _w_spec(wh0.shape), _w_spec(bh0.shape)]

    zeros_hh = jnp.zeros((H, H), jnp.float32)
    for l in range(1, n_layer):
        wi, wh, bi, bh = params["gru"][l]
        # fused weight: g = [inp, h] @ W_f + b_f gives
        #   g[:, :2H]    = gi_rz + gh_rz (biases folded)
        #   g[:, 2H:3H]  = gi_n
        #   g[:, 3H:4H]  = gh_n
        w_f = jnp.concatenate([
            jnp.concatenate([wi[:, :2 * H], wi[:, 2 * H:], zeros_hh], axis=1),
            jnp.concatenate([wh[:, :2 * H], zeros_hh, wh[:, 2 * H:]], axis=1),
        ], axis=0)                                            # (2H, 4H)
        b_f = jnp.concatenate([bi[:, :2 * H] + bh[:, :2 * H],
                               bi[:, 2 * H:], bh[:, 2 * H:]], axis=1)  # (1, 4H)
        flat_args += [w_f, b_f]
        in_specs += [_w_spec(w_f.shape), _w_spec(b_f.shape)]

    w_fc, b_fc = params["fc"]
    flat_args += [w_fc, b_fc]
    in_specs += [_w_spec(w_fc.shape), _w_spec(b_fc.shape)]

    out_shape = (jax.ShapeDtypeStruct((T, Bp, n_class), jnp.float32),
                 jax.ShapeDtypeStruct((T * n_sb * Bp, 1), jnp.float32))
    out_specs = (pl.BlockSpec((tt, Bp, n_class), lambda c: (c, 0, 0)),
                 pl.BlockSpec((tt * n_sb * Bp, 1), lambda c: (c, 0)))

    kernel = _make_kernel(n_layer, H, n_sb, tt, Bp, n_class)

    out_k, conf_k = pl.pallas_call(
        kernel,
        out_shape=out_shape,
        grid_spec=pltpu.PrefetchScalarGridSpec(
            num_scalar_prefetch=0,
            grid=(nc,),
            in_specs=in_specs,
            out_specs=out_specs,
            scratch_shapes=[pltpu.VMEM((n_layer, Bp, H), jnp.float32)],
        ),
        # NOTE: the chunk axis carries the GRU hidden state in VMEM scratch;
        # it must remain "arbitrary" (never megacore-sharded / "parallel").
        compiler_params=pltpu.CompilerParams(
            dimension_semantics=("arbitrary",)),
    )(*flat_args)

    out = jnp.transpose(out_k[:, :B, :], (1, 0, 2))                 # (B, T, C)
    conf = jnp.transpose(conf_k.reshape(T, n_sb, Bp)[:, :, :B],
                         (2, 0, 1))                                 # (B, T, n_sb)
    return out, conf


# --------------------------------------------------------------------------
# Deterministic parameter init (PyTorch-style uniform(-1/sqrt(H), 1/sqrt(H)))
# Weights are stored already transposed ((in_dim, 3H) etc.) for jnp.dot.
# --------------------------------------------------------------------------
def init_params(key, *, block_size, n_hidden, n_layer, n_class):
    H = n_hidden
    bound = 1.0 / (H ** 0.5)
    params = {"gru": [], "fc": None}
    for l in range(n_layer):
        in_dim = block_size if l == 0 else H
        key, k1, k2, k3, k4 = jax.random.split(key, 5)
        wi = jax.random.uniform(k1, (in_dim, 3 * H), jnp.float32, -bound, bound)
        wh = jax.random.uniform(k2, (H, 3 * H), jnp.float32, -bound, bound)
        bi = jax.random.uniform(k3, (1, 3 * H), jnp.float32, -bound, bound)
        bh = jax.random.uniform(k4, (1, 3 * H), jnp.float32, -bound, bound)
        params["gru"].append((wi, wh, bi, bh))
    key, k1, k2 = jax.random.split(key, 3)
    w_fc = jax.random.uniform(k1, (H, n_class), jnp.float32, -bound, bound)
    b_fc = jax.random.uniform(k2, (1, n_class), jnp.float32, -bound, bound)
    params["fc"] = (w_fc, b_fc)
    return params


# --------------------------------------------------------------------------
# Pure-JAX reference (mirrors the PyTorch training-mode l2_naive branch)
# --------------------------------------------------------------------------
def ref_forward(x, params, *, block_size, n_hidden, n_layer, n_class):
    x = x.astype(jnp.float32)
    B, F_, T = x.shape
    n_sb = F_ // block_size
    H = n_hidden
    seq = jnp.transpose(x.reshape(B, n_sb, block_size, T),
                        (0, 3, 1, 2)).reshape(B, T * n_sb, block_size)

    def cell(h_prev, inp, wi, wh, bi, bh):
        gi = inp @ wi + bi
        gh = h_prev @ wh + bh
        r = jax.nn.sigmoid(gi[:, :H] + gh[:, :H])
        z = jax.nn.sigmoid(gi[:, H:2 * H] + gh[:, H:2 * H])
        n = jnp.tanh(gi[:, 2 * H:] + r * gh[:, 2 * H:])
        return (1.0 - z) * n + z * h_prev

    def step(hid, x_t):
        new_h = []
        inp = x_t
        for l in range(n_layer):
            wi, wh, bi, bh = params["gru"][l]
            h_new = cell(hid[l], inp, wi, wh, bi, bh)
            new_h.append(h_new)
            inp = h_new
        return jnp.stack(new_h), inp

    hid0 = jnp.zeros((n_layer, B, H), jnp.float32)
    _, hs = jax.lax.scan(step, hid0, jnp.transpose(seq, (1, 0, 2)))
    h = jnp.transpose(hs, (1, 0, 2)).reshape(B, T, n_sb, H)
    w_fc, b_fc = params["fc"]
    all_out = h @ w_fc + b_fc
    prob = jax.nn.softmax(all_out, axis=-1)
    conf = jnp.sum(prob * prob, axis=-1)
    out = all_out[:, :, -1]
    return out, conf


# --------------------------------------------------------------------------
if __name__ == "__main__":
    B = 2
    block_size = 8        # == input_size of the GRU
    n_sb = 4
    F = block_size * n_sb
    T = 8
    n_hidden = 32
    n_layer = 2
    n_class = 5

    key = jax.random.PRNGKey(0)
    key, kx, kp = jax.random.split(key, 3)
    x = jax.random.normal(kx, (B, F, T), jnp.float32)
    params = init_params(kp, block_size=block_size, n_hidden=n_hidden,
                         n_layer=n_layer, n_class=n_class)

    out_r, conf_r = ref_forward(x, params, block_size=block_size,
                                n_hidden=n_hidden, n_layer=n_layer,
                                n_class=n_class)

    # check both the single-chunk (grid=(1,)) and chunked (cross-chunk hidden
    # carry through VMEM scratch) paths
    for tt in (None, T // 2):
        fwd = jax.jit(functools.partial(
            freq_unroll_block_forward, block_size=block_size,
            n_hidden=n_hidden, n_layer=n_layer, n_class=n_class, tt=tt))
        out, conf = fwd(x, params)
        out = jax.block_until_ready(out)
        conf = jax.block_until_ready(conf)
        assert out.shape == (B, T, n_class) and conf.shape == (B, T, n_sb)
        assert bool(jnp.allclose(out, out_r, atol=2e-3, rtol=2e-3)), \
            "out mismatch (tt=%s)" % tt
        # conf uses the approximate EUP reciprocal -> slightly looser tolerance
        assert bool(jnp.allclose(conf, conf_r, atol=5e-3, rtol=5e-3)), \
            "conf mismatch (tt=%s)" % tt

    print("KERNEL_OK")
</pallas_src>

<mosaic_0001>
module attributes {stable_mosaic.version = 11 : i64} {
  func.func @kernel(%arg0: i32, %arg1: memref<32x8x96xf32, #tpu.memory_space<vmem>>, %arg2: memref<32x96xf32, #tpu.memory_space<vmem>>, %arg3: memref<1x96xf32, #tpu.memory_space<vmem>>, %arg4: memref<64x128xf32, #tpu.memory_space<vmem>>, %arg5: memref<1x128xf32, #tpu.memory_space<vmem>>, %arg6: memref<32x5xf32, #tpu.memory_space<vmem>>, %arg7: memref<1x5xf32, #tpu.memory_space<vmem>>, %arg8: memref<8x8x5xf32, #tpu.memory_space<vmem>>, %arg9: memref<256x1xf32, #tpu.memory_space<vmem>>, %arg10: memref<2x8x32xf32, #tpu.memory_space<vmem>>) attributes {dimension_semantics = [#tpu.dimension_semantics<arbitrary>], iteration_bounds = array<i64: 1>, scalar_prefetch = 0 : i64, scratch_operands = 1 : i64, tpu.core_type = #tpu.core_type<tc>, window_params = [{transform_indices = @transform_0, window_bounds = array<i64: 32, 8, 96>}, {pipeline_mode = #tpu.pipeline_mode<synchronous>, transform_indices = @transform_1, window_bounds = array<i64: 32, 96>}, {pipeline_mode = #tpu.pipeline_mode<synchronous>, transform_indices = @transform_2, window_bounds = array<i64: 1, 96>}, {pipeline_mode = #tpu.pipeline_mode<synchronous>, transform_indices = @transform_3, window_bounds = array<i64: 64, 128>}, {pipeline_mode = #tpu.pipeline_mode<synchronous>, transform_indices = @transform_4, window_bounds = array<i64: 1, 128>}, {pipeline_mode = #tpu.pipeline_mode<synchronous>, transform_indices = @transform_5, window_bounds = array<i64: 32, 5>}, {pipeline_mode = #tpu.pipeline_mode<synchronous>, transform_indices = @transform_6, window_bounds = array<i64: 1, 5>}, {transform_indices = @transform_7, window_bounds = array<i64: 8, 8, 5>}, {transform_indices = @transform_8, window_bounds = array<i64: 256, 1>}]} {
    %c0 = arith.constant 0 : index
    %c0_0 = arith.constant 0 : index
    %0 = vector.load %arg2[%c0, %c0_0] : memref<32x96xf32, #tpu.memory_space<vmem>>, vector<32x96xf32>
    %c0_1 = arith.constant 0 : index
    %c0_2 = arith.constant 0 : index
    %1 = vector.load %arg3[%c0_1, %c0_2] : memref<1x96xf32, #tpu.memory_space<vmem>>, vector<1x96xf32>
    %c0_3 = arith.constant 0 : index
    %c0_4 = arith.constant 0 : index
    %2 = vector.load %arg4[%c0_3, %c0_4] : memref<64x128xf32, #tpu.memory_space<vmem>>, vector<64x128xf32>
    %c0_5 = arith.constant 0 : index
    %c0_6 = arith.constant 0 : index
    %3 = vector.load %arg5[%c0_5, %c0_6] : memref<1x128xf32, #tpu.memory_space<vmem>>, vector<1x128xf32>
    %c0_7 = arith.constant 0 : index
    %c0_8 = arith.constant 0 : index
    %4 = vector.load %arg6[%c0_7, %c0_8] : memref<32x5xf32, #tpu.memory_space<vmem>>, vector<32x5xf32>
    %c0_9 = arith.constant 0 : index
    %c0_10 = arith.constant 0 : index
    %5 = vector.load %arg7[%c0_9, %c0_10] : memref<1x5xf32, #tpu.memory_space<vmem>>, vector<1x5xf32>
    %c0_i32 = arith.constant 0 : i32
    %6 = arith.cmpi eq, %arg0, %c0_i32 : i32
    %7 = arith.extui %6 : i1 to i32
    %c0_i32_11 = arith.constant 0 : i32
    %8 = arith.cmpi ne, %7, %c0_i32_11 : i32
    scf.if %8 {
      %cst_353 = arith.constant 0.000000e+00 : f32
      %1866 = vector.broadcast %cst_353 : f32 to vector<2x8x32xf32>
      %c0_354 = arith.constant 0 : index
      %c0_355 = arith.constant 0 : index
      %c0_356 = arith.constant 0 : index
      %1867 = vector.load %arg10[%c0_354, %c0_355, %c0_356] : memref<2x8x32xf32, #tpu.memory_space<vmem>>, vector<2x8x32xf32>
      tpu.vector_store %arg10[%c0_354, %c0_355, %c0_356], %1866 {strides = array<i32>} : memref<2x8x32xf32, #tpu.memory_space<vmem>>, vector<2x8x32xf32>,
    } else {
    }
    %c0_12 = arith.constant 0 : index
    %c0_13 = arith.constant 0 : index
    %c0_14 = arith.constant 0 : index
    %9 = vector.load %arg10[%c0_12, %c0_13, %c0_14] : memref<2x8x32xf32, #tpu.memory_space<vmem>>, vector<1x8x32xf32>
    %10 = vector.shape_cast %9 : vector<1x8x32xf32> to vector<8x32xf32>
    %c1 = arith.constant 1 : index
    %c0_15 = arith.constant 0 : index
    %c0_16 = arith.constant 0 : index
    %11 = vector.load %arg10[%c1, %c0_15, %c0_16] : memref<2x8x32xf32, #tpu.memory_space<vmem>>, vector<1x8x32xf32>
    %12 = vector.shape_cast %11 : vector<1x8x32xf32> to vector<8x32xf32>
    %c0_17 = arith.constant 0 : index
    %c0_18 = arith.constant 0 : index
    %c0_19 = arith.constant 0 : index
    %13 = vector.load %arg1[%c0_17, %c0_18, %c0_19] : memref<32x8x96xf32, #tpu.memory_space<vmem>>, vector<1x8x96xf32>
    %14 = vector.shape_cast %13 : vector<1x8x96xf32> to vector<8x96xf32>
    %cst = arith.constant dense<0.000000e+00> : vector<8x96xf32>
    %15 = tpu.matmul %10, %0, %cst {dimension_numbers = #tpu.dot_dimension_numbers<[1], [0], [0], [1], [0, 0, 1, 1], [], []>} : vector<8x32xf32>, vector<32x96xf32>, vector<8x96xf32> -> vector<8x96xf32>
    %16 = vector.broadcast %1 : vector<1x96xf32> to vector<8x96xf32>
    %17 = arith.addf %15, %16 : vector<8x96xf32>
    %18 = vector.extract_strided_slice %14 {offsets = [0, 0], sizes = [8, 32], strides = [1, 1]} : vector<8x96xf32> to vector<8x32xf32>
    %19 = vector.extract_strided_slice %17 {offsets = [0, 0], sizes = [8, 32], strides = [1, 1]} : vector<8x96xf32> to vector<8x32xf32>
    %20 = arith.addf %18, %19 : vector<8x32xf32>
    %21 = arith.negf %20 : vector<8x32xf32>
    %22 = math.exp %21 : vector<8x32xf32>
    %cst_20 = arith.constant 1.000000e+00 : f32
    %23 = vector.broadcast %cst_20 : f32 to vector<8x32xf32>
    %24 = arith.addf %23, %22 : vector<8x32xf32>
    %25 = arith.divf %23, %24 : vector<8x32xf32>
    %26 = vector.extract_strided_slice %14 {offsets = [0, 32], sizes = [8, 32], strides = [1, 1]} : vector<8x96xf32> to vector<8x32xf32>
    %27 = vector.extract_strided_slice %17 {offsets = [0, 32], sizes = [8, 32], strides = [1, 1]} : vector<8x96xf32> to vector<8x32xf32>
    %28 = arith.addf %26, %27 : vector<8x32xf32>
    %29 = arith.negf %28 : vector<8x32xf32>
    %30 = math.exp %29 : vector<8x32xf32>
    %cst_21 = arith.constant 1.000000e+00 : f32
    %31 = vector.broadcast %cst_21 : f32 to vector<8x32xf32>
    %32 = arith.addf %31, %30 : vector<8x32xf32>
    %33 = arith.divf %31, %32 : vector<8x32xf32>
    %34 = vector.extract_strided_slice %14 {offsets = [0, 64], sizes = [8, 32], strides = [1, 1]} : vector<8x96xf32> to vector<8x32xf32>
    %35 = vector.extract_strided_slice %17 {offsets = [0, 64], sizes = [8, 32], strides = [1, 1]} : vector<8x96xf32> to vector<8x32xf32>
    %36 = arith.mulf %25, %35 : vector<8x32xf32>
    %37 = arith.addf %34, %36 : vector<8x32xf32>
    %38 = math.tanh %37 : vector<8x32xf32>
    %cst_22 = arith.constant 1.000000e+00 : f32
    %39 = vector.broadcast %cst_22 : f32 to vector<8x32xf32>
    %40 = arith.subf %39, %33 : vector<8x32xf32>
    %41 = arith.mulf %40, %38 : vector<8x32xf32>
    %42 = arith.mulf %33, %10 : vector<8x32xf32>
    %43 = arith.addf %41, %42 : vector<8x32xf32>
    %44 = tpu.concatenate %43, %12 in 1 : vector<8x32xf32>, vector<8x32xf32> -> vector<8x64xf32>
    %cst_23 = arith.constant dense<0.000000e+00> : vector<8x128xf32>
    %45 = tpu.matmul %44, %2, %cst_23 {dimension_numbers = #tpu.dot_dimension_numbers<[1], [0], [0], [1], [0, 0, 1, 1], [], []>} : vector<8x64xf32>, vector<64x128xf32>, vector<8x128xf32> -> vector<8x128xf32>
    %46 = vector.broadcast %3 : vector<1x128xf32> to vector<8x128xf32>
    %47 = arith.addf %45, %46 : vector<8x128xf32>
    %48 = vector.extract_strided_slice %47 {offsets = [0, 0], sizes = [8, 32], strides = [1, 1]} : vector<8x128xf32> to vector<8x32xf32>
    %49 = arith.negf %48 : vector<8x32xf32>
    %50 = math.exp %49 : vector<8x32xf32>
    %cst_24 = arith.constant 1.000000e+00 : f32
    %51 = vector.broadcast %cst_24 : f32 to vector<8x32xf32>
    %52 = arith.addf %51, %50 : vector<8x32xf32>
    %53 = arith.divf %51, %52 : vector<8x32xf32>
    %54 = vector.extract_strided_slice %47 {offsets = [0, 32], sizes = [8, 32], strides = [1, 1]} : vector<8x128xf32> to vector<8x32xf32>
    %55 = arith.negf %54 : vector<8x32xf32>
    %56 = math.exp %55 : vector<8x32xf32>
    %cst_25 = arith.constant 1.000000e+00 : f32
    %57 = vector.broadcast %cst_25 : f32 to vector<8x32xf32>
    %58 = arith.addf %57, %56 : vector<8x32xf32>
    %59 = arith.divf %57, %58 : vector<8x32xf32>
    %60 = vector.extract_strided_slice %47 {offsets = [0, 64], sizes = [8, 32], strides = [1, 1]} : vector<8x128xf32> to vector<8x32xf32>
    %61 = vector.extract_strided_slice %47 {offsets = [0, 96], sizes = [8, 32], strides = [1, 1]} : vector<8x128xf32> to vector<8x32xf32>
    %62 = arith.mulf %53, %61 : vector<8x32xf32>
    %63 = arith.addf %60, %62 : vector<8x32xf32>
    %64 = math.tanh %63 : vector<8x32xf32>
    %cst_26 = arith.constant 1.000000e+00 : f32
    %65 = vector.broadcast %cst_26 : f32 to vector<8x32xf32>
    %66 = arith.subf %65, %59 : vector<8x32xf32>
    %67 = arith.mulf %66, %64 : vector<8x32xf32>
    %68 = arith.mulf %59, %12 : vector<8x32xf32>
    %69 = arith.addf %67, %68 : vector<8x32xf32>
    %c1_27 = arith.constant 1 : index
    %c0_28 = arith.constant 0 : index
    %c0_29 = arith.constant 0 : index
    %70 = vector.load %arg1[%c1_27, %c0_28, %c0_29] : memref<32x8x96xf32, #tpu.memory_space<vmem>>, vector<1x8x96xf32>
    %71 = vector.shape_cast %70 : vector<1x8x96xf32> to vector<8x96xf32>
    %cst_30 = arith.constant dense<0.000000e+00> : vector<8x96xf32>
    %72 = tpu.matmul %43, %0, %cst_30 {dimension_numbers = #tpu.dot_dimension_numbers<[1], [0], [0], [1], [0, 0, 1, 1], [], []>} : vector<8x32xf32>, vector<32x96xf32>, vector<8x96xf32> -> vector<8x96xf32>
    %73 = vector.broadcast %1 : vector<1x96xf32> to vector<8x96xf32>
    %74 = arith.addf %72, %73 : vector<8x96xf32>
    %75 = vector.extract_strided_slice %71 {offsets = [0, 0], sizes = [8, 32], strides = [1, 1]} : vector<8x96xf32> to vector<8x32xf32>
    %76 = vector.extract_strided_slice %74 {offsets = [0, 0], sizes = [8, 32], strides = [1, 1]} : vector<8x96xf32> to vector<8x32xf32>
    %77 = arith.addf %75, %76 : vector<8x32xf32>
    %78 = arith.negf %77 : vector<8x32xf32>
    %79 = math.exp %78 : vector<8x32xf32>
    %cst_31 = arith.constant 1.000000e+00 : f32
    %80 = vector.broadcast %cst_31 : f32 to vector<8x32xf32>
    %81 = arith.addf %80, %79 : vector<8x32xf32>
    %82 = arith.divf %80, %81 : vector<8x32xf32>
    %83 = vector.extract_strided_slice %71 {offsets = [0, 32], sizes = [8, 32], strides = [1, 1]} : vector<8x96xf32> to vector<8x32xf32>
    %84 = vector.extract_strided_slice %74 {offsets = [0, 32], sizes = [8, 32], strides = [1, 1]} : vector<8x96xf32> to vector<8x32xf32>
    %85 = arith.addf %83, %84 : vector<8x32xf32>
    %86 = arith.negf %85 : vector<8x32xf32>
    %87 = math.exp %86 : vector<8x32xf32>
    %cst_32 = arith.constant 1.000000e+00 : f32
    %88 = vector.broadcast %cst_32 : f32 to vector<8x32xf32>
    %89 = arith.addf %88, %87 : vector<8x32xf32>
    %90 = arith.divf %88, %89 : vector<8x32xf32>
    %91 = vector.extract_strided_slice %71 {offsets = [0, 64], sizes = [8, 32], strides = [1, 1]} : vector<8x96xf32> to vector<8x32xf32>
    %92 = vector.extract_strided_slice %74 {offsets = [0, 64], sizes = [8, 32], strides = [1, 1]} : vector<8x96xf32> to vector<8x32xf32>
    %93 = arith.mulf %82, %92 : vector<8x32xf32>
    %94 = arith.addf %91, %93 : vector<8x32xf32>
    %95 = math.tanh %94 : vector<8x32xf32>
    %cst_33 = arith.constant 1.000000e+00 : f32
    %96 = vector.broadcast %cst_33 : f32 to vector<8x32xf32>
    %97 = arith.subf %96, %90 : vector<8x32xf32>
    %98 = arith.mulf %97, %95 : vector<8x32xf32>
    %99 = arith.mulf %90, %43 : vector<8x32xf32>
    %100 = arith.addf %98, %99 : vector<8x32xf32>
    %101 = tpu.concatenate %100, %69 in 1 : vector<8x32xf32>, vector<8x32xf32> -> vector<8x64xf32>
    %cst_34 = arith.constant dense<0.000000e+00> : vector<8x128xf32>
    %102 = tpu.matmul %101, %2, %cst_34 {dimension_numbers = #tpu.dot_dimension_numbers<[1], [0], [0], [1], [0, 0, 1, 1], [], []>} : vector<8x64xf32>, vector<64x128xf32>, vector<8x128xf32> -> vector<8x128xf32>
    %103 = vector.broadcast %3 : vector<1x128xf32> to vector<8x128xf32>
    %104 = arith.addf %102, %103 : vector<8x128xf32>
    %105 = vector.extract_strided_slice %104 {offsets = [0, 0], sizes = [8, 32], strides = [1, 1]} : vector<8x128xf32> to vector<8x32xf32>
    %106 = arith.negf %105 : vector<8x32xf32>
    %107 = math.exp %106 : vector<8x32xf32>
    %cst_35 = arith.constant 1.000000e+00 : f32
    %108 = vector.broadcast %cst_35 : f32 to vector<8x32xf32>
    %109 = arith.addf %108, %107 : vector<8x32xf32>
    %110 = arith.divf %108, %109 : vector<8x32xf32>
    %111 = vector.extract_strided_slice %104 {offsets = [0, 32], sizes = [8, 32], strides = [1, 1]} : vector<8x128xf32> to vector<8x32xf32>
    %112 = arith.negf %111 : vector<8x32xf32>
    %113 = math.exp %112 : vector<8x32xf32>
    %cst_36 = arith.constant 1.000000e+00 : f32
    %114 = vector.broadcast %cst_36 : f32 to vector<8x32xf32>
    %115 = arith.addf %114, %113 : vector<8x32xf32>
    %116 = arith.divf %114, %115 : vector<8x32xf32>
    %117 = vector.extract_strided_slice %104 {offsets = [0, 64], sizes = [8, 32], strides = [1, 1]} : vector<8x128xf32> to vector<8x32xf32>
    %118 = vector.extract_strided_slice %104 {offsets = [0, 96], sizes = [8, 32], strides = [1, 1]} : vector<8x128xf32> to vector<8x32xf32>
    %119 = arith.mulf %110, %118 : vector<8x32xf32>
    %120 = arith.addf %117, %119 : vector<8x32xf32>
    %121 = math.tanh %120 : vector<8x32xf32>
    %cst_37 = arith.constant 1.000000e+00 : f32
    %122 = vector.broadcast %cst_37 : f32 to vector<8x32xf32>
    %123 = arith.subf %122, %116 : vector<8x32xf32>
    %124 = arith.mulf %123, %121 : vector<8x32xf32>
    %125 = arith.mulf %116, %69 : vector<8x32xf32>
    %126 = arith.addf %124, %125 : vector<8x32xf32>
    %c2 = arith.constant 2 : index
    %c0_38 = arith.constant 0 : index
    %c0_39 = arith.constant 0 : index
    %127 = vector.load %arg1[%c2, %c0_38, %c0_39] : memref<32x8x96xf32, #tpu.memory_space<vmem>>, vector<1x8x96xf32>
    %128 = vector.shape_cast %127 : vector<1x8x96xf32> to vector<8x96xf32>
    %cst_40 = arith.constant dense<0.000000e+00> : vector<8x96xf32>
    %129 = tpu.matmul %100, %0, %cst_40 {dimension_numbers = #tpu.dot_dimension_numbers<[1], [0], [0], [1], [0, 0, 1, 1], [], []>} : vector<8x32xf32>, vector<32x96xf32>, vector<8x96xf32> -> vector<8x96xf32>
    %130 = vector.broadcast %1 : vector<1x96xf32> to vector<8x96xf32>
    %131 = arith.addf %129, %130 : vector<8x96xf32>
    %132 = vector.extract_strided_slice %128 {offsets = [0, 0], sizes = [8, 32], strides = [1, 1]} : vector<8x96xf32> to vector<8x32xf32>
    %133 = vector.extract_strided_slice %131 {offsets = [0, 0], sizes = [8, 32], strides = [1, 1]} : vector<8x96xf32> to vector<8x32xf32>
    %134 = arith.addf %132, %133 : vector<8x32xf32>
    %135 = arith.negf %134 : vector<8x32xf32>
    %136 = math.exp %135 : vector<8x32xf32>
    %cst_41 = arith.constant 1.000000e+00 : f32
    %137 = vector.broadcast %cst_41 : f32 to vector<8x32xf32>
    %138 = arith.addf %137, %136 : vector<8x32xf32>
    %139 = arith.divf %137, %138 : vector<8x32xf32>
    %140 = vector.extract_strided_slice %128 {offsets = [0, 32], sizes = [8, 32], strides = [1, 1]} : vector<8x96xf32> to vector<8x32xf32>
    %141 = vector.extract_strided_slice %131 {offsets = [0, 32], sizes = [8, 32], strides = [1, 1]} : vector<8x96xf32> to vector<8x32xf32>
    %142 = arith.addf %140, %141 : vector<8x32xf32>
    %143 = arith.negf %142 : vector<8x32xf32>
    %144 = math.exp %143 : vector<8x32xf32>
    %cst_42 = arith.constant 1.000000e+00 : f32
    %145 = vector.broadcast %cst_42 : f32 to vector<8x32xf32>
    %146 = arith.addf %145, %144 : vector<8x32xf32>
    %147 = arith.divf %145, %146 : vector<8x32xf32>
    %148 = vector.extract_strided_slice %128 {offsets = [0, 64], sizes = [8, 32], strides = [1, 1]} : vector<8x96xf32> to vector<8x32xf32>
    %149 = vector.extract_strided_slice %131 {offsets = [0, 64], sizes = [8, 32], strides = [1, 1]} : vector<8x96xf32> to vector<8x32xf32>
    %150 = arith.mulf %139, %149 : vector<8x32xf32>
    %151 = arith.addf %148, %150 : vector<8x32xf32>
    %152 = math.tanh %151 : vector<8x32xf32>
    %cst_43 = arith.constant 1.000000e+00 : f32
    %153 = vector.broadcast %cst_43 : f32 to vector<8x32xf32>
    %154 = arith.subf %153, %147 : vector<8x32xf32>
    %155 = arith.mulf %154, %152 : vector<8x32xf32>
    %156 = arith.mulf %147, %100 : vector<8x32xf32>
    %157 = arith.addf %155, %156 : vector<8x32xf32>
    %158 = tpu.concatenate %157, %126 in 1 : vector<8x32xf32>, vector<8x32xf32> -> vector<8x64xf32>
    %cst_44 = arith.constant dense<0.000000e+00> : vector<8x128xf32>
    %159 = tpu.matmul %158, %2, %cst_44 {dimension_numbers = #tpu.dot_dimension_numbers<[1], [0], [0], [1], [0, 0, 1, 1], [], []>} : vector<8x64xf32>, vector<64x128xf32>, vector<8x128xf32> -> vector<8x128xf32>
    %160 = vector.broadcast %3 : vector<1x128xf32> to vector<8x128xf32>
    %161 = arith.addf %159, %160 : vector<8x128xf32>
    %162 = vector.extract_strided_slice %161 {offsets = [0, 0], sizes = [8, 32], strides = [1, 1]} : vector<8x128xf32> to vector<8x32xf32>
    %163 = arith.negf %162 : vector<8x32xf32>
    %164 = math.exp %163 : vector<8x32xf32>
    %cst_45 = arith.constant 1.000000e+00 : f32
    %165 = vector.broadcast %cst_45 : f32 to vector<8x32xf32>
    %166 = arith.addf %165, %164 : vector<8x32xf32>
    %167 = arith.divf %165, %166 : vector<8x32xf32>
    %168 = vector.extract_strided_slice %161 {offsets = [0, 32], sizes = [8, 32], strides = [1, 1]} : vector<8x128xf32> to vector<8x32xf32>
    %169 = arith.negf %168 : vector<8x32xf32>
    %170 = math.exp %169 : vector<8x32xf32>
    %cst_46 = arith.constant 1.000000e+00 : f32
    %171 = vector.broadcast %cst_46 : f32 to vector<8x32xf32>
    %172 = arith.addf %171, %170 : vector<8x32xf32>
    %173 = arith.divf %171, %172 : vector<8x32xf32>
    %174 = vector.extract_strided_slice %161 {offsets = [0, 64], sizes = [8, 32], strides = [1, 1]} : vector<8x128xf32> to vector<8x32xf32>
    %175 = vector.extract_strided_slice %161 {offsets = [0, 96], sizes = [8, 32], strides = [1, 1]} : vector<8x128xf32> to vector<8x32xf32>
    %176 = arith.mulf %167, %175 : vector<8x32xf32>
    %177 = arith.addf %174, %176 : vector<8x32xf32>
    %178 = math.tanh %177 : vector<8x32xf32>
    %cst_47 = arith.constant 1.000000e+00 : f32
    %179 = vector.broadcast %cst_47 : f32 to vector<8x32xf32>
    %180 = arith.subf %179, %173 : vector<8x32xf32>
    %181 = arith.mulf %180, %178 : vector<8x32xf32>
    %182 = arith.mulf %173, %126 : vector<8x32xf32>
    %183 = arith.addf %181, %182 : vector<8x32xf32>
    %c3 = arith.constant 3 : index
    %c0_48 = arith.constant 0 : index
    %c0_49 = arith.constant 0 : index
    %184 = vector.load %arg1[%c3, %c0_48, %c0_49] : memref<32x8x96xf32, #tpu.memory_space<vmem>>, vector<1x8x96xf32>
    %185 = vector.shape_cast %184 : vector<1x8x96xf32> to vector<8x96xf32>
    %cst_50 = arith.constant dense<0.000000e+00> : vector<8x96xf32>
    %186 = tpu.matmul %157, %0, %cst_50 {dimension_numbers = #tpu.dot_dimension_numbers<[1], [0], [0], [1], [0, 0, 1, 1], [], []>} : vector<8x32xf32>, vector<32x96xf32>, vector<8x96xf32> -> vector<8x96xf32>
    %187 = vector.broadcast %1 : vector<1x96xf32> to vector<8x96xf32>
    %188 = arith.addf %186, %187 : vector<8x96xf32>
    %189 = vector.extract_strided_slice %185 {offsets = [0, 0], sizes = [8, 32], strides = [1, 1]} : vector<8x96xf32> to vector<8x32xf32>
    %190 = vector.extract_strided_slice %188 {offsets = [0, 0], sizes = [8, 32], strides = [1, 1]} : vector<8x96xf32> to vector<8x32xf32>
    %191 = arith.addf %189, %190 : vector<8x32xf32>
    %192 = arith.negf %191 : vector<8x32xf32>
    %193 = math.exp %192 : vector<8x32xf32>
    %cst_51 = arith.constant 1.000000e+00 : f32
    %194 = vector.broadcast %cst_51 : f32 to vector<8x32xf32>
    %195 = arith.addf %194, %193 : vector<8x32xf32>
    %196 = arith.divf %194, %195 : vector<8x32xf32>
    %197 = vector.extract_strided_slice %185 {offsets = [0, 32], sizes = [8, 32], strides = [1, 1]} : vector<8x96xf32> to vector<8x32xf32>
    %198 = vector.extract_strided_slice %188 {offsets = [0, 32], sizes = [8, 32], strides = [1, 1]} : vector<8x96xf32> to vector<8x32xf32>
    %199 = arith.addf %197, %198 : vector<8x32xf32>
    %200 = arith.negf %199 : vector<8x32xf32>
    %201 = math.exp %200 : vector<8x32xf32>
    %cst_52 = arith.constant 1.000000e+00 : f32
    %202 = vector.broadcast %cst_52 : f32 to vector<8x32xf32>
    %203 = arith.addf %202, %201 : vector<8x32xf32>
    %204 = arith.divf %202, %203 : vector<8x32xf32>
    %205 = vector.extract_strided_slice %185 {offsets = [0, 64], sizes = [8, 32], strides = [1, 1]} : vector<8x96xf32> to vector<8x32xf32>
    %206 = vector.extract_strided_slice %188 {offsets = [0, 64], sizes = [8, 32], strides = [1, 1]} : vector<8x96xf32> to vector<8x32xf32>
    %207 = arith.mulf %196, %206 : vector<8x32xf32>
    %208 = arith.addf %205, %207 : vector<8x32xf32>
    %209 = math.tanh %208 : vector<8x32xf32>
    %cst_53 = arith.constant 1.000000e+00 : f32
    %210 = vector.broadcast %cst_53 : f32 to vector<8x32xf32>
    %211 = arith.subf %210, %204 : vector<8x32xf32>
    %212 = arith.mulf %211, %209 : vector<8x32xf32>
    %213 = arith.mulf %204, %157 : vector<8x32xf32>
    %214 = arith.addf %212, %213 : vector<8x32xf32>
    %215 = tpu.concatenate %214, %183 in 1 : vector<8x32xf32>, vector<8x32xf32> -> vector<8x64xf32>
    %cst_54 = arith.constant dense<0.000000e+00> : vector<8x128xf32>
    %216 = tpu.matmul %215, %2, %cst_54 {dimension_numbers = #tpu.dot_dimension_numbers<[1], [0], [0], [1], [0, 0, 1, 1], [], []>} : vector<8x64xf32>, vector<64x128xf32>, vector<8x128xf32> -> vector<8x128xf32>
    %217 = vector.broadcast %3 : vector<1x128xf32> to vector<8x128xf32>
    %218 = arith.addf %216, %217 : vector<8x128xf32>
    %219 = vector.extract_strided_slice %218 {offsets = [0, 0], sizes = [8, 32], strides = [1, 1]} : vector<8x128xf32> to vector<8x32xf32>
    %220 = arith.negf %219 : vector<8x32xf32>
    %221 = math.exp %220 : vector<8x32xf32>
    %cst_55 = arith.constant 1.000000e+00 : f32
    %222 = vector.broadcast %cst_55 : f32 to vector<8x32xf32>
    %223 = arith.addf %222, %221 : vector<8x32xf32>
    %224 = arith.divf %222, %223 : vector<8x32xf32>
    %225 = vector.extract_strided_slice %218 {offsets = [0, 32], sizes = [8, 32], strides = [1, 1]} : vector<8x128xf32> to vector<8x32xf32>
    %226 = arith.negf %225 : vector<8x32xf32>
    %227 = math.exp %226 : vector<8x32xf32>
    %cst_56 = arith.constant 1.000000e+00 : f32
    %228 = vector.broadcast %cst_56 : f32 to vector<8x32xf32>
    %229 = arith.addf %228, %227 : vector<8x32xf32>
    %230 = arith.divf %228, %229 : vector<8x32xf32>
    %231 = vector.extract_strided_slice %218 {offsets = [0, 64], sizes = [8, 32], strides = [1, 1]} : vector<8x128xf32> to vector<8x32xf32>
    %232 = vector.extract_strided_slice %218 {offsets = [0, 96], sizes = [8, 32], strides = [1, 1]} : vector<8x128xf32> to vector<8x32xf32>
    %233 = arith.mulf %224, %232 : vector<8x32xf32>
    %234 = arith.addf %231, %233 : vector<8x32xf32>
    %235 = math.tanh %234 : vector<8x32xf32>
    %cst_57 = arith.constant 1.000000e+00 : f32
    %236 = vector.broadcast %cst_57 : f32 to vector<8x32xf32>
    %237 = arith.subf %236, %230 : vector<8x32xf32>
    %238 = arith.mulf %237, %235 : vector<8x32xf32>
    %239 = arith.mulf %230, %183 : vector<8x32xf32>
    %240 = arith.addf %238, %239 : vector<8x32xf32>
    %c4 = arith.constant 4 : index
    %c0_58 = arith.constant 0 : index
    %c0_59 = arith.constant 0 : index
    %241 = vector.load %arg1[%c4, %c0_58, %c0_59] : memref<32x8x96xf32, #tpu.memory_space<vmem>>, vector<1x8x96xf32>
    %242 = vector.shape_cast %241 : vector<1x8x96xf32> to vector<8x96xf32>
    %cst_60 = arith.constant dense<0.000000e+00> : vector<8x96xf32>
    %243 = tpu.matmul %214, %0, %cst_60 {dimension_numbers = #tpu.dot_dimension_numbers<[1], [0], [0], [1], [0, 0, 1, 1], [], []>} : vector<8x32xf32>, vector<32x96xf32>, vector<8x96xf32> -> vector<8x96xf32>
    %244 = vector.broadcast %1 : vector<1x96xf32> to vector<8x96xf32>
    %245 = arith.addf %243, %244 : vector<8x96xf32>
    %246 = vector.extract_strided_slice %242 {offsets = [0, 0], sizes = [8, 32], strides = [1, 1]} : vector<8x96xf32> to vector<8x32xf32>
    %247 = vector.extract_strided_slice %245 {offsets = [0, 0], sizes = [8, 32], strides = [1, 1]} : vector<8x96xf32> to vector<8x32xf32>
    %248 = arith.addf %246, %247 : vector<8x32xf32>
    %249 = arith.negf %248 : vector<8x32xf32>
    %250 = math.exp %249 : vector<8x32xf32>
    %cst_61 = arith.constant 1.000000e+00 : f32
    %251 = vector.broadcast %cst_61 : f32 to vector<8x32xf32>
    %252 = arith.addf %251, %250 : vector<8x32xf32>
    %253 = arith.divf %251, %252 : vector<8x32xf32>
    %254 = vector.extract_strided_slice %242 {offsets = [0, 32], sizes = [8, 32], strides = [1, 1]} : vector<8x96xf32> to vector<8x32xf32>
    %255 = vector.extract_strided_slice %245 {offsets = [0, 32], sizes = [8, 32], strides = [1, 1]} : vector<8x96xf32> to vector<8x32xf32>
    %256 = arith.addf %254, %255 : vector<8x32xf32>
    %257 = arith.negf %256 : vector<8x32xf32>
    %258 = math.exp %257 : vector<8x32xf32>
    %cst_62 = arith.constant 1.000000e+00 : f32
    %259 = vector.broadcast %cst_62 : f32 to vector<8x32xf32>
    %260 = arith.addf %259, %258 : vector<8x32xf32>
    %261 = arith.divf %259, %260 : vector<8x32xf32>
    %262 = vector.extract_strided_slice %242 {offsets = [0, 64], sizes = [8, 32], strides = [1, 1]} : vector<8x96xf32> to vector<8x32xf32>
    %263 = vector.extract_strided_slice %245 {offsets = [0, 64], sizes = [8, 32], strides = [1, 1]} : vector<8x96xf32> to vector<8x32xf32>
    %264 = arith.mulf %253, %263 : vector<8x32xf32>
    %265 = arith.addf %262, %264 : vector<8x32xf32>
    %266 = math.tanh %265 : vector<8x32xf32>
    %cst_63 = arith.constant 1.000000e+00 : f32
    %267 = vector.broadcast %cst_63 : f32 to vector<8x32xf32>
    %268 = arith.subf %267, %261 : vector<8x32xf32>
    %269 = arith.mulf %268, %266 : vector<8x32xf32>
    %270 = arith.mulf %261, %214 : vector<8x32xf32>
    %271 = arith.addf %269, %270 : vector<8x32xf32>
    %272 = tpu.concatenate %271, %240 in 1 : vector<8x32xf32>, vector<8x32xf32> -> vector<8x64xf32>
    %cst_64 = arith.constant dense<0.000000e+00> : vector<8x128xf32>
    %273 = tpu.matmul %272, %2, %cst_64 {dimension_numbers = #tpu.dot_dimension_numbers<[1], [0], [0], [1], [0, 0, 1, 1], [], []>} : vector<8x64xf32>, vector<64x128xf32>, vector<8x128xf32> -> vector<8x128xf32>
    %274 = vector.broadcast %3 : vector<1x128xf32> to vector<8x128xf32>
    %275 = arith.addf %273, %274 : vector<8x128xf32>
    %276 = vector.extract_strided_slice %275 {offsets = [0, 0], sizes = [8, 32], strides = [1, 1]} : vector<8x128xf32> to vector<8x32xf32>
    %277 = arith.negf %276 : vector<8x32xf32>
    %278 = math.exp %277 : vector<8x32xf32>
    %cst_65 = arith.constant 1.000000e+00 : f32
    %279 = vector.broadcast %cst_65 : f32 to vector<8x32xf32>
    %280 = arith.addf %279, %278 : vector<8x32xf32>
    %281 = arith.divf %279, %280 : vector<8x32xf32>
    %282 = vector.extract_strided_slice %275 {offsets = [0, 32], sizes = [8, 32], strides = [1, 1]} : vector<8x128xf32> to vector<8x32xf32>
    %283 = arith.negf %282 : vector<8x32xf32>
    %284 = math.exp %283 : vector<8x32xf32>
    %cst_66 = arith.constant 1.000000e+00 : f32
    %285 = vector.broadcast %cst_66 : f32 to vector<8x32xf32>
    %286 = arith.addf %285, %284 : vector<8x32xf32>
    %287 = arith.divf %285, %286 : vector<8x32xf32>
    %288 = vector.extract_strided_slice %275 {offsets = [0, 64], sizes = [8, 32], strides = [1, 1]} : vector<8x128xf32> to vector<8x32xf32>
    %289 = vector.extract_strided_slice %275 {offsets = [0, 96], sizes = [8, 32], strides = [1, 1]} : vector<8x128xf32> to vector<8x32xf32>
    %290 = arith.mulf %281, %289 : vector<8x32xf32>
    %291 = arith.addf %288, %290 : vector<8x32xf32>
    %292 = math.tanh %291 : vector<8x32xf32>
    %cst_67 = arith.constant 1.000000e+00 : f32
    %293 = vector.broadcast %cst_67 : f32 to vector<8x32xf32>
    %294 = arith.subf %293, %287 : vector<8x32xf32>
    %295 = arith.mulf %294, %292 : vector<8x32xf32>
    %296 = arith.mulf %287, %240 : vector<8x32xf32>
    %297 = arith.addf %295, %296 : vector<8x32xf32>
    %c5 = arith.constant 5 : index
    %c0_68 = arith.constant 0 : index
    %c0_69 = arith.constant 0 : index
    %298 = vector.load %arg1[%c5, %c0_68, %c0_69] : memref<32x8x96xf32, #tpu.memory_space<vmem>>, vector<1x8x96xf32>
    %299 = vector.shape_cast %298 : vector<1x8x96xf32> to vector<8x96xf32>
    %cst_70 = arith.constant dense<0.000000e+00> : vector<8x96xf32>
    %300 = tpu.matmul %271, %0, %cst_70 {dimension_numbers = #tpu.dot_dimension_numbers<[1], [0], [0], [1], [0, 0, 1, 1], [], []>} : vector<8x32xf32>, vector<32x96xf32>, vector<8x96xf32> -> vector<8x96xf32>
    %301 = vector.broadcast %1 : vector<1x96xf32> to vector<8x96xf32>
    %302 = arith.addf %300, %301 : vector<8x96xf32>
    %303 = vector.extract_strided_slice %299 {offsets = [0, 0], sizes = [8, 32], strides = [1, 1]} : vector<8x96xf32> to vector<8x32xf32>
    %304 = vector.extract_strided_slice %302 {offsets = [0, 0], sizes = [8, 32], strides = [1, 1]} : vector<8x96xf32> to vector<8x32xf32>
    %305 = arith.addf %303, %304 : vector<8x32xf32>
    %306 = arith.negf %305 : vector<8x32xf32>
    %307 = math.exp %306 : vector<8x32xf32>
    %cst_71 = arith.constant 1.000000e+00 : f32
    %308 = vector.broadcast %cst_71 : f32 to vector<8x32xf32>
    %309 = arith.addf %308, %307 : vector<8x32xf32>
    %310 = arith.divf %308, %309 : vector<8x32xf32>
    %311 = vector.extract_strided_slice %299 {offsets = [0, 32], sizes = [8, 32], strides = [1, 1]} : vector<8x96xf32> to vector<8x32xf32>
    %312 = vector.extract_strided_slice %302 {offsets = [0, 32], sizes = [8, 32], strides = [1, 1]} : vector<8x96xf32> to vector<8x32xf32>
    %313 = arith.addf %311, %312 : vector<8x32xf32>
    %314 = arith.negf %313 : vector<8x32xf32>
    %315 = math.exp %314 : vector<8x32xf32>
    %cst_72 = arith.constant 1.000000e+00 : f32
    %316 = vector.broadcast %cst_72 : f32 to vector<8x32xf32>
    %317 = arith.addf %316, %315 : vector<8x32xf32>
    %318 = arith.divf %316, %317 : vector<8x32xf32>
    %319 = vector.extract_strided_slice %299 {offsets = [0, 64], sizes = [8, 32], strides = [1, 1]} : vector<8x96xf32> to vector<8x32xf32>
    %320 = vector.extract_strided_slice %302 {offsets = [0, 64], sizes = [8, 32], strides = [1, 1]} : vector<8x96xf32> to vector<8x32xf32>
    %321 = arith.mulf %310, %320 : vector<8x32xf32>
    %322 = arith.addf %319, %321 : vector<8x32xf32>
    %323 = math.tanh %322 : vector<8x32xf32>
    %cst_73 = arith.constant 1.000000e+00 : f32
    %324 = vector.broadcast %cst_73 : f32 to vector<8x32xf32>
    %325 = arith.subf %324, %318 : vector<8x32xf32>
    %326 = arith.mulf %325, %323 : vector<8x32xf32>
    %327 = arith.mulf %318, %271 : vector<8x32xf32>
    %328 = arith.addf %326, %327 : vector<8x32xf32>
    %329 = tpu.concatenate %328, %297 in 1 : vector<8x32xf32>, vector<8x32xf32> -> vector<8x64xf32>
    %cst_74 = arith.constant dense<0.000000e+00> : vector<8x128xf32>
    %330 = tpu.matmul %329, %2, %cst_74 {dimension_numbers = #tpu.dot_dimension_numbers<[1], [0], [0], [1], [0, 0, 1, 1], [], []>} : vector<8x64xf32>, vector<64x128xf32>, vector<8x128xf32> -> vector<8x128xf32>
    %331 = vector.broadcast %3 : vector<1x128xf32> to vector<8x128xf32>
    %332 = arith.addf %330, %331 : vector<8x128xf32>
    %333 = vector.extract_strided_slice %332 {offsets = [0, 0], sizes = [8, 32], strides = [1, 1]} : vector<8x128xf32> to vector<8x32xf32>
    %334 = arith.negf %333 : vector<8x32xf32>
    %335 = math.exp %334 : vector<8x32xf32>
    %cst_75 = arith.constant 1.000000e+00 : f32
    %336 = vector.broadcast %cst_75 : f32 to vector<8x32xf32>
    %337 = arith.addf %336, %335 : vector<8x32xf32>
    %338 = arith.divf %336, %337 : vector<8x32xf32>
    %339 = vector.extract_strided_slice %332 {offsets = [0, 32], sizes = [8, 32], strides = [1, 1]} : vector<8x128xf32> to vector<8x32xf32>
    %340 = arith.negf %339 : vector<8x32xf32>
    %341 = math.exp %340 : vector<8x32xf32>
    %cst_76 = arith.constant 1.000000e+00 : f32
    %342 = vector.broadcast %cst_76 : f32 to vector<8x32xf32>
    %343 = arith.addf %342, %341 : vector<8x32xf32>
    %344 = arith.divf %342, %343 : vector<8x32xf32>
    %345 = vector.extract_strided_slice %332 {offsets = [0, 64], sizes = [8, 32], strides = [1, 1]} : vector<8x128xf32> to vector<8x32xf32>
    %346 = vector.extract_strided_slice %332 {offsets = [0, 96], sizes = [8, 32], strides = [1, 1]} : vector<8x128xf32> to vector<8x32xf32>
    %347 = arith.mulf %338, %346 : vector<8x32xf32>
    %348 = arith.addf %345, %347 : vector<8x32xf32>
    %349 = math.tanh %348 : vector<8x32xf32>
    %cst_77 = arith.constant 1.000000e+00 : f32
    %350 = vector.broadcast %cst_77 : f32 to vector<8x32xf32>
    %351 = arith.subf %350, %344 : vector<8x32xf32>
    %352 = arith.mulf %351, %349 : vector<8x32xf32>
    %353 = arith.mulf %344, %297 : vector<8x32xf32>
    %354 = arith.addf %352, %353 : vector<8x32xf32>
    %c6 = arith.constant 6 : index
    %c0_78 = arith.constant 0 : index
    %c0_79 = arith.constant 0 : index
    %355 = vector.load %arg1[%c6, %c0_78, %c0_79] : memref<32x8x96xf32, #tpu.memory_space<vmem>>, vector<1x8x96xf32>
    %356 = vector.shape_cast %355 : vector<1x8x96xf32> to vector<8x96xf32>
    %cst_80 = arith.constant dense<0.000000e+00> : vector<8x96xf32>
    %357 = tpu.matmul %328, %0, %cst_80 {dimension_numbers = #tpu.dot_dimension_numbers<[1], [0], [0], [1], [0, 0, 1, 1], [], []>} : vector<8x32xf32>, vector<32x96xf32>, vector<8x96xf32> -> vector<8x96xf32>
    %358 = vector.broadcast %1 : vector<1x96xf32> to vector<8x96xf32>
    %359 = arith.addf %357, %358 : vector<8x96xf32>
    %360 = vector.extract_strided_slice %356 {offsets = [0, 0], sizes = [8, 32], strides = [1, 1]} : vector<8x96xf32> to vector<8x32xf32>
    %361 = vector.extract_strided_slice %359 {offsets = [0, 0], sizes = [8, 32], strides = [1, 1]} : vector<8x96xf32> to vector<8x32xf32>
    %362 = arith.addf %360, %361 : vector<8x32xf32>
    %363 = arith.negf %362 : vector<8x32xf32>
    %364 = math.exp %363 : vector<8x32xf32>
    %cst_81 = arith.constant 1.000000e+00 : f32
    %365 = vector.broadcast %cst_81 : f32 to vector<8x32xf32>
    %366 = arith.addf %365, %364 : vector<8x32xf32>
    %367 = arith.divf %365, %366 : vector<8x32xf32>
    %368 = vector.extract_strided_slice %356 {offsets = [0, 32], sizes = [8, 32], strides = [1, 1]} : vector<8x96xf32> to vector<8x32xf32>
    %369 = vector.extract_strided_slice %359 {offsets = [0, 32], sizes = [8, 32], strides = [1, 1]} : vector<8x96xf32> to vector<8x32xf32>
    %370 = arith.addf %368, %369 : vector<8x32xf32>
    %371 = arith.negf %370 : vector<8x32xf32>
    %372 = math.exp %371 : vector<8x32xf32>
    %cst_82 = arith.constant 1.000000e+00 : f32
    %373 = vector.broadcast %cst_82 : f32 to vector<8x32xf32>
    %374 = arith.addf %373, %372 : vector<8x32xf32>
    %375 = arith.divf %373, %374 : vector<8x32xf32>
    %376 = vector.extract_strided_slice %356 {offsets = [0, 64], sizes = [8, 32], strides = [1, 1]} : vector<8x96xf32> to vector<8x32xf32>
    %377 = vector.extract_strided_slice %359 {offsets = [0, 64], sizes = [8, 32], strides = [1, 1]} : vector<8x96xf32> to vector<8x32xf32>
    %378 = arith.mulf %367, %377 : vector<8x32xf32>
    %379 = arith.addf %376, %378 : vector<8x32xf32>
    %380 = math.tanh %379 : vector<8x32xf32>
    %cst_83 = arith.constant 1.000000e+00 : f32
    %381 = vector.broadcast %cst_83 : f32 to vector<8x32xf32>
    %382 = arith.subf %381, %375 : vector<8x32xf32>
    %383 = arith.mulf %382, %380 : vector<8x32xf32>
    %384 = arith.mulf %375, %328 : vector<8x32xf32>
    %385 = arith.addf %383, %384 : vector<8x32xf32>
    %386 = tpu.concatenate %385, %354 in 1 : vector<8x32xf32>, vector<8x32xf32> -> vector<8x64xf32>
    %cst_84 = arith.constant dense<0.000000e+00> : vector<8x128xf32>
    %387 = tpu.matmul %386, %2, %cst_84 {dimension_numbers = #tpu.dot_dimension_numbers<[1], [0], [0], [1], [0, 0, 1, 1], [], []>} : vector<8x64xf32>, vector<64x128xf32>, vector<8x128xf32> -> vector<8x128xf32>
    %388 = vector.broadcast %3 : vector<1x128xf32> to vector<8x128xf32>
    %389 = arith.addf %387, %388 : vector<8x128xf32>
    %390 = vector.extract_strided_slice %389 {offsets = [0, 0], sizes = [8, 32], strides = [1, 1]} : vector<8x128xf32> to vector<8x32xf32>
    %391 = arith.negf %390 : vector<8x32xf32>
    %392 = math.exp %391 : vector<8x32xf32>
    %cst_85 = arith.constant 1.000000e+00 : f32
    %393 = vector.broadcast %cst_85 : f32 to vector<8x32xf32>
    %394 = arith.addf %393, %392 : vector<8x32xf32>
    %395 = arith.divf %393, %394 : vector<8x32xf32>
    %396 = vector.extract_strided_slice %389 {offsets = [0, 32], sizes = [8, 32], strides = [1, 1]} : vector<8x128xf32> to vector<8x32xf32>
    %397 = arith.negf %396 : vector<8x32xf32>
    %398 = math.exp %397 : vector<8x32xf32>
    %cst_86 = arith.constant 1.000000e+00 : f32
    %399 = vector.broadcast %cst_86 : f32 to vector<8x32xf32>
    %400 = arith.addf %399, %398 : vector<8x32xf32>
    %401 = arith.divf %399, %400 : vector<8x32xf32>
    %402 = vector.extract_strided_slice %389 {offsets = [0, 64], sizes = [8, 32], strides = [1, 1]} : vector<8x128xf32> to vector<8x32xf32>
    %403 = vector.extract_strided_slice %389 {offsets = [0, 96], sizes = [8, 32], strides = [1, 1]} : vector<8x128xf32> to vector<8x32xf32>
    %404 = arith.mulf %395, %403 : vector<8x32xf32>
    %405 = arith.addf %402, %404 : vector<8x32xf32>
    %406 = math.tanh %405 : vector<8x32xf32>
    %cst_87 = arith.constant 1.000000e+00 : f32
    %407 = vector.broadcast %cst_87 : f32 to vector<8x32xf32>
    %408 = arith.subf %407, %401 : vector<8x32xf32>
    %409 = arith.mulf %408, %406 : vector<8x32xf32>
    %410 = arith.mulf %401, %354 : vector<8x32xf32>
    %411 = arith.addf %409, %410 : vector<8x32xf32>
    %c7 = arith.constant 7 : index
    %c0_88 = arith.constant 0 : index
    %c0_89 = arith.constant 0 : index
    %412 = vector.load %arg1[%c7, %c0_88, %c0_89] : memref<32x8x96xf32, #tpu.memory_space<vmem>>, vector<1x8x96xf32>
    %413 = vector.shape_cast %412 : vector<1x8x96xf32> to vector<8x96xf32>
    %cst_90 = arith.constant dense<0.000000e+00> : vector<8x96xf32>
    %414 = tpu.matmul %385, %0, %cst_90 {dimension_numbers = #tpu.dot_dimension_numbers<[1], [0], [0], [1], [0, 0, 1, 1], [], []>} : vector<8x32xf32>, vector<32x96xf32>, vector<8x96xf32> -> vector<8x96xf32>
    %415 = vector.broadcast %1 : vector<1x96xf32> to vector<8x96xf32>
    %416 = arith.addf %414, %415 : vector<8x96xf32>
    %417 = vector.extract_strided_slice %413 {offsets = [0, 0], sizes = [8, 32], strides = [1, 1]} : vector<8x96xf32> to vector<8x32xf32>
    %418 = vector.extract_strided_slice %416 {offsets = [0, 0], sizes = [8, 32], strides = [1, 1]} : vector<8x96xf32> to vector<8x32xf32>
    %419 = arith.addf %417, %418 : vector<8x32xf32>
    %420 = arith.negf %419 : vector<8x32xf32>
    %421 = math.exp %420 : vector<8x32xf32>
    %cst_91 = arith.constant 1.000000e+00 : f32
    %422 = vector.broadcast %cst_91 : f32 to vector<8x32xf32>
    %423 = arith.addf %422, %421 : vector<8x32xf32>
    %424 = arith.divf %422, %423 : vector<8x32xf32>
    %425 = vector.extract_strided_slice %413 {offsets = [0, 32], sizes = [8, 32], strides = [1, 1]} : vector<8x96xf32> to vector<8x32xf32>
    %426 = vector.extract_strided_slice %416 {offsets = [0, 32], sizes = [8, 32], strides = [1, 1]} : vector<8x96xf32> to vector<8x32xf32>
    %427 = arith.addf %425, %426 : vector<8x32xf32>
    %428 = arith.negf %427 : vector<8x32xf32>
    %429 = math.exp %428 : vector<8x32xf32>
    %cst_92 = arith.constant 1.000000e+00 : f32
    %430 = vector.broadcast %cst_92 : f32 to vector<8x32xf32>
    %431 = arith.addf %430, %429 : vector<8x32xf32>
    %432 = arith.divf %430, %431 : vector<8x32xf32>
    %433 = vector.extract_strided_slice %413 {offsets = [0, 64], sizes = [8, 32], strides = [1, 1]} : vector<8x96xf32> to vector<8x32xf32>
    %434 = vector.extract_strided_slice %416 {offsets = [0, 64], sizes = [8, 32], strides = [1, 1]} : vector<8x96xf32> to vector<8x32xf32>
    %435 = arith.mulf %424, %434 : vector<8x32xf32>
    %436 = arith.addf %433, %435 : vector<8x32xf32>
    %437 = math.tanh %436 : vector<8x32xf32>
    %cst_93 = arith.constant 1.000000e+00 : f32
    %438 = vector.broadcast %cst_93 : f32 to vector<8x32xf32>
    %439 = arith.subf %438, %432 : vector<8x32xf32>
    %440 = arith.mulf %439, %437 : vector<8x32xf32>
    %441 = arith.mulf %432, %385 : vector<8x32xf32>
    %442 = arith.addf %440, %441 : vector<8x32xf32>
    %443 = tpu.concatenate %442, %411 in 1 : vector<8x32xf32>, vector<8x32xf32> -> vector<8x64xf32>
    %cst_94 = arith.constant dense<0.000000e+00> : vector<8x128xf32>
    %444 = tpu.matmul %443, %2, %cst_94 {dimension_numbers = #tpu.dot_dimension_numbers<[1], [0], [0], [1], [0, 0, 1, 1], [], []>} : vector<8x64xf32>, vector<64x128xf32>, vector<8x128xf32> -> vector<8x128xf32>
    %445 = vector.broadcast %3 : vector<1x128xf32> to vector<8x128xf32>
    %446 = arith.addf %444, %445 : vector<8x128xf32>
    %447 = vector.extract_strided_slice %446 {offsets = [0, 0], sizes = [8, 32], strides = [1, 1]} : vector<8x128xf32> to vector<8x32xf32>
    %448 = arith.negf %447 : vector<8x32xf32>
    %449 = math.exp %448 : vector<8x32xf32>
    %cst_95 = arith.constant 1.000000e+00 : f32
    %450 = vector.broadcast %cst_95 : f32 to vector<8x32xf32>
    %451 = arith.addf %450, %449 : vector<8x32xf32>
    %452 = arith.divf %450, %451 : vector<8x32xf32>
    %453 = vector.extract_strided_slice %446 {offsets = [0, 32], sizes = [8, 32], strides = [1, 1]} : vector<8x128xf32> to vector<8x32xf32>
    %454 = arith.negf %453 : vector<8x32xf32>
    %455 = math.exp %454 : vector<8x32xf32>
    %cst_96 = arith.constant 1.000000e+00 : f32
    %456 = vector.broadcast %cst_96 : f32 to vector<8x32xf32>
    %457 = arith.addf %456, %455 : vector<8x32xf32>
    %458 = arith.divf %456, %457 : vector<8x32xf32>
    %459 = vector.extract_strided_slice %446 {offsets = [0, 64], sizes = [8, 32], strides = [1, 1]} : vector<8x128xf32> to vector<8x32xf32>
    %460 = vector.extract_strided_slice %446 {offsets = [0, 96], sizes = [8, 32], strides = [1, 1]} : vector<8x128xf32> to vector<8x32xf32>
    %461 = arith.mulf %452, %460 : vector<8x32xf32>
    %462 = arith.addf %459, %461 : vector<8x32xf32>
    %463 = math.tanh %462 : vector<8x32xf32>
    %cst_97 = arith.constant 1.000000e+00 : f32
    %464 = vector.broadcast %cst_97 : f32 to vector<8x32xf32>
    %465 = arith.subf %464, %458 : vector<8x32xf32>
    %466 = arith.mulf %465, %463 : vector<8x32xf32>
    %467 = arith.mulf %458, %411 : vector<8x32xf32>
    %468 = arith.addf %466, %467 : vector<8x32xf32>
    %c8 = arith.constant 8 : index
    %c0_98 = arith.constant 0 : index
    %c0_99 = arith.constant 0 : index
    %469 = vector.load %arg1[%c8, %c0_98, %c0_99] : memref<32x8x96xf32, #tpu.memory_space<vmem>>, vector<1x8x96xf32>
    %470 = vector.shape_cast %469 : vector<1x8x96xf32> to vector<8x96xf32>
    %cst_100 = arith.constant dense<0.000000e+00> : vector<8x96xf32>
    %471 = tpu.matmul %442, %0, %cst_100 {dimension_numbers = #tpu.dot_dimension_numbers<[1], [0], [0], [1], [0, 0, 1, 1], [], []>} : vector<8x32xf32>, vector<32x96xf32>, vector<8x96xf32> -> vector<8x96xf32>
    %472 = vector.broadcast %1 : vector<1x96xf32> to vector<8x96xf32>
    %473 = arith.addf %471, %472 : vector<8x96xf32>
    %474 = vector.extract_strided_slice %470 {offsets = [0, 0], sizes = [8, 32], strides = [1, 1]} : vector<8x96xf32> to vector<8x32xf32>
    %475 = vector.extract_strided_slice %473 {offsets = [0, 0], sizes = [8, 32], strides = [1, 1]} : vector<8x96xf32> to vector<8x32xf32>
    %476 = arith.addf %474, %475 : vector<8x32xf32>
    %477 = arith.negf %476 : vector<8x32xf32>
    %478 = math.exp %477 : vector<8x32xf32>
    %cst_101 = arith.constant 1.000000e+00 : f32
    %479 = vector.broadcast %cst_101 : f32 to vector<8x32xf32>
    %480 = arith.addf %479, %478 : vector<8x32xf32>
    %481 = arith.divf %479, %480 : vector<8x32xf32>
    %482 = vector.extract_strided_slice %470 {offsets = [0, 32], sizes = [8, 32], strides = [1, 1]} : vector<8x96xf32> to vector<8x32xf32>
    %483 = vector.extract_strided_slice %473 {offsets = [0, 32], sizes = [8, 32], strides = [1, 1]} : vector<8x96xf32> to vector<8x32xf32>
    %484 = arith.addf %482, %483 : vector<8x32xf32>
    %485 = arith.negf %484 : vector<8x32xf32>
    %486 = math.exp %485 : vector<8x32xf32>
    %cst_102 = arith.constant 1.000000e+00 : f32
    %487 = vector.broadcast %cst_102 : f32 to vector<8x32xf32>
    %488 = arith.addf %487, %486 : vector<8x32xf32>
    %489 = arith.divf %487, %488 : vector<8x32xf32>
    %490 = vector.extract_strided_slice %470 {offsets = [0, 64], sizes = [8, 32], strides = [1, 1]} : vector<8x96xf32> to vector<8x32xf32>
    %491 = vector.extract_strided_slice %473 {offsets = [0, 64], sizes = [8, 32], strides = [1, 1]} : vector<8x96xf32> to vector<8x32xf32>
    %492 = arith.mulf %481, %491 : vector<8x32xf32>
    %493 = arith.addf %490, %492 : vector<8x32xf32>
    %494 = math.tanh %493 : vector<8x32xf32>
    %cst_103 = arith.constant 1.000000e+00 : f32
    %495 = vector.broadcast %cst_103 : f32 to vector<8x32xf32>
    %496 = arith.subf %495, %489 : vector<8x32xf32>
    %497 = arith.mulf %496, %494 : vector<8x32xf32>
    %498 = arith.mulf %489, %442 : vector<8x32xf32>
    %499 = arith.addf %497, %498 : vector<8x32xf32>
    %500 = tpu.concatenate %499, %468 in 1 : vector<8x32xf32>, vector<8x32xf32> -> vector<8x64xf32>
    %cst_104 = arith.constant dense<0.000000e+00> : vector<8x128xf32>
    %501 = tpu.matmul %500, %2, %cst_104 {dimension_numbers = #tpu.dot_dimension_numbers<[1], [0], [0], [1], [0, 0, 1, 1], [], []>} : vector<8x64xf32>, vector<64x128xf32>, vector<8x128xf32> -> vector<8x128xf32>
    %502 = vector.broadcast %3 : vector<1x128xf32> to vector<8x128xf32>
    %503 = arith.addf %501, %502 : vector<8x128xf32>
    %504 = vector.extract_strided_slice %503 {offsets = [0, 0], sizes = [8, 32], strides = [1, 1]} : vector<8x128xf32> to vector<8x32xf32>
    %505 = arith.negf %504 : vector<8x32xf32>
    %506 = math.exp %505 : vector<8x32xf32>
    %cst_105 = arith.constant 1.000000e+00 : f32
    %507 = vector.broadcast %cst_105 : f32 to vector<8x32xf32>
    %508 = arith.addf %507, %506 : vector<8x32xf32>
    %509 = arith.divf %507, %508 : vector<8x32xf32>
    %510 = vector.extract_strided_slice %503 {offsets = [0, 32], sizes = [8, 32], strides = [1, 1]} : vector<8x128xf32> to vector<8x32xf32>
    %511 = arith.negf %510 : vector<8x32xf32>
    %512 = math.exp %511 : vector<8x32xf32>
    %cst_106 = arith.constant 1.000000e+00 : f32
    %513 = vector.broadcast %cst_106 : f32 to vector<8x32xf32>
    %514 = arith.addf %513, %512 : vector<8x32xf32>
    %515 = arith.divf %513, %514 : vector<8x32xf32>
    %516 = vector.extract_strided_slice %503 {offsets = [0, 64], sizes = [8, 32], strides = [1, 1]} : vector<8x128xf32> to vector<8x32xf32>
    %517 = vector.extract_strided_slice %503 {offsets = [0, 96], sizes = [8, 32], strides = [1, 1]} : vector<8x128xf32> to vector<8x32xf32>
    %518 = arith.mulf %509, %517 : vector<8x32xf32>
    %519 = arith.addf %516, %518 : vector<8x32xf32>
    %520 = math.tanh %519 : vector<8x32xf32>
    %cst_107 = arith.constant 1.000000e+00 : f32
    %521 = vector.broadcast %cst_107 : f32 to vector<8x32xf32>
    %522 = arith.subf %521, %515 : vector<8x32xf32>
    %523 = arith.mulf %522, %520 : vector<8x32xf32>
    %524 = arith.mulf %515, %468 : vector<8x32xf32>
    %525 = arith.addf %523, %524 : vector<8x32xf32>
    %c9 = arith.constant 9 : index
    %c0_108 = arith.constant 0 : index
    %c0_109 = arith.constant 0 : index
    %526 = vector.load %arg1[%c9, %c0_108, %c0_109] : memref<32x8x96xf32, #tpu.memory_space<vmem>>, vector<1x8x96xf32>
    %527 = vector.shape_cast %526 : vector<1x8x96xf32> to vector<8x96xf32>
    %cst_110 = arith.constant dense<0.000000e+00> : vector<8x96xf32>
    %528 = tpu.matmul %499, %0, %cst_110 {dimension_numbers = #tpu.dot_dimension_numbers<[1], [0], [0], [1], [0, 0, 1, 1], [], []>} : vector<8x32xf32>, vector<32x96xf32>, vector<8x96xf32> -> vector<8x96xf32>
    %529 = vector.broadcast %1 : vector<1x96xf32> to vector<8x96xf32>
    %530 = arith.addf %528, %529 : vector<8x96xf32>
    %531 = vector.extract_strided_slice %527 {offsets = [0, 0], sizes = [8, 32], strides = [1, 1]} : vector<8x96xf32> to vector<8x32xf32>
    %532 = vector.extract_strided_slice %530 {offsets = [0, 0], sizes = [8, 32], strides = [1, 1]} : vector<8x96xf32> to vector<8x32xf32>
    %533 = arith.addf %531, %532 : vector<8x32xf32>
    %534 = arith.negf %533 : vector<8x32xf32>
    %535 = math.exp %534 : vector<8x32xf32>
    %cst_111 = arith.constant 1.000000e+00 : f32
    %536 = vector.broadcast %cst_111 : f32 to vector<8x32xf32>
    %537 = arith.addf %536, %535 : vector<8x32xf32>
    %538 = arith.divf %536, %537 : vector<8x32xf32>
    %539 = vector.extract_strided_slice %527 {offsets = [0, 32], sizes = [8, 32], strides = [1, 1]} : vector<8x96xf32> to vector<8x32xf32>
    %540 = vector.extract_strided_slice %530 {offsets = [0, 32], sizes = [8, 32], strides = [1, 1]} : vector<8x96xf32> to vector<8x32xf32>
    %541 = arith.addf %539, %540 : vector<8x32xf32>
    %542 = arith.negf %541 : vector<8x32xf32>
    %543 = math.exp %542 : vector<8x32xf32>
    %cst_112 = arith.constant 1.000000e+00 : f32
    %544 = vector.broadcast %cst_112 : f32 to vector<8x32xf32>
    %545 = arith.addf %544, %543 : vector<8x32xf32>
    %546 = arith.divf %544, %545 : vector<8x32xf32>
    %547 = vector.extract_strided_slice %527 {offsets = [0, 64], sizes = [8, 32], strides = [1, 1]} : vector<8x96xf32> to vector<8x32xf32>
    %548 = vector.extract_strided_slice %530 {offsets = [0, 64], sizes = [8, 32], strides = [1, 1]} : vector<8x96xf32> to vector<8x32xf32>
    %549 = arith.mulf %538, %548 : vector<8x32xf32>
    %550 = arith.addf %547, %549 : vector<8x32xf32>
    %551 = math.tanh %550 : vector<8x32xf32>
    %cst_113 = arith.constant 1.000000e+00 : f32
    %552 = vector.broadcast %cst_113 : f32 to vector<8x32xf32>
    %553 = arith.subf %552, %546 : vector<8x32xf32>
    %554 = arith.mulf %553, %551 : vector<8x32xf32>
    %555 = arith.mulf %546, %499 : vector<8x32xf32>
    %556 = arith.addf %554, %555 : vector<8x32xf32>
    %557 = tpu.concatenate %556, %525 in 1 : vector<8x32xf32>, vector<8x32xf32> -> vector<8x64xf32>
    %cst_114 = arith.constant dense<0.000000e+00> : vector<8x128xf32>
    %558 = tpu.matmul %557, %2, %cst_114 {dimension_numbers = #tpu.dot_dimension_numbers<[1], [0], [0], [1], [0, 0, 1, 1], [], []>} : vector<8x64xf32>, vector<64x128xf32>, vector<8x128xf32> -> vector<8x128xf32>
    %559 = vector.broadcast %3 : vector<1x128xf32> to vector<8x128xf32>
    %560 = arith.addf %558, %559 : vector<8x128xf32>
    %561 = vector.extract_strided_slice %560 {offsets = [0, 0], sizes = [8, 32], strides = [1, 1]} : vector<8x128xf32> to vector<8x32xf32>
    %562 = arith.negf %561 : vector<8x32xf32>
    %563 = math.exp %562 : vector<8x32xf32>
    %cst_115 = arith.constant 1.000000e+00 : f32
    %564 = vector.broadcast %cst_115 : f32 to vector<8x32xf32>
    %565 = arith.addf %564, %563 : vector<8x32xf32>
    %566 = arith.divf %564, %565 : vector<8x32xf32>
    %567 = vector.extract_strided_slice %560 {offsets = [0, 32], sizes = [8, 32], strides = [1, 1]} : vector<8x128xf32> to vector<8x32xf32>
    %568 = arith.negf %567 : vector<8x32xf32>
    %569 = math.exp %568 : vector<8x32xf32>
    %cst_116 = arith.constant 1.000000e+00 : f32
    %570 = vector.broadcast %cst_116 : f32 to vector<8x32xf32>
    %571 = arith.addf %570, %569 : vector<8x32xf32>
    %572 = arith.divf %570, %571 : vector<8x32xf32>
    %573 = vector.extract_strided_slice %560 {offsets = [0, 64], sizes = [8, 32], strides = [1, 1]} : vector<8x128xf32> to vector<8x32xf32>
    %574 = vector.extract_strided_slice %560 {offsets = [0, 96], sizes = [8, 32], strides = [1, 1]} : vector<8x128xf32> to vector<8x32xf32>
    %575 = arith.mulf %566, %574 : vector<8x32xf32>
    %576 = arith.addf %573, %575 : vector<8x32xf32>
    %577 = math.tanh %576 : vector<8x32xf32>
    %cst_117 = arith.constant 1.000000e+00 : f32
    %578 = vector.broadcast %cst_117 : f32 to vector<8x32xf32>
    %579 = arith.subf %578, %572 : vector<8x32xf32>
    %580 = arith.mulf %579, %577 : vector<8x32xf32>
    %581 = arith.mulf %572, %525 : vector<8x32xf32>
    %582 = arith.addf %580, %581 : vector<8x32xf32>
    %c10 = arith.constant 10 : index
    %c0_118 = arith.constant 0 : index
    %c0_119 = arith.constant 0 : index
    %583 = vector.load %arg1[%c10, %c0_118, %c0_119] : memref<32x8x96xf32, #tpu.memory_space<vmem>>, vector<1x8x96xf32>
    %584 = vector.shape_cast %583 : vector<1x8x96xf32> to vector<8x96xf32>
    %cst_120 = arith.constant dense<0.000000e+00> : vector<8x96xf32>
    %585 = tpu.matmul %556, %0, %cst_120 {dimension_numbers = #tpu.dot_dimension_numbers<[1], [0], [0], [1], [0, 0, 1, 1], [], []>} : vector<8x32xf32>, vector<32x96xf32>, vector<8x96xf32> -> vector<8x96xf32>
    %586 = vector.broadcast %1 : vector<1x96xf32> to vector<8x96xf32>
    %587 = arith.addf %585, %586 : vector<8x96xf32>
    %588 = vector.extract_strided_slice %584 {offsets = [0, 0], sizes = [8, 32], strides = [1, 1]} : vector<8x96xf32> to vector<8x32xf32>
    %589 = vector.extract_strided_slice %587 {offsets = [0, 0], sizes = [8, 32], strides = [1, 1]} : vector<8x96xf32> to vector<8x32xf32>
    %590 = arith.addf %588, %589 : vector<8x32xf32>
    %591 = arith.negf %590 : vector<8x32xf32>
    %592 = math.exp %591 : vector<8x32xf32>
    %cst_121 = arith.constant 1.000000e+00 : f32
    %593 = vector.broadcast %cst_121 : f32 to vector<8x32xf32>
    %594 = arith.addf %593, %592 : vector<8x32xf32>
    %595 = arith.divf %593, %594 : vector<8x32xf32>
    %596 = vector.extract_strided_slice %584 {offsets = [0, 32], sizes = [8, 32], strides = [1, 1]} : vector<8x96xf32> to vector<8x32xf32>
    %597 = vector.extract_strided_slice %587 {offsets = [0, 32], sizes = [8, 32], strides = [1, 1]} : vector<8x96xf32> to vector<8x32xf32>
    %598 = arith.addf %596, %597 : vector<8x32xf32>
    %599 = arith.negf %598 : vector<8x32xf32>
    %600 = math.exp %599 : vector<8x32xf32>
    %cst_122 = arith.constant 1.000000e+00 : f32
    %601 = vector.broadcast %cst_122 : f32 to vector<8x32xf32>
    %602 = arith.addf %601, %600 : vector<8x32xf32>
    %603 = arith.divf %601, %602 : vector<8x32xf32>
    %604 = vector.extract_strided_slice %584 {offsets = [0, 64], sizes = [8, 32], strides = [1, 1]} : vector<8x96xf32> to vector<8x32xf32>
    %605 = vector.extract_strided_slice %587 {offsets = [0, 64], sizes = [8, 32], strides = [1, 1]} : vector<8x96xf32> to vector<8x32xf32>
    %606 = arith.mulf %595, %605 : vector<8x32xf32>
    %607 = arith.addf %604, %606 : vector<8x32xf32>
    %608 = math.tanh %607 : vector<8x32xf32>
    %cst_123 = arith.constant 1.000000e+00 : f32
    %609 = vector.broadcast %cst_123 : f32 to vector<8x32xf32>
    %610 = arith.subf %609, %603 : vector<8x32xf32>
    %611 = arith.mulf %610, %608 : vector<8x32xf32>
    %612 = arith.mulf %603, %556 : vector<8x32xf32>
    %613 = arith.addf %611, %612 : vector<8x32xf32>
    %614 = tpu.concatenate %613, %582 in 1 : vector<8x32xf32>, vector<8x32xf32> -> vector<8x64xf32>
    %cst_124 = arith.constant dense<0.000000e+00> : vector<8x128xf32>
    %615 = tpu.matmul %614, %2, %cst_124 {dimension_numbers = #tpu.dot_dimension_numbers<[1], [0], [0], [1], [0, 0, 1, 1], [], []>} : vector<8x64xf32>, vector<64x128xf32>, vector<8x128xf32> -> vector<8x128xf32>
    %616 = vector.broadcast %3 : vector<1x128xf32> to vector<8x128xf32>
    %617 = arith.addf %615, %616 : vector<8x128xf32>
    %618 = vector.extract_strided_slice %617 {offsets = [0, 0], sizes = [8, 32], strides = [1, 1]} : vector<8x128xf32> to vector<8x32xf32>
    %619 = arith.negf %618 : vector<8x32xf32>
    %620 = math.exp %619 : vector<8x32xf32>
    %cst_125 = arith.constant 1.000000e+00 : f32
    %621 = vector.broadcast %cst_125 : f32 to vector<8x32xf32>
    %622 = arith.addf %621, %620 : vector<8x32xf32>
    %623 = arith.divf %621, %622 : vector<8x32xf32>
    %624 = vector.extract_strided_slice %617 {offsets = [0, 32], sizes = [8, 32], strides = [1, 1]} : vector<8x128xf32> to vector<8x32xf32>
    %625 = arith.negf %624 : vector<8x32xf32>
    %626 = math.exp %625 : vector<8x32xf32>
    %cst_126 = arith.constant 1.000000e+00 : f32
    %627 = vector.broadcast %cst_126 : f32 to vector<8x32xf32>
    %628 = arith.addf %627, %626 : vector<8x32xf32>
    %629 = arith.divf %627, %628 : vector<8x32xf32>
    %630 = vector.extract_strided_slice %617 {offsets = [0, 64], sizes = [8, 32], strides = [1, 1]} : vector<8x128xf32> to vector<8x32xf32>
    %631 = vector.extract_strided_slice %617 {offsets = [0, 96], sizes = [8, 32], strides = [1, 1]} : vector<8x128xf32> to vector<8x32xf32>
    %632 = arith.mulf %623, %631 : vector<8x32xf32>
    %633 = arith.addf %630, %632 : vector<8x32xf32>
    %634 = math.tanh %633 : vector<8x32xf32>
    %cst_127 = arith.constant 1.000000e+00 : f32
    %635 = vector.broadcast %cst_127 : f32 to vector<8x32xf32>
    %636 = arith.subf %635, %629 : vector<8x32xf32>
    %637 = arith.mulf %636, %634 : vector<8x32xf32>
    %638 = arith.mulf %629, %582 : vector<8x32xf32>
    %639 = arith.addf %637, %638 : vector<8x32xf32>
    %c11 = arith.constant 11 : index
    %c0_128 = arith.constant 0 : index
    %c0_129 = arith.constant 0 : index
    %640 = vector.load %arg1[%c11, %c0_128, %c0_129] : memref<32x8x96xf32, #tpu.memory_space<vmem>>, vector<1x8x96xf32>
    %641 = vector.shape_cast %640 : vector<1x8x96xf32> to vector<8x96xf32>
    %cst_130 = arith.constant dense<0.000000e+00> : vector<8x96xf32>
    %642 = tpu.matmul %613, %0, %cst_130 {dimension_numbers = #tpu.dot_dimension_numbers<[1], [0], [0], [1], [0, 0, 1, 1], [], []>} : vector<8x32xf32>, vector<32x96xf32>, vector<8x96xf32> -> vector<8x96xf32>
    %643 = vector.broadcast %1 : vector<1x96xf32> to vector<8x96xf32>
    %644 = arith.addf %642, %643 : vector<8x96xf32>
    %645 = vector.extract_strided_slice %641 {offsets = [0, 0], sizes = [8, 32], strides = [1, 1]} : vector<8x96xf32> to vector<8x32xf32>
    %646 = vector.extract_strided_slice %644 {offsets = [0, 0], sizes = [8, 32], strides = [1, 1]} : vector<8x96xf32> to vector<8x32xf32>
    %647 = arith.addf %645, %646 : vector<8x32xf32>
    %648 = arith.negf %647 : vector<8x32xf32>
    %649 = math.exp %648 : vector<8x32xf32>
    %cst_131 = arith.constant 1.000000e+00 : f32
    %650 = vector.broadcast %cst_131 : f32 to vector<8x32xf32>
    %651 = arith.addf %650, %649 : vector<8x32xf32>
    %652 = arith.divf %650, %651 : vector<8x32xf32>
    %653 = vector.extract_strided_slice %641 {offsets = [0, 32], sizes = [8, 32], strides = [1, 1]} : vector<8x96xf32> to vector<8x32xf32>
    %654 = vector.extract_strided_slice %644 {offsets = [0, 32], sizes = [8, 32], strides = [1, 1]} : vector<8x96xf32> to vector<8x32xf32>
    %655 = arith.addf %653, %654 : vector<8x32xf32>
    %656 = arith.negf %655 : vector<8x32xf32>
    %657 = math.exp %656 : vector<8x32xf32>
    %cst_132 = arith.constant 1.000000e+00 : f32
    %658 = vector.broadcast %cst_132 : f32 to vector<8x32xf32>
    %659 = arith.addf %658, %657 : vector<8x32xf32>
    %660 = arith.divf %658, %659 : vector<8x32xf32>
    %661 = vector.extract_strided_slice %641 {offsets = [0, 64], sizes = [8, 32], strides = [1, 1]} : vector<8x96xf32> to vector<8x32xf32>
    %662 = vector.extract_strided_slice %644 {offsets = [0, 64], sizes = [8, 32], strides = [1, 1]} : vector<8x96xf32> to vector<8x32xf32>
    %663 = arith.mulf %652, %662 : vector<8x32xf32>
    %664 = arith.addf %661, %663 : vector<8x32xf32>
    %665 = math.tanh %664 : vector<8x32xf32>
    %cst_133 = arith.constant 1.000000e+00 : f32
    %666 = vector.broadcast %cst_133 : f32 to vector<8x32xf32>
    %667 = arith.subf %666, %660 : vector<8x32xf32>
    %668 = arith.mulf %667, %665 : vector<8x32xf32>
    %669 = arith.mulf %660, %613 : vector<8x32xf32>
    %670 = arith.addf %668, %669 : vector<8x32xf32>
    %671 = tpu.concatenate %670, %639 in 1 : vector<8x32xf32>, vector<8x32xf32> -> vector<8x64xf32>
    %cst_134 = arith.constant dense<0.000000e+00> : vector<8x128xf32>
    %672 = tpu.matmul %671, %2, %cst_134 {dimension_numbers = #tpu.dot_dimension_numbers<[1], [0], [0], [1], [0, 0, 1, 1], [], []>} : vector<8x64xf32>, vector<64x128xf32>, vector<8x128xf32> -> vector<8x128xf32>
    %673 = vector.broadcast %3 : vector<1x128xf32> to vector<8x128xf32>
    %674 = arith.addf %672, %673 : vector<8x128xf32>
    %675 = vector.extract_strided_slice %674 {offsets = [0, 0], sizes = [8, 32], strides = [1, 1]} : vector<8x128xf32> to vector<8x32xf32>
    %676 = arith.negf %675 : vector<8x32xf32>
    %677 = math.exp %676 : vector<8x32xf32>
    %cst_135 = arith.constant 1.000000e+00 : f32
    %678 = vector.broadcast %cst_135 : f32 to vector<8x32xf32>
    %679 = arith.addf %678, %677 : vector<8x32xf32>
    %680 = arith.divf %678, %679 : vector<8x32xf32>
    %681 = vector.extract_strided_slice %674 {offsets = [0, 32], sizes = [8, 32], strides = [1, 1]} : vector<8x128xf32> to vector<8x32xf32>
    %682 = arith.negf %681 : vector<8x32xf32>
    %683 = math.exp %682 : vector<8x32xf32>
    %cst_136 = arith.constant 1.000000e+00 : f32
    %684 = vector.broadcast %cst_136 : f32 to vector<8x32xf32>
    %685 = arith.addf %684, %683 : vector<8x32xf32>
    %686 = arith.divf %684, %685 : vector<8x32xf32>
    %687 = vector.extract_strided_slice %674 {offsets = [0, 64], sizes = [8, 32], strides = [1, 1]} : vector<8x128xf32> to vector<8x32xf32>
    %688 = vector.extract_strided_slice %674 {offsets = [0, 96], sizes = [8, 32], strides = [1, 1]} : vector<8x128xf32> to vector<8x32xf32>
    %689 = arith.mulf %680, %688 : vector<8x32xf32>
    %690 = arith.addf %687, %689 : vector<8x32xf32>
    %691 = math.tanh %690 : vector<8x32xf32>
    %cst_137 = arith.constant 1.000000e+00 : f32
    %692 = vector.broadcast %cst_137 : f32 to vector<8x32xf32>
    %693 = arith.subf %692, %686 : vector<8x32xf32>
    %694 = arith.mulf %693, %691 : vector<8x32xf32>
    %695 = arith.mulf %686, %639 : vector<8x32xf32>
    %696 = arith.addf %694, %695 : vector<8x32xf32>
    %c12 = arith.constant 12 : index
    %c0_138 = arith.constant 0 : index
    %c0_139 = arith.constant 0 : index
    %697 = vector.load %arg1[%c12, %c0_138, %c0_139] : memref<32x8x96xf32, #tpu.memory_space<vmem>>, vector<1x8x96xf32>
    %698 = vector.shape_cast %697 : vector<1x8x96xf32> to vector<8x96xf32>
    %cst_140 = arith.constant dense<0.000000e+00> : vector<8x96xf32>
    %699 = tpu.matmul %670, %0, %cst_140 {dimension_numbers = #tpu.dot_dimension_numbers<[1], [0], [0], [1], [0, 0, 1, 1], [], []>} : vector<8x32xf32>, vector<32x96xf32>, vector<8x96xf32> -> vector<8x96xf32>
    %700 = vector.broadcast %1 : vector<1x96xf32> to vector<8x96xf32>
    %701 = arith.addf %699, %700 : vector<8x96xf32>
    %702 = vector.extract_strided_slice %698 {offsets = [0, 0], sizes = [8, 32], strides = [1, 1]} : vector<8x96xf32> to vector<8x32xf32>
    %703 = vector.extract_strided_slice %701 {offsets = [0, 0], sizes = [8, 32], strides = [1, 1]} : vector<8x96xf32> to vector<8x32xf32>
    %704 = arith.addf %702, %703 : vector<8x32xf32>
    %705 = arith.negf %704 : vector<8x32xf32>
    %706 = math.exp %705 : vector<8x32xf32>
    %cst_141 = arith.constant 1.000000e+00 : f32
    %707 = vector.broadcast %cst_141 : f32 to vector<8x32xf32>
    %708 = arith.addf %707, %706 : vector<8x32xf32>
    %709 = arith.divf %707, %708 : vector<8x32xf32>
    %710 = vector.extract_strided_slice %698 {offsets = [0, 32], sizes = [8, 32], strides = [1, 1]} : vector<8x96xf32> to vector<8x32xf32>
    %711 = vector.extract_strided_slice %701 {offsets = [0, 32], sizes = [8, 32], strides = [1, 1]} : vector<8x96xf32> to vector<8x32xf32>
    %712 = arith.addf %710, %711 : vector<8x32xf32>
    %713 = arith.negf %712 : vector<8x32xf32>
    %714 = math.exp %713 : vector<8x32xf32>
    %cst_142 = arith.constant 1.000000e+00 : f32
    %715 = vector.broadcast %cst_142 : f32 to vector<8x32xf32>
    %716 = arith.addf %715, %714 : vector<8x32xf32>
    %717 = arith.divf %715, %716 : vector<8x32xf32>
    %718 = vector.extract_strided_slice %698 {offsets = [0, 64], sizes = [8, 32], strides = [1, 1]} : vector<8x96xf32> to vector<8x32xf32>
    %719 = vector.extract_strided_slice %701 {offsets = [0, 64], sizes = [8, 32], strides = [1, 1]} : vector<8x96xf32> to vector<8x32xf32>
    %720 = arith.mulf %709, %719 : vector<8x32xf32>
    %721 = arith.addf %718, %720 : vector<8x32xf32>
    %722 = math.tanh %721 : vector<8x32xf32>
    %cst_143 = arith.constant 1.000000e+00 : f32
    %723 = vector.broadcast %cst_143 : f32 to vector<8x32xf32>
    %724 = arith.subf %723, %717 : vector<8x32xf32>
    %725 = arith.mulf %724, %722 : vector<8x32xf32>
    %726 = arith.mulf %717, %670 : vector<8x32xf32>
    %727 = arith.addf %725, %726 : vector<8x32xf32>
    %728 = tpu.concatenate %727, %696 in 1 : vector<8x32xf32>, vector<8x32xf32> -> vector<8x64xf32>
    %cst_144 = arith.constant dense<0.000000e+00> : vector<8x128xf32>
    %729 = tpu.matmul %728, %2, %cst_144 {dimension_numbers = #tpu.dot_dimension_numbers<[1], [0], [0], [1], [0, 0, 1, 1], [], []>} : vector<8x64xf32>, vector<64x128xf32>, vector<8x128xf32> -> vector<8x128xf32>
    %730 = vector.broadcast %3 : vector<1x128xf32> to vector<8x128xf32>
    %731 = arith.addf %729, %730 : vector<8x128xf32>
    %732 = vector.extract_strided_slice %731 {offsets = [0, 0], sizes = [8, 32], strides = [1, 1]} : vector<8x128xf32> to vector<8x32xf32>
    %733 = arith.negf %732 : vector<8x32xf32>
    %734 = math.exp %733 : vector<8x32xf32>
    %cst_145 = arith.constant 1.000000e+00 : f32
    %735 = vector.broadcast %cst_145 : f32 to vector<8x32xf32>
    %736 = arith.addf %735, %734 : vector<8x32xf32>
    %737 = arith.divf %735, %736 : vector<8x32xf32>
    %738 = vector.extract_strided_slice %731 {offsets = [0, 32], sizes = [8, 32], strides = [1, 1]} : vector<8x128xf32> to vector<8x32xf32>
    %739 = arith.negf %738 : vector<8x32xf32>
    %740 = math.exp %739 : vector<8x32xf32>
    %cst_146 = arith.constant 1.000000e+00 : f32
    %741 = vector.broadcast %cst_146 : f32 to vector<8x32xf32>
    %742 = arith.addf %741, %740 : vector<8x32xf32>
    %743 = arith.divf %741, %742 : vector<8x32xf32>
    %744 = vector.extract_strided_slice %731 {offsets = [0, 64], sizes = [8, 32], strides = [1, 1]} : vector<8x128xf32> to vector<8x32xf32>
    %745 = vector.extract_strided_slice %731 {offsets = [0, 96], sizes = [8, 32], strides = [1, 1]} : vector<8x128xf32> to vector<8x32xf32>
    %746 = arith.mulf %737, %745 : vector<8x32xf32>
    %747 = arith.addf %744, %746 : vector<8x32xf32>
    %748 = math.tanh %747 : vector<8x32xf32>
    %cst_147 = arith.constant 1.000000e+00 : f32
    %749 = vector.broadcast %cst_147 : f32 to vector<8x32xf32>
    %750 = arith.subf %749, %743 : vector<8x32xf32>
    %751 = arith.mulf %750, %748 : vector<8x32xf32>
    %752 = arith.mulf %743, %696 : vector<8x32xf32>
    %753 = arith.addf %751, %752 : vector<8x32xf32>
    %c13 = arith.constant 13 : index
    %c0_148 = arith.constant 0 : index
    %c0_149 = arith.constant 0 : index
    %754 = vector.load %arg1[%c13, %c0_148, %c0_149] : memref<32x8x96xf32, #tpu.memory_space<vmem>>, vector<1x8x96xf32>
    %755 = vector.shape_cast %754 : vector<1x8x96xf32> to vector<8x96xf32>
    %cst_150 = arith.constant dense<0.000000e+00> : vector<8x96xf32>
    %756 = tpu.matmul %727, %0, %cst_150 {dimension_numbers = #tpu.dot_dimension_numbers<[1], [0], [0], [1], [0, 0, 1, 1], [], []>} : vector<8x32xf32>, vector<32x96xf32>, vector<8x96xf32> -> vector<8x96xf32>
    %757 = vector.broadcast %1 : vector<1x96xf32> to vector<8x96xf32>
    %758 = arith.addf %756, %757 : vector<8x96xf32>
    %759 = vector.extract_strided_slice %755 {offsets = [0, 0], sizes = [8, 32], strides = [1, 1]} : vector<8x96xf32> to vector<8x32xf32>
    %760 = vector.extract_strided_slice %758 {offsets = [0, 0], sizes = [8, 32], strides = [1, 1]} : vector<8x96xf32> to vector<8x32xf32>
    %761 = arith.addf %759, %760 : vector<8x32xf32>
    %762 = arith.negf %761 : vector<8x32xf32>
    %763 = math.exp %762 : vector<8x32xf32>
    %cst_151 = arith.constant 1.000000e+00 : f32
    %764 = vector.broadcast %cst_151 : f32 to vector<8x32xf32>
    %765 = arith.addf %764, %763 : vector<8x32xf32>
    %766 = arith.divf %764, %765 : vector<8x32xf32>
    %767 = vector.extract_strided_slice %755 {offsets = [0, 32], sizes = [8, 32], strides = [1, 1]} : vector<8x96xf32> to vector<8x32xf32>
    %768 = vector.extract_strided_slice %758 {offsets = [0, 32], sizes = [8, 32], strides = [1, 1]} : vector<8x96xf32> to vector<8x32xf32>
    %769 = arith.addf %767, %768 : vector<8x32xf32>
    %770 = arith.negf %769 : vector<8x32xf32>
    %771 = math.exp %770 : vector<8x32xf32>
    %cst_152 = arith.constant 1.000000e+00 : f32
    %772 = vector.broadcast %cst_152 : f32 to vector<8x32xf32>
    %773 = arith.addf %772, %771 : vector<8x32xf32>
    %774 = arith.divf %772, %773 : vector<8x32xf32>
    %775 = vector.extract_strided_slice %755 {offsets = [0, 64], sizes = [8, 32], strides = [1, 1]} : vector<8x96xf32> to vector<8x32xf32>
    %776 = vector.extract_strided_slice %758 {offsets = [0, 64], sizes = [8, 32], strides = [1, 1]} : vector<8x96xf32> to vector<8x32xf32>
    %777 = arith.mulf %766, %776 : vector<8x32xf32>
    %778 = arith.addf %775, %777 : vector<8x32xf32>
    %779 = math.tanh %778 : vector<8x32xf32>
    %cst_153 = arith.constant 1.000000e+00 : f32
    %780 = vector.broadcast %cst_153 : f32 to vector<8x32xf32>
    %781 = arith.subf %780, %774 : vector<8x32xf32>
    %782 = arith.mulf %781, %779 : vector<8x32xf32>
    %783 = arith.mulf %774, %727 : vector<8x32xf32>
    %784 = arith.addf %782, %783 : vector<8x32xf32>
    %785 = tpu.concatenate %784, %753 in 1 : vector<8x32xf32>, vector<8x32xf32> -> vector<8x64xf32>
    %cst_154 = arith.constant dense<0.000000e+00> : vector<8x128xf32>
    %786 = tpu.matmul %785, %2, %cst_154 {dimension_numbers = #tpu.dot_dimension_numbers<[1], [0], [0], [1], [0, 0, 1, 1], [], []>} : vector<8x64xf32>, vector<64x128xf32>, vector<8x128xf32> -> vector<8x128xf32>
    %787 = vector.broadcast %3 : vector<1x128xf32> to vector<8x128xf32>
    %788 = arith.addf %786, %787 : vector<8x128xf32>
    %789 = vector.extract_strided_slice %788 {offsets = [0, 0], sizes = [8, 32], strides = [1, 1]} : vector<8x128xf32> to vector<8x32xf32>
    %790 = arith.negf %789 : vector<8x32xf32>
    %791 = math.exp %790 : vector<8x32xf32>
    %cst_155 = arith.constant 1.000000e+00 : f32
    %792 = vector.broadcast %cst_155 : f32 to vector<8x32xf32>
    %793 = arith.addf %792, %791 : vector<8x32xf32>
    %794 = arith.divf %792, %793 : vector<8x32xf32>
    %795 = vector.extract_strided_slice %788 {offsets = [0, 32], sizes = [8, 32], strides = [1, 1]} : vector<8x128xf32> to vector<8x32xf32>
    %796 = arith.negf %795 : vector<8x32xf32>
    %797 = math.exp %796 : vector<8x32xf32>
    %cst_156 = arith.constant 1.000000e+00 : f32
    %798 = vector.broadcast %cst_156 : f32 to vector<8x32xf32>
    %799 = arith.addf %798, %797 : vector<8x32xf32>
    %800 = arith.divf %798, %799 : vector<8x32xf32>
    %801 = vector.extract_strided_slice %788 {offsets = [0, 64], sizes = [8, 32], strides = [1, 1]} : vector<8x128xf32> to vector<8x32xf32>
    %802 = vector.extract_strided_slice %788 {offsets = [0, 96], sizes = [8, 32], strides = [1, 1]} : vector<8x128xf32> to vector<8x32xf32>
    %803 = arith.mulf %794, %802 : vector<8x32xf32>
    %804 = arith.addf %801, %803 : vector<8x32xf32>
    %805 = math.tanh %804 : vector<8x32xf32>
    %cst_157 = arith.constant 1.000000e+00 : f32
    %806 = vector.broadcast %cst_157 : f32 to vector<8x32xf32>
    %807 = arith.subf %806, %800 : vector<8x32xf32>
    %808 = arith.mulf %807, %805 : vector<8x32xf32>
    %809 = arith.mulf %800, %753 : vector<8x32xf32>
    %810 = arith.addf %808, %809 : vector<8x32xf32>
    %c14 = arith.constant 14 : index
    %c0_158 = arith.constant 0 : index
    %c0_159 = arith.constant 0 : index
    %811 = vector.load %arg1[%c14, %c0_158, %c0_159] : memref<32x8x96xf32, #tpu.memory_space<vmem>>, vector<1x8x96xf32>
    %812 = vector.shape_cast %811 : vector<1x8x96xf32> to vector<8x96xf32>
    %cst_160 = arith.constant dense<0.000000e+00> : vector<8x96xf32>
    %813 = tpu.matmul %784, %0, %cst_160 {dimension_numbers = #tpu.dot_dimension_numbers<[1], [0], [0], [1], [0, 0, 1, 1], [], []>} : vector<8x32xf32>, vector<32x96xf32>, vector<8x96xf32> -> vector<8x96xf32>
    %814 = vector.broadcast %1 : vector<1x96xf32> to vector<8x96xf32>
    %815 = arith.addf %813, %814 : vector<8x96xf32>
    %816 = vector.extract_strided_slice %812 {offsets = [0, 0], sizes = [8, 32], strides = [1, 1]} : vector<8x96xf32> to vector<8x32xf32>
    %817 = vector.extract_strided_slice %815 {offsets = [0, 0], sizes = [8, 32], strides = [1, 1]} : vector<8x96xf32> to vector<8x32xf32>
    %818 = arith.addf %816, %817 : vector<8x32xf32>
    %819 = arith.negf %818 : vector<8x32xf32>
    %820 = math.exp %819 : vector<8x32xf32>
    %cst_161 = arith.constant 1.000000e+00 : f32
    %821 = vector.broadcast %cst_161 : f32 to vector<8x32xf32>
    %822 = arith.addf %821, %820 : vector<8x32xf32>
    %823 = arith.divf %821, %822 : vector<8x32xf32>
    %824 = vector.extract_strided_slice %812 {offsets = [0, 32], sizes = [8, 32], strides = [1, 1]} : vector<8x96xf32> to vector<8x32xf32>
    %825 = vector.extract_strided_slice %815 {offsets = [0, 32], sizes = [8, 32], strides = [1, 1]} : vector<8x96xf32> to vector<8x32xf32>
    %826 = arith.addf %824, %825 : vector<8x32xf32>
    %827 = arith.negf %826 : vector<8x32xf32>
    %828 = math.exp %827 : vector<8x32xf32>
    %cst_162 = arith.constant 1.000000e+00 : f32
    %829 = vector.broadcast %cst_162 : f32 to vector<8x32xf32>
    %830 = arith.addf %829, %828 : vector<8x32xf32>
    %831 = arith.divf %829, %830 : vector<8x32xf32>
    %832 = vector.extract_strided_slice %812 {offsets = [0, 64], sizes = [8, 32], strides = [1, 1]} : vector<8x96xf32> to vector<8x32xf32>
    %833 = vector.extract_strided_slice %815 {offsets = [0, 64], sizes = [8, 32], strides = [1, 1]} : vector<8x96xf32> to vector<8x32xf32>
    %834 = arith.mulf %823, %833 : vector<8x32xf32>
    %835 = arith.addf %832, %834 : vector<8x32xf32>
    %836 = math.tanh %835 : vector<8x32xf32>
    %cst_163 = arith.constant 1.000000e+00 : f32
    %837 = vector.broadcast %cst_163 : f32 to vector<8x32xf32>
    %838 = arith.subf %837, %831 : vector<8x32xf32>
    %839 = arith.mulf %838, %836 : vector<8x32xf32>
    %840 = arith.mulf %831, %784 : vector<8x32xf32>
    %841 = arith.addf %839, %840 : vector<8x32xf32>
    %842 = tpu.concatenate %841, %810 in 1 : vector<8x32xf32>, vector<8x32xf32> -> vector<8x64xf32>
    %cst_164 = arith.constant dense<0.000000e+00> : vector<8x128xf32>
    %843 = tpu.matmul %842, %2, %cst_164 {dimension_numbers = #tpu.dot_dimension_numbers<[1], [0], [0], [1], [0, 0, 1, 1], [], []>} : vector<8x64xf32>, vector<64x128xf32>, vector<8x128xf32> -> vector<8x128xf32>
    %844 = vector.broadcast %3 : vector<1x128xf32> to vector<8x128xf32>
    %845 = arith.addf %843, %844 : vector<8x128xf32>
    %846 = vector.extract_strided_slice %845 {offsets = [0, 0], sizes = [8, 32], strides = [1, 1]} : vector<8x128xf32> to vector<8x32xf32>
    %847 = arith.negf %846 : vector<8x32xf32>
    %848 = math.exp %847 : vector<8x32xf32>
    %cst_165 = arith.constant 1.000000e+00 : f32
    %849 = vector.broadcast %cst_165 : f32 to vector<8x32xf32>
    %850 = arith.addf %849, %848 : vector<8x32xf32>
    %851 = arith.divf %849, %850 : vector<8x32xf32>
    %852 = vector.extract_strided_slice %845 {offsets = [0, 32], sizes = [8, 32], strides = [1, 1]} : vector<8x128xf32> to vector<8x32xf32>
    %853 = arith.negf %852 : vector<8x32xf32>
    %854 = math.exp %853 : vector<8x32xf32>
    %cst_166 = arith.constant 1.000000e+00 : f32
    %855 = vector.broadcast %cst_166 : f32 to vector<8x32xf32>
    %856 = arith.addf %855, %854 : vector<8x32xf32>
    %857 = arith.divf %855, %856 : vector<8x32xf32>
    %858 = vector.extract_strided_slice %845 {offsets = [0, 64], sizes = [8, 32], strides = [1, 1]} : vector<8x128xf32> to vector<8x32xf32>
    %859 = vector.extract_strided_slice %845 {offsets = [0, 96], sizes = [8, 32], strides = [1, 1]} : vector<8x128xf32> to vector<8x32xf32>
    %860 = arith.mulf %851, %859 : vector<8x32xf32>
    %861 = arith.addf %858, %860 : vector<8x32xf32>
    %862 = math.tanh %861 : vector<8x32xf32>
    %cst_167 = arith.constant 1.000000e+00 : f32
    %863 = vector.broadcast %cst_167 : f32 to vector<8x32xf32>
    %864 = arith.subf %863, %857 : vector<8x32xf32>
    %865 = arith.mulf %864, %862 : vector<8x32xf32>
    %866 = arith.mulf %857, %810 : vector<8x32xf32>
    %867 = arith.addf %865, %866 : vector<8x32xf32>
    %c15 = arith.constant 15 : index
    %c0_168 = arith.constant 0 : index
    %c0_169 = arith.constant 0 : index
    %868 = vector.load %arg1[%c15, %c0_168, %c0_169] : memref<32x8x96xf32, #tpu.memory_space<vmem>>, vector<1x8x96xf32>
    %869 = vector.shape_cast %868 : vector<1x8x96xf32> to vector<8x96xf32>
    %cst_170 = arith.constant dense<0.000000e+00> : vector<8x96xf32>
    %870 = tpu.matmul %841, %0, %cst_170 {dimension_numbers = #tpu.dot_dimension_numbers<[1], [0], [0], [1], [0, 0, 1, 1], [], []>} : vector<8x32xf32>, vector<32x96xf32>, vector<8x96xf32> -> vector<8x96xf32>
    %871 = vector.broadcast %1 : vector<1x96xf32> to vector<8x96xf32>
    %872 = arith.addf %870, %871 : vector<8x96xf32>
    %873 = vector.extract_strided_slice %869 {offsets = [0, 0], sizes = [8, 32], strides = [1, 1]} : vector<8x96xf32> to vector<8x32xf32>
    %874 = vector.extract_strided_slice %872 {offsets = [0, 0], sizes = [8, 32], strides = [1, 1]} : vector<8x96xf32> to vector<8x32xf32>
    %875 = arith.addf %873, %874 : vector<8x32xf32>
    %876 = arith.negf %875 : vector<8x32xf32>
    %877 = math.exp %876 : vector<8x32xf32>
    %cst_171 = arith.constant 1.000000e+00 : f32
    %878 = vector.broadcast %cst_171 : f32 to vector<8x32xf32>
    %879 = arith.addf %878, %877 : vector<8x32xf32>
    %880 = arith.divf %878, %879 : vector<8x32xf32>
    %881 = vector.extract_strided_slice %869 {offsets = [0, 32], sizes = [8, 32], strides = [1, 1]} : vector<8x96xf32> to vector<8x32xf32>
    %882 = vector.extract_strided_slice %872 {offsets = [0, 32], sizes = [8, 32], strides = [1, 1]} : vector<8x96xf32> to vector<8x32xf32>
    %883 = arith.addf %881, %882 : vector<8x32xf32>
    %884 = arith.negf %883 : vector<8x32xf32>
    %885 = math.exp %884 : vector<8x32xf32>
    %cst_172 = arith.constant 1.000000e+00 : f32
    %886 = vector.broadcast %cst_172 : f32 to vector<8x32xf32>
    %887 = arith.addf %886, %885 : vector<8x32xf32>
    %888 = arith.divf %886, %887 : vector<8x32xf32>
    %889 = vector.extract_strided_slice %869 {offsets = [0, 64], sizes = [8, 32], strides = [1, 1]} : vector<8x96xf32> to vector<8x32xf32>
    %890 = vector.extract_strided_slice %872 {offsets = [0, 64], sizes = [8, 32], strides = [1, 1]} : vector<8x96xf32> to vector<8x32xf32>
    %891 = arith.mulf %880, %890 : vector<8x32xf32>
    %892 = arith.addf %889, %891 : vector<8x32xf32>
    %893 = math.tanh %892 : vector<8x32xf32>
    %cst_173 = arith.constant 1.000000e+00 : f32
    %894 = vector.broadcast %cst_173 : f32 to vector<8x32xf32>
    %895 = arith.subf %894, %888 : vector<8x32xf32>
    %896 = arith.mulf %895, %893 : vector<8x32xf32>
    %897 = arith.mulf %888, %841 : vector<8x32xf32>
    %898 = arith.addf %896, %897 : vector<8x32xf32>
    %899 = tpu.concatenate %898, %867 in 1 : vector<8x32xf32>, vector<8x32xf32> -> vector<8x64xf32>
    %cst_174 = arith.constant dense<0.000000e+00> : vector<8x128xf32>
    %900 = tpu.matmul %899, %2, %cst_174 {dimension_numbers = #tpu.dot_dimension_numbers<[1], [0], [0], [1], [0, 0, 1, 1], [], []>} : vector<8x64xf32>, vector<64x128xf32>, vector<8x128xf32> -> vector<8x128xf32>
    %901 = vector.broadcast %3 : vector<1x128xf32> to vector<8x128xf32>
    %902 = arith.addf %900, %901 : vector<8x128xf32>
    %903 = vector.extract_strided_slice %902 {offsets = [0, 0], sizes = [8, 32], strides = [1, 1]} : vector<8x128xf32> to vector<8x32xf32>
    %904 = arith.negf %903 : vector<8x32xf32>
    %905 = math.exp %904 : vector<8x32xf32>
    %cst_175 = arith.constant 1.000000e+00 : f32
    %906 = vector.broadcast %cst_175 : f32 to vector<8x32xf32>
    %907 = arith.addf %906, %905 : vector<8x32xf32>
    %908 = arith.divf %906, %907 : vector<8x32xf32>
    %909 = vector.extract_strided_slice %902 {offsets = [0, 32], sizes = [8, 32], strides = [1, 1]} : vector<8x128xf32> to vector<8x32xf32>
    %910 = arith.negf %909 : vector<8x32xf32>
    %911 = math.exp %910 : vector<8x32xf32>
    %cst_176 = arith.constant 1.000000e+00 : f32
    %912 = vector.broadcast %cst_176 : f32 to vector<8x32xf32>
    %913 = arith.addf %912, %911 : vector<8x32xf32>
    %914 = arith.divf %912, %913 : vector<8x32xf32>
    %915 = vector.extract_strided_slice %902 {offsets = [0, 64], sizes = [8, 32], strides = [1, 1]} : vector<8x128xf32> to vector<8x32xf32>
    %916 = vector.extract_strided_slice %902 {offsets = [0, 96], sizes = [8, 32], strides = [1, 1]} : vector<8x128xf32> to vector<8x32xf32>
    %917 = arith.mulf %908, %916 : vector<8x32xf32>
    %918 = arith.addf %915, %917 : vector<8x32xf32>
    %919 = math.tanh %918 : vector<8x32xf32>
    %cst_177 = arith.constant 1.000000e+00 : f32
    %920 = vector.broadcast %cst_177 : f32 to vector<8x32xf32>
    %921 = arith.subf %920, %914 : vector<8x32xf32>
    %922 = arith.mulf %921, %919 : vector<8x32xf32>
    %923 = arith.mulf %914, %867 : vector<8x32xf32>
    %924 = arith.addf %922, %923 : vector<8x32xf32>
    %c16 = arith.constant 16 : index
    %c0_178 = arith.constant 0 : index
    %c0_179 = arith.constant 0 : index
    %925 = vector.load %arg1[%c16, %c0_178, %c0_179] : memref<32x8x96xf32, #tpu.memory_space<vmem>>, vector<1x8x96xf32>
    %926 = vector.shape_cast %925 : vector<1x8x96xf32> to vector<8x96xf32>
    %cst_180 = arith.constant dense<0.000000e+00> : vector<8x96xf32>
    %927 = tpu.matmul %898, %0, %cst_180 {dimension_numbers = #tpu.dot_dimension_numbers<[1], [0], [0], [1], [0, 0, 1, 1], [], []>} : vector<8x32xf32>, vector<32x96xf32>, vector<8x96xf32> -> vector<8x96xf32>
    %928 = vector.broadcast %1 : vector<1x96xf32> to vector<8x96xf32>
    %929 = arith.addf %927, %928 : vector<8x96xf32>
    %930 = vector.extract_strided_slice %926 {offsets = [0, 0], sizes = [8, 32], strides = [1, 1]} : vector<8x96xf32> to vector<8x32xf32>
    %931 = vector.extract_strided_slice %929 {offsets = [0, 0], sizes = [8, 32], strides = [1, 1]} : vector<8x96xf32> to vector<8x32xf32>
    %932 = arith.addf %930, %931 : vector<8x32xf32>
    %933 = arith.negf %932 : vector<8x32xf32>
    %934 = math.exp %933 : vector<8x32xf32>
    %cst_181 = arith.constant 1.000000e+00 : f32
    %935 = vector.broadcast %cst_181 : f32 to vector<8x32xf32>
    %936 = arith.addf %935, %934 : vector<8x32xf32>
    %937 = arith.divf %935, %936 : vector<8x32xf32>
    %938 = vector.extract_strided_slice %926 {offsets = [0, 32], sizes = [8, 32], strides = [1, 1]} : vector<8x96xf32> to vector<8x32xf32>
    %939 = vector.extract_strided_slice %929 {offsets = [0, 32], sizes = [8, 32], strides = [1, 1]} : vector<8x96xf32> to vector<8x32xf32>
    %940 = arith.addf %938, %939 : vector<8x32xf32>
    %941 = arith.negf %940 : vector<8x32xf32>
    %942 = math.exp %941 : vector<8x32xf32>
    %cst_182 = arith.constant 1.000000e+00 : f32
    %943 = vector.broadcast %cst_182 : f32 to vector<8x32xf32>
    %944 = arith.addf %943, %942 : vector<8x32xf32>
    %945 = arith.divf %943, %944 : vector<8x32xf32>
    %946 = vector.extract_strided_slice %926 {offsets = [0, 64], sizes = [8, 32], strides = [1, 1]} : vector<8x96xf32> to vector<8x32xf32>
    %947 = vector.extract_strided_slice %929 {offsets = [0, 64], sizes = [8, 32], strides = [1, 1]} : vector<8x96xf32> to vector<8x32xf32>
    %948 = arith.mulf %937, %947 : vector<8x32xf32>
    %949 = arith.addf %946, %948 : vector<8x32xf32>
    %950 = math.tanh %949 : vector<8x32xf32>
    %cst_183 = arith.constant 1.000000e+00 : f32
    %951 = vector.broadcast %cst_183 : f32 to vector<8x32xf32>
    %952 = arith.subf %951, %945 : vector<8x32xf32>
    %953 = arith.mulf %952, %950 : vector<8x32xf32>
    %954 = arith.mulf %945, %898 : vector<8x32xf32>
    %955 = arith.addf %953, %954 : vector<8x32xf32>
    %956 = tpu.concatenate %955, %924 in 1 : vector<8x32xf32>, vector<8x32xf32> -> vector<8x64xf32>
    %cst_184 = arith.constant dense<0.000000e+00> : vector<8x128xf32>
    %957 = tpu.matmul %956, %2, %cst_184 {dimension_numbers = #tpu.dot_dimension_numbers<[1], [0], [0], [1], [0, 0, 1, 1], [], []>} : vector<8x64xf32>, vector<64x128xf32>, vector<8x128xf32> -> vector<8x128xf32>
    %958 = vector.broadcast %3 : vector<1x128xf32> to vector<8x128xf32>
    %959 = arith.addf %957, %958 : vector<8x128xf32>
    %960 = vector.extract_strided_slice %959 {offsets = [0, 0], sizes = [8, 32], strides = [1, 1]} : vector<8x128xf32> to vector<8x32xf32>
    %961 = arith.negf %960 : vector<8x32xf32>
    %962 = math.exp %961 : vector<8x32xf32>
    %cst_185 = arith.constant 1.000000e+00 : f32
    %963 = vector.broadcast %cst_185 : f32 to vector<8x32xf32>
    %964 = arith.addf %963, %962 : vector<8x32xf32>
    %965 = arith.divf %963, %964 : vector<8x32xf32>
    %966 = vector.extract_strided_slice %959 {offsets = [0, 32], sizes = [8, 32], strides = [1, 1]} : vector<8x128xf32> to vector<8x32xf32>
    %967 = arith.negf %966 : vector<8x32xf32>
    %968 = math.exp %967 : vector<8x32xf32>
    %cst_186 = arith.constant 1.000000e+00 : f32
    %969 = vector.broadcast %cst_186 : f32 to vector<8x32xf32>
    %970 = arith.addf %969, %968 : vector<8x32xf32>
    %971 = arith.divf %969, %970 : vector<8x32xf32>
    %972 = vector.extract_strided_slice %959 {offsets = [0, 64], sizes = [8, 32], strides = [1, 1]} : vector<8x128xf32> to vector<8x32xf32>
    %973 = vector.extract_strided_slice %959 {offsets = [0, 96], sizes = [8, 32], strides = [1, 1]} : vector<8x128xf32> to vector<8x32xf32>
    %974 = arith.mulf %965, %973 : vector<8x32xf32>
    %975 = arith.addf %972, %974 : vector<8x32xf32>
    %976 = math.tanh %975 : vector<8x32xf32>
    %cst_187 = arith.constant 1.000000e+00 : f32
    %977 = vector.broadcast %cst_187 : f32 to vector<8x32xf32>
    %978 = arith.subf %977, %971 : vector<8x32xf32>
    %979 = arith.mulf %978, %976 : vector<8x32xf32>
    %980 = arith.mulf %971, %924 : vector<8x32xf32>
    %981 = arith.addf %979, %980 : vector<8x32xf32>
    %c17 = arith.constant 17 : index
    %c0_188 = arith.constant 0 : index
    %c0_189 = arith.constant 0 : index
    %982 = vector.load %arg1[%c17, %c0_188, %c0_189] : memref<32x8x96xf32, #tpu.memory_space<vmem>>, vector<1x8x96xf32>
    %983 = vector.shape_cast %982 : vector<1x8x96xf32> to vector<8x96xf32>
    %cst_190 = arith.constant dense<0.000000e+00> : vector<8x96xf32>
    %984 = tpu.matmul %955, %0, %cst_190 {dimension_numbers = #tpu.dot_dimension_numbers<[1], [0], [0], [1], [0, 0, 1, 1], [], []>} : vector<8x32xf32>, vector<32x96xf32>, vector<8x96xf32> -> vector<8x96xf32>
    %985 = vector.broadcast %1 : vector<1x96xf32> to vector<8x96xf32>
    %986 = arith.addf %984, %985 : vector<8x96xf32>
    %987 = vector.extract_strided_slice %983 {offsets = [0, 0], sizes = [8, 32], strides = [1, 1]} : vector<8x96xf32> to vector<8x32xf32>
    %988 = vector.extract_strided_slice %986 {offsets = [0, 0], sizes = [8, 32], strides = [1, 1]} : vector<8x96xf32> to vector<8x32xf32>
    %989 = arith.addf %987, %988 : vector<8x32xf32>
    %990 = arith.negf %989 : vector<8x32xf32>
    %991 = math.exp %990 : vector<8x32xf32>
    %cst_191 = arith.constant 1.000000e+00 : f32
    %992 = vector.broadcast %cst_191 : f32 to vector<8x32xf32>
    %993 = arith.addf %992, %991 : vector<8x32xf32>
    %994 = arith.divf %992, %993 : vector<8x32xf32>
    %995 = vector.extract_strided_slice %983 {offsets = [0, 32], sizes = [8, 32], strides = [1, 1]} : vector<8x96xf32> to vector<8x32xf32>
    %996 = vector.extract_strided_slice %986 {offsets = [0, 32], sizes = [8, 32], strides = [1, 1]} : vector<8x96xf32> to vector<8x32xf32>
    %997 = arith.addf %995, %996 : vector<8x32xf32>
    %998 = arith.negf %997 : vector<8x32xf32>
    %999 = math.exp %998 : vector<8x32xf32>
    %cst_192 = arith.constant 1.000000e+00 : f32
    %1000 = vector.broadcast %cst_192 : f32 to vector<8x32xf32>
    %1001 = arith.addf %1000, %999 : vector<8x32xf32>
    %1002 = arith.divf %1000, %1001 : vector<8x32xf32>
    %1003 = vector.extract_strided_slice %983 {offsets = [0, 64], sizes = [8, 32], strides = [1, 1]} : vector<8x96xf32> to vector<8x32xf32>
    %1004 = vector.extract_strided_slice %986 {offsets = [0, 64], sizes = [8, 32], strides = [1, 1]} : vector<8x96xf32> to vector<8x32xf32>
    %1005 = arith.mulf %994, %1004 : vector<8x32xf32>
    %1006 = arith.addf %1003, %1005 : vector<8x32xf32>
    %1007 = math.tanh %1006 : vector<8x32xf32>
    %cst_193 = arith.constant 1.000000e+00 : f32
    %1008 = vector.broadcast %cst_193 : f32 to vector<8x32xf32>
    %1009 = arith.subf %1008, %1002 : vector<8x32xf32>
    %1010 = arith.mulf %1009, %1007 : vector<8x32xf32>
    %1011 = arith.mulf %1002, %955 : vector<8x32xf32>
    %1012 = arith.addf %1010, %1011 : vector<8x32xf32>
    %1013 = tpu.concatenate %1012, %981 in 1 : vector<8x32xf32>, vector<8x32xf32> -> vector<8x64xf32>
    %cst_194 = arith.constant dense<0.000000e+00> : vector<8x128xf32>
    %1014 = tpu.matmul %1013, %2, %cst_194 {dimension_numbers = #tpu.dot_dimension_numbers<[1], [0], [0], [1], [0, 0, 1, 1], [], []>} : vector<8x64xf32>, vector<64x128xf32>, vector<8x128xf32> -> vector<8x128xf32>
    %1015 = vector.broadcast %3 : vector<1x128xf32> to vector<8x128xf32>
    %1016 = arith.addf %1014, %1015 : vector<8x128xf32>
    %1017 = vector.extract_strided_slice %1016 {offsets = [0, 0], sizes = [8, 32], strides = [1, 1]} : vector<8x128xf32> to vector<8x32xf32>
    %1018 = arith.negf %1017 : vector<8x32xf32>
    %1019 = math.exp %1018 : vector<8x32xf32>
    %cst_195 = arith.constant 1.000000e+00 : f32
    %1020 = vector.broadcast %cst_195 : f32 to vector<8x32xf32>
    %1021 = arith.addf %1020, %1019 : vector<8x32xf32>
    %1022 = arith.divf %1020, %1021 : vector<8x32xf32>
    %1023 = vector.extract_strided_slice %1016 {offsets = [0, 32], sizes = [8, 32], strides = [1, 1]} : vector<8x128xf32> to vector<8x32xf32>
    %1024 = arith.negf %1023 : vector<8x32xf32>
    %1025 = math.exp %1024 : vector<8x32xf32>
    %cst_196 = arith.constant 1.000000e+00 : f32
    %1026 = vector.broadcast %cst_196 : f32 to vector<8x32xf32>
    %1027 = arith.addf %1026, %1025 : vector<8x32xf32>
    %1028 = arith.divf %1026, %1027 : vector<8x32xf32>
    %1029 = vector.extract_strided_slice %1016 {offsets = [0, 64], sizes = [8, 32], strides = [1, 1]} : vector<8x128xf32> to vector<8x32xf32>
    %1030 = vector.extract_strided_slice %1016 {offsets = [0, 96], sizes = [8, 32], strides = [1, 1]} : vector<8x128xf32> to vector<8x32xf32>
    %1031 = arith.mulf %1022, %1030 : vector<8x32xf32>
    %1032 = arith.addf %1029, %1031 : vector<8x32xf32>
    %1033 = math.tanh %1032 : vector<8x32xf32>
    %cst_197 = arith.constant 1.000000e+00 : f32
    %1034 = vector.broadcast %cst_197 : f32 to vector<8x32xf32>
    %1035 = arith.subf %1034, %1028 : vector<8x32xf32>
    %1036 = arith.mulf %1035, %1033 : vector<8x32xf32>
    %1037 = arith.mulf %1028, %981 : vector<8x32xf32>
    %1038 = arith.addf %1036, %1037 : vector<8x32xf32>
    %c18 = arith.constant 18 : index
    %c0_198 = arith.constant 0 : index
    %c0_199 = arith.constant 0 : index
    %1039 = vector.load %arg1[%c18, %c0_198, %c0_199] : memref<32x8x96xf32, #tpu.memory_space<vmem>>, vector<1x8x96xf32>
    %1040 = vector.shape_cast %1039 : vector<1x8x96xf32> to vector<8x96xf32>
    %cst_200 = arith.constant dense<0.000000e+00> : vector<8x96xf32>
    %1041 = tpu.matmul %1012, %0, %cst_200 {dimension_numbers = #tpu.dot_dimension_numbers<[1], [0], [0], [1], [0, 0, 1, 1], [], []>} : vector<8x32xf32>, vector<32x96xf32>, vector<8x96xf32> -> vector<8x96xf32>
    %1042 = vector.broadcast %1 : vector<1x96xf32> to vector<8x96xf32>
    %1043 = arith.addf %1041, %1042 : vector<8x96xf32>
    %1044 = vector.extract_strided_slice %1040 {offsets = [0, 0], sizes = [8, 32], strides = [1, 1]} : vector<8x96xf32> to vector<8x32xf32>
    %1045 = vector.extract_strided_slice %1043 {offsets = [0, 0], sizes = [8, 32], strides = [1, 1]} : vector<8x96xf32> to vector<8x32xf32>
    %1046 = arith.addf %1044, %1045 : vector<8x32xf32>
    %1047 = arith.negf %1046 : vector<8x32xf32>
    %1048 = math.exp %1047 : vector<8x32xf32>
    %cst_201 = arith.constant 1.000000e+00 : f32
    %1049 = vector.broadcast %cst_201 : f32 to vector<8x32xf32>
    %1050 = arith.addf %1049, %1048 : vector<8x32xf32>
    %1051 = arith.divf %1049, %1050 : vector<8x32xf32>
    %1052 = vector.extract_strided_slice %1040 {offsets = [0, 32], sizes = [8, 32], strides = [1, 1]} : vector<8x96xf32> to vector<8x32xf32>
    %1053 = vector.extract_strided_slice %1043 {offsets = [0, 32], sizes = [8, 32], strides = [1, 1]} : vector<8x96xf32> to vector<8x32xf32>
    %1054 = arith.addf %1052, %1053 : vector<8x32xf32>
    %1055 = arith.negf %1054 : vector<8x32xf32>
    %1056 = math.exp %1055 : vector<8x32xf32>
    %cst_202 = arith.constant 1.000000e+00 : f32
    %1057 = vector.broadcast %cst_202 : f32 to vector<8x32xf32>
    %1058 = arith.addf %1057, %1056 : vector<8x32xf32>
    %1059 = arith.divf %1057, %1058 : vector<8x32xf32>
    %1060 = vector.extract_strided_slice %1040 {offsets = [0, 64], sizes = [8, 32], strides = [1, 1]} : vector<8x96xf32> to vector<8x32xf32>
    %1061 = vector.extract_strided_slice %1043 {offsets = [0, 64], sizes = [8, 32], strides = [1, 1]} : vector<8x96xf32> to vector<8x32xf32>
    %1062 = arith.mulf %1051, %1061 : vector<8x32xf32>
    %1063 = arith.addf %1060, %1062 : vector<8x32xf32>
    %1064 = math.tanh %1063 : vector<8x32xf32>
    %cst_203 = arith.constant 1.000000e+00 : f32
    %1065 = vector.broadcast %cst_203 : f32 to vector<8x32xf32>
    %1066 = arith.subf %1065, %1059 : vector<8x32xf32>
    %1067 = arith.mulf %1066, %1064 : vector<8x32xf32>
    %1068 = arith.mulf %1059, %1012 : vector<8x32xf32>
    %1069 = arith.addf %1067, %1068 : vector<8x32xf32>
    %1070 = tpu.concatenate %1069, %1038 in 1 : vector<8x32xf32>, vector<8x32xf32> -> vector<8x64xf32>
    %cst_204 = arith.constant dense<0.000000e+00> : vector<8x128xf32>
    %1071 = tpu.matmul %1070, %2, %cst_204 {dimension_numbers = #tpu.dot_dimension_numbers<[1], [0], [0], [1], [0, 0, 1, 1], [], []>} : vector<8x64xf32>, vector<64x128xf32>, vector<8x128xf32> -> vector<8x128xf32>
    %1072 = vector.broadcast %3 : vector<1x128xf32> to vector<8x128xf32>
    %1073 = arith.addf %1071, %1072 : vector<8x128xf32>
    %1074 = vector.extract_strided_slice %1073 {offsets = [0, 0], sizes = [8, 32], strides = [1, 1]} : vector<8x128xf32> to vector<8x32xf32>
    %1075 = arith.negf %1074 : vector<8x32xf32>
    %1076 = math.exp %1075 : vector<8x32xf32>
    %cst_205 = arith.constant 1.000000e+00 : f32
    %1077 = vector.broadcast %cst_205 : f32 to vector<8x32xf32>
    %1078 = arith.addf %1077, %1076 : vector<8x32xf32>
    %1079 = arith.divf %1077, %1078 : vector<8x32xf32>
    %1080 = vector.extract_strided_slice %1073 {offsets = [0, 32], sizes = [8, 32], strides = [1, 1]} : vector<8x128xf32> to vector<8x32xf32>
    %1081 = arith.negf %1080 : vector<8x32xf32>
    %1082 = math.exp %1081 : vector<8x32xf32>
    %cst_206 = arith.constant 1.000000e+00 : f32
    %1083 = vector.broadcast %cst_206 : f32 to vector<8x32xf32>
    %1084 = arith.addf %1083, %1082 : vector<8x32xf32>
    %1085 = arith.divf %1083, %1084 : vector<8x32xf32>
    %1086 = vector.extract_strided_slice %1073 {offsets = [0, 64], sizes = [8, 32], strides = [1, 1]} : vector<8x128xf32> to vector<8x32xf32>
    %1087 = vector.extract_strided_slice %1073 {offsets = [0, 96], sizes = [8, 32], strides = [1, 1]} : vector<8x128xf32> to vector<8x32xf32>
    %1088 = arith.mulf %1079, %1087 : vector<8x32xf32>
    %1089 = arith.addf %1086, %1088 : vector<8x32xf32>
    %1090 = math.tanh %1089 : vector<8x32xf32>
    %cst_207 = arith.constant 1.000000e+00 : f32
    %1091 = vector.broadcast %cst_207 : f32 to vector<8x32xf32>
    %1092 = arith.subf %1091, %1085 : vector<8x32xf32>
    %1093 = arith.mulf %1092, %1090 : vector<8x32xf32>
    %1094 = arith.mulf %1085, %1038 : vector<8x32xf32>
    %1095 = arith.addf %1093, %1094 : vector<8x32xf32>
    %c19 = arith.constant 19 : index
    %c0_208 = arith.constant 0 : index
    %c0_209 = arith.constant 0 : index
    %1096 = vector.load %arg1[%c19, %c0_208, %c0_209] : memref<32x8x96xf32, #tpu.memory_space<vmem>>, vector<1x8x96xf32>
    %1097 = vector.shape_cast %1096 : vector<1x8x96xf32> to vector<8x96xf32>
    %cst_210 = arith.constant dense<0.000000e+00> : vector<8x96xf32>
    %1098 = tpu.matmul %1069, %0, %cst_210 {dimension_numbers = #tpu.dot_dimension_numbers<[1], [0], [0], [1], [0, 0, 1, 1], [], []>} : vector<8x32xf32>, vector<32x96xf32>, vector<8x96xf32> -> vector<8x96xf32>
    %1099 = vector.broadcast %1 : vector<1x96xf32> to vector<8x96xf32>
    %1100 = arith.addf %1098, %1099 : vector<8x96xf32>
    %1101 = vector.extract_strided_slice %1097 {offsets = [0, 0], sizes = [8, 32], strides = [1, 1]} : vector<8x96xf32> to vector<8x32xf32>
    %1102 = vector.extract_strided_slice %1100 {offsets = [0, 0], sizes = [8, 32], strides = [1, 1]} : vector<8x96xf32> to vector<8x32xf32>
    %1103 = arith.addf %1101, %1102 : vector<8x32xf32>
    %1104 = arith.negf %1103 : vector<8x32xf32>
    %1105 = math.exp %1104 : vector<8x32xf32>
    %cst_211 = arith.constant 1.000000e+00 : f32
    %1106 = vector.broadcast %cst_211 : f32 to vector<8x32xf32>
    %1107 = arith.addf %1106, %1105 : vector<8x32xf32>
    %1108 = arith.divf %1106, %1107 : vector<8x32xf32>
    %1109 = vector.extract_strided_slice %1097 {offsets = [0, 32], sizes = [8, 32], strides = [1, 1]} : vector<8x96xf32> to vector<8x32xf32>
    %1110 = vector.extract_strided_slice %1100 {offsets = [0, 32], sizes = [8, 32], strides = [1, 1]} : vector<8x96xf32> to vector<8x32xf32>
    %1111 = arith.addf %1109, %1110 : vector<8x32xf32>
    %1112 = arith.negf %1111 : vector<8x32xf32>
    %1113 = math.exp %1112 : vector<8x32xf32>
    %cst_212 = arith.constant 1.000000e+00 : f32
    %1114 = vector.broadcast %cst_212 : f32 to vector<8x32xf32>
    %1115 = arith.addf %1114, %1113 : vector<8x32xf32>
    %1116 = arith.divf %1114, %1115 : vector<8x32xf32>
    %1117 = vector.extract_strided_slice %1097 {offsets = [0, 64], sizes = [8, 32], strides = [1, 1]} : vector<8x96xf32> to vector<8x32xf32>
    %1118 = vector.extract_strided_slice %1100 {offsets = [0, 64], sizes = [8, 32], strides = [1, 1]} : vector<8x96xf32> to vector<8x32xf32>
    %1119 = arith.mulf %1108, %1118 : vector<8x32xf32>
    %1120 = arith.addf %1117, %1119 : vector<8x32xf32>
    %1121 = math.tanh %1120 : vector<8x32xf32>
    %cst_213 = arith.constant 1.000000e+00 : f32
    %1122 = vector.broadcast %cst_213 : f32 to vector<8x32xf32>
    %1123 = arith.subf %1122, %1116 : vector<8x32xf32>
    %1124 = arith.mulf %1123, %1121 : vector<8x32xf32>
    %1125 = arith.mulf %1116, %1069 : vector<8x32xf32>
    %1126 = arith.addf %1124, %1125 : vector<8x32xf32>
    %1127 = tpu.concatenate %1126, %1095 in 1 : vector<8x32xf32>, vector<8x32xf32> -> vector<8x64xf32>
    %cst_214 = arith.constant dense<0.000000e+00> : vector<8x128xf32>
    %1128 = tpu.matmul %1127, %2, %cst_214 {dimension_numbers = #tpu.dot_dimension_numbers<[1], [0], [0], [1], [0, 0, 1, 1], [], []>} : vector<8x64xf32>, vector<64x128xf32>, vector<8x128xf32> -> vector<8x128xf32>
    %1129 = vector.broadcast %3 : vector<1x128xf32> to vector<8x128xf32>
    %1130 = arith.addf %1128, %1129 : vector<8x128xf32>
    %1131 = vector.extract_strided_slice %1130 {offsets = [0, 0], sizes = [8, 32], strides = [1, 1]} : vector<8x128xf32> to vector<8x32xf32>
    %1132 = arith.negf %1131 : vector<8x32xf32>
    %1133 = math.exp %1132 : vector<8x32xf32>
    %cst_215 = arith.constant 1.000000e+00 : f32
    %1134 = vector.broadcast %cst_215 : f32 to vector<8x32xf32>
    %1135 = arith.addf %1134, %1133 : vector<8x32xf32>
    %1136 = arith.divf %1134, %1135 : vector<8x32xf32>
    %1137 = vector.extract_strided_slice %1130 {offsets = [0, 32], sizes = [8, 32], strides = [1, 1]} : vector<8x128xf32> to vector<8x32xf32>
    %1138 = arith.negf %1137 : vector<8x32xf32>
    %1139 = math.exp %1138 : vector<8x32xf32>
    %cst_216 = arith.constant 1.000000e+00 : f32
    %1140 = vector.broadcast %cst_216 : f32 to vector<8x32xf32>
    %1141 = arith.addf %1140, %1139 : vector<8x32xf32>
    %1142 = arith.divf %1140, %1141 : vector<8x32xf32>
    %1143 = vector.extract_strided_slice %1130 {offsets = [0, 64], sizes = [8, 32], strides = [1, 1]} : vector<8x128xf32> to vector<8x32xf32>
    %1144 = vector.extract_strided_slice %1130 {offsets = [0, 96], sizes = [8, 32], strides = [1, 1]} : vector<8x128xf32> to vector<8x32xf32>
    %1145 = arith.mulf %1136, %1144 : vector<8x32xf32>
    %1146 = arith.addf %1143, %1145 : vector<8x32xf32>
    %1147 = math.tanh %1146 : vector<8x32xf32>
    %cst_217 = arith.constant 1.000000e+00 : f32
    %1148 = vector.broadcast %cst_217 : f32 to vector<8x32xf32>
    %1149 = arith.subf %1148, %1142 : vector<8x32xf32>
    %1150 = arith.mulf %1149, %1147 : vector<8x32xf32>
    %1151 = arith.mulf %1142, %1095 : vector<8x32xf32>
    %1152 = arith.addf %1150, %1151 : vector<8x32xf32>
    %c20 = arith.constant 20 : index
    %c0_218 = arith.constant 0 : index
    %c0_219 = arith.constant 0 : index
    %1153 = vector.load %arg1[%c20, %c0_218, %c0_219] : memref<32x8x96xf32, #tpu.memory_space<vmem>>, vector<1x8x96xf32>
    %1154 = vector.shape_cast %1153 : vector<1x8x96xf32> to vector<8x96xf32>
    %cst_220 = arith.constant dense<0.000000e+00> : vector<8x96xf32>
    %1155 = tpu.matmul %1126, %0, %cst_220 {dimension_numbers = #tpu.dot_dimension_numbers<[1], [0], [0], [1], [0, 0, 1, 1], [], []>} : vector<8x32xf32>, vector<32x96xf32>, vector<8x96xf32> -> vector<8x96xf32>
    %1156 = vector.broadcast %1 : vector<1x96xf32> to vector<8x96xf32>
    %1157 = arith.addf %1155, %1156 : vector<8x96xf32>
    %1158 = vector.extract_strided_slice %1154 {offsets = [0, 0], sizes = [8, 32], strides = [1, 1]} : vector<8x96xf32> to vector<8x32xf32>
    %1159 = vector.extract_strided_slice %1157 {offsets = [0, 0], sizes = [8, 32], strides = [1, 1]} : vector<8x96xf32> to vector<8x32xf32>
    %1160 = arith.addf %1158, %1159 : vector<8x32xf32>
    %1161 = arith.negf %1160 : vector<8x32xf32>
    %1162 = math.exp %1161 : vector<8x32xf32>
    %cst_221 = arith.constant 1.000000e+00 : f32
    %1163 = vector.broadcast %cst_221 : f32 to vector<8x32xf32>
    %1164 = arith.addf %1163, %1162 : vector<8x32xf32>
    %1165 = arith.divf %1163, %1164 : vector<8x32xf32>
    %1166 = vector.extract_strided_slice %1154 {offsets = [0, 32], sizes = [8, 32], strides = [1, 1]} : vector<8x96xf32> to vector<8x32xf32>
    %1167 = vector.extract_strided_slice %1157 {offsets = [0, 32], sizes = [8, 32], strides = [1, 1]} : vector<8x96xf32> to vector<8x32xf32>
    %1168 = arith.addf %1166, %1167 : vector<8x32xf32>
    %1169 = arith.negf %1168 : vector<8x32xf32>
    %1170 = math.exp %1169 : vector<8x32xf32>
    %cst_222 = arith.constant 1.000000e+00 : f32
    %1171 = vector.broadcast %cst_222 : f32 to vector<8x32xf32>
    %1172 = arith.addf %1171, %1170 : vector<8x32xf32>
    %1173 = arith.divf %1171, %1172 : vector<8x32xf32>
    %1174 = vector.extract_strided_slice %1154 {offsets = [0, 64], sizes = [8, 32], strides = [1, 1]} : vector<8x96xf32> to vector<8x32xf32>
    %1175 = vector.extract_strided_slice %1157 {offsets = [0, 64], sizes = [8, 32], strides = [1, 1]} : vector<8x96xf32> to vector<8x32xf32>
    %1176 = arith.mulf %1165, %1175 : vector<8x32xf32>
    %1177 = arith.addf %1174, %1176 : vector<8x32xf32>
    %1178 = math.tanh %1177 : vector<8x32xf32>
    %cst_223 = arith.constant 1.000000e+00 : f32
    %1179 = vector.broadcast %cst_223 : f32 to vector<8x32xf32>
    %1180 = arith.subf %1179, %1173 : vector<8x32xf32>
    %1181 = arith.mulf %1180, %1178 : vector<8x32xf32>
    %1182 = arith.mulf %1173, %1126 : vector<8x32xf32>
    %1183 = arith.addf %1181, %1182 : vector<8x32xf32>
    %1184 = tpu.concatenate %1183, %1152 in 1 : vector<8x32xf32>, vector<8x32xf32> -> vector<8x64xf32>
    %cst_224 = arith.constant dense<0.000000e+00> : vector<8x128xf32>
    %1185 = tpu.matmul %1184, %2, %cst_224 {dimension_numbers = #tpu.dot_dimension_numbers<[1], [0], [0], [1], [0, 0, 1, 1], [], []>} : vector<8x64xf32>, vector<64x128xf32>, vector<8x128xf32> -> vector<8x128xf32>
    %1186 = vector.broadcast %3 : vector<1x128xf32> to vector<8x128xf32>
    %1187 = arith.addf %1185, %1186 : vector<8x128xf32>
    %1188 = vector.extract_strided_slice %1187 {offsets = [0, 0], sizes = [8, 32], strides = [1, 1]} : vector<8x128xf32> to vector<8x32xf32>
    %1189 = arith.negf %1188 : vector<8x32xf32>
    %1190 = math.exp %1189 : vector<8x32xf32>
    %cst_225 = arith.constant 1.000000e+00 : f32
    %1191 = vector.broadcast %cst_225 : f32 to vector<8x32xf32>
    %1192 = arith.addf %1191, %1190 : vector<8x32xf32>
    %1193 = arith.divf %1191, %1192 : vector<8x32xf32>
    %1194 = vector.extract_strided_slice %1187 {offsets = [0, 32], sizes = [8, 32], strides = [1, 1]} : vector<8x128xf32> to vector<8x32xf32>
    %1195 = arith.negf %1194 : vector<8x32xf32>
    %1196 = math.exp %1195 : vector<8x32xf32>
    %cst_226 = arith.constant 1.000000e+00 : f32
    %1197 = vector.broadcast %cst_226 : f32 to vector<8x32xf32>
    %1198 = arith.addf %1197, %1196 : vector<8x32xf32>
    %1199 = arith.divf %1197, %1198 : vector<8x32xf32>
    %1200 = vector.extract_strided_slice %1187 {offsets = [0, 64], sizes = [8, 32], strides = [1, 1]} : vector<8x128xf32> to vector<8x32xf32>
    %1201 = vector.extract_strided_slice %1187 {offsets = [0, 96], sizes = [8, 32], strides = [1, 1]} : vector<8x128xf32> to vector<8x32xf32>
    %1202 = arith.mulf %1193, %1201 : vector<8x32xf32>
    %1203 = arith.addf %1200, %1202 : vector<8x32xf32>
    %1204 = math.tanh %1203 : vector<8x32xf32>
    %cst_227 = arith.constant 1.000000e+00 : f32
    %1205 = vector.broadcast %cst_227 : f32 to vector<8x32xf32>
    %1206 = arith.subf %1205, %1199 : vector<8x32xf32>
    %1207 = arith.mulf %1206, %1204 : vector<8x32xf32>
    %1208 = arith.mulf %1199, %1152 : vector<8x32xf32>
    %1209 = arith.addf %1207, %1208 : vector<8x32xf32>
    %c21 = arith.constant 21 : index
    %c0_228 = arith.constant 0 : index
    %c0_229 = arith.constant 0 : index
    %1210 = vector.load %arg1[%c21, %c0_228, %c0_229] : memref<32x8x96xf32, #tpu.memory_space<vmem>>, vector<1x8x96xf32>
    %1211 = vector.shape_cast %1210 : vector<1x8x96xf32> to vector<8x96xf32>
    %cst_230 = arith.constant dense<0.000000e+00> : vector<8x96xf32>
    %1212 = tpu.matmul %1183, %0, %cst_230 {dimension_numbers = #tpu.dot_dimension_numbers<[1], [0], [0], [1], [0, 0, 1, 1], [], []>} : vector<8x32xf32>, vector<32x96xf32>, vector<8x96xf32> -> vector<8x96xf32>
    %1213 = vector.broadcast %1 : vector<1x96xf32> to vector<8x96xf32>
    %1214 = arith.addf %1212, %1213 : vector<8x96xf32>
    %1215 = vector.extract_strided_slice %1211 {offsets = [0, 0], sizes = [8, 32], strides = [1, 1]} : vector<8x96xf32> to vector<8x32xf32>
    %1216 = vector.extract_strided_slice %1214 {offsets = [0, 0], sizes = [8, 32], strides = [1, 1]} : vector<8x96xf32> to vector<8x32xf32>
    %1217 = arith.addf %1215, %1216 : vector<8x32xf32>
    %1218 = arith.negf %1217 : vector<8x32xf32>
    %1219 = math.exp %1218 : vector<8x32xf32>
    %cst_231 = arith.constant 1.000000e+00 : f32
    %1220 = vector.broadcast %cst_231 : f32 to vector<8x32xf32>
    %1221 = arith.addf %1220, %1219 : vector<8x32xf32>
    %1222 = arith.divf %1220, %1221 : vector<8x32xf32>
    %1223 = vector.extract_strided_slice %1211 {offsets = [0, 32], sizes = [8, 32], strides = [1, 1]} : vector<8x96xf32> to vector<8x32xf32>
    %1224 = vector.extract_strided_slice %1214 {offsets = [0, 32], sizes = [8, 32], strides = [1, 1]} : vector<8x96xf32> to vector<8x32xf32>
    %1225 = arith.addf %1223, %1224 : vector<8x32xf32>
    %1226 = arith.negf %1225 : vector<8x32xf32>
    %1227 = math.exp %1226 : vector<8x32xf32>
    %cst_232 = arith.constant 1.000000e+00 : f32
    %1228 = vector.broadcast %cst_232 : f32 to vector<8x32xf32>
    %1229 = arith.addf %1228, %1227 : vector<8x32xf32>
    %1230 = arith.divf %1228, %1229 : vector<8x32xf32>
    %1231 = vector.extract_strided_slice %1211 {offsets = [0, 64], sizes = [8, 32], strides = [1, 1]} : vector<8x96xf32> to vector<8x32xf32>
    %1232 = vector.extract_strided_slice %1214 {offsets = [0, 64], sizes = [8, 32], strides = [1, 1]} : vector<8x96xf32> to vector<8x32xf32>
    %1233 = arith.mulf %1222, %1232 : vector<8x32xf32>
    %1234 = arith.addf %1231, %1233 : vector<8x32xf32>
    %1235 = math.tanh %1234 : vector<8x32xf32>
    %cst_233 = arith.constant 1.000000e+00 : f32
    %1236 = vector.broadcast %cst_233 : f32 to vector<8x32xf32>
    %1237 = arith.subf %1236, %1230 : vector<8x32xf32>
    %1238 = arith.mulf %1237, %1235 : vector<8x32xf32>
    %1239 = arith.mulf %1230, %1183 : vector<8x32xf32>
    %1240 = arith.addf %1238, %1239 : vector<8x32xf32>
    %1241 = tpu.concatenate %1240, %1209 in 1 : vector<8x32xf32>, vector<8x32xf32> -> vector<8x64xf32>
    %cst_234 = arith.constant dense<0.000000e+00> : vector<8x128xf32>
    %1242 = tpu.matmul %1241, %2, %cst_234 {dimension_numbers = #tpu.dot_dimension_numbers<[1], [0], [0], [1], [0, 0, 1, 1], [], []>} : vector<8x64xf32>, vector<64x128xf32>, vector<8x128xf32> -> vector<8x128xf32>
    %1243 = vector.broadcast %3 : vector<1x128xf32> to vector<8x128xf32>
    %1244 = arith.addf %1242, %1243 : vector<8x128xf32>
    %1245 = vector.extract_strided_slice %1244 {offsets = [0, 0], sizes = [8, 32], strides = [1, 1]} : vector<8x128xf32> to vector<8x32xf32>
    %1246 = arith.negf %1245 : vector<8x32xf32>
    %1247 = math.exp %1246 : vector<8x32xf32>
    %cst_235 = arith.constant 1.000000e+00 : f32
    %1248 = vector.broadcast %cst_235 : f32 to vector<8x32xf32>
    %1249 = arith.addf %1248, %1247 : vector<8x32xf32>
    %1250 = arith.divf %1248, %1249 : vector<8x32xf32>
    %1251 = vector.extract_strided_slice %1244 {offsets = [0, 32], sizes = [8, 32], strides = [1, 1]} : vector<8x128xf32> to vector<8x32xf32>
    %1252 = arith.negf %1251 : vector<8x32xf32>
    %1253 = math.exp %1252 : vector<8x32xf32>
    %cst_236 = arith.constant 1.000000e+00 : f32
    %1254 = vector.broadcast %cst_236 : f32 to vector<8x32xf32>
    %1255 = arith.addf %1254, %1253 : vector<8x32xf32>
    %1256 = arith.divf %1254, %1255 : vector<8x32xf32>
    %1257 = vector.extract_strided_slice %1244 {offsets = [0, 64], sizes = [8, 32], strides = [1, 1]} : vector<8x128xf32> to vector<8x32xf32>
    %1258 = vector.extract_strided_slice %1244 {offsets = [0, 96], sizes = [8, 32], strides = [1, 1]} : vector<8x128xf32> to vector<8x32xf32>
    %1259 = arith.mulf %1250, %1258 : vector<8x32xf32>
    %1260 = arith.addf %1257, %1259 : vector<8x32xf32>
    %1261 = math.tanh %1260 : vector<8x32xf32>
    %cst_237 = arith.constant 1.000000e+00 : f32
    %1262 = vector.broadcast %cst_237 : f32 to vector<8x32xf32>
    %1263 = arith.subf %1262, %1256 : vector<8x32xf32>
    %1264 = arith.mulf %1263, %1261 : vector<8x32xf32>
    %1265 = arith.mulf %1256, %1209 : vector<8x32xf32>
    %1266 = arith.addf %1264, %1265 : vector<8x32xf32>
    %c22 = arith.constant 22 : index
    %c0_238 = arith.constant 0 : index
    %c0_239 = arith.constant 0 : index
    %1267 = vector.load %arg1[%c22, %c0_238, %c0_239] : memref<32x8x96xf32, #tpu.memory_space<vmem>>, vector<1x8x96xf32>
    %1268 = vector.shape_cast %1267 : vector<1x8x96xf32> to vector<8x96xf32>
    %cst_240 = arith.constant dense<0.000000e+00> : vector<8x96xf32>
    %1269 = tpu.matmul %1240, %0, %cst_240 {dimension_numbers = #tpu.dot_dimension_numbers<[1], [0], [0], [1], [0, 0, 1, 1], [], []>} : vector<8x32xf32>, vector<32x96xf32>, vector<8x96xf32> -> vector<8x96xf32>
    %1270 = vector.broadcast %1 : vector<1x96xf32> to vector<8x96xf32>
    %1271 = arith.addf %1269, %1270 : vector<8x96xf32>
    %1272 = vector.extract_strided_slice %1268 {offsets = [0, 0], sizes = [8, 32], strides = [1, 1]} : vector<8x96xf32> to vector<8x32xf32>
    %1273 = vector.extract_strided_slice %1271 {offsets = [0, 0], sizes = [8, 32], strides = [1, 1]} : vector<8x96xf32> to vector<8x32xf32>
    %1274 = arith.addf %1272, %1273 : vector<8x32xf32>
    %1275 = arith.negf %1274 : vector<8x32xf32>
    %1276 = math.exp %1275 : vector<8x32xf32>
    %cst_241 = arith.constant 1.000000e+00 : f32
    %1277 = vector.broadcast %cst_241 : f32 to vector<8x32xf32>
    %1278 = arith.addf %1277, %1276 : vector<8x32xf32>
    %1279 = arith.divf %1277, %1278 : vector<8x32xf32>
    %1280 = vector.extract_strided_slice %1268 {offsets = [0, 32], sizes = [8, 32], strides = [1, 1]} : vector<8x96xf32> to vector<8x32xf32>
    %1281 = vector.extract_strided_slice %1271 {offsets = [0, 32], sizes = [8, 32], strides = [1, 1]} : vector<8x96xf32> to vector<8x32xf32>
    %1282 = arith.addf %1280, %1281 : vector<8x32xf32>
    %1283 = arith.negf %1282 : vector<8x32xf32>
    %1284 = math.exp %1283 : vector<8x32xf32>
    %cst_242 = arith.constant 1.000000e+00 : f32
    %1285 = vector.broadcast %cst_242 : f32 to vector<8x32xf32>
    %1286 = arith.addf %1285, %1284 : vector<8x32xf32>
    %1287 = arith.divf %1285, %1286 : vector<8x32xf32>
    %1288 = vector.extract_strided_slice %1268 {offsets = [0, 64], sizes = [8, 32], strides = [1, 1]} : vector<8x96xf32> to vector<8x32xf32>
    %1289 = vector.extract_strided_slice %1271 {offsets = [0, 64], sizes = [8, 32], strides = [1, 1]} : vector<8x96xf32> to vector<8x32xf32>
    %1290 = arith.mulf %1279, %1289 : vector<8x32xf32>
    %1291 = arith.addf %1288, %1290 : vector<8x32xf32>
    %1292 = math.tanh %1291 : vector<8x32xf32>
    %cst_243 = arith.constant 1.000000e+00 : f32
    %1293 = vector.broadcast %cst_243 : f32 to vector<8x32xf32>
    %1294 = arith.subf %1293, %1287 : vector<8x32xf32>
    %1295 = arith.mulf %1294, %1292 : vector<8x32xf32>
    %1296 = arith.mulf %1287, %1240 : vector<8x32xf32>
    %1297 = arith.addf %1295, %1296 : vector<8x32xf32>
    %1298 = tpu.concatenate %1297, %1266 in 1 : vector<8x32xf32>, vector<8x32xf32> -> vector<8x64xf32>
    %cst_244 = arith.constant dense<0.000000e+00> : vector<8x128xf32>
    %1299 = tpu.matmul %1298, %2, %cst_244 {dimension_numbers = #tpu.dot_dimension_numbers<[1], [0], [0], [1], [0, 0, 1, 1], [], []>} : vector<8x64xf32>, vector<64x128xf32>, vector<8x128xf32> -> vector<8x128xf32>
    %1300 = vector.broadcast %3 : vector<1x128xf32> to vector<8x128xf32>
    %1301 = arith.addf %1299, %1300 : vector<8x128xf32>
    %1302 = vector.extract_strided_slice %1301 {offsets = [0, 0], sizes = [8, 32], strides = [1, 1]} : vector<8x128xf32> to vector<8x32xf32>
    %1303 = arith.negf %1302 : vector<8x32xf32>
    %1304 = math.exp %1303 : vector<8x32xf32>
    %cst_245 = arith.constant 1.000000e+00 : f32
    %1305 = vector.broadcast %cst_245 : f32 to vector<8x32xf32>
    %1306 = arith.addf %1305, %1304 : vector<8x32xf32>
    %1307 = arith.divf %1305, %1306 : vector<8x32xf32>
    %1308 = vector.extract_strided_slice %1301 {offsets = [0, 32], sizes = [8, 32], strides = [1, 1]} : vector<8x128xf32> to vector<8x32xf32>
    %1309 = arith.negf %1308 : vector<8x32xf32>
    %1310 = math.exp %1309 : vector<8x32xf32>
    %cst_246 = arith.constant 1.000000e+00 : f32
    %1311 = vector.broadcast %cst_246 : f32 to vector<8x32xf32>
    %1312 = arith.addf %1311, %1310 : vector<8x32xf32>
    %1313 = arith.divf %1311, %1312 : vector<8x32xf32>
    %1314 = vector.extract_strided_slice %1301 {offsets = [0, 64], sizes = [8, 32], strides = [1, 1]} : vector<8x128xf32> to vector<8x32xf32>
    %1315 = vector.extract_strided_slice %1301 {offsets = [0, 96], sizes = [8, 32], strides = [1, 1]} : vector<8x128xf32> to vector<8x32xf32>
    %1316 = arith.mulf %1307, %1315 : vector<8x32xf32>
    %1317 = arith.addf %1314, %1316 : vector<8x32xf32>
    %1318 = math.tanh %1317 : vector<8x32xf32>
    %cst_247 = arith.constant 1.000000e+00 : f32
    %1319 = vector.broadcast %cst_247 : f32 to vector<8x32xf32>
    %1320 = arith.subf %1319, %1313 : vector<8x32xf32>
    %1321 = arith.mulf %1320, %1318 : vector<8x32xf32>
    %1322 = arith.mulf %1313, %1266 : vector<8x32xf32>
    %1323 = arith.addf %1321, %1322 : vector<8x32xf32>
    %c23 = arith.constant 23 : index
    %c0_248 = arith.constant 0 : index
    %c0_249 = arith.constant 0 : index
    %1324 = vector.load %arg1[%c23, %c0_248, %c0_249] : memref<32x8x96xf32, #tpu.memory_space<vmem>>, vector<1x8x96xf32>
    %1325 = vector.shape_cast %1324 : vector<1x8x96xf32> to vector<8x96xf32>
    %cst_250 = arith.constant dense<0.000000e+00> : vector<8x96xf32>
    %1326 = tpu.matmul %1297, %0, %cst_250 {dimension_numbers = #tpu.dot_dimension_numbers<[1], [0], [0], [1], [0, 0, 1, 1], [], []>} : vector<8x32xf32>, vector<32x96xf32>, vector<8x96xf32> -> vector<8x96xf32>
    %1327 = vector.broadcast %1 : vector<1x96xf32> to vector<8x96xf32>
    %1328 = arith.addf %1326, %1327 : vector<8x96xf32>
    %1329 = vector.extract_strided_slice %1325 {offsets = [0, 0], sizes = [8, 32], strides = [1, 1]} : vector<8x96xf32> to vector<8x32xf32>
    %1330 = vector.extract_strided_slice %1328 {offsets = [0, 0], sizes = [8, 32], strides = [1, 1]} : vector<8x96xf32> to vector<8x32xf32>
    %1331 = arith.addf %1329, %1330 : vector<8x32xf32>
    %1332 = arith.negf %1331 : vector<8x32xf32>
    %1333 = math.exp %1332 : vector<8x32xf32>
    %cst_251 = arith.constant 1.000000e+00 : f32
    %1334 = vector.broadcast %cst_251 : f32 to vector<8x32xf32>
    %1335 = arith.addf %1334, %1333 : vector<8x32xf32>
    %1336 = arith.divf %1334, %1335 : vector<8x32xf32>
    %1337 = vector.extract_strided_slice %1325 {offsets = [0, 32], sizes = [8, 32], strides = [1, 1]} : vector<8x96xf32> to vector<8x32xf32>
    %1338 = vector.extract_strided_slice %1328 {offsets = [0, 32], sizes = [8, 32], strides = [1, 1]} : vector<8x96xf32> to vector<8x32xf32>
    %1339 = arith.addf %1337, %1338 : vector<8x32xf32>
    %1340 = arith.negf %1339 : vector<8x32xf32>
    %1341 = math.exp %1340 : vector<8x32xf32>
    %cst_252 = arith.constant 1.000000e+00 : f32
    %1342 = vector.broadcast %cst_252 : f32 to vector<8x32xf32>
    %1343 = arith.addf %1342, %1341 : vector<8x32xf32>
    %1344 = arith.divf %1342, %1343 : vector<8x32xf32>
    %1345 = vector.extract_strided_slice %1325 {offsets = [0, 64], sizes = [8, 32], strides = [1, 1]} : vector<8x96xf32> to vector<8x32xf32>
    %1346 = vector.extract_strided_slice %1328 {offsets = [0, 64], sizes = [8, 32], strides = [1, 1]} : vector<8x96xf32> to vector<8x32xf32>
    %1347 = arith.mulf %1336, %1346 : vector<8x32xf32>
    %1348 = arith.addf %1345, %1347 : vector<8x32xf32>
    %1349 = math.tanh %1348 : vector<8x32xf32>
    %cst_253 = arith.constant 1.000000e+00 : f32
    %1350 = vector.broadcast %cst_253 : f32 to vector<8x32xf32>
    %1351 = arith.subf %1350, %1344 : vector<8x32xf32>
    %1352 = arith.mulf %1351, %1349 : vector<8x32xf32>
    %1353 = arith.mulf %1344, %1297 : vector<8x32xf32>
    %1354 = arith.addf %1352, %1353 : vector<8x32xf32>
    %1355 = tpu.concatenate %1354, %1323 in 1 : vector<8x32xf32>, vector<8x32xf32> -> vector<8x64xf32>
    %cst_254 = arith.constant dense<0.000000e+00> : vector<8x128xf32>
    %1356 = tpu.matmul %1355, %2, %cst_254 {dimension_numbers = #tpu.dot_dimension_numbers<[1], [0], [0], [1], [0, 0, 1, 1], [], []>} : vector<8x64xf32>, vector<64x128xf32>, vector<8x128xf32> -> vector<8x128xf32>
    %1357 = vector.broadcast %3 : vector<1x128xf32> to vector<8x128xf32>
    %1358 = arith.addf %1356, %1357 : vector<8x128xf32>
    %1359 = vector.extract_strided_slice %1358 {offsets = [0, 0], sizes = [8, 32], strides = [1, 1]} : vector<8x128xf32> to vector<8x32xf32>
    %1360 = arith.negf %1359 : vector<8x32xf32>
    %1361 = math.exp %1360 : vector<8x32xf32>
    %cst_255 = arith.constant 1.000000e+00 : f32
    %1362 = vector.broadcast %cst_255 : f32 to vector<8x32xf32>
    %1363 = arith.addf %1362, %1361 : vector<8x32xf32>
    %1364 = arith.divf %1362, %1363 : vector<8x32xf32>
    %1365 = vector.extract_strided_slice %1358 {offsets = [0, 32], sizes = [8, 32], strides = [1, 1]} : vector<8x128xf32> to vector<8x32xf32>
    %1366 = arith.negf %1365 : vector<8x32xf32>
    %1367 = math.exp %1366 : vector<8x32xf32>
    %cst_256 = arith.constant 1.000000e+00 : f32
    %1368 = vector.broadcast %cst_256 : f32 to vector<8x32xf32>
    %1369 = arith.addf %1368, %1367 : vector<8x32xf32>
    %1370 = arith.divf %1368, %1369 : vector<8x32xf32>
    %1371 = vector.extract_strided_slice %1358 {offsets = [0, 64], sizes = [8, 32], strides = [1, 1]} : vector<8x128xf32> to vector<8x32xf32>
    %1372 = vector.extract_strided_slice %1358 {offsets = [0, 96], sizes = [8, 32], strides = [1, 1]} : vector<8x128xf32> to vector<8x32xf32>
    %1373 = arith.mulf %1364, %1372 : vector<8x32xf32>
    %1374 = arith.addf %1371, %1373 : vector<8x32xf32>
    %1375 = math.tanh %1374 : vector<8x32xf32>
    %cst_257 = arith.constant 1.000000e+00 : f32
    %1376 = vector.broadcast %cst_257 : f32 to vector<8x32xf32>
    %1377 = arith.subf %1376, %1370 : vector<8x32xf32>
    %1378 = arith.mulf %1377, %1375 : vector<8x32xf32>
    %1379 = arith.mulf %1370, %1323 : vector<8x32xf32>
    %1380 = arith.addf %1378, %1379 : vector<8x32xf32>
    %c24 = arith.constant 24 : index
    %c0_258 = arith.constant 0 : index
    %c0_259 = arith.constant 0 : index
    %1381 = vector.load %arg1[%c24, %c0_258, %c0_259] : memref<32x8x96xf32, #tpu.memory_space<vmem>>, vector<1x8x96xf32>
    %1382 = vector.shape_cast %1381 : vector<1x8x96xf32> to vector<8x96xf32>
    %cst_260 = arith.constant dense<0.000000e+00> : vector<8x96xf32>
    %1383 = tpu.matmul %1354, %0, %cst_260 {dimension_numbers = #tpu.dot_dimension_numbers<[1], [0], [0], [1], [0, 0, 1, 1], [], []>} : vector<8x32xf32>, vector<32x96xf32>, vector<8x96xf32> -> vector<8x96xf32>
    %1384 = vector.broadcast %1 : vector<1x96xf32> to vector<8x96xf32>
    %1385 = arith.addf %1383, %1384 : vector<8x96xf32>
    %1386 = vector.extract_strided_slice %1382 {offsets = [0, 0], sizes = [8, 32], strides = [1, 1]} : vector<8x96xf32> to vector<8x32xf32>
    %1387 = vector.extract_strided_slice %1385 {offsets = [0, 0], sizes = [8, 32], strides = [1, 1]} : vector<8x96xf32> to vector<8x32xf32>
    %1388 = arith.addf %1386, %1387 : vector<8x32xf32>
    %1389 = arith.negf %1388 : vector<8x32xf32>
    %1390 = math.exp %1389 : vector<8x32xf32>
    %cst_261 = arith.constant 1.000000e+00 : f32
    %1391 = vector.broadcast %cst_261 : f32 to vector<8x32xf32>
    %1392 = arith.addf %1391, %1390 : vector<8x32xf32>
    %1393 = arith.divf %1391, %1392 : vector<8x32xf32>
    %1394 = vector.extract_strided_slice %1382 {offsets = [0, 32], sizes = [8, 32], strides = [1, 1]} : vector<8x96xf32> to vector<8x32xf32>
    %1395 = vector.extract_strided_slice %1385 {offsets = [0, 32], sizes = [8, 32], strides = [1, 1]} : vector<8x96xf32> to vector<8x32xf32>
    %1396 = arith.addf %1394, %1395 : vector<8x32xf32>
    %1397 = arith.negf %1396 : vector<8x32xf32>
    %1398 = math.exp %1397 : vector<8x32xf32>
    %cst_262 = arith.constant 1.000000e+00 : f32
    %1399 = vector.broadcast %cst_262 : f32 to vector<8x32xf32>
    %1400 = arith.addf %1399, %1398 : vector<8x32xf32>
    %1401 = arith.divf %1399, %1400 : vector<8x32xf32>
    %1402 = vector.extract_strided_slice %1382 {offsets = [0, 64], sizes = [8, 32], strides = [1, 1]} : vector<8x96xf32> to vector<8x32xf32>
    %1403 = vector.extract_strided_slice %1385 {offsets = [0, 64], sizes = [8, 32], strides = [1, 1]} : vector<8x96xf32> to vector<8x32xf32>
    %1404 = arith.mulf %1393, %1403 : vector<8x32xf32>
    %1405 = arith.addf %1402, %1404 : vector<8x32xf32>
    %1406 = math.tanh %1405 : vector<8x32xf32>
    %cst_263 = arith.constant 1.000000e+00 : f32
    %1407 = vector.broadcast %cst_263 : f32 to vector<8x32xf32>
    %1408 = arith.subf %1407, %1401 : vector<8x32xf32>
    %1409 = arith.mulf %1408, %1406 : vector<8x32xf32>
    %1410 = arith.mulf %1401, %1354 : vector<8x32xf32>
    %1411 = arith.addf %1409, %1410 : vector<8x32xf32>
    %1412 = tpu.concatenate %1411, %1380 in 1 : vector<8x32xf32>, vector<8x32xf32> -> vector<8x64xf32>
    %cst_264 = arith.constant dense<0.000000e+00> : vector<8x128xf32>
    %1413 = tpu.matmul %1412, %2, %cst_264 {dimension_numbers = #tpu.dot_dimension_numbers<[1], [0], [0], [1], [0, 0, 1, 1], [], []>} : vector<8x64xf32>, vector<64x128xf32>, vector<8x128xf32> -> vector<8x128xf32>
    %1414 = vector.broadcast %3 : vector<1x128xf32> to vector<8x128xf32>
    %1415 = arith.addf %1413, %1414 : vector<8x128xf32>
    %1416 = vector.extract_strided_slice %1415 {offsets = [0, 0], sizes = [8, 32], strides = [1, 1]} : vector<8x128xf32> to vector<8x32xf32>
    %1417 = arith.negf %1416 : vector<8x32xf32>
    %1418 = math.exp %1417 : vector<8x32xf32>
    %cst_265 = arith.constant 1.000000e+00 : f32
    %1419 = vector.broadcast %cst_265 : f32 to vector<8x32xf32>
    %1420 = arith.addf %1419, %1418 : vector<8x32xf32>
    %1421 = arith.divf %1419, %1420 : vector<8x32xf32>
    %1422 = vector.extract_strided_slice %1415 {offsets = [0, 32], sizes = [8, 32], strides = [1, 1]} : vector<8x128xf32> to vector<8x32xf32>
    %1423 = arith.negf %1422 : vector<8x32xf32>
    %1424 = math.exp %1423 : vector<8x32xf32>
    %cst_266 = arith.constant 1.000000e+00 : f32
    %1425 = vector.broadcast %cst_266 : f32 to vector<8x32xf32>
    %1426 = arith.addf %1425, %1424 : vector<8x32xf32>
    %1427 = arith.divf %1425, %1426 : vector<8x32xf32>
    %1428 = vector.extract_strided_slice %1415 {offsets = [0, 64], sizes = [8, 32], strides = [1, 1]} : vector<8x128xf32> to vector<8x32xf32>
    %1429 = vector.extract_strided_slice %1415 {offsets = [0, 96], sizes = [8, 32], strides = [1, 1]} : vector<8x128xf32> to vector<8x32xf32>
    %1430 = arith.mulf %1421, %1429 : vector<8x32xf32>
    %1431 = arith.addf %1428, %1430 : vector<8x32xf32>
    %1432 = math.tanh %1431 : vector<8x32xf32>
    %cst_267 = arith.constant 1.000000e+00 : f32
    %1433 = vector.broadcast %cst_267 : f32 to vector<8x32xf32>
    %1434 = arith.subf %1433, %1427 : vector<8x32xf32>
    %1435 = arith.mulf %1434, %1432 : vector<8x32xf32>
    %1436 = arith.mulf %1427, %1380 : vector<8x32xf32>
    %1437 = arith.addf %1435, %1436 : vector<8x32xf32>
    %c25 = arith.constant 25 : index
    %c0_268 = arith.constant 0 : index
    %c0_269 = arith.constant 0 : index
    %1438 = vector.load %arg1[%c25, %c0_268, %c0_269] : memref<32x8x96xf32, #tpu.memory_space<vmem>>, vector<1x8x96xf32>
    %1439 = vector.shape_cast %1438 : vector<1x8x96xf32> to vector<8x96xf32>
    %cst_270 = arith.constant dense<0.000000e+00> : vector<8x96xf32>
    %1440 = tpu.matmul %1411, %0, %cst_270 {dimension_numbers = #tpu.dot_dimension_numbers<[1], [0], [0], [1], [0, 0, 1, 1], [], []>} : vector<8x32xf32>, vector<32x96xf32>, vector<8x96xf32> -> vector<8x96xf32>
    %1441 = vector.broadcast %1 : vector<1x96xf32> to vector<8x96xf32>
    %1442 = arith.addf %1440, %1441 : vector<8x96xf32>
    %1443 = vector.extract_strided_slice %1439 {offsets = [0, 0], sizes = [8, 32], strides = [1, 1]} : vector<8x96xf32> to vector<8x32xf32>
    %1444 = vector.extract_strided_slice %1442 {offsets = [0, 0], sizes = [8, 32], strides = [1, 1]} : vector<8x96xf32> to vector<8x32xf32>
    %1445 = arith.addf %1443, %1444 : vector<8x32xf32>
    %1446 = arith.negf %1445 : vector<8x32xf32>
    %1447 = math.exp %1446 : vector<8x32xf32>
    %cst_271 = arith.constant 1.000000e+00 : f32
    %1448 = vector.broadcast %cst_271 : f32 to vector<8x32xf32>
    %1449 = arith.addf %1448, %1447 : vector<8x32xf32>
    %1450 = arith.divf %1448, %1449 : vector<8x32xf32>
    %1451 = vector.extract_strided_slice %1439 {offsets = [0, 32], sizes = [8, 32], strides = [1, 1]} : vector<8x96xf32> to vector<8x32xf32>
    %1452 = vector.extract_strided_slice %1442 {offsets = [0, 32], sizes = [8, 32], strides = [1, 1]} : vector<8x96xf32> to vector<8x32xf32>
    %1453 = arith.addf %1451, %1452 : vector<8x32xf32>
    %1454 = arith.negf %1453 : vector<8x32xf32>
    %1455 = math.exp %1454 : vector<8x32xf32>
    %cst_272 = arith.constant 1.000000e+00 : f32
    %1456 = vector.broadcast %cst_272 : f32 to vector<8x32xf32>
    %1457 = arith.addf %1456, %1455 : vector<8x32xf32>
    %1458 = arith.divf %1456, %1457 : vector<8x32xf32>
    %1459 = vector.extract_strided_slice %1439 {offsets = [0, 64], sizes = [8, 32], strides = [1, 1]} : vector<8x96xf32> to vector<8x32xf32>
    %1460 = vector.extract_strided_slice %1442 {offsets = [0, 64], sizes = [8, 32], strides = [1, 1]} : vector<8x96xf32> to vector<8x32xf32>
    %1461 = arith.mulf %1450, %1460 : vector<8x32xf32>
    %1462 = arith.addf %1459, %1461 : vector<8x32xf32>
    %1463 = math.tanh %1462 : vector<8x32xf32>
    %cst_273 = arith.constant 1.000000e+00 : f32
    %1464 = vector.broadcast %cst_273 : f32 to vector<8x32xf32>
    %1465 = arith.subf %1464, %1458 : vector<8x32xf32>
    %1466 = arith.mulf %1465, %1463 : vector<8x32xf32>
    %1467 = arith.mulf %1458, %1411 : vector<8x32xf32>
    %1468 = arith.addf %1466, %1467 : vector<8x32xf32>
    %1469 = tpu.concatenate %1468, %1437 in 1 : vector<8x32xf32>, vector<8x32xf32> -> vector<8x64xf32>
    %cst_274 = arith.constant dense<0.000000e+00> : vector<8x128xf32>
    %1470 = tpu.matmul %1469, %2, %cst_274 {dimension_numbers = #tpu.dot_dimension_numbers<[1], [0], [0], [1], [0, 0, 1, 1], [], []>} : vector<8x64xf32>, vector<64x128xf32>, vector<8x128xf32> -> vector<8x128xf32>
    %1471 = vector.broadcast %3 : vector<1x128xf32> to vector<8x128xf32>
    %1472 = arith.addf %1470, %1471 : vector<8x128xf32>
    %1473 = vector.extract_strided_slice %1472 {offsets = [0, 0], sizes = [8, 32], strides = [1, 1]} : vector<8x128xf32> to vector<8x32xf32>
    %1474 = arith.negf %1473 : vector<8x32xf32>
    %1475 = math.exp %1474 : vector<8x32xf32>
    %cst_275 = arith.constant 1.000000e+00 : f32
    %1476 = vector.broadcast %cst_275 : f32 to vector<8x32xf32>
    %1477 = arith.addf %1476, %1475 : vector<8x32xf32>
    %1478 = arith.divf %1476, %1477 : vector<8x32xf32>
    %1479 = vector.extract_strided_slice %1472 {offsets = [0, 32], sizes = [8, 32], strides = [1, 1]} : vector<8x128xf32> to vector<8x32xf32>
    %1480 = arith.negf %1479 : vector<8x32xf32>
    %1481 = math.exp %1480 : vector<8x32xf32>
    %cst_276 = arith.constant 1.000000e+00 : f32
    %1482 = vector.broadcast %cst_276 : f32 to vector<8x32xf32>
    %1483 = arith.addf %1482, %1481 : vector<8x32xf32>
    %1484 = arith.divf %1482, %1483 : vector<8x32xf32>
    %1485 = vector.extract_strided_slice %1472 {offsets = [0, 64], sizes = [8, 32], strides = [1, 1]} : vector<8x128xf32> to vector<8x32xf32>
    %1486 = vector.extract_strided_slice %1472 {offsets = [0, 96], sizes = [8, 32], strides = [1, 1]} : vector<8x128xf32> to vector<8x32xf32>
    %1487 = arith.mulf %1478, %1486 : vector<8x32xf32>
    %1488 = arith.addf %1485, %1487 : vector<8x32xf32>
    %1489 = math.tanh %1488 : vector<8x32xf32>
    %cst_277 = arith.constant 1.000000e+00 : f32
    %1490 = vector.broadcast %cst_277 : f32 to vector<8x32xf32>
    %1491 = arith.subf %1490, %1484 : vector<8x32xf32>
    %1492 = arith.mulf %1491, %1489 : vector<8x32xf32>
    %1493 = arith.mulf %1484, %1437 : vector<8x32xf32>
    %1494 = arith.addf %1492, %1493 : vector<8x32xf32>
    %c26 = arith.constant 26 : index
    %c0_278 = arith.constant 0 : index
    %c0_279 = arith.constant 0 : index
    %1495 = vector.load %arg1[%c26, %c0_278, %c0_279] : memref<32x8x96xf32, #tpu.memory_space<vmem>>, vector<1x8x96xf32>
    %1496 = vector.shape_cast %1495 : vector<1x8x96xf32> to vector<8x96xf32>
    %cst_280 = arith.constant dense<0.000000e+00> : vector<8x96xf32>
    %1497 = tpu.matmul %1468, %0, %cst_280 {dimension_numbers = #tpu.dot_dimension_numbers<[1], [0], [0], [1], [0, 0, 1, 1], [], []>} : vector<8x32xf32>, vector<32x96xf32>, vector<8x96xf32> -> vector<8x96xf32>
    %1498 = vector.broadcast %1 : vector<1x96xf32> to vector<8x96xf32>
    %1499 = arith.addf %1497, %1498 : vector<8x96xf32>
    %1500 = vector.extract_strided_slice %1496 {offsets = [0, 0], sizes = [8, 32], strides = [1, 1]} : vector<8x96xf32> to vector<8x32xf32>
    %1501 = vector.extract_strided_slice %1499 {offsets = [0, 0], sizes = [8, 32], strides = [1, 1]} : vector<8x96xf32> to vector<8x32xf32>
    %1502 = arith.addf %1500, %1501 : vector<8x32xf32>
    %1503 = arith.negf %1502 : vector<8x32xf32>
    %1504 = math.exp %1503 : vector<8x32xf32>
    %cst_281 = arith.constant 1.000000e+00 : f32
    %1505 = vector.broadcast %cst_281 : f32 to vector<8x32xf32>
    %1506 = arith.addf %1505, %1504 : vector<8x32xf32>
    %1507 = arith.divf %1505, %1506 : vector<8x32xf32>
    %1508 = vector.extract_strided_slice %1496 {offsets = [0, 32], sizes = [8, 32], strides = [1, 1]} : vector<8x96xf32> to vector<8x32xf32>
    %1509 = vector.extract_strided_slice %1499 {offsets = [0, 32], sizes = [8, 32], strides = [1, 1]} : vector<8x96xf32> to vector<8x32xf32>
    %1510 = arith.addf %1508, %1509 : vector<8x32xf32>
    %1511 = arith.negf %1510 : vector<8x32xf32>
    %1512 = math.exp %1511 : vector<8x32xf32>
    %cst_282 = arith.constant 1.000000e+00 : f32
    %1513 = vector.broadcast %cst_282 : f32 to vector<8x32xf32>
    %1514 = arith.addf %1513, %1512 : vector<8x32xf32>
    %1515 = arith.divf %1513, %1514 : vector<8x32xf32>
    %1516 = vector.extract_strided_slice %1496 {offsets = [0, 64], sizes = [8, 32], strides = [1, 1]} : vector<8x96xf32> to vector<8x32xf32>
    %1517 = vector.extract_strided_slice %1499 {offsets = [0, 64], sizes = [8, 32], strides = [1, 1]} : vector<8x96xf32> to vector<8x32xf32>
    %1518 = arith.mulf %1507, %1517 : vector<8x32xf32>
    %1519 = arith.addf %1516, %1518 : vector<8x32xf32>
    %1520 = math.tanh %1519 : vector<8x32xf32>
    %cst_283 = arith.constant 1.000000e+00 : f32
    %1521 = vector.broadcast %cst_283 : f32 to vector<8x32xf32>
    %1522 = arith.subf %1521, %1515 : vector<8x32xf32>
    %1523 = arith.mulf %1522, %1520 : vector<8x32xf32>
    %1524 = arith.mulf %1515, %1468 : vector<8x32xf32>
    %1525 = arith.addf %1523, %1524 : vector<8x32xf32>
    %1526 = tpu.concatenate %1525, %1494 in 1 : vector<8x32xf32>, vector<8x32xf32> -> vector<8x64xf32>
    %cst_284 = arith.constant dense<0.000000e+00> : vector<8x128xf32>
    %1527 = tpu.matmul %1526, %2, %cst_284 {dimension_numbers = #tpu.dot_dimension_numbers<[1], [0], [0], [1], [0, 0, 1, 1], [], []>} : vector<8x64xf32>, vector<64x128xf32>, vector<8x128xf32> -> vector<8x128xf32>
    %1528 = vector.broadcast %3 : vector<1x128xf32> to vector<8x128xf32>
    %1529 = arith.addf %1527, %1528 : vector<8x128xf32>
    %1530 = vector.extract_strided_slice %1529 {offsets = [0, 0], sizes = [8, 32], strides = [1, 1]} : vector<8x128xf32> to vector<8x32xf32>
    %1531 = arith.negf %1530 : vector<8x32xf32>
    %1532 = math.exp %1531 : vector<8x32xf32>
    %cst_285 = arith.constant 1.000000e+00 : f32
    %1533 = vector.broadcast %cst_285 : f32 to vector<8x32xf32>
    %1534 = arith.addf %1533, %1532 : vector<8x32xf32>
    %1535 = arith.divf %1533, %1534 : vector<8x32xf32>
    %1536 = vector.extract_strided_slice %1529 {offsets = [0, 32], sizes = [8, 32], strides = [1, 1]} : vector<8x128xf32> to vector<8x32xf32>
    %1537 = arith.negf %1536 : vector<8x32xf32>
    %1538 = math.exp %1537 : vector<8x32xf32>
    %cst_286 = arith.constant 1.000000e+00 : f32
    %1539 = vector.broadcast %cst_286 : f32 to vector<8x32xf32>
    %1540 = arith.addf %1539, %1538 : vector<8x32xf32>
    %1541 = arith.divf %1539, %1540 : vector<8x32xf32>
    %1542 = vector.extract_strided_slice %1529 {offsets = [0, 64], sizes = [8, 32], strides = [1, 1]} : vector<8x128xf32> to vector<8x32xf32>
    %1543 = vector.extract_strided_slice %1529 {offsets = [0, 96], sizes = [8, 32], strides = [1, 1]} : vector<8x128xf32> to vector<8x32xf32>
    %1544 = arith.mulf %1535, %1543 : vector<8x32xf32>
    %1545 = arith.addf %1542, %1544 : vector<8x32xf32>
    %1546 = math.tanh %1545 : vector<8x32xf32>
    %cst_287 = arith.constant 1.000000e+00 : f32
    %1547 = vector.broadcast %cst_287 : f32 to vector<8x32xf32>
    %1548 = arith.subf %1547, %1541 : vector<8x32xf32>
    %1549 = arith.mulf %1548, %1546 : vector<8x32xf32>
    %1550 = arith.mulf %1541, %1494 : vector<8x32xf32>
    %1551 = arith.addf %1549, %1550 : vector<8x32xf32>
    %c27 = arith.constant 27 : index
    %c0_288 = arith.constant 0 : index
    %c0_289 = arith.constant 0 : index
    %1552 = vector.load %arg1[%c27, %c0_288, %c0_289] : memref<32x8x96xf32, #tpu.memory_space<vmem>>, vector<1x8x96xf32>
    %1553 = vector.shape_cast %1552 : vector<1x8x96xf32> to vector<8x96xf32>
    %cst_290 = arith.constant dense<0.000000e+00> : vector<8x96xf32>
    %1554 = tpu.matmul %1525, %0, %cst_290 {dimension_numbers = #tpu.dot_dimension_numbers<[1], [0], [0], [1], [0, 0, 1, 1], [], []>} : vector<8x32xf32>, vector<32x96xf32>, vector<8x96xf32> -> vector<8x96xf32>
    %1555 = vector.broadcast %1 : vector<1x96xf32> to vector<8x96xf32>
    %1556 = arith.addf %1554, %1555 : vector<8x96xf32>
    %1557 = vector.extract_strided_slice %1553 {offsets = [0, 0], sizes = [8, 32], strides = [1, 1]} : vector<8x96xf32> to vector<8x32xf32>
    %1558 = vector.extract_strided_slice %1556 {offsets = [0, 0], sizes = [8, 32], strides = [1, 1]} : vector<8x96xf32> to vector<8x32xf32>
    %1559 = arith.addf %1557, %1558 : vector<8x32xf32>
    %1560 = arith.negf %1559 : vector<8x32xf32>
    %1561 = math.exp %1560 : vector<8x32xf32>
    %cst_291 = arith.constant 1.000000e+00 : f32
    %1562 = vector.broadcast %cst_291 : f32 to vector<8x32xf32>
    %1563 = arith.addf %1562, %1561 : vector<8x32xf32>
    %1564 = arith.divf %1562, %1563 : vector<8x32xf32>
    %1565 = vector.extract_strided_slice %1553 {offsets = [0, 32], sizes = [8, 32], strides = [1, 1]} : vector<8x96xf32> to vector<8x32xf32>
    %1566 = vector.extract_strided_slice %1556 {offsets = [0, 32], sizes = [8, 32], strides = [1, 1]} : vector<8x96xf32> to vector<8x32xf32>
    %1567 = arith.addf %1565, %1566 : vector<8x32xf32>
    %1568 = arith.negf %1567 : vector<8x32xf32>
    %1569 = math.exp %1568 : vector<8x32xf32>
    %cst_292 = arith.constant 1.000000e+00 : f32
    %1570 = vector.broadcast %cst_292 : f32 to vector<8x32xf32>
    %1571 = arith.addf %1570, %1569 : vector<8x32xf32>
    %1572 = arith.divf %1570, %1571 : vector<8x32xf32>
    %1573 = vector.extract_strided_slice %1553 {offsets = [0, 64], sizes = [8, 32], strides = [1, 1]} : vector<8x96xf32> to vector<8x32xf32>
    %1574 = vector.extract_strided_slice %1556 {offsets = [0, 64], sizes = [8, 32], strides = [1, 1]} : vector<8x96xf32> to vector<8x32xf32>
    %1575 = arith.mulf %1564, %1574 : vector<8x32xf32>
    %1576 = arith.addf %1573, %1575 : vector<8x32xf32>
    %1577 = math.tanh %1576 : vector<8x32xf32>
    %cst_293 = arith.constant 1.000000e+00 : f32
    %1578 = vector.broadcast %cst_293 : f32 to vector<8x32xf32>
    %1579 = arith.subf %1578, %1572 : vector<8x32xf32>
    %1580 = arith.mulf %1579, %1577 : vector<8x32xf32>
    %1581 = arith.mulf %1572, %1525 : vector<8x32xf32>
    %1582 = arith.addf %1580, %1581 : vector<8x32xf32>
    %1583 = tpu.concatenate %1582, %1551 in 1 : vector<8x32xf32>, vector<8x32xf32> -> vector<8x64xf32>
    %cst_294 = arith.constant dense<0.000000e+00> : vector<8x128xf32>
    %1584 = tpu.matmul %1583, %2, %cst_294 {dimension_numbers = #tpu.dot_dimension_numbers<[1], [0], [0], [1], [0, 0, 1, 1], [], []>} : vector<8x64xf32>, vector<64x128xf32>, vector<8x128xf32> -> vector<8x128xf32>
    %1585 = vector.broadcast %3 : vector<1x128xf32> to vector<8x128xf32>
    %1586 = arith.addf %1584, %1585 : vector<8x128xf32>
    %1587 = vector.extract_strided_slice %1586 {offsets = [0, 0], sizes = [8, 32], strides = [1, 1]} : vector<8x128xf32> to vector<8x32xf32>
    %1588 = arith.negf %1587 : vector<8x32xf32>
    %1589 = math.exp %1588 : vector<8x32xf32>
    %cst_295 = arith.constant 1.000000e+00 : f32
    %1590 = vector.broadcast %cst_295 : f32 to vector<8x32xf32>
    %1591 = arith.addf %1590, %1589 : vector<8x32xf32>
    %1592 = arith.divf %1590, %1591 : vector<8x32xf32>
    %1593 = vector.extract_strided_slice %1586 {offsets = [0, 32], sizes = [8, 32], strides = [1, 1]} : vector<8x128xf32> to vector<8x32xf32>
    %1594 = arith.negf %1593 : vector<8x32xf32>
    %1595 = math.exp %1594 : vector<8x32xf32>
    %cst_296 = arith.constant 1.000000e+00 : f32
    %1596 = vector.broadcast %cst_296 : f32 to vector<8x32xf32>
    %1597 = arith.addf %1596, %1595 : vector<8x32xf32>
    %1598 = arith.divf %1596, %1597 : vector<8x32xf32>
    %1599 = vector.extract_strided_slice %1586 {offsets = [0, 64], sizes = [8, 32], strides = [1, 1]} : vector<8x128xf32> to vector<8x32xf32>
    %1600 = vector.extract_strided_slice %1586 {offsets = [0, 96], sizes = [8, 32], strides = [1, 1]} : vector<8x128xf32> to vector<8x32xf32>
    %1601 = arith.mulf %1592, %1600 : vector<8x32xf32>
    %1602 = arith.addf %1599, %1601 : vector<8x32xf32>
    %1603 = math.tanh %1602 : vector<8x32xf32>
    %cst_297 = arith.constant 1.000000e+00 : f32
    %1604 = vector.broadcast %cst_297 : f32 to vector<8x32xf32>
    %1605 = arith.subf %1604, %1598 : vector<8x32xf32>
    %1606 = arith.mulf %1605, %1603 : vector<8x32xf32>
    %1607 = arith.mulf %1598, %1551 : vector<8x32xf32>
    %1608 = arith.addf %1606, %1607 : vector<8x32xf32>
    %c28 = arith.constant 28 : index
    %c0_298 = arith.constant 0 : index
    %c0_299 = arith.constant 0 : index
    %1609 = vector.load %arg1[%c28, %c0_298, %c0_299] : memref<32x8x96xf32, #tpu.memory_space<vmem>>, vector<1x8x96xf32>
    %1610 = vector.shape_cast %1609 : vector<1x8x96xf32> to vector<8x96xf32>
    %cst_300 = arith.constant dense<0.000000e+00> : vector<8x96xf32>
    %1611 = tpu.matmul %1582, %0, %cst_300 {dimension_numbers = #tpu.dot_dimension_numbers<[1], [0], [0], [1], [0, 0, 1, 1], [], []>} : vector<8x32xf32>, vector<32x96xf32>, vector<8x96xf32> -> vector<8x96xf32>
    %1612 = vector.broadcast %1 : vector<1x96xf32> to vector<8x96xf32>
    %1613 = arith.addf %1611, %1612 : vector<8x96xf32>
    %1614 = vector.extract_strided_slice %1610 {offsets = [0, 0], sizes = [8, 32], strides = [1, 1]} : vector<8x96xf32> to vector<8x32xf32>
    %1615 = vector.extract_strided_slice %1613 {offsets = [0, 0], sizes = [8, 32], strides = [1, 1]} : vector<8x96xf32> to vector<8x32xf32>
    %1616 = arith.addf %1614, %1615 : vector<8x32xf32>
    %1617 = arith.negf %1616 : vector<8x32xf32>
    %1618 = math.exp %1617 : vector<8x32xf32>
    %cst_301 = arith.constant 1.000000e+00 : f32
    %1619 = vector.broadcast %cst_301 : f32 to vector<8x32xf32>
    %1620 = arith.addf %1619, %1618 : vector<8x32xf32>
    %1621 = arith.divf %1619, %1620 : vector<8x32xf32>
    %1622 = vector.extract_strided_slice %1610 {offsets = [0, 32], sizes = [8, 32], strides = [1, 1]} : vector<8x96xf32> to vector<8x32xf32>
    %1623 = vector.extract_strided_slice %1613 {offsets = [0, 32], sizes = [8, 32], strides = [1, 1]} : vector<8x96xf32> to vector<8x32xf32>
    %1624 = arith.addf %1622, %1623 : vector<8x32xf32>
    %1625 = arith.negf %1624 : vector<8x32xf32>
    %1626 = math.exp %1625 : vector<8x32xf32>
    %cst_302 = arith.constant 1.000000e+00 : f32
    %1627 = vector.broadcast %cst_302 : f32 to vector<8x32xf32>
    %1628 = arith.addf %1627, %1626 : vector<8x32xf32>
    %1629 = arith.divf %1627, %1628 : vector<8x32xf32>
    %1630 = vector.extract_strided_slice %1610 {offsets = [0, 64], sizes = [8, 32], strides = [1, 1]} : vector<8x96xf32> to vector<8x32xf32>
    %1631 = vector.extract_strided_slice %1613 {offsets = [0, 64], sizes = [8, 32], strides = [1, 1]} : vector<8x96xf32> to vector<8x32xf32>
    %1632 = arith.mulf %1621, %1631 : vector<8x32xf32>
    %1633 = arith.addf %1630, %1632 : vector<8x32xf32>
    %1634 = math.tanh %1633 : vector<8x32xf32>
    %cst_303 = arith.constant 1.000000e+00 : f32
    %1635 = vector.broadcast %cst_303 : f32 to vector<8x32xf32>
    %1636 = arith.subf %1635, %1629 : vector<8x32xf32>
    %1637 = arith.mulf %1636, %1634 : vector<8x32xf32>
    %1638 = arith.mulf %1629, %1582 : vector<8x32xf32>
    %1639 = arith.addf %1637, %1638 : vector<8x32xf32>
    %1640 = tpu.concatenate %1639, %1608 in 1 : vector<8x32xf32>, vector<8x32xf32> -> vector<8x64xf32>
    %cst_304 = arith.constant dense<0.000000e+00> : vector<8x128xf32>
    %1641 = tpu.matmul %1640, %2, %cst_304 {dimension_numbers = #tpu.dot_dimension_numbers<[1], [0], [0], [1], [0, 0, 1, 1], [], []>} : vector<8x64xf32>, vector<64x128xf32>, vector<8x128xf32> -> vector<8x128xf32>
    %1642 = vector.broadcast %3 : vector<1x128xf32> to vector<8x128xf32>
    %1643 = arith.addf %1641, %1642 : vector<8x128xf32>
    %1644 = vector.extract_strided_slice %1643 {offsets = [0, 0], sizes = [8, 32], strides = [1, 1]} : vector<8x128xf32> to vector<8x32xf32>
    %1645 = arith.negf %1644 : vector<8x32xf32>
    %1646 = math.exp %1645 : vector<8x32xf32>
    %cst_305 = arith.constant 1.000000e+00 : f32
    %1647 = vector.broadcast %cst_305 : f32 to vector<8x32xf32>
    %1648 = arith.addf %1647, %1646 : vector<8x32xf32>
    %1649 = arith.divf %1647, %1648 : vector<8x32xf32>
    %1650 = vector.extract_strided_slice %1643 {offsets = [0, 32], sizes = [8, 32], strides = [1, 1]} : vector<8x128xf32> to vector<8x32xf32>
    %1651 = arith.negf %1650 : vector<8x32xf32>
    %1652 = math.exp %1651 : vector<8x32xf32>
    %cst_306 = arith.constant 1.000000e+00 : f32
    %1653 = vector.broadcast %cst_306 : f32 to vector<8x32xf32>
    %1654 = arith.addf %1653, %1652 : vector<8x32xf32>
    %1655 = arith.divf %1653, %1654 : vector<8x32xf32>
    %1656 = vector.extract_strided_slice %1643 {offsets = [0, 64], sizes = [8, 32], strides = [1, 1]} : vector<8x128xf32> to vector<8x32xf32>
    %1657 = vector.extract_strided_slice %1643 {offsets = [0, 96], sizes = [8, 32], strides = [1, 1]} : vector<8x128xf32> to vector<8x32xf32>
    %1658 = arith.mulf %1649, %1657 : vector<8x32xf32>
    %1659 = arith.addf %1656, %1658 : vector<8x32xf32>
    %1660 = math.tanh %1659 : vector<8x32xf32>
    %cst_307 = arith.constant 1.000000e+00 : f32
    %1661 = vector.broadcast %cst_307 : f32 to vector<8x32xf32>
    %1662 = arith.subf %1661, %1655 : vector<8x32xf32>
    %1663 = arith.mulf %1662, %1660 : vector<8x32xf32>
    %1664 = arith.mulf %1655, %1608 : vector<8x32xf32>
    %1665 = arith.addf %1663, %1664 : vector<8x32xf32>
    %c29 = arith.constant 29 : index
    %c0_308 = arith.constant 0 : index
    %c0_309 = arith.constant 0 : index
    %1666 = vector.load %arg1[%c29, %c0_308, %c0_309] : memref<32x8x96xf32, #tpu.memory_space<vmem>>, vector<1x8x96xf32>
    %1667 = vector.shape_cast %1666 : vector<1x8x96xf32> to vector<8x96xf32>
    %cst_310 = arith.constant dense<0.000000e+00> : vector<8x96xf32>
    %1668 = tpu.matmul %1639, %0, %cst_310 {dimension_numbers = #tpu.dot_dimension_numbers<[1], [0], [0], [1], [0, 0, 1, 1], [], []>} : vector<8x32xf32>, vector<32x96xf32>, vector<8x96xf32> -> vector<8x96xf32>
    %1669 = vector.broadcast %1 : vector<1x96xf32> to vector<8x96xf32>
    %1670 = arith.addf %1668, %1669 : vector<8x96xf32>
    %1671 = vector.extract_strided_slice %1667 {offsets = [0, 0], sizes = [8, 32], strides = [1, 1]} : vector<8x96xf32> to vector<8x32xf32>
    %1672 = vector.extract_strided_slice %1670 {offsets = [0, 0], sizes = [8, 32], strides = [1, 1]} : vector<8x96xf32> to vector<8x32xf32>
    %1673 = arith.addf %1671, %1672 : vector<8x32xf32>
    %1674 = arith.negf %1673 : vector<8x32xf32>
    %1675 = math.exp %1674 : vector<8x32xf32>
    %cst_311 = arith.constant 1.000000e+00 : f32
    %1676 = vector.broadcast %cst_311 : f32 to vector<8x32xf32>
    %1677 = arith.addf %1676, %1675 : vector<8x32xf32>
    %1678 = arith.divf %1676, %1677 : vector<8x32xf32>
    %1679 = vector.extract_strided_slice %1667 {offsets = [0, 32], sizes = [8, 32], strides = [1, 1]} : vector<8x96xf32> to vector<8x32xf32>
    %1680 = vector.extract_strided_slice %1670 {offsets = [0, 32], sizes = [8, 32], strides = [1, 1]} : vector<8x96xf32> to vector<8x32xf32>
    %1681 = arith.addf %1679, %1680 : vector<8x32xf32>
    %1682 = arith.negf %1681 : vector<8x32xf32>
    %1683 = math.exp %1682 : vector<8x32xf32>
    %cst_312 = arith.constant 1.000000e+00 : f32
    %1684 = vector.broadcast %cst_312 : f32 to vector<8x32xf32>
    %1685 = arith.addf %1684, %1683 : vector<8x32xf32>
    %1686 = arith.divf %1684, %1685 : vector<8x32xf32>
    %1687 = vector.extract_strided_slice %1667 {offsets = [0, 64], sizes = [8, 32], strides = [1, 1]} : vector<8x96xf32> to vector<8x32xf32>
    %1688 = vector.extract_strided_slice %1670 {offsets = [0, 64], sizes = [8, 32], strides = [1, 1]} : vector<8x96xf32> to vector<8x32xf32>
    %1689 = arith.mulf %1678, %1688 : vector<8x32xf32>
    %1690 = arith.addf %1687, %1689 : vector<8x32xf32>
    %1691 = math.tanh %1690 : vector<8x32xf32>
    %cst_313 = arith.constant 1.000000e+00 : f32
    %1692 = vector.broadcast %cst_313 : f32 to vector<8x32xf32>
    %1693 = arith.subf %1692, %1686 : vector<8x32xf32>
    %1694 = arith.mulf %1693, %1691 : vector<8x32xf32>
    %1695 = arith.mulf %1686, %1639 : vector<8x32xf32>
    %1696 = arith.addf %1694, %1695 : vector<8x32xf32>
    %1697 = tpu.concatenate %1696, %1665 in 1 : vector<8x32xf32>, vector<8x32xf32> -> vector<8x64xf32>
    %cst_314 = arith.constant dense<0.000000e+00> : vector<8x128xf32>
    %1698 = tpu.matmul %1697, %2, %cst_314 {dimension_numbers = #tpu.dot_dimension_numbers<[1], [0], [0], [1], [0, 0, 1, 1], [], []>} : vector<8x64xf32>, vector<64x128xf32>, vector<8x128xf32> -> vector<8x128xf32>
    %1699 = vector.broadcast %3 : vector<1x128xf32> to vector<8x128xf32>
    %1700 = arith.addf %1698, %1699 : vector<8x128xf32>
    %1701 = vector.extract_strided_slice %1700 {offsets = [0, 0], sizes = [8, 32], strides = [1, 1]} : vector<8x128xf32> to vector<8x32xf32>
    %1702 = arith.negf %1701 : vector<8x32xf32>
    %1703 = math.exp %1702 : vector<8x32xf32>
    %cst_315 = arith.constant 1.000000e+00 : f32
    %1704 = vector.broadcast %cst_315 : f32 to vector<8x32xf32>
    %1705 = arith.addf %1704, %1703 : vector<8x32xf32>
    %1706 = arith.divf %1704, %1705 : vector<8x32xf32>
    %1707 = vector.extract_strided_slice %1700 {offsets = [0, 32], sizes = [8, 32], strides = [1, 1]} : vector<8x128xf32> to vector<8x32xf32>
    %1708 = arith.negf %1707 : vector<8x32xf32>
    %1709 = math.exp %1708 : vector<8x32xf32>
    %cst_316 = arith.constant 1.000000e+00 : f32
    %1710 = vector.broadcast %cst_316 : f32 to vector<8x32xf32>
    %1711 = arith.addf %1710, %1709 : vector<8x32xf32>
    %1712 = arith.divf %1710, %1711 : vector<8x32xf32>
    %1713 = vector.extract_strided_slice %1700 {offsets = [0, 64], sizes = [8, 32], strides = [1, 1]} : vector<8x128xf32> to vector<8x32xf32>
    %1714 = vector.extract_strided_slice %1700 {offsets = [0, 96], sizes = [8, 32], strides = [1, 1]} : vector<8x128xf32> to vector<8x32xf32>
    %1715 = arith.mulf %1706, %1714 : vector<8x32xf32>
    %1716 = arith.addf %1713, %1715 : vector<8x32xf32>
    %1717 = math.tanh %1716 : vector<8x32xf32>
    %cst_317 = arith.constant 1.000000e+00 : f32
    %1718 = vector.broadcast %cst_317 : f32 to vector<8x32xf32>
    %1719 = arith.subf %1718, %1712 : vector<8x32xf32>
    %1720 = arith.mulf %1719, %1717 : vector<8x32xf32>
    %1721 = arith.mulf %1712, %1665 : vector<8x32xf32>
    %1722 = arith.addf %1720, %1721 : vector<8x32xf32>
    %c30 = arith.constant 30 : index
    %c0_318 = arith.constant 0 : index
    %c0_319 = arith.constant 0 : index
    %1723 = vector.load %arg1[%c30, %c0_318, %c0_319] : memref<32x8x96xf32, #tpu.memory_space<vmem>>, vector<1x8x96xf32>
    %1724 = vector.shape_cast %1723 : vector<1x8x96xf32> to vector<8x96xf32>
    %cst_320 = arith.constant dense<0.000000e+00> : vector<8x96xf32>
    %1725 = tpu.matmul %1696, %0, %cst_320 {dimension_numbers = #tpu.dot_dimension_numbers<[1], [0], [0], [1], [0, 0, 1, 1], [], []>} : vector<8x32xf32>, vector<32x96xf32>, vector<8x96xf32> -> vector<8x96xf32>
    %1726 = vector.broadcast %1 : vector<1x96xf32> to vector<8x96xf32>
    %1727 = arith.addf %1725, %1726 : vector<8x96xf32>
    %1728 = vector.extract_strided_slice %1724 {offsets = [0, 0], sizes = [8, 32], strides = [1, 1]} : vector<8x96xf32> to vector<8x32xf32>
    %1729 = vector.extract_strided_slice %1727 {offsets = [0, 0], sizes = [8, 32], strides = [1, 1]} : vector<8x96xf32> to vector<8x32xf32>
    %1730 = arith.addf %1728, %1729 : vector<8x32xf32>
    %1731 = arith.negf %1730 : vector<8x32xf32>
    %1732 = math.exp %1731 : vector<8x32xf32>
    %cst_321 = arith.constant 1.000000e+00 : f32
    %1733 = vector.broadcast %cst_321 : f32 to vector<8x32xf32>
    %1734 = arith.addf %1733, %1732 : vector<8x32xf32>
    %1735 = arith.divf %1733, %1734 : vector<8x32xf32>
    %1736 = vector.extract_strided_slice %1724 {offsets = [0, 32], sizes = [8, 32], strides = [1, 1]} : vector<8x96xf32> to vector<8x32xf32>
    %1737 = vector.extract_strided_slice %1727 {offsets = [0, 32], sizes = [8, 32], strides = [1, 1]} : vector<8x96xf32> to vector<8x32xf32>
    %1738 = arith.addf %1736, %1737 : vector<8x32xf32>
    %1739 = arith.negf %1738 : vector<8x32xf32>
    %1740 = math.exp %1739 : vector<8x32xf32>
    %cst_322 = arith.constant 1.000000e+00 : f32
    %1741 = vector.broadcast %cst_322 : f32 to vector<8x32xf32>
    %1742 = arith.addf %1741, %1740 : vector<8x32xf32>
    %1743 = arith.divf %1741, %1742 : vector<8x32xf32>
    %1744 = vector.extract_strided_slice %1724 {offsets = [0, 64], sizes = [8, 32], strides = [1, 1]} : vector<8x96xf32> to vector<8x32xf32>
    %1745 = vector.extract_strided_slice %1727 {offsets = [0, 64], sizes = [8, 32], strides = [1, 1]} : vector<8x96xf32> to vector<8x32xf32>
    %1746 = arith.mulf %1735, %1745 : vector<8x32xf32>
    %1747 = arith.addf %1744, %1746 : vector<8x32xf32>
    %1748 = math.tanh %1747 : vector<8x32xf32>
    %cst_323 = arith.constant 1.000000e+00 : f32
    %1749 = vector.broadcast %cst_323 : f32 to vector<8x32xf32>
    %1750 = arith.subf %1749, %1743 : vector<8x32xf32>
    %1751 = arith.mulf %1750, %1748 : vector<8x32xf32>
    %1752 = arith.mulf %1743, %1696 : vector<8x32xf32>
    %1753 = arith.addf %1751, %1752 : vector<8x32xf32>
    %1754 = tpu.concatenate %1753, %1722 in 1 : vector<8x32xf32>, vector<8x32xf32> -> vector<8x64xf32>
    %cst_324 = arith.constant dense<0.000000e+00> : vector<8x128xf32>
    %1755 = tpu.matmul %1754, %2, %cst_324 {dimension_numbers = #tpu.dot_dimension_numbers<[1], [0], [0], [1], [0, 0, 1, 1], [], []>} : vector<8x64xf32>, vector<64x128xf32>, vector<8x128xf32> -> vector<8x128xf32>
    %1756 = vector.broadcast %3 : vector<1x128xf32> to vector<8x128xf32>
    %1757 = arith.addf %1755, %1756 : vector<8x128xf32>
    %1758 = vector.extract_strided_slice %1757 {offsets = [0, 0], sizes = [8, 32], strides = [1, 1]} : vector<8x128xf32> to vector<8x32xf32>
    %1759 = arith.negf %1758 : vector<8x32xf32>
    %1760 = math.exp %1759 : vector<8x32xf32>
    %cst_325 = arith.constant 1.000000e+00 : f32
    %1761 = vector.broadcast %cst_325 : f32 to vector<8x32xf32>
    %1762 = arith.addf %1761, %1760 : vector<8x32xf32>
    %1763 = arith.divf %1761, %1762 : vector<8x32xf32>
    %1764 = vector.extract_strided_slice %1757 {offsets = [0, 32], sizes = [8, 32], strides = [1, 1]} : vector<8x128xf32> to vector<8x32xf32>
    %1765 = arith.negf %1764 : vector<8x32xf32>
    %1766 = math.exp %1765 : vector<8x32xf32>
    %cst_326 = arith.constant 1.000000e+00 : f32
    %1767 = vector.broadcast %cst_326 : f32 to vector<8x32xf32>
    %1768 = arith.addf %1767, %1766 : vector<8x32xf32>
    %1769 = arith.divf %1767, %1768 : vector<8x32xf32>
    %1770 = vector.extract_strided_slice %1757 {offsets = [0, 64], sizes = [8, 32], strides = [1, 1]} : vector<8x128xf32> to vector<8x32xf32>
    %1771 = vector.extract_strided_slice %1757 {offsets = [0, 96], sizes = [8, 32], strides = [1, 1]} : vector<8x128xf32> to vector<8x32xf32>
    %1772 = arith.mulf %1763, %1771 : vector<8x32xf32>
    %1773 = arith.addf %1770, %1772 : vector<8x32xf32>
    %1774 = math.tanh %1773 : vector<8x32xf32>
    %cst_327 = arith.constant 1.000000e+00 : f32
    %1775 = vector.broadcast %cst_327 : f32 to vector<8x32xf32>
    %1776 = arith.subf %1775, %1769 : vector<8x32xf32>
    %1777 = arith.mulf %1776, %1774 : vector<8x32xf32>
    %1778 = arith.mulf %1769, %1722 : vector<8x32xf32>
    %1779 = arith.addf %1777, %1778 : vector<8x32xf32>
    %c31 = arith.constant 31 : index
    %c0_328 = arith.constant 0 : index
    %c0_329 = arith.constant 0 : index
    %1780 = vector.load %arg1[%c31, %c0_328, %c0_329] : memref<32x8x96xf32, #tpu.memory_space<vmem>>, vector<1x8x96xf32>
    %1781 = vector.shape_cast %1780 : vector<1x8x96xf32> to vector<8x96xf32>
    %cst_330 = arith.constant dense<0.000000e+00> : vector<8x96xf32>
    %1782 = tpu.matmul %1753, %0, %cst_330 {dimension_numbers = #tpu.dot_dimension_numbers<[1], [0], [0], [1], [0, 0, 1, 1], [], []>} : vector<8x32xf32>, vector<32x96xf32>, vector<8x96xf32> -> vector<8x96xf32>
    %1783 = vector.broadcast %1 : vector<1x96xf32> to vector<8x96xf32>
    %1784 = arith.addf %1782, %1783 : vector<8x96xf32>
    %1785 = vector.extract_strided_slice %1781 {offsets = [0, 0], sizes = [8, 32], strides = [1, 1]} : vector<8x96xf32> to vector<8x32xf32>
    %1786 = vector.extract_strided_slice %1784 {offsets = [0, 0], sizes = [8, 32], strides = [1, 1]} : vector<8x96xf32> to vector<8x32xf32>
    %1787 = arith.addf %1785, %1786 : vector<8x32xf32>
    %1788 = arith.negf %1787 : vector<8x32xf32>
    %1789 = math.exp %1788 : vector<8x32xf32>
    %cst_331 = arith.constant 1.000000e+00 : f32
    %1790 = vector.broadcast %cst_331 : f32 to vector<8x32xf32>
    %1791 = arith.addf %1790, %1789 : vector<8x32xf32>
    %1792 = arith.divf %1790, %1791 : vector<8x32xf32>
    %1793 = vector.extract_strided_slice %1781 {offsets = [0, 32], sizes = [8, 32], strides = [1, 1]} : vector<8x96xf32> to vector<8x32xf32>
    %1794 = vector.extract_strided_slice %1784 {offsets = [0, 32], sizes = [8, 32], strides = [1, 1]} : vector<8x96xf32> to vector<8x32xf32>
    %1795 = arith.addf %1793, %1794 : vector<8x32xf32>
    %1796 = arith.negf %1795 : vector<8x32xf32>
    %1797 = math.exp %1796 : vector<8x32xf32>
    %cst_332 = arith.constant 1.000000e+00 : f32
    %1798 = vector.broadcast %cst_332 : f32 to vector<8x32xf32>
    %1799 = arith.addf %1798, %1797 : vector<8x32xf32>
    %1800 = arith.divf %1798, %1799 : vector<8x32xf32>
    %1801 = vector.extract_strided_slice %1781 {offsets = [0, 64], sizes = [8, 32], strides = [1, 1]} : vector<8x96xf32> to vector<8x32xf32>
    %1802 = vector.extract_strided_slice %1784 {offsets = [0, 64], sizes = [8, 32], strides = [1, 1]} : vector<8x96xf32> to vector<8x32xf32>
    %1803 = arith.mulf %1792, %1802 : vector<8x32xf32>
    %1804 = arith.addf %1801, %1803 : vector<8x32xf32>
    %1805 = math.tanh %1804 : vector<8x32xf32>
    %cst_333 = arith.constant 1.000000e+00 : f32
    %1806 = vector.broadcast %cst_333 : f32 to vector<8x32xf32>
    %1807 = arith.subf %1806, %1800 : vector<8x32xf32>
    %1808 = arith.mulf %1807, %1805 : vector<8x32xf32>
    %1809 = arith.mulf %1800, %1753 : vector<8x32xf32>
    %1810 = arith.addf %1808, %1809 : vector<8x32xf32>
    %1811 = tpu.concatenate %1810, %1779 in 1 : vector<8x32xf32>, vector<8x32xf32> -> vector<8x64xf32>
    %cst_334 = arith.constant dense<0.000000e+00> : vector<8x128xf32>
    %1812 = tpu.matmul %1811, %2, %cst_334 {dimension_numbers = #tpu.dot_dimension_numbers<[1], [0], [0], [1], [0, 0, 1, 1], [], []>} : vector<8x64xf32>, vector<64x128xf32>, vector<8x128xf32> -> vector<8x128xf32>
    %1813 = vector.broadcast %3 : vector<1x128xf32> to vector<8x128xf32>
    %1814 = arith.addf %1812, %1813 : vector<8x128xf32>
    %1815 = vector.extract_strided_slice %1814 {offsets = [0, 0], sizes = [8, 32], strides = [1, 1]} : vector<8x128xf32> to vector<8x32xf32>
    %1816 = arith.negf %1815 : vector<8x32xf32>
    %1817 = math.exp %1816 : vector<8x32xf32>
    %cst_335 = arith.constant 1.000000e+00 : f32
    %1818 = vector.broadcast %cst_335 : f32 to vector<8x32xf32>
    %1819 = arith.addf %1818, %1817 : vector<8x32xf32>
    %1820 = arith.divf %1818, %1819 : vector<8x32xf32>
    %1821 = vector.extract_strided_slice %1814 {offsets = [0, 32], sizes = [8, 32], strides = [1, 1]} : vector<8x128xf32> to vector<8x32xf32>
    %1822 = arith.negf %1821 : vector<8x32xf32>
    %1823 = math.exp %1822 : vector<8x32xf32>
    %cst_336 = arith.constant 1.000000e+00 : f32
    %1824 = vector.broadcast %cst_336 : f32 to vector<8x32xf32>
    %1825 = arith.addf %1824, %1823 : vector<8x32xf32>
    %1826 = arith.divf %1824, %1825 : vector<8x32xf32>
    %1827 = vector.extract_strided_slice %1814 {offsets = [0, 64], sizes = [8, 32], strides = [1, 1]} : vector<8x128xf32> to vector<8x32xf32>
    %1828 = vector.extract_strided_slice %1814 {offsets = [0, 96], sizes = [8, 32], strides = [1, 1]} : vector<8x128xf32> to vector<8x32xf32>
    %1829 = arith.mulf %1820, %1828 : vector<8x32xf32>
    %1830 = arith.addf %1827, %1829 : vector<8x32xf32>
    %1831 = math.tanh %1830 : vector<8x32xf32>
    %cst_337 = arith.constant 1.000000e+00 : f32
    %1832 = vector.broadcast %cst_337 : f32 to vector<8x32xf32>
    %1833 = arith.subf %1832, %1826 : vector<8x32xf32>
    %1834 = arith.mulf %1833, %1831 : vector<8x32xf32>
    %1835 = arith.mulf %1826, %1779 : vector<8x32xf32>
    %1836 = arith.addf %1834, %1835 : vector<8x32xf32>
    %c0_338 = arith.constant 0 : index
    %c0_339 = arith.constant 0 : index
    %c0_340 = arith.constant 0 : index
    %1837 = vector.load %arg10[%c0_338, %c0_339, %c0_340] : memref<2x8x32xf32, #tpu.memory_space<vmem>>, vector<1x8x32xf32>
    %1838 = vector.shape_cast %1837 : vector<1x8x32xf32> to vector<8x32xf32>
    %1839 = vector.shape_cast %1810 : vector<8x32xf32> to vector<1x8x32xf32>
    tpu.vector_store %arg10[%c0_338, %c0_339, %c0_340], %1839 {strides = array<i32>} : memref<2x8x32xf32, #tpu.memory_space<vmem>>, vector<1x8x32xf32>,
    %c1_341 = arith.constant 1 : index
    %c0_342 = arith.constant 0 : index
    %c0_343 = arith.constant 0 : index
    %1840 = vector.load %arg10[%c1_341, %c0_342, %c0_343] : memref<2x8x32xf32, #tpu.memory_space<vmem>>, vector<1x8x32xf32>
    %1841 = vector.shape_cast %1840 : vector<1x8x32xf32> to vector<8x32xf32>
    %1842 = vector.shape_cast %1836 : vector<8x32xf32> to vector<1x8x32xf32>
    tpu.vector_store %arg10[%c1_341, %c0_342, %c0_343], %1842 {strides = array<i32>} : memref<2x8x32xf32, #tpu.memory_space<vmem>>, vector<1x8x32xf32>,
    %1843 = tpu.concatenate %69, %126, %183, %240, %297, %354, %411, %468, %525, %582, %639, %696, %753, %810, %867, %924 in 0 : vector<8x32xf32>, vector<8x32xf32>, vector<8x32xf32>, vector<8x32xf32>, vector<8x32xf32>, vector<8x32xf32>, vector<8x32xf32>, vector<8x32xf32>, vector<8x32xf32>, vector<8x32xf32>, vector<8x32xf32>, vector<8x32xf32>, vector<8x32xf32>, vector<8x32xf32>, vector<8x32xf32>, vector<8x32xf32> -> vector<128x32xf32>
    %1844 = tpu.concatenate %981, %1038, %1095, %1152, %1209, %1266, %1323, %1380, %1437, %1494, %1551, %1608, %1665, %1722, %1779, %1836 in 0 : vector<8x32xf32>, vector<8x32xf32>, vector<8x32xf32>, vector<8x32xf32>, vector<8x32xf32>, vector<8x32xf32>, vector<8x32xf32>, vector<8x32xf32>, vector<8x32xf32>, vector<8x32xf32>, vector<8x32xf32>, vector<8x32xf32>, vector<8x32xf32>, vector<8x32xf32>, vector<8x32xf32>, vector<8x32xf32> -> vector<128x32xf32>
    %1845 = tpu.concatenate %1843, %1844 in 0 : vector<128x32xf32>, vector<128x32xf32> -> vector<256x32xf32>
    %cst_344 = arith.constant dense<0.000000e+00> : vector<256x5xf32>
    %1846 = tpu.matmul %1845, %4, %cst_344 {dimension_numbers = #tpu.dot_dimension_numbers<[1], [0], [0], [1], [0, 0, 1, 1], [], []>} : vector<256x32xf32>, vector<32x5xf32>, vector<256x5xf32> -> vector<256x5xf32>
    %1847 = vector.broadcast %5 : vector<1x5xf32> to vector<256x5xf32>
    %1848 = arith.addf %1846, %1847 : vector<256x5xf32>
    %cst_345 = arith.constant dense<0xFF800000> : vector<256xf32>
    %1849 = vector.multi_reduction <maximumf>, %1848, %cst_345 [1] : vector<256x5xf32> to vector<256xf32>
    %1850 = vector.shape_cast %1849 : vector<256xf32> to vector<256x1xf32>
    %1851 = vector.broadcast %1850 : vector<256x1xf32> to vector<256x5xf32>
    %1852 = arith.subf %1848, %1851 : vector<256x5xf32>
    %1853 = math.exp %1852 : vector<256x5xf32>
    %cst_346 = arith.constant dense<0.000000e+00> : vector<256xf32>
    %1854 = vector.multi_reduction <add>, %1853, %cst_346 [1] : vector<256x5xf32> to vector<256xf32>
    %1855 = vector.shape_cast %1854 : vector<256xf32> to vector<256x1xf32>
    %1856 = tpu.reciprocal %1855 {approx = true} : vector<256x1xf32> -> vector<256x1xf32>
    %1857 = vector.broadcast %1856 : vector<256x1xf32> to vector<256x5xf32>
    %1858 = arith.mulf %1853, %1857 : vector<256x5xf32>
    %1859 = arith.mulf %1858, %1858 : vector<256x5xf32>
    %cst_347 = arith.constant dense<0.000000e+00> : vector<256xf32>
    %1860 = vector.multi_reduction <add>, %1859, %cst_347 [1] : vector<256x5xf32> to vector<256xf32>
    %1861 = vector.shape_cast %1860 : vector<256xf32> to vector<256x1xf32>
    %c0_348 = arith.constant 0 : index
    %c0_349 = arith.constant 0 : index
    %1862 = vector.load %arg9[%c0_348, %c0_349] : memref<256x1xf32, #tpu.memory_space<vmem>>, vector<256x1xf32>
    tpu.vector_store %arg9[%c0_348, %c0_349], %1861 {strides = array<i32>} : memref<256x1xf32, #tpu.memory_space<vmem>>, vector<256x1xf32>,
    %1863 = vector.shape_cast %1848 : vector<256x5xf32> to vector<8x32x5xf32>
    %1864 = vector.extract_strided_slice %1863 {offsets = [0, 24, 0], sizes = [8, 8, 5], strides = [1, 1, 1]} : vector<8x32x5xf32> to vector<8x8x5xf32>
    %c0_350 = arith.constant 0 : index
    %c0_351 = arith.constant 0 : index
    %c0_352 = arith.constant 0 : index
    %1865 = vector.load %arg8[%c0_350, %c0_351, %c0_352] : memref<8x8x5xf32, #tpu.memory_space<vmem>>, vector<8x8x5xf32>
    tpu.vector_store %arg8[%c0_350, %c0_351, %c0_352], %1864 {strides = array<i32>} : memref<8x8x5xf32, #tpu.memory_space<vmem>>, vector<8x8x5xf32>,
    return
  }
  func.func @transform_0(%arg0: i32) -> (i32, i32, i32) {
    %c0_i32 = arith.constant 0 : i32
    %c0_i32_0 = arith.constant 0 : i32
    %c0_i32_1 = arith.constant 0 : i32
    return %arg0, %c0_i32, %c0_i32_0 : i32, i32, i32
  }
  func.func @transform_1(%arg0: i32) -> (i32, i32) {
    %c0_i32 = arith.constant 0 : i32
    %c0_i32_0 = arith.constant 0 : i32
    %c0_i32_1 = arith.constant 0 : i32
    return %c0_i32, %c0_i32_0 : i32, i32
  }
  func.func @transform_2(%arg0: i32) -> (i32, i32) {
    %c0_i32 = arith.constant 0 : i32
    %c0_i32_0 = arith.constant 0 : i32
    %c0_i32_1 = arith.constant 0 : i32
    return %c0_i32, %c0_i32_0 : i32, i32
  }
  func.func @transform_3(%arg0: i32) -> (i32, i32) {
    %c0_i32 = arith.constant 0 : i32
    %c0_i32_0 = arith.constant 0 : i32
    %c0_i32_1 = arith.constant 0 : i32
    return %c0_i32, %c0_i32_0 : i32, i32
  }
  func.func @transform_4(%arg0: i32) -> (i32, i32) {
    %c0_i32 = arith.constant 0 : i32
    %c0_i32_0 = arith.constant 0 : i32
    %c0_i32_1 = arith.constant 0 : i32
    return %c0_i32, %c0_i32_0 : i32, i32
  }
  func.func @transform_5(%arg0: i32) -> (i32, i32) {
    %c0_i32 = arith.constant 0 : i32
    %c0_i32_0 = arith.constant 0 : i32
    %c0_i32_1 = arith.constant 0 : i32
    return %c0_i32, %c0_i32_0 : i32, i32
  }
  func.func @transform_6(%arg0: i32) -> (i32, i32) {
    %c0_i32 = arith.constant 0 : i32
    %c0_i32_0 = arith.constant 0 : i32
    %c0_i32_1 = arith.constant 0 : i32
    return %c0_i32, %c0_i32_0 : i32, i32
  }
  func.func @transform_7(%arg0: i32) -> (i32, i32, i32) {
    %c0_i32 = arith.constant 0 : i32
    %c0_i32_0 = arith.constant 0 : i32
    %c0_i32_1 = arith.constant 0 : i32
    return %arg0, %c0_i32, %c0_i32_0 : i32, i32, i32
  }
  func.func @transform_8(%arg0: i32) -> (i32, i32) {
    %c0_i32 = arith.constant 0 : i32
    %c0_i32_0 = arith.constant 0 : i32
    return %arg0, %c0_i32 : i32, i32
  }
}

</mosaic_0001>

<llo_original>
// kernel: freq_unroll_block_forward.1
$region0: #{freq_unroll_block_forward.1}
  #allocation0 [shape = 'u32[]', space=smem, size = 0x4, offset = 0x4, fixed_abs, tag = 'smem constant byte address 0x4 - core index']
  #allocation1 [shape = 'u32[144,128]{1,0:T(1,128)}', space=vmem, size = 0x12000, scoped, tag = 'internal scratch']
  #allocation2 [shape = 'f32[2,8,32]{2,1,0:T(8,128)}', space=vmem, size = 0x2000, scoped, tag = 'scratch operand']
  %s0 = inlined_call_operand.vmem [shape: f32[32,8,96], index: 0, kind: input, shape index: {}]
  %s1 = inlined_call_operand.vmem [shape: f32[32,96], index: 1, kind: input, shape index: {}]
  %s2 = inlined_call_operand.vmem [shape: f32[1,96], index: 2, kind: input, shape index: {}]
  %s3 = inlined_call_operand.vmem [shape: f32[64,128], index: 3, kind: input, shape index: {}]
  %s4 = inlined_call_operand.vmem [shape: f32[1,128], index: 4, kind: input, shape index: {}]
  %s5 = inlined_call_operand.vmem [shape: f32[32,5], index: 5, kind: input, shape index: {}]
  %s6 = inlined_call_operand.vmem [shape: f32[1,5], index: 6, kind: input, shape index: {}]
  %s7 = inlined_call_operand.vmem [shape: f32[8,8,5], index: 7, kind: output, shape index: {0}]
  %s8 = inlined_call_operand.vmem [shape: f32[256,1], index: 8, kind: output, shape index: {1}]
  %9 = xla_tuple %s7, %s8
  %s10 = sld [smem:[#allocation0]]
  $region50: #{freq_unroll_block_forward.1} parent=0
    _
  %s12 = ssub.s32 1, %s10
  %s13 = scalar_select 0, %s12, %s10
  // Predicated region
  $region2: #{freq_unroll_block_forward.1} parent=0 // pred_check
    _
  $region3: #{freq_unroll_block_forward.1} parent=0 // pred_check_branch
    %15 = sbr.rel (0) target = $region5
  $region4: #{freq_unroll_block_forward.1} parent=0 // pred_region
    _
  $region5: #{freq_unroll_block_forward.1} parent=0 // pred_fallthru
    _
  // Predicated region
  $region6: #{freq_unroll_block_forward.1} parent=0 // pred_check
    _
  $region7: #{freq_unroll_block_forward.1} parent=0 // pred_check_branch
    %17 = sbr.rel (0) target = $region9
  $region8: #{freq_unroll_block_forward.1} parent=0 // pred_region
    _
  $region9: #{freq_unroll_block_forward.1} parent=0 // pred_fallthru
    _
  // Predicated region
  $region10: #{freq_unroll_block_forward.1} parent=0 // pred_check
    _
  $region11: #{freq_unroll_block_forward.1} parent=0 // pred_check_branch
    %19 = sbr.rel (0) target = $region13
  $region12: #{freq_unroll_block_forward.1} parent=0 // pred_region
    _
  $region13: #{freq_unroll_block_forward.1} parent=0 // pred_fallthru
    _
  // Predicated region
  $region14: #{freq_unroll_block_forward.1} parent=0 // pred_check
    _
  $region15: #{freq_unroll_block_forward.1} parent=0 // pred_check_branch
    %21 = sbr.rel (0) target = $region17
  $region16: #{freq_unroll_block_forward.1} parent=0 // pred_region
    _
  $region17: #{freq_unroll_block_forward.1} parent=0 // pred_fallthru
    _
  // Predicated region
  $region18: #{freq_unroll_block_forward.1} parent=0 // pred_check
    _
  $region19: #{freq_unroll_block_forward.1} parent=0 // pred_check_branch
    %23 = sbr.rel (0) target = $region21
  $region20: #{freq_unroll_block_forward.1} parent=0 // pred_region
    _
  $region21: #{freq_unroll_block_forward.1} parent=0 // pred_fallthru
    _
  // Predicated region
  $region22: #{freq_unroll_block_forward.1} parent=0 // pred_check
    _
  $region23: #{freq_unroll_block_forward.1} parent=0 // pred_check_branch
    %25 = sbr.rel (0) target = $region25
  $region24: #{freq_unroll_block_forward.1} parent=0 // pred_region
    _
  $region25: #{freq_unroll_block_forward.1} parent=0 // pred_fallthru
    _
  // Predicated region
  $region26: #{freq_unroll_block_forward.1} parent=0 // pred_check
    _
  $region27: #{freq_unroll_block_forward.1} parent=0 // pred_check_branch
    %27 = sbr.rel (0) target = $region29
  $region28: #{freq_unroll_block_forward.1} parent=0 // pred_region
    _
  $region29: #{freq_unroll_block_forward.1} parent=0 // pred_fallthru
    _
  %v28 = vld [vmem:[%s1] sm:$0xff]
  %v29 = vld [vmem:[%s1 + $0x8] sm:$0xff]
  %v30 = vld [vmem:[%s1 + $0x10] sm:$0xff]
  %v31 = vld [vmem:[%s1 + $0x18] sm:$0xff]
  %v32 = vld [vmem:[%s2] sm:$0x1]
  %v33 = vld [vmem:[%s3] sm:$0xff]
  %v34 = vld [vmem:[%s3 + $0x8] sm:$0xff]
  %v35 = vld [vmem:[%s3 + $0x10] sm:$0xff]
  %v36 = vld [vmem:[%s3 + $0x18] sm:$0xff]
  %v37 = vld [vmem:[%s3 + $0x20] sm:$0xff]
  %v38 = vld [vmem:[%s3 + $0x28] sm:$0xff]
  %v39 = vld [vmem:[%s3 + $0x30] sm:$0xff]
  %v40 = vld [vmem:[%s3 + $0x38] sm:$0xff]
  %v41 = vld [vmem:[%s4] sm:$0x1]
  %v42 = vld [vmem:[%s5] sm:$0xff]
  %v43 = vld [vmem:[%s5 + $0x8] sm:$0xff]
  %v44 = vld [vmem:[%s5 + $0x10] sm:$0xff]
  %v45 = vld [vmem:[%s5 + $0x18] sm:$0xff]
  %v46 = vld [vmem:[%s6] sm:$0x1]
  %p47 = scmp.eq.s32.totalorder 0, 0
  // Predicated region
  $region30: #{freq_unroll_block_forward.1} parent=0 // pred_check
    %p48 = pneg %p47
  $region31: #{freq_unroll_block_forward.1} parent=0 // pred_check_branch
    %50 = sbr.rel (%p48) target = $region33
  $region32: #{freq_unroll_block_forward.1} parent=0 // pred_region
    %vm51 = vcmask 261120
    %52 = vst.msk [vmem:[#allocation2] sm:$0xff] %vm51, 0.0
    %53 = vst.msk [vmem:[#allocation2 + $0x8] sm:$0xff] %vm51, 0.0
  $region33: #{freq_unroll_block_forward.1} parent=0 // pred_fallthru
    _
  %v54 = vld [vmem:[#allocation2] sm:$0xff]
  %s55 = scalar_lea.vmem [#allocation2], 8
  %v56 = vld [vmem:[%s55] sm:$0xff]
  %v57 = vld [vmem:[%s0] sm:$0xff]
  %v59 = vlaneseq
  %v60 = vshrl.u32 %v59, 7
  %v61 = vsub.s32 0, %v60
  %v62 = vrot.slane %v32, %v61
  %vm64 = vcmask 261120
  %v66 = vsel %vm64, %v54, 0
  %68 = vmatprep.subr.mxu0 0.0
  %69 = vmatpush1.msra.mxu0 %v28
  %70 = vmatprep.subr.mxu0 0.0
  %71 = vmatpush1.msra.mxu0 %v29
  %72 = vmatprep.subr.mxu0 0.0
  %73 = vmatpush1.msra.mxu0 %v30
  %74 = vmatprep.subr.mxu0 0.0
  %75 = vmatpush1.msra.mxu0 %v31
  %76 = vmatprep.subr.mxu0 0.0
  %77 = vmatpush1.msra.mxu0 0.0
  %78 = vmatprep.subr.mxu0 0.0
  %79 = vmatpush1.msra.mxu0 0.0
  %80 = vmatprep.subr.mxu0 0.0
  %81 = vmatpush1.msra.mxu0 0.0
  %82 = vmatprep.subr.mxu0 0.0
  %83 = vmatpush1.msra.mxu0 0.0
  %84 = vmatprep.subr.mxu0 0.0
  %85 = vmatpush1.msra.mxu0 0.0
  %86 = vmatprep.subr.mxu0 0.0
  %87 = vmatpush1.msra.mxu0 0.0
  %88 = vmatprep.subr.mxu0 0.0
  %89 = vmatpush1.msra.mxu0 0.0
  %90 = vmatprep.subr.mxu0 0.0
  %91 = vmatpush1.msra.mxu0 0.0
  %92 = vmatprep.subr.mxu0 0.0
  %93 = vmatpush1.msra.mxu0 0.0
  %94 = vmatprep.subr.mxu0 0.0
  %95 = vmatpush1.msra.mxu0 0.0
  %96 = vmatprep.subr.mxu0 0.0
  %97 = vmatpush1.msra.mxu0 0.0
  %98 = vmatprep.subr.mxu0 0.0
  %99 = vmatpush1.msra.mxu0 0.0
  %100 = vmatprep.subr.mxu0 0.0
  %101 = vmatpush1.msra.mxu0 0.0
  %102 = vmatprep.subr.mxu0 0.0
  %103 = vmatpush1.msra.mxu0 0.0
  %104 = vmatprep.subr.mxu0 0.0
  %105 = vmatpush1.msra.mxu0 0.0
  %106 = vmatprep.subr.mxu0 0.0
  %107 = vmatpush1.msra.mxu0 0.0
  %108 = vmatprep.subr.mxu0 0.0
  %109 = vmatpush1.msra.mxu0 0.0
  %110 = vmatprep.subr.mxu0 0.0
  %111 = vmatpush1.msra.mxu0 0.0
  %112 = vmatprep.subr.mxu0 0.0
  %113 = vmatpush1.msra.mxu0 0.0
  %114 = vmatprep.subr.mxu0 0.0
  %115 = vmatpush1.msra.mxu0 0.0
  %116 = vmatprep.subr.mxu0 0.0
  %117 = vmatpush1.msra.mxu0 0.0
  %118 = vmatprep.subr.mxu0 0.0
  %119 = vmatpush1.msra.mxu0 0.0
  %120 = vmatprep.subr.mxu0 0.0
  %121 = vmatpush1.msra.mxu0 0.0
  %122 = vmatprep.subr.mxu0 0.0
  %123 = vmatpush1.msra.mxu0 0.0
  %124 = vmatprep.subr.mxu0 0.0
  %125 = vmatpush1.msra.mxu0 0.0
  %126 = vmatprep.subr.mxu0 0.0
  %127 = vmatpush1.msra.mxu0 0.0
  %128 = vmatprep.subr.mxu0 0.0
  %129 = vmatpush1.msra.mxu0 0.0
  %130 = vmatprep.subr.mxu0 0.0
  %131 = vmatpush1.msra.mxu0 0.0
  %132 = vmatprep.mubr.f32.mxu0 0.0
  %133 = vmatmul.mubr.f32.gmra.mrb[0].mxu0 %v66
  %v134 = vpop.f32.mrb[0].mxu0
  %v135 = vadd.f32 %v62, %v134
  %v136 = vpop.f32.mrb[0].mxu0
  %137 = vdwg.mxu0
  %v138 = vadd.f32 %v57, %v135
  %v139 = vxor.u32 %v138, 2147483648
  %v140 = vmul.f32 %v139, 1.442695
  %v141 = vpow.pop %v140
  %v142 = vadd.f32 %v141, 1.0
  %v143 = vrcp.pop %v142
  %v144 = vmul.f32 1.0, %v143
  %146 = vrot.lane.b32.xlu0 %v135, 64
  %v147 = vpop.permute.xlu0 %146
  %v149 = vmul.f32 %v144, %v147
  %151 = vrot.lane.b32.xlu0 %v149, 64
  %v152 = vpop.permute.xlu0 %151
  %v154 = vadd.f32 %v57, %v152
  %v155 = vtanh.pop %v154
  %v156 = vsub.f32 1.0, %v144
  %158 = vrot.lane.b32.xlu0 %v155, 96
  %v159 = vpop.permute.xlu0 %158
  %v161 = vmul.f32 %v156, %v159
  %162 = vrot.lane.b32.xlu0 %v54, 32
  %v163 = vpop.permute.xlu0 %162
  %v165 = vmul.f32 %v144, %v163
  %v166 = vadd.f32 %v161, %v165
  %168 = vrot.lane.b32.xlu0 %v166, 96
  %v169 = vpop.permute.xlu0 %168
  %172 = vrot.lane.b32.xlu0 %v56, 32
  %v173 = vpop.permute.xlu0 %172
  %v175 = vsel %vm64, %v169, %v173
  %v177 = vlaneseq
  %v178 = vshrl.u32 %v177, 7
  %v179 = vsub.s32 0, %v178
  %v180 = vrot.slane %v41, %v179
  %vm182 = vcmask 523264
  %v184 = vsel %vm182, %v175, 0
  %186 = vmatprep.subr.mxu0 0.0
  %187 = vmatpush1.msra.mxu0 %v33
  %188 = vmatprep.subr.mxu0 0.0
  %189 = vmatpush1.msra.mxu0 %v34
  %190 = vmatprep.subr.mxu0 0.0
  %191 = vmatpush1.msra.mxu0 %v35
  %192 = vmatprep.subr.mxu0 0.0
  %193 = vmatpush1.msra.mxu0 %v36
  %194 = vmatprep.subr.mxu0 0.0
  %195 = vmatpush1.msra.mxu0 %v37
  %196 = vmatprep.subr.mxu0 0.0
  %197 = vmatpush1.msra.mxu0 %v38
  %198 = vmatprep.subr.mxu0 0.0
  %199 = vmatpush1.msra.mxu0 %v39
  %200 = vmatprep.subr.mxu0 0.0
  %201 = vmatpush1.msra.mxu0 %v40
  %202 = vmatprep.subr.mxu0 0.0
  %203 = vmatpush1.msra.mxu0 0.0
  %204 = vmatprep.subr.mxu0 0.0
  %205 = vmatpush1.msra.mxu0 0.0
  %206 = vmatprep.subr.mxu0 0.0
  %207 = vmatpush1.msra.mxu0 0.0
  %208 = vmatprep.subr.mxu0 0.0
  %209 = vmatpush1.msra.mxu0 0.0
  %210 = vmatprep.subr.mxu0 0.0
  %211 = vmatpush1.msra.mxu0 0.0
  %212 = vmatprep.subr.mxu0 0.0
  %213 = vmatpush1.msra.mxu0 0.0
  %214 = vmatprep.subr.mxu0 0.0
  %215 = vmatpush1.msra.mxu0 0.0
  %216 = vmatprep.subr.mxu0 0.0
  %217 = vmatpush1.msra.mxu0 0.0
  %218 = vmatprep.subr.mxu0 0.0
  %219 = vmatpush1.msra.mxu0 0.0
  %220 = vmatprep.subr.mxu0 0.0
  %221 = vmatpush1.msra.mxu0 0.0
  %222 = vmatprep.subr.mxu0 0.0
  %223 = vmatpush1.msra.mxu0 0.0
  %224 = vmatprep.subr.mxu0 0.0
  %225 = vmatpush1.msra.mxu0 0.0
  %226 = vmatprep.subr.mxu0 0.0
  %227 = vmatpush1.msra.mxu0 0.0
  %228 = vmatprep.subr.mxu0 0.0
  %229 = vmatpush1.msra.mxu0 0.0
  %230 = vmatprep.subr.mxu0 0.0
  %231 = vmatpush1.msra.mxu0 0.0
  %232 = vmatprep.subr.mxu0 0.0
  %233 = vmatpush1.msra.mxu0 0.0
  %234 = vmatprep.subr.mxu0 0.0
  %235 = vmatpush1.msra.mxu0 0.0
  %236 = vmatprep.subr.mxu0 0.0
  %237 = vmatpush1.msra.mxu0 0.0
  %238 = vmatprep.subr.mxu0 0.0
  %239 = vmatpush1.msra.mxu0 0.0
  %240 = vmatprep.subr.mxu0 0.0
  %241 = vmatpush1.msra.mxu0 0.0
  %242 = vmatprep.subr.mxu0 0.0
  %243 = vmatpush1.msra.mxu0 0.0
  %244 = vmatprep.subr.mxu0 0.0
  %245 = vmatpush1.msra.mxu0 0.0
  %246 = vmatprep.subr.mxu0 0.0
  %247 = vmatpush1.msra.mxu0 0.0
  %248 = vmatprep.subr.mxu0 0.0
  %249 = vmatpush1.msra.mxu0 0.0
  %250 = vmatprep.mubr.f32.mxu0 0.0
  %251 = vmatmul.mubr.f32.gmra.mrb[0].mxu0 %v184
  %v252 = vpop.f32.mrb[0].mxu0
  %v253 = vadd.f32 %v180, %v252
  %v254 = vpop.f32.mrb[0].mxu0
  %255 = vdwg.mxu0
  %v256 = vxor.u32 %v253, 2147483648
  %v257 = vmul.f32 %v256, 1.442695
  %v258 = vpow.pop %v257
  %v259 = vadd.f32 %v258, 1.0
  %v260 = vrcp.pop %v259
  %v261 = vmul.f32 1.0, %v260
  %263 = vrot.lane.b32.xlu0 %v253, 32
  %v264 = vpop.permute.xlu0 %263
  %v266 = vmul.f32 %v261, %v264
  %268 = vrot.lane.b32.xlu0 %v266, 64
  %v269 = vpop.permute.xlu0 %268
  %v271 = vadd.f32 %v253, %v269
  %v272 = vtanh.pop %v271
  %v273 = vsub.f32 1.0, %v261
  %275 = vrot.lane.b32.xlu0 %v272, 96
  %v276 = vpop.permute.xlu0 %275
  %v278 = vmul.f32 %v273, %v276
  %v279 = vmul.f32 %v261, %v173
  %v280 = vadd.f32 %v278, %v279
  %s281 = scalar_lea.vmem %s0, 8
  %v282 = vld [vmem:[%s281] sm:$0xff]
  %v283 = vsel %vm64, %v169, 0
  %285 = vmatprep.subr.mxu0 0.0
  %286 = vmatpush1.msra.mxu0 %v28
  %287 = vmatprep.subr.mxu0 0.0
  %288 = vmatpush1.msra.mxu0 %v29
  %289 = vmatprep.subr.mxu0 0.0
  %290 = vmatpush1.msra.mxu0 %v30
  %291 = vmatprep.subr.mxu0 0.0
  %292 = vmatpush1.msra.mxu0 %v31
  %293 = vmatprep.subr.mxu0 0.0
  %294 = vmatpush1.msra.mxu0 0.0
  %295 = vmatprep.subr.mxu0 0.0
  %296 = vmatpush1.msra.mxu0 0.0
  %297 = vmatprep.subr.mxu0 0.0
  %298 = vmatpush1.msra.mxu0 0.0
  %299 = vmatprep.subr.mxu0 0.0
  %300 = vmatpush1.msra.mxu0 0.0
  %301 = vmatprep.subr.mxu0 0.0
  %302 = vmatpush1.msra.mxu0 0.0
  %303 = vmatprep.subr.mxu0 0.0
  %304 = vmatpush1.msra.mxu0 0.0
  %305 = vmatprep.subr.mxu0 0.0
  %306 = vmatpush1.msra.mxu0 0.0
  %307 = vmatprep.subr.mxu0 0.0
  %308 = vmatpush1.msra.mxu0 0.0
  %309 = vmatprep.subr.mxu0 0.0
  %310 = vmatpush1.msra.mxu0 0.0
  %311 = vmatprep.subr.mxu0 0.0
  %312 = vmatpush1.msra.mxu0 0.0
  %313 = vmatprep.subr.mxu0 0.0
  %314 = vmatpush1.msra.mxu0 0.0
  %315 = vmatprep.subr.mxu0 0.0
  %316 = vmatpush1.msra.mxu0 0.0
  %317 = vmatprep.subr.mxu0 0.0
  %318 = vmatpush1.msra.mxu0 0.0
  %319 = vmatprep.subr.mxu0 0.0
  %320 = vmatpush1.msra.mxu0 0.0
  %321 = vmatprep.subr.mxu0 0.0
  %322 = vmatpush1.msra.mxu0 0.0
  %323 = vmatprep.subr.mxu0 0.0
  %324 = vmatpush1.msra.mxu0 0.0
  %325 = vmatprep.subr.mxu0 0.0
  %326 = vmatpush1.msra.mxu0 0.0
  %327 = vmatprep.subr.mxu0 0.0
  %328 = vmatpush1.msra.mxu0 0.0
  %329 = vmatprep.subr.mxu0 0.0
  %330 = vmatpush1.msra.mxu0 0.0
  %331 = vmatprep.subr.mxu0 0.0
  %332 = vmatpush1.msra.mxu0 0.0
  %333 = vmatprep.subr.mxu0 0.0
  %334 = vmatpush1.msra.mxu0 0.0
  %335 = vmatprep.subr.mxu0 0.0
  %336 = vmatpush1.msra.mxu0 0.0
  %337 = vmatprep.subr.mxu0 0.0
  %338 = vmatpush1.msra.mxu0 0.0
  %339 = vmatprep.subr.mxu0 0.0
  %340 = vmatpush1.msra.mxu0 0.0
  %341 = vmatprep.subr.mxu0 0.0
  %342 = vmatpush1.msra.mxu0 0.0
  %343 = vmatprep.subr.mxu0 0.0
  %344 = vmatpush1.msra.mxu0 0.0
  %345 = vmatprep.subr.mxu0 0.0
  %346 = vmatpush1.msra.mxu0 0.0
  %347 = vmatprep.subr.mxu0 0.0
  %348 = vmatpush1.msra.mxu0 0.0
  %349 = vmatprep.mubr.f32.mxu0 0.0
  %350 = vmatmul.mubr.f32.gmra.mrb[0].mxu0 %v283
  %v351 = vpop.f32.mrb[0].mxu0
  %v352 = vadd.f32 %v62, %v351
  %v353 = vpop.f32.mrb[0].mxu0
  %354 = vdwg.mxu0
  %v355 = vadd.f32 %v282, %v352
  %v356 = vxor.u32 %v355, 2147483648
  %v357 = vmul.f32 %v356, 1.442695
  %v358 = vpow.pop %v357
  %v359 = vadd.f32 %v358, 1.0
  %v360 = vrcp.pop %v359
  %v361 = vmul.f32 1.0, %v360
  %363 = vrot.lane.b32.xlu0 %v352, 64
  %v364 = vpop.permute.xlu0 %363
  %v366 = vmul.f32 %v361, %v364
  %368 = vrot.lane.b32.xlu0 %v366, 64
  %v369 = vpop.permute.xlu0 %368
  %v371 = vadd.f32 %v282, %v369
  %v372 = vtanh.pop %v371
  %v373 = vsub.f32 1.0, %v361
  %375 = vrot.lane.b32.xlu0 %v372, 96
  %v376 = vpop.permute.xlu0 %375
  %v378 = vmul.f32 %v373, %v376
  %v379 = vmul.f32 %v361, %v166
  %v380 = vadd.f32 %v378, %v379
  %382 = vrot.lane.b32.xlu0 %v380, 96
  %v383 = vpop.permute.xlu0 %382
  %v385 = vsel %vm64, %v383, %v280
  %v387 = vsel %vm182, %v385, 0
  %389 = vmatprep.subr.mxu0 0.0
  %390 = vmatpush1.msra.mxu0 %v33
  %391 = vmatprep.subr.mxu0 0.0
  %392 = vmatpush1.msra.mxu0 %v34
  %393 = vmatprep.subr.mxu0 0.0
  %394 = vmatpush1.msra.mxu0 %v35
  %395 = vmatprep.subr.mxu0 0.0
  %396 = vmatpush1.msra.mxu0 %v36
  %397 = vmatprep.subr.mxu0 0.0
  %398 = vmatpush1.msra.mxu0 %v37
  %399 = vmatprep.subr.mxu0 0.0
  %400 = vmatpush1.msra.mxu0 %v38
  %401 = vmatprep.subr.mxu0 0.0
  %402 = vmatpush1.msra.mxu0 %v39
  %403 = vmatprep.subr.mxu0 0.0
  %404 = vmatpush1.msra.mxu0 %v40
  %405 = vmatprep.subr.mxu0 0.0
  %406 = vmatpush1.msra.mxu0 0.0
  %407 = vmatprep.subr.mxu0 0.0
  %408 = vmatpush1.msra.mxu0 0.0
  %409 = vmatprep.subr.mxu0 0.0
  %410 = vmatpush1.msra.mxu0 0.0
  %411 = vmatprep.subr.mxu0 0.0
  %412 = vmatpush1.msra.mxu0 0.0
  %413 = vmatprep.subr.mxu0 0.0
  %414 = vmatpush1.msra.mxu0 0.0
  %415 = vmatprep.subr.mxu0 0.0
  %416 = vmatpush1.msra.mxu0 0.0
  %417 = vmatprep.subr.mxu0 0.0
  %418 = vmatpush1.msra.mxu0 0.0
  %419 = vmatprep.subr.mxu0 0.0
  %420 = vmatpush1.msra.mxu0 0.0
  %421 = vmatprep.subr.mxu0 0.0
  %422 = vmatpush1.msra.mxu0 0.0
  %423 = vmatprep.subr.mxu0 0.0
  %424 = vmatpush1.msra.mxu0 0.0
  %425 = vmatprep.subr.mxu0 0.0
  %426 = vmatpush1.msra.mxu0 0.0
  %427 = vmatprep.subr.mxu0 0.0
  %428 = vmatpush1.msra.mxu0 0.0
  %429 = vmatprep.subr.mxu0 0.0
  %430 = vmatpush1.msra.mxu0 0.0
  %431 = vmatprep.subr.mxu0 0.0
  %432 = vmatpush1.msra.mxu0 0.0
  %433 = vmatprep.subr.mxu0 0.0
  %434 = vmatpush1.msra.mxu0 0.0
  %435 = vmatprep.subr.mxu0 0.0
  %436 = vmatpush1.msra.mxu0 0.0
  %437 = vmatprep.subr.mxu0 0.0
  %438 = vmatpush1.msra.mxu0 0.0
  %439 = vmatprep.subr.mxu0 0.0
  %440 = vmatpush1.msra.mxu0 0.0
  %441 = vmatprep.subr.mxu0 0.0
  %442 = vmatpush1.msra.mxu0 0.0
  %443 = vmatprep.subr.mxu0 0.0
  %444 = vmatpush1.msra.mxu0 0.0
  %445 = vmatprep.subr.mxu0 0.0
  %446 = vmatpush1.msra.mxu0 0.0
  %447 = vmatprep.subr.mxu0 0.0
  %448 = vmatpush1.msra.mxu0 0.0
  %449 = vmatprep.subr.mxu0 0.0
  %450 = vmatpush1.msra.mxu0 0.0
  %451 = vmatprep.subr.mxu0 0.0
  %452 = vmatpush1.msra.mxu0 0.0
  %453 = vmatprep.mubr.f32.mxu0 0.0
  %454 = vmatmul.mubr.f32.gmra.mrb[0].mxu0 %v387
  %v455 = vpop.f32.mrb[0].mxu0
  %v456 = vadd.f32 %v180, %v455
  %v457 = vpop.f32.mrb[0].mxu0
  %458 = vdwg.mxu0
  %v459 = vxor.u32 %v456, 2147483648
  %v460 = vmul.f32 %v459, 1.442695
  %v461 = vpow.pop %v460
  %v462 = vadd.f32 %v461, 1.0
  %v463 = vrcp.pop %v462
  %v464 = vmul.f32 1.0, %v463
  %466 = vrot.lane.b32.xlu0 %v456, 32
  %v467 = vpop.permute.xlu0 %466
  %v469 = vmul.f32 %v464, %v467
  %471 = vrot.lane.b32.xlu0 %v469, 64
  %v472 = vpop.permute.xlu0 %471
  %v474 = vadd.f32 %v456, %v472
  %v475 = vtanh.pop %v474
  %v476 = vsub.f32 1.0, %v464
  %478 = vrot.lane.b32.xlu0 %v475, 96
  %v479 = vpop.permute.xlu0 %478
  %v481 = vmul.f32 %v476, %v479
  %v482 = vmul.f32 %v464, %v280
  %v483 = vadd.f32 %v481, %v482
  %s484 = scalar_lea.vmem %s0, 16
  %v485 = vld [vmem:[%s484] sm:$0xff]
  %v486 = vsel %vm64, %v383, 0
  %488 = vmatprep.subr.mxu0 0.0
  %489 = vmatpush1.msra.mxu0 %v28
  %490 = vmatprep.subr.mxu0 0.0
  %491 = vmatpush1.msra.mxu0 %v29
  %492 = vmatprep.subr.mxu0 0.0
  %493 = vmatpush1.msra.mxu0 %v30
  %494 = vmatprep.subr.mxu0 0.0
  %495 = vmatpush1.msra.mxu0 %v31
  %496 = vmatprep.subr.mxu0 0.0
  %497 = vmatpush1.msra.mxu0 0.0
  %498 = vmatprep.subr.mxu0 0.0
  %499 = vmatpush1.msra.mxu0 0.0
  %500 = vmatprep.subr.mxu0 0.0
  %501 = vmatpush1.msra.mxu0 0.0
  %502 = vmatprep.subr.mxu0 0.0
  %503 = vmatpush1.msra.mxu0 0.0
  %504 = vmatprep.subr.mxu0 0.0
  %505 = vmatpush1.msra.mxu0 0.0
  %506 = vmatprep.subr.mxu0 0.0
  %507 = vmatpush1.msra.mxu0 0.0
  %508 = vmatprep.subr.mxu0 0.0
  %509 = vmatpush1.msra.mxu0 0.0
  %510 = vmatprep.subr.mxu0 0.0
  %511 = vmatpush1.msra.mxu0 0.0
  %512 = vmatprep.subr.mxu0 0.0
  %513 = vmatpush1.msra.mxu0 0.0
  %514 = vmatprep.subr.mxu0 0.0
  %515 = vmatpush1.msra.mxu0 0.0
  %516 = vmatprep.subr.mxu0 0.0
  %517 = vmatpush1.msra.mxu0 0.0
  %518 = vmatprep.subr.mxu0 0.0
  %519 = vmatpush1.msra.mxu0 0.0
  %520 = vmatprep.subr.mxu0 0.0
  %521 = vmatpush1.msra.mxu0 0.0
  %522 = vmatprep.subr.mxu0 0.0
  %523 = vmatpush1.msra.mxu0 0.0
  %524 = vmatprep.subr.mxu0 0.0
  %525 = vmatpush1.msra.mxu0 0.0
  %526 = vmatprep.subr.mxu0 0.0
  %527 = vmatpush1.msra.mxu0 0.0
  %528 = vmatprep.subr.mxu0 0.0
  %529 = vmatpush1.msra.mxu0 0.0
  %530 = vmatprep.subr.mxu0 0.0
  %531 = vmatpush1.msra.mxu0 0.0
  %532 = vmatprep.subr.mxu0 0.0
  %533 = vmatpush1.msra.mxu0 0.0
  %534 = vmatprep.subr.mxu0 0.0
  %535 = vmatpush1.msra.mxu0 0.0
  %536 = vmatprep.subr.mxu0 0.0
  %537 = vmatpush1.msra.mxu0 0.0
  %538 = vmatprep.subr.mxu0 0.0
  %539 = vmatpush1.msra.mxu0 0.0
  %540 = vmatprep.subr.mxu0 0.0
  %541 = vmatpush1.msra.mxu0 0.0
  %542 = vmatprep.subr.mxu0 0.0
  %543 = vmatpush1.msra.mxu0 0.0
  %544 = vmatprep.subr.mxu0 0.0
  %545 = vmatpush1.msra.mxu0 0.0
  %546 = vmatprep.subr.mxu0 0.0
  %547 = vmatpush1.msra.mxu0 0.0
  %548 = vmatprep.subr.mxu0 0.0
  %549 = vmatpush1.msra.mxu0 0.0
  %550 = vmatprep.subr.mxu0 0.0
  %551 = vmatpush1.msra.mxu0 0.0
  %552 = vmatprep.mubr.f32.mxu0 0.0
  %553 = vmatmul.mubr.f32.gmra.mrb[0].mxu0 %v486
  %v554 = vpop.f32.mrb[0].mxu0
  %v555 = vadd.f32 %v62, %v554
  %v556 = vpop.f32.mrb[0].mxu0
  %557 = vdwg.mxu0
  %v558 = vadd.f32 %v485, %v555
  %v559 = vxor.u32 %v558, 2147483648
  %v560 = vmul.f32 %v559, 1.442695
  %v561 = vpow.pop %v560
  %v562 = vadd.f32 %v561, 1.0
  %v563 = vrcp.pop %v562
  %v564 = vmul.f32 1.0, %v563
  %566 = vrot.lane.b32.xlu0 %v555, 64
  %v567 = vpop.permute.xlu0 %566
  %v569 = vmul.f32 %v564, %v567
  %571 = vrot.lane.b32.xlu0 %v569, 64
  %v572 = vpop.permute.xlu0 %571
  %v574 = vadd.f32 %v485, %v572
  %v575 = vtanh.pop %v574
  %v576 = vsub.f32 1.0, %v564
  %578 = vrot.lane.b32.xlu0 %v575, 96
  %v579 = vpop.permute.xlu0 %578
  %v581 = vmul.f32 %v576, %v579
  %v582 = vmul.f32 %v564, %v380
  %v583 = vadd.f32 %v581, %v582
  %585 = vrot.lane.b32.xlu0 %v583, 96
  %v586 = vpop.permute.xlu0 %585
  %v588 = vsel %vm64, %v586, %v483
  %v590 = vsel %vm182, %v588, 0
  %592 = vmatprep.subr.mxu0 0.0
  %593 = vmatpush1.msra.mxu0 %v33
  %594 = vmatprep.subr.mxu0 0.0
  %595 = vmatpush1.msra.mxu0 %v34
  %596 = vmatprep.subr.mxu0 0.0
  %597 = vmatpush1.msra.mxu0 %v35
  %598 = vmatprep.subr.mxu0 0.0
  %599 = vmatpush1.msra.mxu0 %v36
  %600 = vmatprep.subr.mxu0 0.0
  %601 = vmatpush1.msra.mxu0 %v37
  %602 = vmatprep.subr.mxu0 0.0
  %603 = vmatpush1.msra.mxu0 %v38
  %604 = vmatprep.subr.mxu0 0.0
  %605 = vmatpush1.msra.mxu0 %v39
  %606 = vmatprep.subr.mxu0 0.0
  %607 = vmatpush1.msra.mxu0 %v40
  %608 = vmatprep.subr.mxu0 0.0
  %609 = vmatpush1.msra.mxu0 0.0
  %610 = vmatprep.subr.mxu0 0.0
  %611 = vmatpush1.msra.mxu0 0.0
  %612 = vmatprep.subr.mxu0 0.0
  %613 = vmatpush1.msra.mxu0 0.0
  %614 = vmatprep.subr.mxu0 0.0
  %615 = vmatpush1.msra.mxu0 0.0
  %616 = vmatprep.subr.mxu0 0.0
  %617 = vmatpush1.msra.mxu0 0.0
  %618 = vmatprep.subr.mxu0 0.0
  %619 = vmatpush1.msra.mxu0 0.0
  %620 = vmatprep.subr.mxu0 0.0
  %621 = vmatpush1.msra.mxu0 0.0
  %622 = vmatprep.subr.mxu0 0.0
  %623 = vmatpush1.msra.mxu0 0.0
  %624 = vmatprep.subr.mxu0 0.0
  %625 = vmatpush1.msra.mxu0 0.0
  %626 = vmatprep.subr.mxu0 0.0
  %627 = vmatpush1.msra.mxu0 0.0
  %628 = vmatprep.subr.mxu0 0.0
  %629 = vmatpush1.msra.mxu0 0.0
  %630 = vmatprep.subr.mxu0 0.0
  %631 = vmatpush1.msra.mxu0 0.0
  %632 = vmatprep.subr.mxu0 0.0
  %633 = vmatpush1.msra.mxu0 0.0
  %634 = vmatprep.subr.mxu0 0.0
  %635 = vmatpush1.msra.mxu0 0.0
  %636 = vmatprep.subr.mxu0 0.0
  %637 = vmatpush1.msra.mxu0 0.0
  %638 = vmatprep.subr.mxu0 0.0
  %639 = vmatpush1.msra.mxu0 0.0
  %640 = vmatprep.subr.mxu0 0.0
  %641 = vmatpush1.msra.mxu0 0.0
  %642 = vmatprep.subr.mxu0 0.0
  %643 = vmatpush1.msra.mxu0 0.0
  %644 = vmatprep.subr.mxu0 0.0
  %645 = vmatpush1.msra.mxu0 0.0
  %646 = vmatprep.subr.mxu0 0.0
  %647 = vmatpush1.msra.mxu0 0.0
  %648 = vmatprep.subr.mxu0 0.0
  %649 = vmatpush1.msra.mxu0 0.0
  %650 = vmatprep.subr.mxu0 0.0
  %651 = vmatpush1.msra.mxu0 0.0
  %652 = vmatprep.subr.mxu0 0.0
  %653 = vmatpush1.msra.mxu0 0.0
  %654 = vmatprep.subr.mxu0 0.0
  %655 = vmatpush1.msra.mxu0 0.0
  %656 = vmatprep.mubr.f32.mxu0 0.0
  %657 = vmatmul.mubr.f32.gmra.mrb[0].mxu0 %v590
  %v658 = vpop.f32.mrb[0].mxu0
  %v659 = vadd.f32 %v180, %v658
  %v660 = vpop.f32.mrb[0].mxu0
  %661 = vdwg.mxu0
  %v662 = vxor.u32 %v659, 2147483648
  %v663 = vmul.f32 %v662, 1.442695
  %v664 = vpow.pop %v663
  %v665 = vadd.f32 %v664, 1.0
  %v666 = vrcp.pop %v665
  %v667 = vmul.f32 1.0, %v666
  %669 = vrot.lane.b32.xlu0 %v659, 32
  %v670 = vpop.permute.xlu0 %669
  %v672 = vmul.f32 %v667, %v670
  %674 = vrot.lane.b32.xlu0 %v672, 64
  %v675 = vpop.permute.xlu0 %674
  %v677 = vadd.f32 %v659, %v675
  %v678 = vtanh.pop %v677
  %v679 = vsub.f32 1.0, %v667
  %681 = vrot.lane.b32.xlu0 %v678, 96
  %v682 = vpop.permute.xlu0 %681
  %v684 = vmul.f32 %v679, %v682
  %v685 = vmul.f32 %v667, %v483
  %v686 = vadd.f32 %v684, %v685
  %s687 = scalar_lea.vmem %s0, 24
  %v688 = vld [vmem:[%s687] sm:$0xff]
  %v689 = vsel %vm64, %v586, 0
  %691 = vmatprep.subr.mxu0 0.0
  %692 = vmatpush1.msra.mxu0 %v28
  %693 = vmatprep.subr.mxu0 0.0
  %694 = vmatpush1.msra.mxu0 %v29
  %695 = vmatprep.subr.mxu0 0.0
  %696 = vmatpush1.msra.mxu0 %v30
  %697 = vmatprep.subr.mxu0 0.0
  %698 = vmatpush1.msra.mxu0 %v31
  %699 = vmatprep.subr.mxu0 0.0
  %700 = vmatpush1.msra.mxu0 0.0
  %701 = vmatprep.subr.mxu0 0.0
  %702 = vmatpush1.msra.mxu0 0.0
  %703 = vmatprep.subr.mxu0 0.0
  %704 = vmatpush1.msra.mxu0 0.0
  %705 = vmatprep.subr.mxu0 0.0
  %706 = vmatpush1.msra.mxu0 0.0
  %707 = vmatprep.subr.mxu0 0.0
  %708 = vmatpush1.msra.mxu0 0.0
  %709 = vmatprep.subr.mxu0 0.0
  %710 = vmatpush1.msra.mxu0 0.0
  %711 = vmatprep.subr.mxu0 0.0
  %712 = vmatpush1.msra.mxu0 0.0
  %713 = vmatprep.subr.mxu0 0.0
  %714 = vmatpush1.msra.mxu0 0.0
  %715 = vmatprep.subr.mxu0 0.0
  %716 = vmatpush1.msra.mxu0 0.0
  %717 = vmatprep.subr.mxu0 0.0
  %718 = vmatpush1.msra.mxu0 0.0
  %719 = vmatprep.subr.mxu0 0.0
  %720 = vmatpush1.msra.mxu0 0.0
  %721 = vmatprep.subr.mxu0 0.0
  %722 = vmatpush1.msra.mxu0 0.0
  %723 = vmatprep.subr.mxu0 0.0
  %724 = vmatpush1.msra.mxu0 0.0
  %725 = vmatprep.subr.mxu0 0.0
  %726 = vmatpush1.msra.mxu0 0.0
  %727 = vmatprep.subr.mxu0 0.0
  %728 = vmatpush1.msra.mxu0 0.0
  %729 = vmatprep.subr.mxu0 0.0
  %730 = vmatpush1.msra.mxu0 0.0
  %731 = vmatprep.subr.mxu0 0.0
  %732 = vmatpush1.msra.mxu0 0.0
  %733 = vmatprep.subr.mxu0 0.0
  %734 = vmatpush1.msra.mxu0 0.0
  %735 = vmatprep.subr.mxu0 0.0
  %736 = vmatpush1.msra.mxu0 0.0
  %737 = vmatprep.subr.mxu0 0.0
  %738 = vmatpush1.msra.mxu0 0.0
  %739 = vmatprep.subr.mxu0 0.0
  %740 = vmatpush1.msra.mxu0 0.0
  %741 = vmatprep.subr.mxu0 0.0
  %742 = vmatpush1.msra.mxu0 0.0
  %743 = vmatprep.subr.mxu0 0.0
  %744 = vmatpush1.msra.mxu0 0.0
  %745 = vmatprep.subr.mxu0 0.0
  %746 = vmatpush1.msra.mxu0 0.0
  %747 = vmatprep.subr.mxu0 0.0
  %748 = vmatpush1.msra.mxu0 0.0
  %749 = vmatprep.subr.mxu0 0.0
  %750 = vmatpush1.msra.mxu0 0.0
  %751 = vmatprep.subr.mxu0 0.0
  %752 = vmatpush1.msra.mxu0 0.0
  %753 = vmatprep.subr.mxu0 0.0
  %754 = vmatpush1.msra.mxu0 0.0
  %755 = vmatprep.mubr.f32.mxu0 0.0
  %756 = vmatmul.mubr.f32.gmra.mrb[0].mxu0 %v689
  %v757 = vpop.f32.mrb[0].mxu0
  %v758 = vadd.f32 %v62, %v757
  %v759 = vpop.f32.mrb[0].mxu0
  %760 = vdwg.mxu0
  %v761 = vadd.f32 %v688, %v758
  %v762 = vxor.u32 %v761, 2147483648
  %v763 = vmul.f32 %v762, 1.442695
  %v764 = vpow.pop %v763
  %v765 = vadd.f32 %v764, 1.0
  %v766 = vrcp.pop %v765
  %v767 = vmul.f32 1.0, %v766
  %769 = vrot.lane.b32.xlu0 %v758, 64
  %v770 = vpop.permute.xlu0 %769
  %v772 = vmul.f32 %v767, %v770
  %774 = vrot.lane.b32.xlu0 %v772, 64
  %v775 = vpop.permute.xlu0 %774
  %v777 = vadd.f32 %v688, %v775
  %v778 = vtanh.pop %v777
  %v779 = vsub.f32 1.0, %v767
  %781 = vrot.lane.b32.xlu0 %v778, 96
  %v782 = vpop.permute.xlu0 %781
  %v784 = vmul.f32 %v779, %v782
  %v785 = vmul.f32 %v767, %v583
  %v786 = vadd.f32 %v784, %v785
  %788 = vrot.lane.b32.xlu0 %v786, 96
  %v789 = vpop.permute.xlu0 %788
  %v791 = vsel %vm64, %v789, %v686
  %v793 = vsel %vm182, %v791, 0
  %795 = vmatprep.subr.mxu0 0.0
  %796 = vmatpush1.msra.mxu0 %v33
  %797 = vmatprep.subr.mxu0 0.0
  %798 = vmatpush1.msra.mxu0 %v34
  %799 = vmatprep.subr.mxu0 0.0
  %800 = vmatpush1.msra.mxu0 %v35
  %801 = vmatprep.subr.mxu0 0.0
  %802 = vmatpush1.msra.mxu0 %v36
  %803 = vmatprep.subr.mxu0 0.0
  %804 = vmatpush1.msra.mxu0 %v37
  %805 = vmatprep.subr.mxu0 0.0
  %806 = vmatpush1.msra.mxu0 %v38
  %807 = vmatprep.subr.mxu0 0.0
  %808 = vmatpush1.msra.mxu0 %v39
  %809 = vmatprep.subr.mxu0 0.0
  %810 = vmatpush1.msra.mxu0 %v40
  %811 = vmatprep.subr.mxu0 0.0
  %812 = vmatpush1.msra.mxu0 0.0
  %813 = vmatprep.subr.mxu0 0.0
  %814 = vmatpush1.msra.mxu0 0.0
  %815 = vmatprep.subr.mxu0 0.0
  %816 = vmatpush1.msra.mxu0 0.0
  %817 = vmatprep.subr.mxu0 0.0
  %818 = vmatpush1.msra.mxu0 0.0
  %819 = vmatprep.subr.mxu0 0.0
  %820 = vmatpush1.msra.mxu0 0.0
  %821 = vmatprep.subr.mxu0 0.0
  %822 = vmatpush1.msra.mxu0 0.0
  %823 = vmatprep.subr.mxu0 0.0
  %824 = vmatpush1.msra.mxu0 0.0
  %825 = vmatprep.subr.mxu0 0.0
  %826 = vmatpush1.msra.mxu0 0.0
  %827 = vmatprep.subr.mxu0 0.0
  %828 = vmatpush1.msra.mxu0 0.0
  %829 = vmatprep.subr.mxu0 0.0
  %830 = vmatpush1.msra.mxu0 0.0
  %831 = vmatprep.subr.mxu0 0.0
  %832 = vmatpush1.msra.mxu0 0.0
  %833 = vmatprep.subr.mxu0 0.0
  %834 = vmatpush1.msra.mxu0 0.0
  %835 = vmatprep.subr.mxu0 0.0
  %836 = vmatpush1.msra.mxu0 0.0
  %837 = vmatprep.subr.mxu0 0.0
  %838 = vmatpush1.msra.mxu0 0.0
  %839 = vmatprep.subr.mxu0 0.0
  %840 = vmatpush1.msra.mxu0 0.0
  %841 = vmatprep.subr.mxu0 0.0
  %842 = vmatpush1.msra.mxu0 0.0
  %843 = vmatprep.subr.mxu0 0.0
  %844 = vmatpush1.msra.mxu0 0.0
  %845 = vmatprep.subr.mxu0 0.0
  %846 = vmatpush1.msra.mxu0 0.0
  %847 = vmatprep.subr.mxu0 0.0
  %848 = vmatpush1.msra.mxu0 0.0
  %849 = vmatprep.subr.mxu0 0.0
  %850 = vmatpush1.msra.mxu0 0.0
  %851 = vmatprep.subr.mxu0 0.0
  %852 = vmatpush1.msra.mxu0 0.0
  %853 = vmatprep.subr.mxu0 0.0
  %854 = vmatpush1.msra.mxu0 0.0
  %855 = vmatprep.subr.mxu0 0.0
  %856 = vmatpush1.msra.mxu0 0.0
  %857 = vmatprep.subr.mxu0 0.0
  %858 = vmatpush1.msra.mxu0 0.0
  %859 = vmatprep.mubr.f32.mxu0 0.0
  %860 = vmatmul.mubr.f32.gmra.mrb[0].mxu0 %v793
  %v861 = vpop.f32.mrb[0].mxu0
  %v862 = vadd.f32 %v180, %v861
  %v863 = vpop.f32.mrb[0].mxu0
  %864 = vdwg.mxu0
  %v865 = vxor.u32 %v862, 2147483648
  %v866 = vmul.f32 %v865, 1.442695
  %v867 = vpow.pop %v866
  %v868 = vadd.f32 %v867, 1.0
  %v869 = vrcp.pop %v868
  %v870 = vmul.f32 1.0, %v869
  %872 = vrot.lane.b32.xlu0 %v862, 32
  %v873 = vpop.permute.xlu0 %872
  %v875 = vmul.f32 %v870, %v873
  %877 = vrot.lane.b32.xlu0 %v875, 64
  %v878 = vpop.permute.xlu0 %877
  %v880 = vadd.f32 %v862, %v878
  %v881 = vtanh.pop %v880
  %v882 = vsub.f32 1.0, %v870
  %884 = vrot.lane.b32.xlu0 %v881, 96
  %v885 = vpop.permute.xlu0 %884
  %v887 = vmul.f32 %v882, %v885
  %v888 = vmul.f32 %v870, %v686
  %v889 = vadd.f32 %v887, %v888
  %s890 = scalar_lea.vmem %s0, 32
  %v891 = vld [vmem:[%s890] sm:$0xff]
  %v892 = vsel %vm64, %v789, 0
  %894 = vmatprep.subr.mxu0 0.0
  %895 = vmatpush1.msra.mxu0 %v28
  %896 = vmatprep.subr.mxu0 0.0
  %897 = vmatpush1.msra.mxu0 %v29
  %898 = vmatprep.subr.mxu0 0.0
  %899 = vmatpush1.msra.mxu0 %v30
  %900 = vmatprep.subr.mxu0 0.0
  %901 = vmatpush1.msra.mxu0 %v31
  %902 = vmatprep.subr.mxu0 0.0
  %903 = vmatpush1.msra.mxu0 0.0
  %904 = vmatprep.subr.mxu0 0.0
  %905 = vmatpush1.msra.mxu0 0.0
  %906 = vmatprep.subr.mxu0 0.0
  %907 = vmatpush1.msra.mxu0 0.0
  %908 = vmatprep.subr.mxu0 0.0
  %909 = vmatpush1.msra.mxu0 0.0
  %910 = vmatprep.subr.mxu0 0.0
  %911 = vmatpush1.msra.mxu0 0.0
  %912 = vmatprep.subr.mxu0 0.0
  %913 = vmatpush1.msra.mxu0 0.0
  %914 = vmatprep.subr.mxu0 0.0
  %915 = vmatpush1.msra.mxu0 0.0
  %916 = vmatprep.subr.mxu0 0.0
  %917 = vmatpush1.msra.mxu0 0.0
  %918 = vmatprep.subr.mxu0 0.0
  %919 = vmatpush1.msra.mxu0 0.0
  %920 = vmatprep.subr.mxu0 0.0
  %921 = vmatpush1.msra.mxu0 0.0
  %922 = vmatprep.subr.mxu0 0.0
  %923 = vmatpush1.msra.mxu0 0.0
  %924 = vmatprep.subr.mxu0 0.0
  %925 = vmatpush1.msra.mxu0 0.0
  %926 = vmatprep.subr.mxu0 0.0
  %927 = vmatpush1.msra.mxu0 0.0
  %928 = vmatprep.subr.mxu0 0.0
  %929 = vmatpush1.msra.mxu0 0.0
  %930 = vmatprep.subr.mxu0 0.0
  %931 = vmatpush1.msra.mxu0 0.0
  %932 = vmatprep.subr.mxu0 0.0
  %933 = vmatpush1.msra.mxu0 0.0
  %934 = vmatprep.subr.mxu0 0.0
  %935 = vmatpush1.msra.mxu0 0.0
  %936 = vmatprep.subr.mxu0 0.0
  %937 = vmatpush1.msra.mxu0 0.0
  %938 = vmatprep.subr.mxu0 0.0
  %939 = vmatpush1.msra.mxu0 0.0
  %940 = vmatprep.subr.mxu0 0.0
  %941 = vmatpush1.msra.mxu0 0.0
  %942 = vmatprep.subr.mxu0 0.0
  %943 = vmatpush1.msra.mxu0 0.0
  %944 = vmatprep.subr.mxu0 0.0
  %945 = vmatpush1.msra.mxu0 0.0
  %946 = vmatprep.subr.mxu0 0.0
  %947 = vmatpush1.msra.mxu0 0.0
  %948 = vmatprep.subr.mxu0 0.0
  %949 = vmatpush1.msra.mxu0 0.0
  %950 = vmatprep.subr.mxu0 0.0
  %951 = vmatpush1.msra.mxu0 0.0
  %952 = vmatprep.subr.mxu0 0.0
  %953 = vmatpush1.msra.mxu0 0.0
  %954 = vmatprep.subr.mxu0 0.0
  %955 = vmatpush1.msra.mxu0 0.0
  %956 = vmatprep.subr.mxu0 0.0
  %957 = vmatpush1.msra.mxu0 0.0
  %958 = vmatprep.mubr.f32.mxu0 0.0
  %959 = vmatmul.mubr.f32.gmra.mrb[0].mxu0 %v892
  %v960 = vpop.f32.mrb[0].mxu0
  %v961 = vadd.f32 %v62, %v960
  %v962 = vpop.f32.mrb[0].mxu0
  %963 = vdwg.mxu0
  %v964 = vadd.f32 %v891, %v961
  %v965 = vxor.u32 %v964, 2147483648
  %v966 = vmul.f32 %v965, 1.442695
  %v967 = vpow.pop %v966
  %v968 = vadd.f32 %v967, 1.0
  %v969 = vrcp.pop %v968
  %v970 = vmul.f32 1.0, %v969
  %972 = vrot.lane.b32.xlu0 %v961, 64
  %v973 = vpop.permute.xlu0 %972
  %v975 = vmul.f32 %v970, %v973
  %977 = vrot.lane.b32.xlu0 %v975, 64
  %v978 = vpop.permute.xlu0 %977
  %v980 = vadd.f32 %v891, %v978
  %v981 = vtanh.pop %v980
  %v982 = vsub.f32 1.0, %v970
  %984 = vrot.lane.b32.xlu0 %v981, 96
  %v985 = vpop.permute.xlu0 %984
  %v987 = vmul.f32 %v982, %v985
  %v988 = vmul.f32 %v970, %v786
  %v989 = vadd.f32 %v987, %v988
  %991 = vrot.lane.b32.xlu0 %v989, 96
  %v992 = vpop.permute.xlu0 %991
  %v994 = vsel %vm64, %v992, %v889
  %v996 = vsel %vm182, %v994, 0
  %998 = vmatprep.subr.mxu0 0.0
  %999 = vmatpush1.msra.mxu0 %v33
  %1000 = vmatprep.subr.mxu0 0.0
  %1001 = vmatpush1.msra.mxu0 %v34
  %1002 = vmatprep.subr.mxu0 0.0
  %1003 = vmatpush1.msra.mxu0 %v35
  %1004 = vmatprep.subr.mxu0 0.0
  %1005 = vmatpush1.msra.mxu0 %v36
  %1006 = vmatprep.subr.mxu0 0.0
  %1007 = vmatpush1.msra.mxu0 %v37
  %1008 = vmatprep.subr.mxu0 0.0
  %1009 = vmatpush1.msra.mxu0 %v38
  %1010 = vmatprep.subr.mxu0 0.0
  %1011 = vmatpush1.msra.mxu0 %v39
  %1012 = vmatprep.subr.mxu0 0.0
  %1013 = vmatpush1.msra.mxu0 %v40
  %1014 = vmatprep.subr.mxu0 0.0
  %1015 = vmatpush1.msra.mxu0 0.0
  %1016 = vmatprep.subr.mxu0 0.0
  %1017 = vmatpush1.msra.mxu0 0.0
  %1018 = vmatprep.subr.mxu0 0.0
  %1019 = vmatpush1.msra.mxu0 0.0
  %1020 = vmatprep.subr.mxu0 0.0
  %1021 = vmatpush1.msra.mxu0 0.0
  %1022 = vmatprep.subr.mxu0 0.0
  %1023 = vmatpush1.msra.mxu0 0.0
  %1024 = vmatprep.subr.mxu0 0.0
  %1025 = vmatpush1.msra.mxu0 0.0
  %1026 = vmatprep.subr.mxu0 0.0
  %1027 = vmatpush1.msra.mxu0 0.0
  %1028 = vmatprep.subr.mxu0 0.0
  %1029 = vmatpush1.msra.mxu0 0.0
  %1030 = vmatprep.subr.mxu0 0.0
  %1031 = vmatpush1.msra.mxu0 0.0
  %1032 = vmatprep.subr.mxu0 0.0
  %1033 = vmatpush1.msra.mxu0 0.0
  %1034 = vmatprep.subr.mxu0 0.0
  %1035 = vmatpush1.msra.mxu0 0.0
  %1036 = vmatprep.subr.mxu0 0.0
  %1037 = vmatpush1.msra.mxu0 0.0
  %1038 = vmatprep.subr.mxu0 0.0
  %1039 = vmatpush1.msra.mxu0 0.0
  %1040 = vmatprep.subr.mxu0 0.0
  %1041 = vmatpush1.msra.mxu0 0.0
  %1042 = vmatprep.subr.mxu0 0.0
  %1043 = vmatpush1.msra.mxu0 0.0
  %1044 = vmatprep.subr.mxu0 0.0
  %1045 = vmatpush1.msra.mxu0 0.0
  %1046 = vmatprep.subr.mxu0 0.0
  %1047 = vmatpush1.msra.mxu0 0.0
  %1048 = vmatprep.subr.mxu0 0.0
  %1049 = vmatpush1.msra.mxu0 0.0
  %1050 = vmatprep.subr.mxu0 0.0
  %1051 = vmatpush1.msra.mxu0 0.0
  %1052 = vmatprep.subr.mxu0 0.0
  %1053 = vmatpush1.msra.mxu0 0.0
  %1054 = vmatprep.subr.mxu0 0.0
  %1055 = vmatpush1.msra.mxu0 0.0
  %1056 = vmatprep.subr.mxu0 0.0
  %1057 = vmatpush1.msra.mxu0 0.0
  %1058 = vmatprep.subr.mxu0 0.0
  %1059 = vmatpush1.msra.mxu0 0.0
  %1060 = vmatprep.subr.mxu0 0.0
  %1061 = vmatpush1.msra.mxu0 0.0
  %1062 = vmatprep.mubr.f32.mxu0 0.0
  %1063 = vmatmul.mubr.f32.gmra.mrb[0].mxu0 %v996
  %v1064 = vpop.f32.mrb[0].mxu0
  %v1065 = vadd.f32 %v180, %v1064
  %v1066 = vpop.f32.mrb[0].mxu0
  %1067 = vdwg.mxu0
  %v1068 = vxor.u32 %v1065, 2147483648
  %v1069 = vmul.f32 %v1068, 1.442695
  %v1070 = vpow.pop %v1069
  %v1071 = vadd.f32 %v1070, 1.0
  %v1072 = vrcp.pop %v1071
  %v1073 = vmul.f32 1.0, %v1072
  %1075 = vrot.lane.b32.xlu0 %v1065, 32
  %v1076 = vpop.permute.xlu0 %1075
  %v1078 = vmul.f32 %v1073, %v1076
  %1080 = vrot.lane.b32.xlu0 %v1078, 64
  %v1081 = vpop.permute.xlu0 %1080
  %v1083 = vadd.f32 %v1065, %v1081
  %v1084 = vtanh.pop %v1083
  %v1085 = vsub.f32 1.0, %v1073
  %1087 = vrot.lane.b32.xlu0 %v1084, 96
  %v1088 = vpop.permute.xlu0 %1087
  %v1090 = vmul.f32 %v1085, %v1088
  %v1091 = vmul.f32 %v1073, %v889
  %v1092 = vadd.f32 %v1090, %v1091
  %s1093 = scalar_lea.vmem %s0, 40
  %v1094 = vld [vmem:[%s1093] sm:$0xff]
  %v1095 = vsel %vm64, %v992, 0
  %1097 = vmatprep.subr.mxu0 0.0
  %1098 = vmatpush1.msra.mxu0 %v28
  %1099 = vmatprep.subr.mxu0 0.0
  %1100 = vmatpush1.msra.mxu0 %v29
  %1101 = vmatprep.subr.mxu0 0.0
  %1102 = vmatpush1.msra.mxu0 %v30
  %1103 = vmatprep.subr.mxu0 0.0
  %1104 = vmatpush1.msra.mxu0 %v31
  %1105 = vmatprep.subr.mxu0 0.0
  %1106 = vmatpush1.msra.mxu0 0.0
  %1107 = vmatprep.subr.mxu0 0.0
  %1108 = vmatpush1.msra.mxu0 0.0
  %1109 = vmatprep.subr.mxu0 0.0
  %1110 = vmatpush1.msra.mxu0 0.0
  %1111 = vmatprep.subr.mxu0 0.0
  %1112 = vmatpush1.msra.mxu0 0.0
  %1113 = vmatprep.subr.mxu0 0.0
  %1114 = vmatpush1.msra.mxu0 0.0
  %1115 = vmatprep.subr.mxu0 0.0
  %1116 = vmatpush1.msra.mxu0 0.0
  %1117 = vmatprep.subr.mxu0 0.0
  %1118 = vmatpush1.msra.mxu0 0.0
  %1119 = vmatprep.subr.mxu0 0.0
  %1120 = vmatpush1.msra.mxu0 0.0
  %1121 = vmatprep.subr.mxu0 0.0
  %1122 = vmatpush1.msra.mxu0 0.0
  %1123 = vmatprep.subr.mxu0 0.0
  %1124 = vmatpush1.msra.mxu0 0.0
  %1125 = vmatprep.subr.mxu0 0.0
  %1126 = vmatpush1.msra.mxu0 0.0
  %1127 = vmatprep.subr.mxu0 0.0
  %1128 = vmatpush1.msra.mxu0 0.0
  %1129 = vmatprep.subr.mxu0 0.0
  %1130 = vmatpush1.msra.mxu0 0.0
  %1131 = vmatprep.subr.mxu0 0.0
  %1132 = vmatpush1.msra.mxu0 0.0
  %1133 = vmatprep.subr.mxu0 0.0
  %1134 = vmatpush1.msra.mxu0 0.0
  %1135 = vmatprep.subr.mxu0 0.0
  %1136 = vmatpush1.msra.mxu0 0.0
  %1137 = vmatprep.subr.mxu0 0.0
  %1138 = vmatpush1.msra.mxu0 0.0
  %1139 = vmatprep.subr.mxu0 0.0
  %1140 = vmatpush1.msra.mxu0 0.0
  %1141 = vmatprep.subr.mxu0 0.0
  %1142 = vmatpush1.msra.mxu0 0.0
  %1143 = vmatprep.subr.mxu0 0.0
  %1144 = vmatpush1.msra.mxu0 0.0
  %1145 = vmatprep.subr.mxu0 0.0
  %1146 = vmatpush1.msra.mxu0 0.0
  %1147 = vmatprep.subr.mxu0 0.0
  %1148 = vmatpush1.msra.mxu0 0.0
  %1149 = vmatprep.subr.mxu0 0.0
  %1150 = vmatpush1.msra.mxu0 0.0
  %1151 = vmatprep.subr.mxu0 0.0
  %1152 = vmatpush1.msra.mxu0 0.0
  %1153 = vmatprep.subr.mxu0 0.0
  %1154 = vmatpush1.msra.mxu0 0.0
  %1155 = vmatprep.subr.mxu0 0.0
  %1156 = vmatpush1.msra.mxu0 0.0
  %1157 = vmatprep.subr.mxu0 0.0
  %1158 = vmatpush1.msra.mxu0 0.0
  %1159 = vmatprep.subr.mxu0 0.0
  %1160 = vmatpush1.msra.mxu0 0.0
  %1161 = vmatprep.mubr.f32.mxu0 0.0
  %1162 = vmatmul.mubr.f32.gmra.mrb[0].mxu0 %v1095
  %v1163 = vpop.f32.mrb[0].mxu0
  %v1164 = vadd.f32 %v62, %v1163
  %v1165 = vpop.f32.mrb[0].mxu0
  %1166 = vdwg.mxu0
  %v1167 = vadd.f32 %v1094, %v1164
  %v1168 = vxor.u32 %v1167, 2147483648
  %v1169 = vmul.f32 %v1168, 1.442695
  %v1170 = vpow.pop %v1169
  %v1171 = vadd.f32 %v1170, 1.0
  %v1172 = vrcp.pop %v1171
  %v1173 = vmul.f32 1.0, %v1172
  %1175 = vrot.lane.b32.xlu0 %v1164, 64
  %v1176 = vpop.permute.xlu0 %1175
  %v1178 = vmul.f32 %v1173, %v1176
  %1180 = vrot.lane.b32.xlu0 %v1178, 64
  %v1181 = vpop.permute.xlu0 %1180
  %v1183 = vadd.f32 %v1094, %v1181
  %v1184 = vtanh.pop %v1183
  %v1185 = vsub.f32 1.0, %v1173
  %1187 = vrot.lane.b32.xlu0 %v1184, 96
  %v1188 = vpop.permute.xlu0 %1187
  %v1190 = vmul.f32 %v1185, %v1188
  %v1191 = vmul.f32 %v1173, %v989
  %v1192 = vadd.f32 %v1190, %v1191
  %1194 = vrot.lane.b32.xlu0 %v1192, 96
  %v1195 = vpop.permute.xlu0 %1194
  %v1197 = vsel %vm64, %v1195, %v1092
  %v1199 = vsel %vm182, %v1197, 0
  %1201 = vmatprep.subr.mxu0 0.0
  %1202 = vmatpush1.msra.mxu0 %v33
  %1203 = vmatprep.subr.mxu0 0.0
  %1204 = vmatpush1.msra.mxu0 %v34
  %1205 = vmatprep.subr.mxu0 0.0
  %1206 = vmatpush1.msra.mxu0 %v35
  %1207 = vmatprep.subr.mxu0 0.0
  %1208 = vmatpush1.msra.mxu0 %v36
  %1209 = vmatprep.subr.mxu0 0.0
  %1210 = vmatpush1.msra.mxu0 %v37
  %1211 = vmatprep.subr.mxu0 0.0
  %1212 = vmatpush1.msra.mxu0 %v38
  %1213 = vmatprep.subr.mxu0 0.0
  %1214 = vmatpush1.msra.mxu0 %v39
  %1215 = vmatprep.subr.mxu0 0.0
  %1216 = vmatpush1.msra.mxu0 %v40
  %1217 = vmatprep.subr.mxu0 0.0
  %1218 = vmatpush1.msra.mxu0 0.0
  %1219 = vmatprep.subr.mxu0 0.0
  %1220 = vmatpush1.msra.mxu0 0.0
  %1221 = vmatprep.subr.mxu0 0.0
  %1222 = vmatpush1.msra.mxu0 0.0
  %1223 = vmatprep.subr.mxu0 0.0
  %1224 = vmatpush1.msra.mxu0 0.0
  %1225 = vmatprep.subr.mxu0 0.0
  %1226 = vmatpush1.msra.mxu0 0.0
  %1227 = vmatprep.subr.mxu0 0.0
  %1228 = vmatpush1.msra.mxu0 0.0
  %1229 = vmatprep.subr.mxu0 0.0
  %1230 = vmatpush1.msra.mxu0 0.0
  %1231 = vmatprep.subr.mxu0 0.0
  %1232 = vmatpush1.msra.mxu0 0.0
  %1233 = vmatprep.subr.mxu0 0.0
  %1234 = vmatpush1.msra.mxu0 0.0
  %1235 = vmatprep.subr.mxu0 0.0
  %1236 = vmatpush1.msra.mxu0 0.0
  %1237 = vmatprep.subr.mxu0 0.0
  %1238 = vmatpush1.msra.mxu0 0.0
  %1239 = vmatprep.subr.mxu0 0.0
  %1240 = vmatpush1.msra.mxu0 0.0
  %1241 = vmatprep.subr.mxu0 0.0
  %1242 = vmatpush1.msra.mxu0 0.0
  %1243 = vmatprep.subr.mxu0 0.0
  %1244 = vmatpush1.msra.mxu0 0.0
  %1245 = vmatprep.subr.mxu0 0.0
  %1246 = vmatpush1.msra.mxu0 0.0
  %1247 = vmatprep.subr.mxu0 0.0
  %1248 = vmatpush1.msra.mxu0 0.0
  %1249 = vmatprep.subr.mxu0 0.0
  %1250 = vmatpush1.msra.mxu0 0.0
  %1251 = vmatprep.subr.mxu0 0.0
  %1252 = vmatpush1.msra.mxu0 0.0
  %1253 = vmatprep.subr.mxu0 0.0
  %1254 = vmatpush1.msra.mxu0 0.0
  %1255 = vmatprep.subr.mxu0 0.0
  %1256 = vmatpush1.msra.mxu0 0.0
  %1257 = vmatprep.subr.mxu0 0.0
  %1258 = vmatpush1.msra.mxu0 0.0
  %1259 = vmatprep.subr.mxu0 0.0
  %1260 = vmatpush1.msra.mxu0 0.0
  %1261 = vmatprep.subr.mxu0 0.0
  %1262 = vmatpush1.msra.mxu0 0.0
  %1263 = vmatprep.subr.mxu0 0.0
  %1264 = vmatpush1.msra.mxu0 0.0
  %1265 = vmatprep.mubr.f32.mxu0 0.0
  %1266 = vmatmul.mubr.f32.gmra.mrb[0].mxu0 %v1199
  %v1267 = vpop.f32.mrb[0].mxu0
  %v1268 = vadd.f32 %v180, %v1267
  %v1269 = vpop.f32.mrb[0].mxu0
  %1270 = vdwg.mxu0
  %v1271 = vxor.u32 %v1268, 2147483648
  %v1272 = vmul.f32 %v1271, 1.442695
  %v1273 = vpow.pop %v1272
  %v1274 = vadd.f32 %v1273, 1.0
  %v1275 = vrcp.pop %v1274
  %v1276 = vmul.f32 1.0, %v1275
  %1278 = vrot.lane.b32.xlu0 %v1268, 32
  %v1279 = vpop.permute.xlu0 %1278
  %v1281 = vmul.f32 %v1276, %v1279
  %1283 = vrot.lane.b32.xlu0 %v1281, 64
  %v1284 = vpop.permute.xlu0 %1283
  %v1286 = vadd.f32 %v1268, %v1284
  %v1287 = vtanh.pop %v1286
  %v1288 = vsub.f32 1.0, %v1276
  %1290 = vrot.lane.b32.xlu0 %v1287, 96
  %v1291 = vpop.permute.xlu0 %1290
  %v1293 = vmul.f32 %v1288, %v1291
  %v1294 = vmul.f32 %v1276, %v1092
  %v1295 = vadd.f32 %v1293, %v1294
  %s1296 = scalar_lea.vmem %s0, 48
  %v1297 = vld [vmem:[%s1296] sm:$0xff]
  %v1298 = vsel %vm64, %v1195, 0
  %1300 = vmatprep.subr.mxu0 0.0
  %1301 = vmatpush1.msra.mxu0 %v28
  %1302 = vmatprep.subr.mxu0 0.0
  %1303 = vmatpush1.msra.mxu0 %v29
  %1304 = vmatprep.subr.mxu0 0.0
  %1305 = vmatpush1.msra.mxu0 %v30
  %1306 = vmatprep.subr.mxu0 0.0
  %1307 = vmatpush1.msra.mxu0 %v31
  %1308 = vmatprep.subr.mxu0 0.0
  %1309 = vmatpush1.msra.mxu0 0.0
  %1310 = vmatprep.subr.mxu0 0.0
  %1311 = vmatpush1.msra.mxu0 0.0
  %1312 = vmatprep.subr.mxu0 0.0
  %1313 = vmatpush1.msra.mxu0 0.0
  %1314 = vmatprep.subr.mxu0 0.0
  %1315 = vmatpush1.msra.mxu0 0.0
  %1316 = vmatprep.subr.mxu0 0.0
  %1317 = vmatpush1.msra.mxu0 0.0
  %1318 = vmatprep.subr.mxu0 0.0
  %1319 = vmatpush1.msra.mxu0 0.0
  %1320 = vmatprep.subr.mxu0 0.0
  %1321 = vmatpush1.msra.mxu0 0.0
  %1322 = vmatprep.subr.mxu0 0.0
  %1323 = vmatpush1.msra.mxu0 0.0
  %1324 = vmatprep.subr.mxu0 0.0
  %1325 = vmatpush1.msra.mxu0 0.0
  %1326 = vmatprep.subr.mxu0 0.0
  %1327 = vmatpush1.msra.mxu0 0.0
  %1328 = vmatprep.subr.mxu0 0.0
  %1329 = vmatpush1.msra.mxu0 0.0
  %1330 = vmatprep.subr.mxu0 0.0
  %1331 = vmatpush1.msra.mxu0 0.0
  %1332 = vmatprep.subr.mxu0 0.0
  %1333 = vmatpush1.msra.mxu0 0.0
  %1334 = vmatprep.subr.mxu0 0.0
  %1335 = vmatpush1.msra.mxu0 0.0
  %1336 = vmatprep.subr.mxu0 0.0
  %1337 = vmatpush1.msra.mxu0 0.0
  %1338 = vmatprep.subr.mxu0 0.0
  %1339 = vmatpush1.msra.mxu0 0.0
  %1340 = vmatprep.subr.mxu0 0.0
  %1341 = vmatpush1.msra.mxu0 0.0
  %1342 = vmatprep.subr.mxu0 0.0
  %1343 = vmatpush1.msra.mxu0 0.0
  %1344 = vmatprep.subr.mxu0 0.0
  %1345 = vmatpush1.msra.mxu0 0.0
  %1346 = vmatprep.subr.mxu0 0.0
  %1347 = vmatpush1.msra.mxu0 0.0
  %1348 = vmatprep.subr.mxu0 0.0
  %1349 = vmatpush1.msra.mxu0 0.0
  %1350 = vmatprep.subr.mxu0 0.0
  %1351 = vmatpush1.msra.mxu0 0.0
  %1352 = vmatprep.subr.mxu0 0.0
  %1353 = vmatpush1.msra.mxu0 0.0
  %1354 = vmatprep.subr.mxu0 0.0
  %1355 = vmatpush1.msra.mxu0 0.0
  %1356 = vmatprep.subr.mxu0 0.0
  %1357 = vmatpush1.msra.mxu0 0.0
  %1358 = vmatprep.subr.mxu0 0.0
  %1359 = vmatpush1.msra.mxu0 0.0
  %1360 = vmatprep.subr.mxu0 0.0
  %1361 = vmatpush1.msra.mxu0 0.0
  %1362 = vmatprep.subr.mxu0 0.0
  %1363 = vmatpush1.msra.mxu0 0.0
  %1364 = vmatprep.mubr.f32.mxu0 0.0
  %1365 = vmatmul.mubr.f32.gmra.mrb[0].mxu0 %v1298
  %v1366 = vpop.f32.mrb[0].mxu0
  %v1367 = vadd.f32 %v62, %v1366
  %v1368 = vpop.f32.mrb[0].mxu0
  %1369 = vdwg.mxu0
  %v1370 = vadd.f32 %v1297, %v1367
  %v1371 = vxor.u32 %v1370, 2147483648
  %v1372 = vmul.f32 %v1371, 1.442695
  %v1373 = vpow.pop %v1372
  %v1374 = vadd.f32 %v1373, 1.0
  %v1375 = vrcp.pop %v1374
  %v1376 = vmul.f32 1.0, %v1375
  %1378 = vrot.lane.b32.xlu0 %v1367, 64
  %v1379 = vpop.permute.xlu0 %1378
  %v1381 = vmul.f32 %v1376, %v1379
  %1383 = vrot.lane.b32.xlu0 %v1381, 64
  %v1384 = vpop.permute.xlu0 %1383
  %v1386 = vadd.f32 %v1297, %v1384
  %v1387 = vtanh.pop %v1386
  %v1388 = vsub.f32 1.0, %v1376
  %1390 = vrot.lane.b32.xlu0 %v1387, 96
  %v1391 = vpop.permute.xlu0 %1390
  %v1393 = vmul.f32 %v1388, %v1391
  %v1394 = vmul.f32 %v1376, %v1192
  %v1395 = vadd.f32 %v1393, %v1394
  %1397 = vrot.lane.b32.xlu0 %v1395, 96
  %v1398 = vpop.permute.xlu0 %1397
  %v1400 = vsel %vm64, %v1398, %v1295
  %v1402 = vsel %vm182, %v1400, 0
  %1404 = vmatprep.subr.mxu0 0.0
  %1405 = vmatpush1.msra.mxu0 %v33
  %1406 = vmatprep.subr.mxu0 0.0
  %1407 = vmatpush1.msra.mxu0 %v34
  %1408 = vmatprep.subr.mxu0 0.0
  %1409 = vmatpush1.msra.mxu0 %v35
  %1410 = vmatprep.subr.mxu0 0.0
  %1411 = vmatpush1.msra.mxu0 %v36
  %1412 = vmatprep.subr.mxu0 0.0
  %1413 = vmatpush1.msra.mxu0 %v37
  %1414 = vmatprep.subr.mxu0 0.0
  %1415 = vmatpush1.msra.mxu0 %v38
  %1416 = vmatprep.subr.mxu0 0.0
  %1417 = vmatpush1.msra.mxu0 %v39
  %1418 = vmatprep.subr.mxu0 0.0
  %1419 = vmatpush1.msra.mxu0 %v40
  %1420 = vmatprep.subr.mxu0 0.0
  %1421 = vmatpush1.msra.mxu0 0.0
  %1422 = vmatprep.subr.mxu0 0.0
  %1423 = vmatpush1.msra.mxu0 0.0
  %1424 = vmatprep.subr.mxu0 0.0
  %1425 = vmatpush1.msra.mxu0 0.0
  %1426 = vmatprep.subr.mxu0 0.0
  %1427 = vmatpush1.msra.mxu0 0.0
  %1428 = vmatprep.subr.mxu0 0.0
  %1429 = vmatpush1.msra.mxu0 0.0
  %1430 = vmatprep.subr.mxu0 0.0
  %1431 = vmatpush1.msra.mxu0 0.0
  %1432 = vmatprep.subr.mxu0 0.0
  %1433 = vmatpush1.msra.mxu0 0.0
  %1434 = vmatprep.subr.mxu0 0.0
  %1435 = vmatpush1.msra.mxu0 0.0
  %1436 = vmatprep.subr.mxu0 0.0
  %1437 = vmatpush1.msra.mxu0 0.0
  %1438 = vmatprep.subr.mxu0 0.0
  %1439 = vmatpush1.msra.mxu0 0.0
  %1440 = vmatprep.subr.mxu0 0.0
  %1441 = vmatpush1.msra.mxu0 0.0
  %1442 = vmatprep.subr.mxu0 0.0
  %1443 = vmatpush1.msra.mxu0 0.0
  %1444 = vmatprep.subr.mxu0 0.0
  %1445 = vmatpush1.msra.mxu0 0.0
  %1446 = vmatprep.subr.mxu0 0.0
  %1447 = vmatpush1.msra.mxu0 0.0
  %1448 = vmatprep.subr.mxu0 0.0
  %1449 = vmatpush1.msra.mxu0 0.0
  %1450 = vmatprep.subr.mxu0 0.0
  %1451 = vmatpush1.msra.mxu0 0.0
  %1452 = vmatprep.subr.mxu0 0.0
  %1453 = vmatpush1.msra.mxu0 0.0
  %1454 = vmatprep.subr.mxu0 0.0
  %1455 = vmatpush1.msra.mxu0 0.0
  %1456 = vmatprep.subr.mxu0 0.0
  %1457 = vmatpush1.msra.mxu0 0.0
  %1458 = vmatprep.subr.mxu0 0.0
  %1459 = vmatpush1.msra.mxu0 0.0
  %1460 = vmatprep.subr.mxu0 0.0
  %1461 = vmatpush1.msra.mxu0 0.0
  %1462 = vmatprep.subr.mxu0 0.0
  %1463 = vmatpush1.msra.mxu0 0.0
  %1464 = vmatprep.subr.mxu0 0.0
  %1465 = vmatpush1.msra.mxu0 0.0
  %1466 = vmatprep.subr.mxu0 0.0
  %1467 = vmatpush1.msra.mxu0 0.0
  %1468 = vmatprep.mubr.f32.mxu0 0.0
  %1469 = vmatmul.mubr.f32.gmra.mrb[0].mxu0 %v1402
  %v1470 = vpop.f32.mrb[0].mxu0
  %v1471 = vadd.f32 %v180, %v1470
  %v1472 = vpop.f32.mrb[0].mxu0
  %1473 = vdwg.mxu0
  %v1474 = vxor.u32 %v1471, 2147483648
  %v1475 = vmul.f32 %v1474, 1.442695
  %v1476 = vpow.pop %v1475
  %v1477 = vadd.f32 %v1476, 1.0
  %v1478 = vrcp.pop %v1477
  %v1479 = vmul.f32 1.0, %v1478
  %1481 = vrot.lane.b32.xlu0 %v1471, 32
  %v1482 = vpop.permute.xlu0 %1481
  %v1484 = vmul.f32 %v1479, %v1482
  %1486 = vrot.lane.b32.xlu0 %v1484, 64
  %v1487 = vpop.permute.xlu0 %1486
  %v1489 = vadd.f32 %v1471, %v1487
  %v1490 = vtanh.pop %v1489
  %v1491 = vsub.f32 1.0, %v1479
  %1493 = vrot.lane.b32.xlu0 %v1490, 96
  %v1494 = vpop.permute.xlu0 %1493
  %v1496 = vmul.f32 %v1491, %v1494
  %v1497 = vmul.f32 %v1479, %v1295
  %v1498 = vadd.f32 %v1496, %v1497
  %s1499 = scalar_lea.vmem %s0, 56
  %v1500 = vld [vmem:[%s1499] sm:$0xff]
  %v1501 = vsel %vm64, %v1398, 0
  %1503 = vmatprep.subr.mxu0 0.0
  %1504 = vmatpush1.msra.mxu0 %v28
  %1505 = vmatprep.subr.mxu0 0.0
  %1506 = vmatpush1.msra.mxu0 %v29
  %1507 = vmatprep.subr.mxu0 0.0
  %1508 = vmatpush1.msra.mxu0 %v30
  %1509 = vmatprep.subr.mxu0 0.0
  %1510 = vmatpush1.msra.mxu0 %v31
  %1511 = vmatprep.subr.mxu0 0.0
  %1512 = vmatpush1.msra.mxu0 0.0
  %1513 = vmatprep.subr.mxu0 0.0
  %1514 = vmatpush1.msra.mxu0 0.0
  %1515 = vmatprep.subr.mxu0 0.0
  %1516 = vmatpush1.msra.mxu0 0.0
  %1517 = vmatprep.subr.mxu0 0.0
  %1518 = vmatpush1.msra.mxu0 0.0
  %1519 = vmatprep.subr.mxu0 0.0
  %1520 = vmatpush1.msra.mxu0 0.0
  %1521 = vmatprep.subr.mxu0 0.0
  %1522 = vmatpush1.msra.mxu0 0.0
  %1523 = vmatprep.subr.mxu0 0.0
  %1524 = vmatpush1.msra.mxu0 0.0
  %1525 = vmatprep.subr.mxu0 0.0
  %1526 = vmatpush1.msra.mxu0 0.0
  %1527 = vmatprep.subr.mxu0 0.0
  %1528 = vmatpush1.msra.mxu0 0.0
  %1529 = vmatprep.subr.mxu0 0.0
  %1530 = vmatpush1.msra.mxu0 0.0
  %1531 = vmatprep.subr.mxu0 0.0
  %1532 = vmatpush1.msra.mxu0 0.0
  %1533 = vmatprep.subr.mxu0 0.0
  %1534 = vmatpush1.msra.mxu0 0.0
  %1535 = vmatprep.subr.mxu0 0.0
  %1536 = vmatpush1.msra.mxu0 0.0
  %1537 = vmatprep.subr.mxu0 0.0
  %1538 = vmatpush1.msra.mxu0 0.0
  %1539 = vmatprep.subr.mxu0 0.0
  %1540 = vmatpush1.msra.mxu0 0.0
  %1541 = vmatprep.subr.mxu0 0.0
  %1542 = vmatpush1.msra.mxu0 0.0
  %1543 = vmatprep.subr.mxu0 0.0
  %1544 = vmatpush1.msra.mxu0 0.0
  %1545 = vmatprep.subr.mxu0 0.0
  %1546 = vmatpush1.msra.mxu0 0.0
  %1547 = vmatprep.subr.mxu0 0.0
  %1548 = vmatpush1.msra.mxu0 0.0
  %1549 = vmatprep.subr.mxu0 0.0
  %1550 = vmatpush1.msra.mxu0 0.0
  %1551 = vmatprep.subr.mxu0 0.0
  %1552 = vmatpush1.msra.mxu0 0.0
  %1553 = vmatprep.subr.mxu0 0.0
  %1554 = vmatpush1.msra.mxu0 0.0
  %1555 = vmatprep.subr.mxu0 0.0
  %1556 = vmatpush1.msra.mxu0 0.0
  %1557 = vmatprep.subr.mxu0 0.0
  %1558 = vmatpush1.msra.mxu0 0.0
  %1559 = vmatprep.subr.mxu0 0.0
  %1560 = vmatpush1.msra.mxu0 0.0
  %1561 = vmatprep.subr.mxu0 0.0
  %1562 = vmatpush1.msra.mxu0 0.0
  %1563 = vmatprep.subr.mxu0 0.0
  %1564 = vmatpush1.msra.mxu0 0.0
  %1565 = vmatprep.subr.mxu0 0.0
  %1566 = vmatpush1.msra.mxu0 0.0
  %1567 = vmatprep.mubr.f32.mxu0 0.0
  %1568 = vmatmul.mubr.f32.gmra.mrb[0].mxu0 %v1501
  %v1569 = vpop.f32.mrb[0].mxu0
  %v1570 = vadd.f32 %v62, %v1569
  %v1571 = vpop.f32.mrb[0].mxu0
  %1572 = vdwg.mxu0
  %v1573 = vadd.f32 %v1500, %v1570
  %v1574 = vxor.u32 %v1573, 2147483648
  %v1575 = vmul.f32 %v1574, 1.442695
  %v1576 = vpow.pop %v1575
  %v1577 = vadd.f32 %v1576, 1.0
  %v1578 = vrcp.pop %v1577
  %v1579 = vmul.f32 1.0, %v1578
  %1581 = vrot.lane.b32.xlu0 %v1570, 64
  %v1582 = vpop.permute.xlu0 %1581
  %v1584 = vmul.f32 %v1579, %v1582
  %1586 = vrot.lane.b32.xlu0 %v1584, 64
  %v1587 = vpop.permute.xlu0 %1586
  %v1589 = vadd.f32 %v1500, %v1587
  %v1590 = vtanh.pop %v1589
  %v1591 = vsub.f32 1.0, %v1579
  %1593 = vrot.lane.b32.xlu0 %v1590, 96
  %v1594 = vpop.permute.xlu0 %1593
  %v1596 = vmul.f32 %v1591, %v1594
  %v1597 = vmul.f32 %v1579, %v1395
  %v1598 = vadd.f32 %v1596, %v1597
  %1600 = vrot.lane.b32.xlu0 %v1598, 96
  %v1601 = vpop.permute.xlu0 %1600
  %v1603 = vsel %vm64, %v1601, %v1498
  %v1605 = vsel %vm182, %v1603, 0
  %1607 = vmatprep.subr.mxu0 0.0
  %1608 = vmatpush1.msra.mxu0 %v33
  %1609 = vmatprep.subr.mxu0 0.0
  %1610 = vmatpush1.msra.mxu0 %v34
  %1611 = vmatprep.subr.mxu0 0.0
  %1612 = vmatpush1.msra.mxu0 %v35
  %1613 = vmatprep.subr.mxu0 0.0
  %1614 = vmatpush1.msra.mxu0 %v36
  %1615 = vmatprep.subr.mxu0 0.0
  %1616 = vmatpush1.msra.mxu0 %v37
  %1617 = vmatprep.subr.mxu0 0.0
  %1618 = vmatpush1.msra.mxu0 %v38
  %1619 = vmatprep.subr.mxu0 0.0
  %1620 = vmatpush1.msra.mxu0 %v39
  %1621 = vmatprep.subr.mxu0 0.0
  %1622 = vmatpush1.msra.mxu0 %v40
  %1623 = vmatprep.subr.mxu0 0.0
  %1624 = vmatpush1.msra.mxu0 0.0
  %1625 = vmatprep.subr.mxu0 0.0
  %1626 = vmatpush1.msra.mxu0 0.0
  %1627 = vmatprep.subr.mxu0 0.0
  %1628 = vmatpush1.msra.mxu0 0.0
  %1629 = vmatprep.subr.mxu0 0.0
  %1630 = vmatpush1.msra.mxu0 0.0
  %1631 = vmatprep.subr.mxu0 0.0
  %1632 = vmatpush1.msra.mxu0 0.0
  %1633 = vmatprep.subr.mxu0 0.0
  %1634 = vmatpush1.msra.mxu0 0.0
  %1635 = vmatprep.subr.mxu0 0.0
  %1636 = vmatpush1.msra.mxu0 0.0
  %1637 = vmatprep.subr.mxu0 0.0
  %1638 = vmatpush1.msra.mxu0 0.0
  %1639 = vmatprep.subr.mxu0 0.0
  %1640 = vmatpush1.msra.mxu0 0.0
  %1641 = vmatprep.subr.mxu0 0.0
  %1642 = vmatpush1.msra.mxu0 0.0
  %1643 = vmatprep.subr.mxu0 0.0
  %1644 = vmatpush1.msra.mxu0 0.0
  %1645 = vmatprep.subr.mxu0 0.0
  %1646 = vmatpush1.msra.mxu0 0.0
  %1647 = vmatprep.subr.mxu0 0.0
  %1648 = vmatpush1.msra.mxu0 0.0
  %1649 = vmatprep.subr.mxu0 0.0
  %1650 = vmatpush1.msra.mxu0 0.0
  %1651 = vmatprep.subr.mxu0 0.0
  %1652 = vmatpush1.msra.mxu0 0.0
  %1653 = vmatprep.subr.mxu0 0.0
  %1654 = vmatpush1.msra.mxu0 0.0
  %1655 = vmatprep.subr.mxu0 0.0
  %1656 = vmatpush1.msra.mxu0 0.0
  %1657 = vmatprep.subr.mxu0 0.0
  %1658 = vmatpush1.msra.mxu0 0.0
  %1659 = vmatprep.subr.mxu0 0.0
  %1660 = vmatpush1.msra.mxu0 0.0
  %1661 = vmatprep.subr.mxu0 0.0
  %1662 = vmatpush1.msra.mxu0 0.0
  %1663 = vmatprep.subr.mxu0 0.0
  %1664 = vmatpush1.msra.mxu0 0.0
  %1665 = vmatprep.subr.mxu0 0.0
  %1666 = vmatpush1.msra.mxu0 0.0
  %1667 = vmatprep.subr.mxu0 0.0
  %1668 = vmatpush1.msra.mxu0 0.0
  %1669 = vmatprep.subr.mxu0 0.0
  %1670 = vmatpush1.msra.mxu0 0.0
  %1671 = vmatprep.mubr.f32.mxu0 0.0
  %1672 = vmatmul.mubr.f32.gmra.mrb[0].mxu0 %v1605
  %v1673 = vpop.f32.mrb[0].mxu0
  %v1674 = vadd.f32 %v180, %v1673
  %v1675 = vpop.f32.mrb[0].mxu0
  %1676 = vdwg.mxu0
  %v1677 = vxor.u32 %v1674, 2147483648
  %v1678 = vmul.f32 %v1677, 1.442695
  %v1679 = vpow.pop %v1678
  %v1680 = vadd.f32 %v1679, 1.0
  %v1681 = vrcp.pop %v1680
  %v1682 = vmul.f32 1.0, %v1681
  %1684 = vrot.lane.b32.xlu0 %v1674, 32
  %v1685 = vpop.permute.xlu0 %1684
  %v1687 = vmul.f32 %v1682, %v1685
  %1689 = vrot.lane.b32.xlu0 %v1687, 64
  %v1690 = vpop.permute.xlu0 %1689
  %v1692 = vadd.f32 %v1674, %v1690
  %v1693 = vtanh.pop %v1692
  %v1694 = vsub.f32 1.0, %v1682
  %1696 = vrot.lane.b32.xlu0 %v1693, 96
  %v1697 = vpop.permute.xlu0 %1696
  %v1699 = vmul.f32 %v1694, %v1697
  %v1700 = vmul.f32 %v1682, %v1498
  %v1701 = vadd.f32 %v1699, %v1700
  %s1702 = scalar_lea.vmem %s0, 64
  %v1703 = vld [vmem:[%s1702] sm:$0xff]
  %v1704 = vsel %vm64, %v1601, 0
  %1706 = vmatprep.subr.mxu0 0.0
  %1707 = vmatpush1.msra.mxu0 %v28
  %1708 = vmatprep.subr.mxu0 0.0
  %1709 = vmatpush1.msra.mxu0 %v29
  %1710 = vmatprep.subr.mxu0 0.0
  %1711 = vmatpush1.msra.mxu0 %v30
  %1712 = vmatprep.subr.mxu0 0.0
  %1713 = vmatpush1.msra.mxu0 %v31
  %1714 = vmatprep.subr.mxu0 0.0
  %1715 = vmatpush1.msra.mxu0 0.0
  %1716 = vmatprep.subr.mxu0 0.0
  %1717 = vmatpush1.msra.mxu0 0.0
  %1718 = vmatprep.subr.mxu0 0.0
  %1719 = vmatpush1.msra.mxu0 0.0
  %1720 = vmatprep.subr.mxu0 0.0
  %1721 = vmatpush1.msra.mxu0 0.0
  %1722 = vmatprep.subr.mxu0 0.0
  %1723 = vmatpush1.msra.mxu0 0.0
  %1724 = vmatprep.subr.mxu0 0.0
  %1725 = vmatpush1.msra.mxu0 0.0
  %1726 = vmatprep.subr.mxu0 0.0
  %1727 = vmatpush1.msra.mxu0 0.0
  %1728 = vmatprep.subr.mxu0 0.0
  %1729 = vmatpush1.msra.mxu0 0.0
  %1730 = vmatprep.subr.mxu0 0.0
  %1731 = vmatpush1.msra.mxu0 0.0
  %1732 = vmatprep.subr.mxu0 0.0
  %1733 = vmatpush1.msra.mxu0 0.0
  %1734 = vmatprep.subr.mxu0 0.0
  %1735 = vmatpush1.msra.mxu0 0.0
  %1736 = vmatprep.subr.mxu0 0.0
  %1737 = vmatpush1.msra.mxu0 0.0
  %1738 = vmatprep.subr.mxu0 0.0
  %1739 = vmatpush1.msra.mxu0 0.0
  %1740 = vmatprep.subr.mxu0 0.0
  %1741 = vmatpush1.msra.mxu0 0.0
  %1742 = vmatprep.subr.mxu0 0.0
  %1743 = vmatpush1.msra.mxu0 0.0
  %1744 = vmatprep.subr.mxu0 0.0
  %1745 = vmatpush1.msra.mxu0 0.0
  %1746 = vmatprep.subr.mxu0 0.0
  %1747 = vmatpush1.msra.mxu0 0.0
  %1748 = vmatprep.subr.mxu0 0.0
  %1749 = vmatpush1.msra.mxu0 0.0
  %1750 = vmatprep.subr.mxu0 0.0
  %1751 = vmatpush1.msra.mxu0 0.0
  %1752 = vmatprep.subr.mxu0 0.0
  %1753 = vmatpush1.msra.mxu0 0.0
  %1754 = vmatprep.subr.mxu0 0.0
  %1755 = vmatpush1.msra.mxu0 0.0
  %1756 = vmatprep.subr.mxu0 0.0
  %1757 = vmatpush1.msra.mxu0 0.0
  %1758 = vmatprep.subr.mxu0 0.0
  %1759 = vmatpush1.msra.mxu0 0.0
  %1760 = vmatprep.subr.mxu0 0.0
  %1761 = vmatpush1.msra.mxu0 0.0
  %1762 = vmatprep.subr.mxu0 0.0
  %1763 = vmatpush1.msra.mxu0 0.0
  %1764 = vmatprep.subr.mxu0 0.0
  %1765 = vmatpush1.msra.mxu0 0.0
  %1766 = vmatprep.subr.mxu0 0.0
  %1767 = vmatpush1.msra.mxu0 0.0
  %1768 = vmatprep.subr.mxu0 0.0
  %1769 = vmatpush1.msra.mxu0 0.0
  %1770 = vmatprep.mubr.f32.mxu0 0.0
  %1771 = vmatmul.mubr.f32.gmra.mrb[0].mxu0 %v1704
  %v1772 = vpop.f32.mrb[0].mxu0
  %v1773 = vadd.f32 %v62, %v1772
  %v1774 = vpop.f32.mrb[0].mxu0
  %1775 = vdwg.mxu0
  %v1776 = vadd.f32 %v1703, %v1773
  %v1777 = vxor.u32 %v1776, 2147483648
  %v1778 = vmul.f32 %v1777, 1.442695
  %v1779 = vpow.pop %v1778
  %v1780 = vadd.f32 %v1779, 1.0
  %v1781 = vrcp.pop %v1780
  %v1782 = vmul.f32 1.0, %v1781
  %1784 = vrot.lane.b32.xlu0 %v1773, 64
  %v1785 = vpop.permute.xlu0 %1784
  %v1787 = vmul.f32 %v1782, %v1785
  %1789 = vrot.lane.b32.xlu0 %v1787, 64
  %v1790 = vpop.permute.xlu0 %1789
  %v1792 = vadd.f32 %v1703, %v1790
  %v1793 = vtanh.pop %v1792
  %v1794 = vsub.f32 1.0, %v1782
  %1796 = vrot.lane.b32.xlu0 %v1793, 96
  %v1797 = vpop.permute.xlu0 %1796
  %v1799 = vmul.f32 %v1794, %v1797
  %v1800 = vmul.f32 %v1782, %v1598
  %v1801 = vadd.f32 %v1799, %v1800
  %1803 = vrot.lane.b32.xlu0 %v1801, 96
  %v1804 = vpop.permute.xlu0 %1803
  %v1806 = vsel %vm64, %v1804, %v1701
  %v1808 = vsel %vm182, %v1806, 0
  %1810 = vmatprep.subr.mxu0 0.0
  %1811 = vmatpush1.msra.mxu0 %v33
  %1812 = vmatprep.subr.mxu0 0.0
  %1813 = vmatpush1.msra.mxu0 %v34
  %1814 = vmatprep.subr.mxu0 0.0
  %1815 = vmatpush1.msra.mxu0 %v35
  %1816 = vmatprep.subr.mxu0 0.0
  %1817 = vmatpush1.msra.mxu0 %v36
  %1818 = vmatprep.subr.mxu0 0.0
  %1819 = vmatpush1.msra.mxu0 %v37
  %1820 = vmatprep.subr.mxu0 0.0
  %1821 = vmatpush1.msra.mxu0 %v38
  %1822 = vmatprep.subr.mxu0 0.0
  %1823 = vmatpush1.msra.mxu0 %v39
  %1824 = vmatprep.subr.mxu0 0.0
  %1825 = vmatpush1.msra.mxu0 %v40
  %1826 = vmatprep.subr.mxu0 0.0
  %1827 = vmatpush1.msra.mxu0 0.0
  %1828 = vmatprep.subr.mxu0 0.0
  %1829 = vmatpush1.msra.mxu0 0.0
  %1830 = vmatprep.subr.mxu0 0.0
  %1831 = vmatpush1.msra.mxu0 0.0
  %1832 = vmatprep.subr.mxu0 0.0
  %1833 = vmatpush1.msra.mxu0 0.0
  %1834 = vmatprep.subr.mxu0 0.0
  %1835 = vmatpush1.msra.mxu0 0.0
  %1836 = vmatprep.subr.mxu0 0.0
  %1837 = vmatpush1.msra.mxu0 0.0
  %1838 = vmatprep.subr.mxu0 0.0
  %1839 = vmatpush1.msra.mxu0 0.0
  %1840 = vmatprep.subr.mxu0 0.0
  %1841 = vmatpush1.msra.mxu0 0.0
  %1842 = vmatprep.subr.mxu0 0.0
  %1843 = vmatpush1.msra.mxu0 0.0
  %1844 = vmatprep.subr.mxu0 0.0
  %1845 = vmatpush1.msra.mxu0 0.0
  %1846 = vmatprep.subr.mxu0 0.0
  %1847 = vmatpush1.msra.mxu0 0.0
  %1848 = vmatprep.subr.mxu0 0.0
  %1849 = vmatpush1.msra.mxu0 0.0
  %1850 = vmatprep.subr.mxu0 0.0
  %1851 = vmatpush1.msra.mxu0 0.0
  %1852 = vmatprep.subr.mxu0 0.0
  %1853 = vmatpush1.msra.mxu0 0.0
  %1854 = vmatprep.subr.mxu0 0.0
  %1855 = vmatpush1.msra.mxu0 0.0
  %1856 = vmatprep.subr.mxu0 0.0
  %1857 = vmatpush1.msra.mxu0 0.0
  %1858 = vmatprep.subr.mxu0 0.0
  %1859 = vmatpush1.msra.mxu0 0.0
  %1860 = vmatprep.subr.mxu0 0.0
  %1861 = vmatpush1.msra.mxu0 0.0
  %1862 = vmatprep.subr.mxu0 0.0
  %1863 = vmatpush1.msra.mxu0 0.0
  %1864 = vmatprep.subr.mxu0 0.0
  %1865 = vmatpush1.msra.mxu0 0.0
  %1866 = vmatprep.subr.mxu0 0.0
  %1867 = vmatpush1.msra.mxu0 0.0
  %1868 = vmatprep.subr.mxu0 0.0
  %1869 = vmatpush1.msra.mxu0 0.0
  %1870 = vmatprep.subr.mxu0 0.0
  %1871 = vmatpush1.msra.mxu0 0.0
  %1872 = vmatprep.subr.mxu0 0.0
  %1873 = vmatpush1.msra.mxu0 0.0
  %1874 = vmatprep.mubr.f32.mxu0 0.0
  %1875 = vmatmul.mubr.f32.gmra.mrb[0].mxu0 %v1808
  %v1876 = vpop.f32.mrb[0].mxu0
  %v1877 = vadd.f32 %v180, %v1876
  %v1878 = vpop.f32.mrb[0].mxu0
  %1879 = vdwg.mxu0
  %v1880 = vxor.u32 %v1877, 2147483648
  %v1881 = vmul.f32 %v1880, 1.442695
  %v1882 = vpow.pop %v1881
  %v1883 = vadd.f32 %v1882, 1.0
  %v1884 = vrcp.pop %v1883
  %v1885 = vmul.f32 1.0, %v1884
  %1887 = vrot.lane.b32.xlu0 %v1877, 32
  %v1888 = vpop.permute.xlu0 %1887
  %v1890 = vmul.f32 %v1885, %v1888
  %1892 = vrot.lane.b32.xlu0 %v1890, 64
  %v1893 = vpop.permute.xlu0 %1892
  %v1895 = vadd.f32 %v1877, %v1893
  %v1896 = vtanh.pop %v1895
  %v1897 = vsub.f32 1.0, %v1885
  %1899 = vrot.lane.b32.xlu0 %v1896, 96
  %v1900 = vpop.permute.xlu0 %1899
  %v1902 = vmul.f32 %v1897, %v1900
  %v1903 = vmul.f32 %v1885, %v1701
  %v1904 = vadd.f32 %v1902, %v1903
  %s1905 = scalar_lea.vmem %s0, 72
  %v1906 = vld [vmem:[%s1905] sm:$0xff]
  %v1907 = vsel %vm64, %v1804, 0
  %1909 = vmatprep.subr.mxu0 0.0
  %1910 = vmatpush1.msra.mxu0 %v28
  %1911 = vmatprep.subr.mxu0 0.0
  %1912 = vmatpush1.msra.mxu0 %v29
  %1913 = vmatprep.subr.mxu0 0.0
  %1914 = vmatpush1.msra.mxu0 %v30
  %1915 = vmatprep.subr.mxu0 0.0
  %1916 = vmatpush1.msra.mxu0 %v31
  %1917 = vmatprep.subr.mxu0 0.0
  %1918 = vmatpush1.msra.mxu0 0.0
  %1919 = vmatprep.subr.mxu0 0.0
  %1920 = vmatpush1.msra.mxu0 0.0
  %1921 = vmatprep.subr.mxu0 0.0
  %1922 = vmatpush1.msra.mxu0 0.0
  %1923 = vmatprep.subr.mxu0 0.0
  %1924 = vmatpush1.msra.mxu0 0.0
  %1925 = vmatprep.subr.mxu0 0.0
  %1926 = vmatpush1.msra.mxu0 0.0
  %1927 = vmatprep.subr.mxu0 0.0
  %1928 = vmatpush1.msra.mxu0 0.0
  %1929 = vmatprep.subr.mxu0 0.0
  %1930 = vmatpush1.msra.mxu0 0.0
  %1931 = vmatprep.subr.mxu0 0.0
  %1932 = vmatpush1.msra.mxu0 0.0
  %1933 = vmatprep.subr.mxu0 0.0
  %1934 = vmatpush1.msra.mxu0 0.0
  %1935 = vmatprep.subr.mxu0 0.0
  %1936 = vmatpush1.msra.mxu0 0.0
  %1937 = vmatprep.subr.mxu0 0.0
  %1938 = vmatpush1.msra.mxu0 0.0
  %1939 = vmatprep.subr.mxu0 0.0
  %1940 = vmatpush1.msra.mxu0 0.0
  %1941 = vmatprep.subr.mxu0 0.0
  %1942 = vmatpush1.msra.mxu0 0.0
  %1943 = vmatprep.subr.mxu0 0.0
  %1944 = vmatpush1.msra.mxu0 0.0
  %1945 = vmatprep.subr.mxu0 0.0
  %1946 = vmatpush1.msra.mxu0 0.0
  %1947 = vmatprep.subr.mxu0 0.0
  %1948 = vmatpush1.msra.mxu0 0.0
  %1949 = vmatprep.subr.mxu0 0.0
  %1950 = vmatpush1.msra.mxu0 0.0
  %1951 = vmatprep.subr.mxu0 0.0
  %1952 = vmatpush1.msra.mxu0 0.0
  %1953 = vmatprep.subr.mxu0 0.0
  %1954 = vmatpush1.msra.mxu0 0.0
  %1955 = vmatprep.subr.mxu0 0.0
  %1956 = vmatpush1.msra.mxu0 0.0
  %1957 = vmatprep.subr.mxu0 0.0
  %1958 = vmatpush1.msra.mxu0 0.0
  %1959 = vmatprep.subr.mxu0 0.0
  %1960 = vmatpush1.msra.mxu0 0.0
  %1961 = vmatprep.subr.mxu0 0.0
  %1962 = vmatpush1.msra.mxu0 0.0
  %1963 = vmatprep.subr.mxu0 0.0
  %1964 = vmatpush1.msra.mxu0 0.0
  %1965 = vmatprep.subr.mxu0 0.0
  %1966 = vmatpush1.msra.mxu0 0.0
  %1967 = vmatprep.subr.mxu0 0.0
  %1968 = vmatpush1.msra.mxu0 0.0
  %1969 = vmatprep.subr.mxu0 0.0
  %1970 = vmatpush1.msra.mxu0 0.0
  %1971 = vmatprep.subr.mxu0 0.0
  %1972 = vmatpush1.msra.mxu0 0.0
  %1973 = vmatprep.mubr.f32.mxu0 0.0
  %1974 = vmatmul.mubr.f32.gmra.mrb[0].mxu0 %v1907
  %v1975 = vpop.f32.mrb[0].mxu0
  %v1976 = vadd.f32 %v62, %v1975
  %v1977 = vpop.f32.mrb[0].mxu0
  %1978 = vdwg.mxu0
  %v1979 = vadd.f32 %v1906, %v1976
  %v1980 = vxor.u32 %v1979, 2147483648
  %v1981 = vmul.f32 %v1980, 1.442695
  %v1982 = vpow.pop %v1981
  %v1983 = vadd.f32 %v1982, 1.0
  %v1984 = vrcp.pop %v1983
  %v1985 = vmul.f32 1.0, %v1984
  %1987 = vrot.lane.b32.xlu0 %v1976, 64
  %v1988 = vpop.permute.xlu0 %1987
  %v1990 = vmul.f32 %v1985, %v1988
  %1992 = vrot.lane.b32.xlu0 %v1990, 64
  %v1993 = vpop.permute.xlu0 %1992
  %v1995 = vadd.f32 %v1906, %v1993
  %v1996 = vtanh.pop %v1995
  %v1997 = vsub.f32 1.0, %v1985
  %1999 = vrot.lane.b32.xlu0 %v1996, 96
  %v2000 = vpop.permute.xlu0 %1999
  %v2002 = vmul.f32 %v1997, %v2000
  %v2003 = vmul.f32 %v1985, %v1801
  %v2004 = vadd.f32 %v2002, %v2003
  %2006 = vrot.lane.b32.xlu0 %v2004, 96
  %v2007 = vpop.permute.xlu0 %2006
  %v2009 = vsel %vm64, %v2007, %v1904
  %v2011 = vsel %vm182, %v2009, 0
  %2013 = vmatprep.subr.mxu0 0.0
  %2014 = vmatpush1.msra.mxu0 %v33
  %2015 = vmatprep.subr.mxu0 0.0
  %2016 = vmatpush1.msra.mxu0 %v34
  %2017 = vmatprep.subr.mxu0 0.0
  %2018 = vmatpush1.msra.mxu0 %v35
  %2019 = vmatprep.subr.mxu0 0.0
  %2020 = vmatpush1.msra.mxu0 %v36
  %2021 = vmatprep.subr.mxu0 0.0
  %2022 = vmatpush1.msra.mxu0 %v37
  %2023 = vmatprep.subr.mxu0 0.0
  %2024 = vmatpush1.msra.mxu0 %v38
  %2025 = vmatprep.subr.mxu0 0.0
  %2026 = vmatpush1.msra.mxu0 %v39
  %2027 = vmatprep.subr.mxu0 0.0
  %2028 = vmatpush1.msra.mxu0 %v40
  %2029 = vmatprep.subr.mxu0 0.0
  %2030 = vmatpush1.msra.mxu0 0.0
  %2031 = vmatprep.subr.mxu0 0.0
  %2032 = vmatpush1.msra.mxu0 0.0
  %2033 = vmatprep.subr.mxu0 0.0
  %2034 = vmatpush1.msra.mxu0 0.0
  %2035 = vmatprep.subr.mxu0 0.0
  %2036 = vmatpush1.msra.mxu0 0.0
  %2037 = vmatprep.subr.mxu0 0.0
  %2038 = vmatpush1.msra.mxu0 0.0
  %2039 = vmatprep.subr.mxu0 0.0
  %2040 = vmatpush1.msra.mxu0 0.0
  %2041 = vmatprep.subr.mxu0 0.0
  %2042 = vmatpush1.msra.mxu0 0.0
  %2043 = vmatprep.subr.mxu0 0.0
  %2044 = vmatpush1.msra.mxu0 0.0
  %2045 = vmatprep.subr.mxu0 0.0
  %2046 = vmatpush1.msra.mxu0 0.0
  %2047 = vmatprep.subr.mxu0 0.0
  %2048 = vmatpush1.msra.mxu0 0.0
  %2049 = vmatprep.subr.mxu0 0.0
  %2050 = vmatpush1.msra.mxu0 0.0
  %2051 = vmatprep.subr.mxu0 0.0
  %2052 = vmatpush1.msra.mxu0 0.0
  %2053 = vmatprep.subr.mxu0 0.0
  %2054 = vmatpush1.msra.mxu0 0.0
  %2055 = vmatprep.subr.mxu0 0.0
  %2056 = vmatpush1.msra.mxu0 0.0
  %2057 = vmatprep.subr.mxu0 0.0
  %2058 = vmatpush1.msra.mxu0 0.0
  %2059 = vmatprep.subr.mxu0 0.0
  %2060 = vmatpush1.msra.mxu0 0.0
  %2061 = vmatprep.subr.mxu0 0.0
  %2062 = vmatpush1.msra.mxu0 0.0
  %2063 = vmatprep.subr.mxu0 0.0
  %2064 = vmatpush1.msra.mxu0 0.0
  %2065 = vmatprep.subr.mxu0 0.0
  %2066 = vmatpush1.msra.mxu0 0.0
  %2067 = vmatprep.subr.mxu0 0.0
  %2068 = vmatpush1.msra.mxu0 0.0
  %2069 = vmatprep.subr.mxu0 0.0
  %2070 = vmatpush1.msra.mxu0 0.0
  %2071 = vmatprep.subr.mxu0 0.0
  %2072 = vmatpush1.msra.mxu0 0.0
  %2073 = vmatprep.subr.mxu0 0.0
  %2074 = vmatpush1.msra.mxu0 0.0
  %2075 = vmatprep.subr.mxu0 0.0
  %2076 = vmatpush1.msra.mxu0 0.0
  %2077 = vmatprep.mubr.f32.mxu0 0.0
  %2078 = vmatmul.mubr.f32.gmra.mrb[0].mxu0 %v2011
  %v2079 = vpop.f32.mrb[0].mxu0
  %v2080 = vadd.f32 %v180, %v2079
  %v2081 = vpop.f32.mrb[0].mxu0
  %2082 = vdwg.mxu0
  %v2083 = vxor.u32 %v2080, 2147483648
  %v2084 = vmul.f32 %v2083, 1.442695
  %v2085 = vpow.pop %v2084
  %v2086 = vadd.f32 %v2085, 1.0
  %v2087 = vrcp.pop %v2086
  %v2088 = vmul.f32 1.0, %v2087
  %2090 = vrot.lane.b32.xlu0 %v2080, 32
  %v2091 = vpop.permute.xlu0 %2090
  %v2093 = vmul.f32 %v2088, %v2091
  %2095 = vrot.lane.b32.xlu0 %v2093, 64
  %v2096 = vpop.permute.xlu0 %2095
  %v2098 = vadd.f32 %v2080, %v2096
  %v2099 = vtanh.pop %v2098
  %v2100 = vsub.f32 1.0, %v2088
  %2102 = vrot.lane.b32.xlu0 %v2099, 96
  %v2103 = vpop.permute.xlu0 %2102
  %v2105 = vmul.f32 %v2100, %v2103
  %v2106 = vmul.f32 %v2088, %v1904
  %v2107 = vadd.f32 %v2105, %v2106
  %s2108 = scalar_lea.vmem %s0, 80
  %v2109 = vld [vmem:[%s2108] sm:$0xff]
  %v2110 = vsel %vm64, %v2007, 0
  %2112 = vmatprep.subr.mxu0 0.0
  %2113 = vmatpush1.msra.mxu0 %v28
  %2114 = vmatprep.subr.mxu0 0.0
  %2115 = vmatpush1.msra.mxu0 %v29
  %2116 = vmatprep.subr.mxu0 0.0
  %2117 = vmatpush1.msra.mxu0 %v30
  %2118 = vmatprep.subr.mxu0 0.0
  %2119 = vmatpush1.msra.mxu0 %v31
  %2120 = vmatprep.subr.mxu0 0.0
  %2121 = vmatpush1.msra.mxu0 0.0
  %2122 = vmatprep.subr.mxu0 0.0
  %2123 = vmatpush1.msra.mxu0 0.0
  %2124 = vmatprep.subr.mxu0 0.0
  %2125 = vmatpush1.msra.mxu0 0.0
  %2126 = vmatprep.subr.mxu0 0.0
  %2127 = vmatpush1.msra.mxu0 0.0
  %2128 = vmatprep.subr.mxu0 0.0
  %2129 = vmatpush1.msra.mxu0 0.0
  %2130 = vmatprep.subr.mxu0 0.0
  %2131 = vmatpush1.msra.mxu0 0.0
  %2132 = vmatprep.subr.mxu0 0.0
  %2133 = vmatpush1.msra.mxu0 0.0
  %2134 = vmatprep.subr.mxu0 0.0
  %2135 = vmatpush1.msra.mxu0 0.0
  %2136 = vmatprep.subr.mxu0 0.0
  %2137 = vmatpush1.msra.mxu0 0.0
  %2138 = vmatprep.subr.mxu0 0.0
  %2139 = vmatpush1.msra.mxu0 0.0
  %2140 = vmatprep.subr.mxu0 0.0
  %2141 = vmatpush1.msra.mxu0 0.0
  %2142 = vmatprep.subr.mxu0 0.0
  %2143 = vmatpush1.msra.mxu0 0.0
  %2144 = vmatprep.subr.mxu0 0.0
  %2145 = vmatpush1.msra.mxu0 0.0
  %2146 = vmatprep.subr.mxu0 0.0
  %2147 = vmatpush1.msra.mxu0 0.0
  %2148 = vmatprep.subr.mxu0 0.0
  %2149 = vmatpush1.msra.mxu0 0.0
  %2150 = vmatprep.subr.mxu0 0.0
  %2151 = vmatpush1.msra.mxu0 0.0
  %2152 = vmatprep.subr.mxu0 0.0
  %2153 = vmatpush1.msra.mxu0 0.0
  %2154 = vmatprep.subr.mxu0 0.0
  %2155 = vmatpush1.msra.mxu0 0.0
  %2156 = vmatprep.subr.mxu0 0.0
  %2157 = vmatpush1.msra.mxu0 0.0
  %2158 = vmatprep.subr.mxu0 0.0
  %2159 = vmatpush1.msra.mxu0 0.0
  %2160 = vmatprep.subr.mxu0 0.0
  %2161 = vmatpush1.msra.mxu0 0.0
  %2162 = vmatprep.subr.mxu0 0.0
  %2163 = vmatpush1.msra.mxu0 0.0
  %2164 = vmatprep.subr.mxu0 0.0
  %2165 = vmatpush1.msra.mxu0 0.0
  %2166 = vmatprep.subr.mxu0 0.0
  %2167 = vmatpush1.msra.mxu0 0.0
  %2168 = vmatprep.subr.mxu0 0.0
  %2169 = vmatpush1.msra.mxu0 0.0
  %2170 = vmatprep.subr.mxu0 0.0
  %2171 = vmatpush1.msra.mxu0 0.0
  %2172 = vmatprep.subr.mxu0 0.0
  %2173 = vmatpush1.msra.mxu0 0.0
  %2174 = vmatprep.subr.mxu0 0.0
  %2175 = vmatpush1.msra.mxu0 0.0
  %2176 = vmatprep.mubr.f32.mxu0 0.0
  %2177 = vmatmul.mubr.f32.gmra.mrb[0].mxu0 %v2110
  %v2178 = vpop.f32.mrb[0].mxu0
  %v2179 = vadd.f32 %v62, %v2178
  %v2180 = vpop.f32.mrb[0].mxu0
  %2181 = vdwg.mxu0
  %v2182 = vadd.f32 %v2109, %v2179
  %v2183 = vxor.u32 %v2182, 2147483648
  %v2184 = vmul.f32 %v2183, 1.442695
  %v2185 = vpow.pop %v2184
  %v2186 = vadd.f32 %v2185, 1.0
  %v2187 = vrcp.pop %v2186
  %v2188 = vmul.f32 1.0, %v2187
  %2190 = vrot.lane.b32.xlu0 %v2179, 64
  %v2191 = vpop.permute.xlu0 %2190
  %v2193 = vmul.f32 %v2188, %v2191
  %2195 = vrot.lane.b32.xlu0 %v2193, 64
  %v2196 = vpop.permute.xlu0 %2195
  %v2198 = vadd.f32 %v2109, %v2196
  %v2199 = vtanh.pop %v2198
  %v2200 = vsub.f32 1.0, %v2188
  %2202 = vrot.lane.b32.xlu0 %v2199, 96
  %v2203 = vpop.permute.xlu0 %2202
  %v2205 = vmul.f32 %v2200, %v2203
  %v2206 = vmul.f32 %v2188, %v2004
  %v2207 = vadd.f32 %v2205, %v2206
  %2209 = vrot.lane.b32.xlu0 %v2207, 96
  %v2210 = vpop.permute.xlu0 %2209
  %v2212 = vsel %vm64, %v2210, %v2107
  %v2214 = vsel %vm182, %v2212, 0
  %2216 = vmatprep.subr.mxu0 0.0
  %2217 = vmatpush1.msra.mxu0 %v33
  %2218 = vmatprep.subr.mxu0 0.0
  %2219 = vmatpush1.msra.mxu0 %v34
  %2220 = vmatprep.subr.mxu0 0.0
  %2221 = vmatpush1.msra.mxu0 %v35
  %2222 = vmatprep.subr.mxu0 0.0
  %2223 = vmatpush1.msra.mxu0 %v36
  %2224 = vmatprep.subr.mxu0 0.0
  %2225 = vmatpush1.msra.mxu0 %v37
  %2226 = vmatprep.subr.mxu0 0.0
  %2227 = vmatpush1.msra.mxu0 %v38
  %2228 = vmatprep.subr.mxu0 0.0
  %2229 = vmatpush1.msra.mxu0 %v39
  %2230 = vmatprep.subr.mxu0 0.0
  %2231 = vmatpush1.msra.mxu0 %v40
  %2232 = vmatprep.subr.mxu0 0.0
  %2233 = vmatpush1.msra.mxu0 0.0
  %2234 = vmatprep.subr.mxu0 0.0
  %2235 = vmatpush1.msra.mxu0 0.0
  %2236 = vmatprep.subr.mxu0 0.0
  %2237 = vmatpush1.msra.mxu0 0.0
  %2238 = vmatprep.subr.mxu0 0.0
  %2239 = vmatpush1.msra.mxu0 0.0
  %2240 = vmatprep.subr.mxu0 0.0
  %2241 = vmatpush1.msra.mxu0 0.0
  %2242 = vmatprep.subr.mxu0 0.0
  %2243 = vmatpush1.msra.mxu0 0.0
  %2244 = vmatprep.subr.mxu0 0.0
  %2245 = vmatpush1.msra.mxu0 0.0
  %2246 = vmatprep.subr.mxu0 0.0
  %2247 = vmatpush1.msra.mxu0 0.0
  %2248 = vmatprep.subr.mxu0 0.0
  %2249 = vmatpush1.msra.mxu0 0.0
  %2250 = vmatprep.subr.mxu0 0.0
  %2251 = vmatpush1.msra.mxu0 0.0
  %2252 = vmatprep.subr.mxu0 0.0
  %2253 = vmatpush1.msra.mxu0 0.0
  %2254 = vmatprep.subr.mxu0 0.0
  %2255 = vmatpush1.msra.mxu0 0.0
  %2256 = vmatprep.subr.mxu0 0.0
  %2257 = vmatpush1.msra.mxu0 0.0
  %2258 = vmatprep.subr.mxu0 0.0
  %2259 = vmatpush1.msra.mxu0 0.0
  %2260 = vmatprep.subr.mxu0 0.0
  %2261 = vmatpush1.msra.mxu0 0.0
  %2262 = vmatprep.subr.mxu0 0.0
  %2263 = vmatpush1.msra.mxu0 0.0
  %2264 = vmatprep.subr.mxu0 0.0
  %2265 = vmatpush1.msra.mxu0 0.0
  %2266 = vmatprep.subr.mxu0 0.0
  %2267 = vmatpush1.msra.mxu0 0.0
  %2268 = vmatprep.subr.mxu0 0.0
  %2269 = vmatpush1.msra.mxu0 0.0
  %2270 = vmatprep.subr.mxu0 0.0
  %2271 = vmatpush1.msra.mxu0 0.0
  %2272 = vmatprep.subr.mxu0 0.0
  %2273 = vmatpush1.msra.mxu0 0.0
  %2274 = vmatprep.subr.mxu0 0.0
  %2275 = vmatpush1.msra.mxu0 0.0
  %2276 = vmatprep.subr.mxu0 0.0
  %2277 = vmatpush1.msra.mxu0 0.0
  %2278 = vmatprep.subr.mxu0 0.0
  %2279 = vmatpush1.msra.mxu0 0.0
  %2280 = vmatprep.mubr.f32.mxu0 0.0
  %2281 = vmatmul.mubr.f32.gmra.mrb[0].mxu0 %v2214
  %v2282 = vpop.f32.mrb[0].mxu0
  %v2283 = vadd.f32 %v180, %v2282
  %v2284 = vpop.f32.mrb[0].mxu0
  %2285 = vdwg.mxu0
  %v2286 = vxor.u32 %v2283, 2147483648
  %v2287 = vmul.f32 %v2286, 1.442695
  %v2288 = vpow.pop %v2287
  %v2289 = vadd.f32 %v2288, 1.0
  %v2290 = vrcp.pop %v2289
  %v2291 = vmul.f32 1.0, %v2290
  %2293 = vrot.lane.b32.xlu0 %v2283, 32
  %v2294 = vpop.permute.xlu0 %2293
  %v2296 = vmul.f32 %v2291, %v2294
  %2298 = vrot.lane.b32.xlu0 %v2296, 64
  %v2299 = vpop.permute.xlu0 %2298
  %v2301 = vadd.f32 %v2283, %v2299
  %v2302 = vtanh.pop %v2301
  %v2303 = vsub.f32 1.0, %v2291
  %2305 = vrot.lane.b32.xlu0 %v2302, 96
  %v2306 = vpop.permute.xlu0 %2305
  %v2308 = vmul.f32 %v2303, %v2306
  %v2309 = vmul.f32 %v2291, %v2107
  %v2310 = vadd.f32 %v2308, %v2309
  %s2311 = scalar_lea.vmem %s0, 88
  %v2312 = vld [vmem:[%s2311] sm:$0xff]
  %v2313 = vsel %vm64, %v2210, 0
  %2315 = vmatprep.subr.mxu0 0.0
  %2316 = vmatpush1.msra.mxu0 %v28
  %2317 = vmatprep.subr.mxu0 0.0
  %2318 = vmatpush1.msra.mxu0 %v29
  %2319 = vmatprep.subr.mxu0 0.0
  %2320 = vmatpush1.msra.mxu0 %v30
  %2321 = vmatprep.subr.mxu0 0.0
  %2322 = vmatpush1.msra.mxu0 %v31
  %2323 = vmatprep.subr.mxu0 0.0
  %2324 = vmatpush1.msra.mxu0 0.0
  %2325 = vmatprep.subr.mxu0 0.0
  %2326 = vmatpush1.msra.mxu0 0.0
  %2327 = vmatprep.subr.mxu0 0.0
  %2328 = vmatpush1.msra.mxu0 0.0
  %2329 = vmatprep.subr.mxu0 0.0
  %2330 = vmatpush1.msra.mxu0 0.0
  %2331 = vmatprep.subr.mxu0 0.0
  %2332 = vmatpush1.msra.mxu0 0.0
  %2333 = vmatprep.subr.mxu0 0.0
  %2334 = vmatpush1.msra.mxu0 0.0
  %2335 = vmatprep.subr.mxu0 0.0
  %2336 = vmatpush1.msra.mxu0 0.0
  %2337 = vmatprep.subr.mxu0 0.0
  %2338 = vmatpush1.msra.mxu0 0.0
  %2339 = vmatprep.subr.mxu0 0.0
  %2340 = vmatpush1.msra.mxu0 0.0
  %2341 = vmatprep.subr.mxu0 0.0
  %2342 = vmatpush1.msra.mxu0 0.0
  %2343 = vmatprep.subr.mxu0 0.0
  %2344 = vmatpush1.msra.mxu0 0.0
  %2345 = vmatprep.subr.mxu0 0.0
  %2346 = vmatpush1.msra.mxu0 0.0
  %2347 = vmatprep.subr.mxu0 0.0
  %2348 = vmatpush1.msra.mxu0 0.0
  %2349 = vmatprep.subr.mxu0 0.0
  %2350 = vmatpush1.msra.mxu0 0.0
  %2351 = vmatprep.subr.mxu0 0.0
  %2352 = vmatpush1.msra.mxu0 0.0
  %2353 = vmatprep.subr.mxu0 0.0
  %2354 = vmatpush1.msra.mxu0 0.0
  %2355 = vmatprep.subr.mxu0 0.0
  %2356 = vmatpush1.msra.mxu0 0.0
  %2357 = vmatprep.subr.mxu0 0.0
  %2358 = vmatpush1.msra.mxu0 0.0
  %2359 = vmatprep.subr.mxu0 0.0
  %2360 = vmatpush1.msra.mxu0 0.0
  %2361 = vmatprep.subr.mxu0 0.0
  %2362 = vmatpush1.msra.mxu0 0.0
  %2363 = vmatprep.subr.mxu0 0.0
  %2364 = vmatpush1.msra.mxu0 0.0
  %2365 = vmatprep.subr.mxu0 0.0
  %2366 = vmatpush1.msra.mxu0 0.0
  %2367 = vmatprep.subr.mxu0 0.0
  %2368 = vmatpush1.msra.mxu0 0.0
  %2369 = vmatprep.subr.mxu0 0.0
  %2370 = vmatpush1.msra.mxu0 0.0
  %2371 = vmatprep.subr.mxu0 0.0
  %2372 = vmatpush1.msra.mxu0 0.0
  %2373 = vmatprep.subr.mxu0 0.0
  %2374 = vmatpush1.msra.mxu0 0.0
  %2375 = vmatprep.subr.mxu0 0.0
  %2376 = vmatpush1.msra.mxu0 0.0
  %2377 = vmatprep.subr.mxu0 0.0
  %2378 = vmatpush1.msra.mxu0 0.0
  %2379 = vmatprep.mubr.f32.mxu0 0.0
  %2380 = vmatmul.mubr.f32.gmra.mrb[0].mxu0 %v2313
  %v2381 = vpop.f32.mrb[0].mxu0
  %v2382 = vadd.f32 %v62, %v2381
  %v2383 = vpop.f32.mrb[0].mxu0
  %2384 = vdwg.mxu0
  %v2385 = vadd.f32 %v2312, %v2382
  %v2386 = vxor.u32 %v2385, 2147483648
  %v2387 = vmul.f32 %v2386, 1.442695
  %v2388 = vpow.pop %v2387
  %v2389 = vadd.f32 %v2388, 1.0
  %v2390 = vrcp.pop %v2389
  %v2391 = vmul.f32 1.0, %v2390
  %2393 = vrot.lane.b32.xlu0 %v2382, 64
  %v2394 = vpop.permute.xlu0 %2393
  %v2396 = vmul.f32 %v2391, %v2394
  %2398 = vrot.lane.b32.xlu0 %v2396, 64
  %v2399 = vpop.permute.xlu0 %2398
  %v2401 = vadd.f32 %v2312, %v2399
  %v2402 = vtanh.pop %v2401
  %v2403 = vsub.f32 1.0, %v2391
  %2405 = vrot.lane.b32.xlu0 %v2402, 96
  %v2406 = vpop.permute.xlu0 %2405
  %v2408 = vmul.f32 %v2403, %v2406
  %v2409 = vmul.f32 %v2391, %v2207
  %v2410 = vadd.f32 %v2408, %v2409
  %2412 = vrot.lane.b32.xlu0 %v2410, 96
  %v2413 = vpop.permute.xlu0 %2412
  %v2415 = vsel %vm64, %v2413, %v2310
  %v2417 = vsel %vm182, %v2415, 0
  %2419 = vmatprep.subr.mxu0 0.0
  %2420 = vmatpush1.msra.mxu0 %v33
  %2421 = vmatprep.subr.mxu0 0.0
  %2422 = vmatpush1.msra.mxu0 %v34
  %2423 = vmatprep.subr.mxu0 0.0
  %2424 = vmatpush1.msra.mxu0 %v35
  %2425 = vmatprep.subr.mxu0 0.0
  %2426 = vmatpush1.msra.mxu0 %v36
  %2427 = vmatprep.subr.mxu0 0.0
  %2428 = vmatpush1.msra.mxu0 %v37
  %2429 = vmatprep.subr.mxu0 0.0
  %2430 = vmatpush1.msra.mxu0 %v38
  %2431 = vmatprep.subr.mxu0 0.0
  %2432 = vmatpush1.msra.mxu0 %v39
  %2433 = vmatprep.subr.mxu0 0.0
  %2434 = vmatpush1.msra.mxu0 %v40
  %2435 = vmatprep.subr.mxu0 0.0
  %2436 = vmatpush1.msra.mxu0 0.0
  %2437 = vmatprep.subr.mxu0 0.0
  %2438 = vmatpush1.msra.mxu0 0.0
  %2439 = vmatprep.subr.mxu0 0.0
  %2440 = vmatpush1.msra.mxu0 0.0
  %2441 = vmatprep.subr.mxu0 0.0
  %2442 = vmatpush1.msra.mxu0 0.0
  %2443 = vmatprep.subr.mxu0 0.0
  %2444 = vmatpush1.msra.mxu0 0.0
  %2445 = vmatprep.subr.mxu0 0.0
  %2446 = vmatpush1.msra.mxu0 0.0
  %2447 = vmatprep.subr.mxu0 0.0
  %2448 = vmatpush1.msra.mxu0 0.0
  %2449 = vmatprep.subr.mxu0 0.0
  %2450 = vmatpush1.msra.mxu0 0.0
  %2451 = vmatprep.subr.mxu0 0.0
  %2452 = vmatpush1.msra.mxu0 0.0
  %2453 = vmatprep.subr.mxu0 0.0
  %2454 = vmatpush1.msra.mxu0 0.0
  %2455 = vmatprep.subr.mxu0 0.0
  %2456 = vmatpush1.msra.mxu0 0.0
  %2457 = vmatprep.subr.mxu0 0.0
  %2458 = vmatpush1.msra.mxu0 0.0
  %2459 = vmatprep.subr.mxu0 0.0
  %2460 = vmatpush1.msra.mxu0 0.0
  %2461 = vmatprep.subr.mxu0 0.0
  %2462 = vmatpush1.msra.mxu0 0.0
  %2463 = vmatprep.subr.mxu0 0.0
  %2464 = vmatpush1.msra.mxu0 0.0
  %2465 = vmatprep.subr.mxu0 0.0
  %2466 = vmatpush1.msra.mxu0 0.0
  %2467 = vmatprep.subr.mxu0 0.0
  %2468 = vmatpush1.msra.mxu0 0.0
  %2469 = vmatprep.subr.mxu0 0.0
  %2470 = vmatpush1.msra.mxu0 0.0
  %2471 = vmatprep.subr.mxu0 0.0
  %2472 = vmatpush1.msra.mxu0 0.0
  %2473 = vmatprep.subr.mxu0 0.0
  %2474 = vmatpush1.msra.mxu0 0.0
  %2475 = vmatprep.subr.mxu0 0.0
  %2476 = vmatpush1.msra.mxu0 0.0
  %2477 = vmatprep.subr.mxu0 0.0
  %2478 = vmatpush1.msra.mxu0 0.0
  %2479 = vmatprep.subr.mxu0 0.0
  %2480 = vmatpush1.msra.mxu0 0.0
  %2481 = vmatprep.subr.mxu0 0.0
  %2482 = vmatpush1.msra.mxu0 0.0
  %2483 = vmatprep.mubr.f32.mxu0 0.0
  %2484 = vmatmul.mubr.f32.gmra.mrb[0].mxu0 %v2417
  %v2485 = vpop.f32.mrb[0].mxu0
  %v2486 = vadd.f32 %v180, %v2485
  %v2487 = vpop.f32.mrb[0].mxu0
  %2488 = vdwg.mxu0
  %v2489 = vxor.u32 %v2486, 2147483648
  %v2490 = vmul.f32 %v2489, 1.442695
  %v2491 = vpow.pop %v2490
  %v2492 = vadd.f32 %v2491, 1.0
  %v2493 = vrcp.pop %v2492
  %v2494 = vmul.f32 1.0, %v2493
  %2496 = vrot.lane.b32.xlu0 %v2486, 32
  %v2497 = vpop.permute.xlu0 %2496
  %v2499 = vmul.f32 %v2494, %v2497
  %2501 = vrot.lane.b32.xlu0 %v2499, 64
  %v2502 = vpop.permute.xlu0 %2501
  %v2504 = vadd.f32 %v2486, %v2502
  %v2505 = vtanh.pop %v2504
  %v2506 = vsub.f32 1.0, %v2494
  %2508 = vrot.lane.b32.xlu0 %v2505, 96
  %v2509 = vpop.permute.xlu0 %2508
  %v2511 = vmul.f32 %v2506, %v2509
  %v2512 = vmul.f32 %v2494, %v2310
  %v2513 = vadd.f32 %v2511, %v2512
  %s2514 = scalar_lea.vmem %s0, 96
  %v2515 = vld [vmem:[%s2514] sm:$0xff]
  %v2516 = vsel %vm64, %v2413, 0
  %2518 = vmatprep.subr.mxu0 0.0
  %2519 = vmatpush1.msra.mxu0 %v28
  %2520 = vmatprep.subr.mxu0 0.0
  %2521 = vmatpush1.msra.mxu0 %v29
  %2522 = vmatprep.subr.mxu0 0.0
  %2523 = vmatpush1.msra.mxu0 %v30
  %2524 = vmatprep.subr.mxu0 0.0
  %2525 = vmatpush1.msra.mxu0 %v31
  %2526 = vmatprep.subr.mxu0 0.0
  %2527 = vmatpush1.msra.mxu0 0.0
  %2528 = vmatprep.subr.mxu0 0.0
  %2529 = vmatpush1.msra.mxu0 0.0
  %2530 = vmatprep.subr.mxu0 0.0
  %2531 = vmatpush1.msra.mxu0 0.0
  %2532 = vmatprep.subr.mxu0 0.0
  %2533 = vmatpush1.msra.mxu0 0.0
  %2534 = vmatprep.subr.mxu0 0.0
  %2535 = vmatpush1.msra.mxu0 0.0
  %2536 = vmatprep.subr.mxu0 0.0
  %2537 = vmatpush1.msra.mxu0 0.0
  %2538 = vmatprep.subr.mxu0 0.0
  %2539 = vmatpush1.msra.mxu0 0.0
  %2540 = vmatprep.subr.mxu0 0.0
  %2541 = vmatpush1.msra.mxu0 0.0
  %2542 = vmatprep.subr.mxu0 0.0
  %2543 = vmatpush1.msra.mxu0 0.0
  %2544 = vmatprep.subr.mxu0 0.0
  %2545 = vmatpush1.msra.mxu0 0.0
  %2546 = vmatprep.subr.mxu0 0.0
  %2547 = vmatpush1.msra.mxu0 0.0
  %2548 = vmatprep.subr.mxu0 0.0
  %2549 = vmatpush1.msra.mxu0 0.0
  %2550 = vmatprep.subr.mxu0 0.0
  %2551 = vmatpush1.msra.mxu0 0.0
  %2552 = vmatprep.subr.mxu0 0.0
  %2553 = vmatpush1.msra.mxu0 0.0
  %2554 = vmatprep.subr.mxu0 0.0
  %2555 = vmatpush1.msra.mxu0 0.0
  %2556 = vmatprep.subr.mxu0 0.0
  %2557 = vmatpush1.msra.mxu0 0.0
  %2558 = vmatprep.subr.mxu0 0.0
  %2559 = vmatpush1.msra.mxu0 0.0
  %2560 = vmatprep.subr.mxu0 0.0
  %2561 = vmatpush1.msra.mxu0 0.0
  %2562 = vmatprep.subr.mxu0 0.0
  %2563 = vmatpush1.msra.mxu0 0.0
  %2564 = vmatprep.subr.mxu0 0.0
  %2565 = vmatpush1.msra.mxu0 0.0
  %2566 = vmatprep.subr.mxu0 0.0
  %2567 = vmatpush1.msra.mxu0 0.0
  %2568 = vmatprep.subr.mxu0 0.0
  %2569 = vmatpush1.msra.mxu0 0.0
  %2570 = vmatprep.subr.mxu0 0.0
  %2571 = vmatpush1.msra.mxu0 0.0
  %2572 = vmatprep.subr.mxu0 0.0
  %2573 = vmatpush1.msra.mxu0 0.0
  %2574 = vmatprep.subr.mxu0 0.0
  %2575 = vmatpush1.msra.mxu0 0.0
  %2576 = vmatprep.subr.mxu0 0.0
  %2577 = vmatpush1.msra.mxu0 0.0
  %2578 = vmatprep.subr.mxu0 0.0
  %2579 = vmatpush1.msra.mxu0 0.0
  %2580 = vmatprep.subr.mxu0 0.0
  %2581 = vmatpush1.msra.mxu0 0.0
  %2582 = vmatprep.mubr.f32.mxu0 0.0
  %2583 = vmatmul.mubr.f32.gmra.mrb[0].mxu0 %v2516
  %v2584 = vpop.f32.mrb[0].mxu0
  %v2585 = vadd.f32 %v62, %v2584
  %v2586 = vpop.f32.mrb[0].mxu0
  %2587 = vdwg.mxu0
  %v2588 = vadd.f32 %v2515, %v2585
  %v2589 = vxor.u32 %v2588, 2147483648
  %v2590 = vmul.f32 %v2589, 1.442695
  %v2591 = vpow.pop %v2590
  %v2592 = vadd.f32 %v2591, 1.0
  %v2593 = vrcp.pop %v2592
  %v2594 = vmul.f32 1.0, %v2593
  %2596 = vrot.lane.b32.xlu0 %v2585, 64
  %v2597 = vpop.permute.xlu0 %2596
  %v2599 = vmul.f32 %v2594, %v2597
  %2601 = vrot.lane.b32.xlu0 %v2599, 64
  %v2602 = vpop.permute.xlu0 %2601
  %v2604 = vadd.f32 %v2515, %v2602
  %v2605 = vtanh.pop %v2604
  %v2606 = vsub.f32 1.0, %v2594
  %2608 = vrot.lane.b32.xlu0 %v2605, 96
  %v2609 = vpop.permute.xlu0 %2608
  %v2611 = vmul.f32 %v2606, %v2609
  %v2612 = vmul.f32 %v2594, %v2410
  %v2613 = vadd.f32 %v2611, %v2612
  %2615 = vrot.lane.b32.xlu0 %v2613, 96
  %v2616 = vpop.permute.xlu0 %2615
  %v2618 = vsel %vm64, %v2616, %v2513
  %v2620 = vsel %vm182, %v2618, 0
  %2622 = vmatprep.subr.mxu0 0.0
  %2623 = vmatpush1.msra.mxu0 %v33
  %2624 = vmatprep.subr.mxu0 0.0
  %2625 = vmatpush1.msra.mxu0 %v34
  %2626 = vmatprep.subr.mxu0 0.0
  %2627 = vmatpush1.msra.mxu0 %v35
  %2628 = vmatprep.subr.mxu0 0.0
  %2629 = vmatpush1.msra.mxu0 %v36
  %2630 = vmatprep.subr.mxu0 0.0
  %2631 = vmatpush1.msra.mxu0 %v37
  %2632 = vmatprep.subr.mxu0 0.0
  %2633 = vmatpush1.msra.mxu0 %v38
  %2634 = vmatprep.subr.mxu0 0.0
  %2635 = vmatpush1.msra.mxu0 %v39
  %2636 = vmatprep.subr.mxu0 0.0
  %2637 = vmatpush1.msra.mxu0 %v40
  %2638 = vmatprep.subr.mxu0 0.0
  %2639 = vmatpush1.msra.mxu0 0.0
  %2640 = vmatprep.subr.mxu0 0.0
  %2641 = vmatpush1.msra.mxu0 0.0
  %2642 = vmatprep.subr.mxu0 0.0
  %2643 = vmatpush1.msra.mxu0 0.0
  %2644 = vmatprep.subr.mxu0 0.0
  %2645 = vmatpush1.msra.mxu0 0.0
  %2646 = vmatprep.subr.mxu0 0.0
  %2647 = vmatpush1.msra.mxu0 0.0
  %2648 = vmatprep.subr.mxu0 0.0
  %2649 = vmatpush1.msra.mxu0 0.0
  %2650 = vmatprep.subr.mxu0 0.0
  %2651 = vmatpush1.msra.mxu0 0.0
  %2652 = vmatprep.subr.mxu0 0.0
  %2653 = vmatpush1.msra.mxu0 0.0
  %2654 = vmatprep.subr.mxu0 0.0
  %2655 = vmatpush1.msra.mxu0 0.0
  %2656 = vmatprep.subr.mxu0 0.0
  %2657 = vmatpush1.msra.mxu0 0.0
  %2658 = vmatprep.subr.mxu0 0.0
  %2659 = vmatpush1.msra.mxu0 0.0
  %2660 = vmatprep.subr.mxu0 0.0
  %2661 = vmatpush1.msra.mxu0 0.0
  %2662 = vmatprep.subr.mxu0 0.0
  %2663 = vmatpush1.msra.mxu0 0.0
  %2664 = vmatprep.subr.mxu0 0.0
  %2665 = vmatpush1.msra.mxu0 0.0
  %2666 = vmatprep.subr.mxu0 0.0
  %2667 = vmatpush1.msra.mxu0 0.0
  %2668 = vmatprep.subr.mxu0 0.0
  %2669 = vmatpush1.msra.mxu0 0.0
  %2670 = vmatprep.subr.mxu0 0.0
  %2671 = vmatpush1.msra.mxu0 0.0
  %2672 = vmatprep.subr.mxu0 0.0
  %2673 = vmatpush1.msra.mxu0 0.0
  %2674 = vmatprep.subr.mxu0 0.0
  %2675 = vmatpush1.msra.mxu0 0.0
  %2676 = vmatprep.subr.mxu0 0.0
  %2677 = vmatpush1.msra.mxu0 0.0
  %2678 = vmatprep.subr.mxu0 0.0
  %2679 = vmatpush1.msra.mxu0 0.0
  %2680 = vmatprep.subr.mxu0 0.0
  %2681 = vmatpush1.msra.mxu0 0.0
  %2682 = vmatprep.subr.mxu0 0.0
  %2683 = vmatpush1.msra.mxu0 0.0
  %2684 = vmatprep.subr.mxu0 0.0
  %2685 = vmatpush1.msra.mxu0 0.0
  %2686 = vmatprep.mubr.f32.mxu0 0.0
  %2687 = vmatmul.mubr.f32.gmra.mrb[0].mxu0 %v2620
  %v2688 = vpop.f32.mrb[0].mxu0
  %v2689 = vadd.f32 %v180, %v2688
  %v2690 = vpop.f32.mrb[0].mxu0
  %2691 = vdwg.mxu0
  %v2692 = vxor.u32 %v2689, 2147483648
  %v2693 = vmul.f32 %v2692, 1.442695
  %v2694 = vpow.pop %v2693
  %v2695 = vadd.f32 %v2694, 1.0
  %v2696 = vrcp.pop %v2695
  %v2697 = vmul.f32 1.0, %v2696
  %2699 = vrot.lane.b32.xlu0 %v2689, 32
  %v2700 = vpop.permute.xlu0 %2699
  %v2702 = vmul.f32 %v2697, %v2700
  %2704 = vrot.lane.b32.xlu0 %v2702, 64
  %v2705 = vpop.permute.xlu0 %2704
  %v2707 = vadd.f32 %v2689, %v2705
  %v2708 = vtanh.pop %v2707
  %v2709 = vsub.f32 1.0, %v2697
  %2711 = vrot.lane.b32.xlu0 %v2708, 96
  %v2712 = vpop.permute.xlu0 %2711
  %v2714 = vmul.f32 %v2709, %v2712
  %v2715 = vmul.f32 %v2697, %v2513
  %v2716 = vadd.f32 %v2714, %v2715
  %s2717 = scalar_lea.vmem %s0, 104
  %v2718 = vld [vmem:[%s2717] sm:$0xff]
  %v2719 = vsel %vm64, %v2616, 0
  %2721 = vmatprep.subr.mxu0 0.0
  %2722 = vmatpush1.msra.mxu0 %v28
  %2723 = vmatprep.subr.mxu0 0.0
  %2724 = vmatpush1.msra.mxu0 %v29
  %2725 = vmatprep.subr.mxu0 0.0
  %2726 = vmatpush1.msra.mxu0 %v30
  %2727 = vmatprep.subr.mxu0 0.0
  %2728 = vmatpush1.msra.mxu0 %v31
  %2729 = vmatprep.subr.mxu0 0.0
  %2730 = vmatpush1.msra.mxu0 0.0
  %2731 = vmatprep.subr.mxu0 0.0
  %2732 = vmatpush1.msra.mxu0 0.0
  %2733 = vmatprep.subr.mxu0 0.0
  %2734 = vmatpush1.msra.mxu0 0.0
  %2735 = vmatprep.subr.mxu0 0.0
  %2736 = vmatpush1.msra.mxu0 0.0
  %2737 = vmatprep.subr.mxu0 0.0
  %2738 = vmatpush1.msra.mxu0 0.0
  %2739 = vmatprep.subr.mxu0 0.0
  %2740 = vmatpush1.msra.mxu0 0.0
  %2741 = vmatprep.subr.mxu0 0.0
  %2742 = vmatpush1.msra.mxu0 0.0
  %2743 = vmatprep.subr.mxu0 0.0
  %2744 = vmatpush1.msra.mxu0 0.0
  %2745 = vmatprep.subr.mxu0 0.0
  %2746 = vmatpush1.msra.mxu0 0.0
  %2747 = vmatprep.subr.mxu0 0.0
  %2748 = vmatpush1.msra.mxu0 0.0
  %2749 = vmatprep.subr.mxu0 0.0
  %2750 = vmatpush1.msra.mxu0 0.0
  %2751 = vmatprep.subr.mxu0 0.0
  %2752 = vmatpush1.msra.mxu0 0.0
  %2753 = vmatprep.subr.mxu0 0.0
  %2754 = vmatpush1.msra.mxu0 0.0
  %2755 = vmatprep.subr.mxu0 0.0
  %2756 = vmatpush1.msra.mxu0 0.0
  %2757 = vmatprep.subr.mxu0 0.0
  %2758 = vmatpush1.msra.mxu0 0.0
  %2759 = vmatprep.subr.mxu0 0.0
  %2760 = vmatpush1.msra.mxu0 0.0
  %2761 = vmatprep.subr.mxu0 0.0
  %2762 = vmatpush1.msra.mxu0 0.0
  %2763 = vmatprep.subr.mxu0 0.0
  %2764 = vmatpush1.msra.mxu0 0.0
  %2765 = vmatprep.subr.mxu0 0.0
  %2766 = vmatpush1.msra.mxu0 0.0
  %2767 = vmatprep.subr.mxu0 0.0
  %2768 = vmatpush1.msra.mxu0 0.0
  %2769 = vmatprep.subr.mxu0 0.0
  %2770 = vmatpush1.msra.mxu0 0.0
  %2771 = vmatprep.subr.mxu0 0.0
  %2772 = vmatpush1.msra.mxu0 0.0
  %2773 = vmatprep.subr.mxu0 0.0
  %2774 = vmatpush1.msra.mxu0 0.0
  %2775 = vmatprep.subr.mxu0 0.0
  %2776 = vmatpush1.msra.mxu0 0.0
  %2777 = vmatprep.subr.mxu0 0.0
  %2778 = vmatpush1.msra.mxu0 0.0
  %2779 = vmatprep.subr.mxu0 0.0
  %2780 = vmatpush1.msra.mxu0 0.0
  %2781 = vmatprep.subr.mxu0 0.0
  %2782 = vmatpush1.msra.mxu0 0.0
  %2783 = vmatprep.subr.mxu0 0.0
  %2784 = vmatpush1.msra.mxu0 0.0
  %2785 = vmatprep.mubr.f32.mxu0 0.0
  %2786 = vmatmul.mubr.f32.gmra.mrb[0].mxu0 %v2719
  %v2787 = vpop.f32.mrb[0].mxu0
  %v2788 = vadd.f32 %v62, %v2787
  %v2789 = vpop.f32.mrb[0].mxu0
  %2790 = vdwg.mxu0
  %v2791 = vadd.f32 %v2718, %v2788
  %v2792 = vxor.u32 %v2791, 2147483648
  %v2793 = vmul.f32 %v2792, 1.442695
  %v2794 = vpow.pop %v2793
  %v2795 = vadd.f32 %v2794, 1.0
  %v2796 = vrcp.pop %v2795
  %v2797 = vmul.f32 1.0, %v2796
  %2799 = vrot.lane.b32.xlu0 %v2788, 64
  %v2800 = vpop.permute.xlu0 %2799
  %v2802 = vmul.f32 %v2797, %v2800
  %2804 = vrot.lane.b32.xlu0 %v2802, 64
  %v2805 = vpop.permute.xlu0 %2804
  %v2807 = vadd.f32 %v2718, %v2805
  %v2808 = vtanh.pop %v2807
  %v2809 = vsub.f32 1.0, %v2797
  %2811 = vrot.lane.b32.xlu0 %v2808, 96
  %v2812 = vpop.permute.xlu0 %2811
  %v2814 = vmul.f32 %v2809, %v2812
  %v2815 = vmul.f32 %v2797, %v2613
  %v2816 = vadd.f32 %v2814, %v2815
  %2818 = vrot.lane.b32.xlu0 %v2816, 96
  %v2819 = vpop.permute.xlu0 %2818
  %v2821 = vsel %vm64, %v2819, %v2716
  %v2823 = vsel %vm182, %v2821, 0
  %2825 = vmatprep.subr.mxu0 0.0
  %2826 = vmatpush1.msra.mxu0 %v33
  %2827 = vmatprep.subr.mxu0 0.0
  %2828 = vmatpush1.msra.mxu0 %v34
  %2829 = vmatprep.subr.mxu0 0.0
  %2830 = vmatpush1.msra.mxu0 %v35
  %2831 = vmatprep.subr.mxu0 0.0
  %2832 = vmatpush1.msra.mxu0 %v36
  %2833 = vmatprep.subr.mxu0 0.0
  %2834 = vmatpush1.msra.mxu0 %v37
  %2835 = vmatprep.subr.mxu0 0.0
  %2836 = vmatpush1.msra.mxu0 %v38
  %2837 = vmatprep.subr.mxu0 0.0
  %2838 = vmatpush1.msra.mxu0 %v39
  %2839 = vmatprep.subr.mxu0 0.0
  %2840 = vmatpush1.msra.mxu0 %v40
  %2841 = vmatprep.subr.mxu0 0.0
  %2842 = vmatpush1.msra.mxu0 0.0
  %2843 = vmatprep.subr.mxu0 0.0
  %2844 = vmatpush1.msra.mxu0 0.0
  %2845 = vmatprep.subr.mxu0 0.0
  %2846 = vmatpush1.msra.mxu0 0.0
  %2847 = vmatprep.subr.mxu0 0.0
  %2848 = vmatpush1.msra.mxu0 0.0
  %2849 = vmatprep.subr.mxu0 0.0
  %2850 = vmatpush1.msra.mxu0 0.0
  %2851 = vmatprep.subr.mxu0 0.0
  %2852 = vmatpush1.msra.mxu0 0.0
  %2853 = vmatprep.subr.mxu0 0.0
  %2854 = vmatpush1.msra.mxu0 0.0
  %2855 = vmatprep.subr.mxu0 0.0
  %2856 = vmatpush1.msra.mxu0 0.0
  %2857 = vmatprep.subr.mxu0 0.0
  %2858 = vmatpush1.msra.mxu0 0.0
  %2859 = vmatprep.subr.mxu0 0.0
  %2860 = vmatpush1.msra.mxu0 0.0
  %2861 = vmatprep.subr.mxu0 0.0
  %2862 = vmatpush1.msra.mxu0 0.0
  %2863 = vmatprep.subr.mxu0 0.0
  %2864 = vmatpush1.msra.mxu0 0.0
  %2865 = vmatprep.subr.mxu0 0.0
  %2866 = vmatpush1.msra.mxu0 0.0
  %2867 = vmatprep.subr.mxu0 0.0
  %2868 = vmatpush1.msra.mxu0 0.0
  %2869 = vmatprep.subr.mxu0 0.0
  %2870 = vmatpush1.msra.mxu0 0.0
  %2871 = vmatprep.subr.mxu0 0.0
  %2872 = vmatpush1.msra.mxu0 0.0
  %2873 = vmatprep.subr.mxu0 0.0
  %2874 = vmatpush1.msra.mxu0 0.0
  %2875 = vmatprep.subr.mxu0 0.0
  %2876 = vmatpush1.msra.mxu0 0.0
  %2877 = vmatprep.subr.mxu0 0.0
  %2878 = vmatpush1.msra.mxu0 0.0
  %2879 = vmatprep.subr.mxu0 0.0
  %2880 = vmatpush1.msra.mxu0 0.0
  %2881 = vmatprep.subr.mxu0 0.0
  %2882 = vmatpush1.msra.mxu0 0.0
  %2883 = vmatprep.subr.mxu0 0.0
  %2884 = vmatpush1.msra.mxu0 0.0
  %2885 = vmatprep.subr.mxu0 0.0
  %2886 = vmatpush1.msra.mxu0 0.0
  %2887 = vmatprep.subr.mxu0 0.0
  %2888 = vmatpush1.msra.mxu0 0.0
  %2889 = vmatprep.mubr.f32.mxu0 0.0
  %2890 = vmatmul.mubr.f32.gmra.mrb[0].mxu0 %v2823
  %v2891 = vpop.f32.mrb[0].mxu0
  %v2892 = vadd.f32 %v180, %v2891
  %v2893 = vpop.f32.mrb[0].mxu0
  %2894 = vdwg.mxu0
  %v2895 = vxor.u32 %v2892, 2147483648
  %v2896 = vmul.f32 %v2895, 1.442695
  %v2897 = vpow.pop %v2896
  %v2898 = vadd.f32 %v2897, 1.0
  %v2899 = vrcp.pop %v2898
  %v2900 = vmul.f32 1.0, %v2899
  %2902 = vrot.lane.b32.xlu0 %v2892, 32
  %v2903 = vpop.permute.xlu0 %2902
  %v2905 = vmul.f32 %v2900, %v2903
  %2907 = vrot.lane.b32.xlu0 %v2905, 64
  %v2908 = vpop.permute.xlu0 %2907
  %v2910 = vadd.f32 %v2892, %v2908
  %v2911 = vtanh.pop %v2910
  %v2912 = vsub.f32 1.0, %v2900
  %2914 = vrot.lane.b32.xlu0 %v2911, 96
  %v2915 = vpop.permute.xlu0 %2914
  %v2917 = vmul.f32 %v2912, %v2915
  %v2918 = vmul.f32 %v2900, %v2716
  %v2919 = vadd.f32 %v2917, %v2918
  %s2920 = scalar_lea.vmem %s0, 112
  %v2921 = vld [vmem:[%s2920] sm:$0xff]
  %v2922 = vsel %vm64, %v2819, 0
  %2924 = vmatprep.subr.mxu0 0.0
  %2925 = vmatpush1.msra.mxu0 %v28
  %2926 = vmatprep.subr.mxu0 0.0
  %2927 = vmatpush1.msra.mxu0 %v29
  %2928 = vmatprep.subr.mxu0 0.0
  %2929 = vmatpush1.msra.mxu0 %v30
  %2930 = vmatprep.subr.mxu0 0.0
  %2931 = vmatpush1.msra.mxu0 %v31
  %2932 = vmatprep.subr.mxu0 0.0
  %2933 = vmatpush1.msra.mxu0 0.0
  %2934 = vmatprep.subr.mxu0 0.0
  %2935 = vmatpush1.msra.mxu0 0.0
  %2936 = vmatprep.subr.mxu0 0.0
  %2937 = vmatpush1.msra.mxu0 0.0
  %2938 = vmatprep.subr.mxu0 0.0
  %2939 = vmatpush1.msra.mxu0 0.0
  %2940 = vmatprep.subr.mxu0 0.0
  %2941 = vmatpush1.msra.mxu0 0.0
  %2942 = vmatprep.subr.mxu0 0.0
  %2943 = vmatpush1.msra.mxu0 0.0
  %2944 = vmatprep.subr.mxu0 0.0
  %2945 = vmatpush1.msra.mxu0 0.0
  %2946 = vmatprep.subr.mxu0 0.0
  %2947 = vmatpush1.msra.mxu0 0.0
  %2948 = vmatprep.subr.mxu0 0.0
  %2949 = vmatpush1.msra.mxu0 0.0
  %2950 = vmatprep.subr.mxu0 0.0
  %2951 = vmatpush1.msra.mxu0 0.0
  %2952 = vmatprep.subr.mxu0 0.0
  %2953 = vmatpush1.msra.mxu0 0.0
  %2954 = vmatprep.subr.mxu0 0.0
  %2955 = vmatpush1.msra.mxu0 0.0
  %2956 = vmatprep.subr.mxu0 0.0
  %2957 = vmatpush1.msra.mxu0 0.0
  %2958 = vmatprep.subr.mxu0 0.0
  %2959 = vmatpush1.msra.mxu0 0.0
  %2960 = vmatprep.subr.mxu0 0.0
  %2961 = vmatpush1.msra.mxu0 0.0
  %2962 = vmatprep.subr.mxu0 0.0
  %2963 = vmatpush1.msra.mxu0 0.0
  %2964 = vmatprep.subr.mxu0 0.0
  %2965 = vmatpush1.msra.mxu0 0.0
  %2966 = vmatprep.subr.mxu0 0.0
  %2967 = vmatpush1.msra.mxu0 0.0
  %2968 = vmatprep.subr.mxu0 0.0
  %2969 = vmatpush1.msra.mxu0 0.0
  %2970 = vmatprep.subr.mxu0 0.0
  %2971 = vmatpush1.msra.mxu0 0.0
  %2972 = vmatprep.subr.mxu0 0.0
  %2973 = vmatpush1.msra.mxu0 0.0
  %2974 = vmatprep.subr.mxu0 0.0
  %2975 = vmatpush1.msra.mxu0 0.0
  %2976 = vmatprep.subr.mxu0 0.0
  %2977 = vmatpush1.msra.mxu0 0.0
  %2978 = vmatprep.subr.mxu0 0.0
  %2979 = vmatpush1.msra.mxu0 0.0
  %2980 = vmatprep.subr.mxu0 0.0
  %2981 = vmatpush1.msra.mxu0 0.0
  %2982 = vmatprep.subr.mxu0 0.0
  %2983 = vmatpush1.msra.mxu0 0.0
  %2984 = vmatprep.subr.mxu0 0.0
  %2985 = vmatpush1.msra.mxu0 0.0
  %2986 = vmatprep.subr.mxu0 0.0
  %2987 = vmatpush1.msra.mxu0 0.0
  %2988 = vmatprep.mubr.f32.mxu0 0.0
  %2989 = vmatmul.mubr.f32.gmra.mrb[0].mxu0 %v2922
  %v2990 = vpop.f32.mrb[0].mxu0
  %v2991 = vadd.f32 %v62, %v2990
  %v2992 = vpop.f32.mrb[0].mxu0
  %2993 = vdwg.mxu0
  %v2994 = vadd.f32 %v2921, %v2991
  %v2995 = vxor.u32 %v2994, 2147483648
  %v2996 = vmul.f32 %v2995, 1.442695
  %v2997 = vpow.pop %v2996
  %v2998 = vadd.f32 %v2997, 1.0
  %v2999 = vrcp.pop %v2998
  %v3000 = vmul.f32 1.0, %v2999
  %3002 = vrot.lane.b32.xlu0 %v2991, 64
  %v3003 = vpop.permute.xlu0 %3002
  %v3005 = vmul.f32 %v3000, %v3003
  %3007 = vrot.lane.b32.xlu0 %v3005, 64
  %v3008 = vpop.permute.xlu0 %3007
  %v3010 = vadd.f32 %v2921, %v3008
  %v3011 = vtanh.pop %v3010
  %v3012 = vsub.f32 1.0, %v3000
  %3014 = vrot.lane.b32.xlu0 %v3011, 96
  %v3015 = vpop.permute.xlu0 %3014
  %v3017 = vmul.f32 %v3012, %v3015
  %v3018 = vmul.f32 %v3000, %v2816
  %v3019 = vadd.f32 %v3017, %v3018
  %3021 = vrot.lane.b32.xlu0 %v3019, 96
  %v3022 = vpop.permute.xlu0 %3021
  %v3024 = vsel %vm64, %v3022, %v2919
  %v3026 = vsel %vm182, %v3024, 0
  %3028 = vmatprep.subr.mxu0 0.0
  %3029 = vmatpush1.msra.mxu0 %v33
  %3030 = vmatprep.subr.mxu0 0.0
  %3031 = vmatpush1.msra.mxu0 %v34
  %3032 = vmatprep.subr.mxu0 0.0
  %3033 = vmatpush1.msra.mxu0 %v35
  %3034 = vmatprep.subr.mxu0 0.0
  %3035 = vmatpush1.msra.mxu0 %v36
  %3036 = vmatprep.subr.mxu0 0.0
  %3037 = vmatpush1.msra.mxu0 %v37
  %3038 = vmatprep.subr.mxu0 0.0
  %3039 = vmatpush1.msra.mxu0 %v38
  %3040 = vmatprep.subr.mxu0 0.0
  %3041 = vmatpush1.msra.mxu0 %v39
  %3042 = vmatprep.subr.mxu0 0.0
  %3043 = vmatpush1.msra.mxu0 %v40
  %3044 = vmatprep.subr.mxu0 0.0
  %3045 = vmatpush1.msra.mxu0 0.0
  %3046 = vmatprep.subr.mxu0 0.0
  %3047 = vmatpush1.msra.mxu0 0.0
  %3048 = vmatprep.subr.mxu0 0.0
  %3049 = vmatpush1.msra.mxu0 0.0
  %3050 = vmatprep.subr.mxu0 0.0
  %3051 = vmatpush1.msra.mxu0 0.0
  %3052 = vmatprep.subr.mxu0 0.0
  %3053 = vmatpush1.msra.mxu0 0.0
  %3054 = vmatprep.subr.mxu0 0.0
  %3055 = vmatpush1.msra.mxu0 0.0
  %3056 = vmatprep.subr.mxu0 0.0
  %3057 = vmatpush1.msra.mxu0 0.0
  %3058 = vmatprep.subr.mxu0 0.0
  %3059 = vmatpush1.msra.mxu0 0.0
  %3060 = vmatprep.subr.mxu0 0.0
  %3061 = vmatpush1.msra.mxu0 0.0
  %3062 = vmatprep.subr.mxu0 0.0
  %3063 = vmatpush1.msra.mxu0 0.0
  %3064 = vmatprep.subr.mxu0 0.0
  %3065 = vmatpush1.msra.mxu0 0.0
  %3066 = vmatprep.subr.mxu0 0.0
  %3067 = vmatpush1.msra.mxu0 0.0
  %3068 = vmatprep.subr.mxu0 0.0
  %3069 = vmatpush1.msra.mxu0 0.0
  %3070 = vmatprep.subr.mxu0 0.0
  %3071 = vmatpush1.msra.mxu0 0.0
  %3072 = vmatprep.subr.mxu0 0.0
  %3073 = vmatpush1.msra.mxu0 0.0
  %3074 = vmatprep.subr.mxu0 0.0
  %3075 = vmatpush1.msra.mxu0 0.0
  %3076 = vmatprep.subr.mxu0 0.0
  %3077 = vmatpush1.msra.mxu0 0.0
  %3078 = vmatprep.subr.mxu0 0.0
  %3079 = vmatpush1.msra.mxu0 0.0
  %3080 = vmatprep.subr.mxu0 0.0
  %3081 = vmatpush1.msra.mxu0 0.0
  %3082 = vmatprep.subr.mxu0 0.0
  %3083 = vmatpush1.msra.mxu0 0.0
  %3084 = vmatprep.subr.mxu0 0.0
  %3085 = vmatpush1.msra.mxu0 0.0
  %3086 = vmatprep.subr.mxu0 0.0
  %3087 = vmatpush1.msra.mxu0 0.0
  %3088 = vmatprep.subr.mxu0 0.0
  %3089 = vmatpush1.msra.mxu0 0.0
  %3090 = vmatprep.subr.mxu0 0.0
  %3091 = vmatpush1.msra.mxu0 0.0
  %3092 = vmatprep.mubr.f32.mxu0 0.0
  %3093 = vmatmul.mubr.f32.gmra.mrb[0].mxu0 %v3026
  %v3094 = vpop.f32.mrb[0].mxu0
  %v3095 = vadd.f32 %v180, %v3094
  %v3096 = vpop.f32.mrb[0].mxu0
  %3097 = vdwg.mxu0
  %v3098 = vxor.u32 %v3095, 2147483648
  %v3099 = vmul.f32 %v3098, 1.442695
  %v3100 = vpow.pop %v3099
  %v3101 = vadd.f32 %v3100, 1.0
  %v3102 = vrcp.pop %v3101
  %v3103 = vmul.f32 1.0, %v3102
  %3105 = vrot.lane.b32.xlu0 %v3095, 32
  %v3106 = vpop.permute.xlu0 %3105
  %v3108 = vmul.f32 %v3103, %v3106
  %3110 = vrot.lane.b32.xlu0 %v3108, 64
  %v3111 = vpop.permute.xlu0 %3110
  %v3113 = vadd.f32 %v3095, %v3111
  %v3114 = vtanh.pop %v3113
  %v3115 = vsub.f32 1.0, %v3103
  %3117 = vrot.lane.b32.xlu0 %v3114, 96
  %v3118 = vpop.permute.xlu0 %3117
  %v3120 = vmul.f32 %v3115, %v3118
  %v3121 = vmul.f32 %v3103, %v2919
  %v3122 = vadd.f32 %v3120, %v3121
  %s3123 = scalar_lea.vmem %s0, 120
  %v3124 = vld [vmem:[%s3123] sm:$0xff]
  %v3125 = vsel %vm64, %v3022, 0
  %3127 = vmatprep.subr.mxu0 0.0
  %3128 = vmatpush1.msra.mxu0 %v28
  %3129 = vmatprep.subr.mxu0 0.0
  %3130 = vmatpush1.msra.mxu0 %v29
  %3131 = vmatprep.subr.mxu0 0.0
  %3132 = vmatpush1.msra.mxu0 %v30
  %3133 = vmatprep.subr.mxu0 0.0
  %3134 = vmatpush1.msra.mxu0 %v31
  %3135 = vmatprep.subr.mxu0 0.0
  %3136 = vmatpush1.msra.mxu0 0.0
  %3137 = vmatprep.subr.mxu0 0.0
  %3138 = vmatpush1.msra.mxu0 0.0
  %3139 = vmatprep.subr.mxu0 0.0
  %3140 = vmatpush1.msra.mxu0 0.0
  %3141 = vmatprep.subr.mxu0 0.0
  %3142 = vmatpush1.msra.mxu0 0.0
  %3143 = vmatprep.subr.mxu0 0.0
  %3144 = vmatpush1.msra.mxu0 0.0
  %3145 = vmatprep.subr.mxu0 0.0
  %3146 = vmatpush1.msra.mxu0 0.0
  %3147 = vmatprep.subr.mxu0 0.0
  %3148 = vmatpush1.msra.mxu0 0.0
  %3149 = vmatprep.subr.mxu0 0.0
  %3150 = vmatpush1.msra.mxu0 0.0
  %3151 = vmatprep.subr.mxu0 0.0
  %3152 = vmatpush1.msra.mxu0 0.0
  %3153 = vmatprep.subr.mxu0 0.0
  %3154 = vmatpush1.msra.mxu0 0.0
  %3155 = vmatprep.subr.mxu0 0.0
  %3156 = vmatpush1.msra.mxu0 0.0
  %3157 = vmatprep.subr.mxu0 0.0
  %3158 = vmatpush1.msra.mxu0 0.0
  %3159 = vmatprep.subr.mxu0 0.0
  %3160 = vmatpush1.msra.mxu0 0.0
  %3161 = vmatprep.subr.mxu0 0.0
  %3162 = vmatpush1.msra.mxu0 0.0
  %3163 = vmatprep.subr.mxu0 0.0
  %3164 = vmatpush1.msra.mxu0 0.0
  %3165 = vmatprep.subr.mxu0 0.0
  %3166 = vmatpush1.msra.mxu0 0.0
  %3167 = vmatprep.subr.mxu0 0.0
  %3168 = vmatpush1.msra.mxu0 0.0
  %3169 = vmatprep.subr.mxu0 0.0
  %3170 = vmatpush1.msra.mxu0 0.0
  %3171 = vmatprep.subr.mxu0 0.0
  %3172 = vmatpush1.msra.mxu0 0.0
  %3173 = vmatprep.subr.mxu0 0.0
  %3174 = vmatpush1.msra.mxu0 0.0
  %3175 = vmatprep.subr.mxu0 0.0
  %3176 = vmatpush1.msra.mxu0 0.0
  %3177 = vmatprep.subr.mxu0 0.0
  %3178 = vmatpush1.msra.mxu0 0.0
  %3179 = vmatprep.subr.mxu0 0.0
  %3180 = vmatpush1.msra.mxu0 0.0
  %3181 = vmatprep.subr.mxu0 0.0
  %3182 = vmatpush1.msra.mxu0 0.0
  %3183 = vmatprep.subr.mxu0 0.0
  %3184 = vmatpush1.msra.mxu0 0.0
  %3185 = vmatprep.subr.mxu0 0.0
  %3186 = vmatpush1.msra.mxu0 0.0
  %3187 = vmatprep.subr.mxu0 0.0
  %3188 = vmatpush1.msra.mxu0 0.0
  %3189 = vmatprep.subr.mxu0 0.0
  %3190 = vmatpush1.msra.mxu0 0.0
  %3191 = vmatprep.mubr.f32.mxu0 0.0
  %3192 = vmatmul.mubr.f32.gmra.mrb[0].mxu0 %v3125
  %v3193 = vpop.f32.mrb[0].mxu0
  %v3194 = vadd.f32 %v62, %v3193
  %v3195 = vpop.f32.mrb[0].mxu0
  %3196 = vdwg.mxu0
  %v3197 = vadd.f32 %v3124, %v3194
  %v3198 = vxor.u32 %v3197, 2147483648
  %v3199 = vmul.f32 %v3198, 1.442695
  %v3200 = vpow.pop %v3199
  %v3201 = vadd.f32 %v3200, 1.0
  %v3202 = vrcp.pop %v3201
  %v3203 = vmul.f32 1.0, %v3202
  %3205 = vrot.lane.b32.xlu0 %v3194, 64
  %v3206 = vpop.permute.xlu0 %3205
  %v3208 = vmul.f32 %v3203, %v3206
  %3210 = vrot.lane.b32.xlu0 %v3208, 64
  %v3211 = vpop.permute.xlu0 %3210
  %v3213 = vadd.f32 %v3124, %v3211
  %v3214 = vtanh.pop %v3213
  %v3215 = vsub.f32 1.0, %v3203
  %3217 = vrot.lane.b32.xlu0 %v3214, 96
  %v3218 = vpop.permute.xlu0 %3217
  %v3220 = vmul.f32 %v3215, %v3218
  %v3221 = vmul.f32 %v3203, %v3019
  %v3222 = vadd.f32 %v3220, %v3221
  %3224 = vrot.lane.b32.xlu0 %v3222, 96
  %v3225 = vpop.permute.xlu0 %3224
  %v3227 = vsel %vm64, %v3225, %v3122
  %v3229 = vsel %vm182, %v3227, 0
  %3231 = vmatprep.subr.mxu0 0.0
  %3232 = vmatpush1.msra.mxu0 %v33
  %3233 = vmatprep.subr.mxu0 0.0
  %3234 = vmatpush1.msra.mxu0 %v34
  %3235 = vmatprep.subr.mxu0 0.0
  %3236 = vmatpush1.msra.mxu0 %v35
  %3237 = vmatprep.subr.mxu0 0.0
  %3238 = vmatpush1.msra.mxu0 %v36
  %3239 = vmatprep.subr.mxu0 0.0
  %3240 = vmatpush1.msra.mxu0 %v37
  %3241 = vmatprep.subr.mxu0 0.0
  %3242 = vmatpush1.msra.mxu0 %v38
  %3243 = vmatprep.subr.mxu0 0.0
  %3244 = vmatpush1.msra.mxu0 %v39
  %3245 = vmatprep.subr.mxu0 0.0
  %3246 = vmatpush1.msra.mxu0 %v40
  %3247 = vmatprep.subr.mxu0 0.0
  %3248 = vmatpush1.msra.mxu0 0.0
  %3249 = vmatprep.subr.mxu0 0.0
  %3250 = vmatpush1.msra.mxu0 0.0
  %3251 = vmatprep.subr.mxu0 0.0
  %3252 = vmatpush1.msra.mxu0 0.0
  %3253 = vmatprep.subr.mxu0 0.0
  %3254 = vmatpush1.msra.mxu0 0.0
  %3255 = vmatprep.subr.mxu0 0.0
  %3256 = vmatpush1.msra.mxu0 0.0
  %3257 = vmatprep.subr.mxu0 0.0
  %3258 = vmatpush1.msra.mxu0 0.0
  %3259 = vmatprep.subr.mxu0 0.0
  %3260 = vmatpush1.msra.mxu0 0.0
  %3261 = vmatprep.subr.mxu0 0.0
  %3262 = vmatpush1.msra.mxu0 0.0
  %3263 = vmatprep.subr.mxu0 0.0
  %3264 = vmatpush1.msra.mxu0 0.0
  %3265 = vmatprep.subr.mxu0 0.0
  %3266 = vmatpush1.msra.mxu0 0.0
  %3267 = vmatprep.subr.mxu0 0.0
  %3268 = vmatpush1.msra.mxu0 0.0
  %3269 = vmatprep.subr.mxu0 0.0
  %3270 = vmatpush1.msra.mxu0 0.0
  %3271 = vmatprep.subr.mxu0 0.0
  %3272 = vmatpush1.msra.mxu0 0.0
  %3273 = vmatprep.subr.mxu0 0.0
  %3274 = vmatpush1.msra.mxu0 0.0
  %3275 = vmatprep.subr.mxu0 0.0
  %3276 = vmatpush1.msra.mxu0 0.0
  %3277 = vmatprep.subr.mxu0 0.0
  %3278 = vmatpush1.msra.mxu0 0.0
  %3279 = vmatprep.subr.mxu0 0.0
  %3280 = vmatpush1.msra.mxu0 0.0
  %3281 = vmatprep.subr.mxu0 0.0
  %3282 = vmatpush1.msra.mxu0 0.0
  %3283 = vmatprep.subr.mxu0 0.0
  %3284 = vmatpush1.msra.mxu0 0.0
  %3285 = vmatprep.subr.mxu0 0.0
  %3286 = vmatpush1.msra.mxu0 0.0
  %3287 = vmatprep.subr.mxu0 0.0
  %3288 = vmatpush1.msra.mxu0 0.0
  %3289 = vmatprep.subr.mxu0 0.0
  %3290 = vmatpush1.msra.mxu0 0.0
  %3291 = vmatprep.subr.mxu0 0.0
  %3292 = vmatpush1.msra.mxu0 0.0
  %3293 = vmatprep.subr.mxu0 0.0
  %3294 = vmatpush1.msra.mxu0 0.0
  %3295 = vmatprep.mubr.f32.mxu0 0.0
  %3296 = vmatmul.mubr.f32.gmra.mrb[0].mxu0 %v3229
  %v3297 = vpop.f32.mrb[0].mxu0
  %v3298 = vadd.f32 %v180, %v3297
  %v3299 = vpop.f32.mrb[0].mxu0
  %3300 = vdwg.mxu0
  %v3301 = vxor.u32 %v3298, 2147483648
  %v3302 = vmul.f32 %v3301, 1.442695
  %v3303 = vpow.pop %v3302
  %v3304 = vadd.f32 %v3303, 1.0
  %v3305 = vrcp.pop %v3304
  %v3306 = vmul.f32 1.0, %v3305
  %3308 = vrot.lane.b32.xlu0 %v3298, 32
  %v3309 = vpop.permute.xlu0 %3308
  %v3311 = vmul.f32 %v3306, %v3309
  %3313 = vrot.lane.b32.xlu0 %v3311, 64
  %v3314 = vpop.permute.xlu0 %3313
  %v3316 = vadd.f32 %v3298, %v3314
  %v3317 = vtanh.pop %v3316
  %v3318 = vsub.f32 1.0, %v3306
  %3320 = vrot.lane.b32.xlu0 %v3317, 96
  %v3321 = vpop.permute.xlu0 %3320
  %v3323 = vmul.f32 %v3318, %v3321
  %v3324 = vmul.f32 %v3306, %v3122
  %v3325 = vadd.f32 %v3323, %v3324
  %s3326 = scalar_lea.vmem %s0, 128
  %v3327 = vld [vmem:[%s3326] sm:$0xff]
  %v3328 = vsel %vm64, %v3225, 0
  %3330 = vmatprep.subr.mxu0 0.0
  %3331 = vmatpush1.msra.mxu0 %v28
  %3332 = vmatprep.subr.mxu0 0.0
  %3333 = vmatpush1.msra.mxu0 %v29
  %3334 = vmatprep.subr.mxu0 0.0
  %3335 = vmatpush1.msra.mxu0 %v30
  %3336 = vmatprep.subr.mxu0 0.0
  %3337 = vmatpush1.msra.mxu0 %v31
  %3338 = vmatprep.subr.mxu0 0.0
  %3339 = vmatpush1.msra.mxu0 0.0
  %3340 = vmatprep.subr.mxu0 0.0
  %3341 = vmatpush1.msra.mxu0 0.0
  %3342 = vmatprep.subr.mxu0 0.0
  %3343 = vmatpush1.msra.mxu0 0.0
  %3344 = vmatprep.subr.mxu0 0.0
  %3345 = vmatpush1.msra.mxu0 0.0
  %3346 = vmatprep.subr.mxu0 0.0
  %3347 = vmatpush1.msra.mxu0 0.0
  %3348 = vmatprep.subr.mxu0 0.0
  %3349 = vmatpush1.msra.mxu0 0.0
  %3350 = vmatprep.subr.mxu0 0.0
  %3351 = vmatpush1.msra.mxu0 0.0
  %3352 = vmatprep.subr.mxu0 0.0
  %3353 = vmatpush1.msra.mxu0 0.0
  %3354 = vmatprep.subr.mxu0 0.0
  %3355 = vmatpush1.msra.mxu0 0.0
  %3356 = vmatprep.subr.mxu0 0.0
  %3357 = vmatpush1.msra.mxu0 0.0
  %3358 = vmatprep.subr.mxu0 0.0
  %3359 = vmatpush1.msra.mxu0 0.0
  %3360 = vmatprep.subr.mxu0 0.0
  %3361 = vmatpush1.msra.mxu0 0.0
  %3362 = vmatprep.subr.mxu0 0.0
  %3363 = vmatpush1.msra.mxu0 0.0
  %3364 = vmatprep.subr.mxu0 0.0
  %3365 = vmatpush1.msra.mxu0 0.0
  %3366 = vmatprep.subr.mxu0 0.0
  %3367 = vmatpush1.msra.mxu0 0.0
  %3368 = vmatprep.subr.mxu0 0.0
  %3369 = vmatpush1.msra.mxu0 0.0
  %3370 = vmatprep.subr.mxu0 0.0
  %3371 = vmatpush1.msra.mxu0 0.0
  %3372 = vmatprep.subr.mxu0 0.0
  %3373 = vmatpush1.msra.mxu0 0.0
  %3374 = vmatprep.subr.mxu0 0.0
  %3375 = vmatpush1.msra.mxu0 0.0
  %3376 = vmatprep.subr.mxu0 0.0
  %3377 = vmatpush1.msra.mxu0 0.0
  %3378 = vmatprep.subr.mxu0 0.0
  %3379 = vmatpush1.msra.mxu0 0.0
  %3380 = vmatprep.subr.mxu0 0.0
  %3381 = vmatpush1.msra.mxu0 0.0
  %3382 = vmatprep.subr.mxu0 0.0
  %3383 = vmatpush1.msra.mxu0 0.0
  %3384 = vmatprep.subr.mxu0 0.0
  %3385 = vmatpush1.msra.mxu0 0.0
  %3386 = vmatprep.subr.mxu0 0.0
  %3387 = vmatpush1.msra.mxu0 0.0
  %3388 = vmatprep.subr.mxu0 0.0
  %3389 = vmatpush1.msra.mxu0 0.0
  %3390 = vmatprep.subr.mxu0 0.0
  %3391 = vmatpush1.msra.mxu0 0.0
  %3392 = vmatprep.subr.mxu0 0.0
  %3393 = vmatpush1.msra.mxu0 0.0
  %3394 = vmatprep.mubr.f32.mxu0 0.0
  %3395 = vmatmul.mubr.f32.gmra.mrb[0].mxu0 %v3328
  %v3396 = vpop.f32.mrb[0].mxu0
  %v3397 = vadd.f32 %v62, %v3396
  %v3398 = vpop.f32.mrb[0].mxu0
  %3399 = vdwg.mxu0
  %v3400 = vadd.f32 %v3327, %v3397
  %v3401 = vxor.u32 %v3400, 2147483648
  %v3402 = vmul.f32 %v3401, 1.442695
  %v3403 = vpow.pop %v3402
  %v3404 = vadd.f32 %v3403, 1.0
  %v3405 = vrcp.pop %v3404
  %v3406 = vmul.f32 1.0, %v3405
  %3408 = vrot.lane.b32.xlu0 %v3397, 64
  %v3409 = vpop.permute.xlu0 %3408
  %v3411 = vmul.f32 %v3406, %v3409
  %3413 = vrot.lane.b32.xlu0 %v3411, 64
  %v3414 = vpop.permute.xlu0 %3413
  %v3416 = vadd.f32 %v3327, %v3414
  %v3417 = vtanh.pop %v3416
  %v3418 = vsub.f32 1.0, %v3406
  %3420 = vrot.lane.b32.xlu0 %v3417, 96
  %v3421 = vpop.permute.xlu0 %3420
  %v3423 = vmul.f32 %v3418, %v3421
  %v3424 = vmul.f32 %v3406, %v3222
  %v3425 = vadd.f32 %v3423, %v3424
  %3427 = vrot.lane.b32.xlu0 %v3425, 96
  %v3428 = vpop.permute.xlu0 %3427
  %v3430 = vsel %vm64, %v3428, %v3325
  %v3432 = vsel %vm182, %v3430, 0
  %3434 = vmatprep.subr.mxu0 0.0
  %3435 = vmatpush1.msra.mxu0 %v33
  %3436 = vmatprep.subr.mxu0 0.0
  %3437 = vmatpush1.msra.mxu0 %v34
  %3438 = vmatprep.subr.mxu0 0.0
  %3439 = vmatpush1.msra.mxu0 %v35
  %3440 = vmatprep.subr.mxu0 0.0
  %3441 = vmatpush1.msra.mxu0 %v36
  %3442 = vmatprep.subr.mxu0 0.0
  %3443 = vmatpush1.msra.mxu0 %v37
  %3444 = vmatprep.subr.mxu0 0.0
  %3445 = vmatpush1.msra.mxu0 %v38
  %3446 = vmatprep.subr.mxu0 0.0
  %3447 = vmatpush1.msra.mxu0 %v39
  %3448 = vmatprep.subr.mxu0 0.0
  %3449 = vmatpush1.msra.mxu0 %v40
  %3450 = vmatprep.subr.mxu0 0.0
  %3451 = vmatpush1.msra.mxu0 0.0
  %3452 = vmatprep.subr.mxu0 0.0
  %3453 = vmatpush1.msra.mxu0 0.0
  %3454 = vmatprep.subr.mxu0 0.0
  %3455 = vmatpush1.msra.mxu0 0.0
  %3456 = vmatprep.subr.mxu0 0.0
  %3457 = vmatpush1.msra.mxu0 0.0
  %3458 = vmatprep.subr.mxu0 0.0
  %3459 = vmatpush1.msra.mxu0 0.0
  %3460 = vmatprep.subr.mxu0 0.0
  %3461 = vmatpush1.msra.mxu0 0.0
  %3462 = vmatprep.subr.mxu0 0.0
  %3463 = vmatpush1.msra.mxu0 0.0
  %3464 = vmatprep.subr.mxu0 0.0
  %3465 = vmatpush1.msra.mxu0 0.0
  %3466 = vmatprep.subr.mxu0 0.0
  %3467 = vmatpush1.msra.mxu0 0.0
  %3468 = vmatprep.subr.mxu0 0.0
  %3469 = vmatpush1.msra.mxu0 0.0
  %3470 = vmatprep.subr.mxu0 0.0
  %3471 = vmatpush1.msra.mxu0 0.0
  %3472 = vmatprep.subr.mxu0 0.0
  %3473 = vmatpush1.msra.mxu0 0.0
  %3474 = vmatprep.subr.mxu0 0.0
  %3475 = vmatpush1.msra.mxu0 0.0
  %3476 = vmatprep.subr.mxu0 0.0
  %3477 = vmatpush1.msra.mxu0 0.0
  %3478 = vmatprep.subr.mxu0 0.0
  %3479 = vmatpush1.msra.mxu0 0.0
  %3480 = vmatprep.subr.mxu0 0.0
  %3481 = vmatpush1.msra.mxu0 0.0
  %3482 = vmatprep.subr.mxu0 0.0
  %3483 = vmatpush1.msra.mxu0 0.0
  %3484 = vmatprep.subr.mxu0 0.0
  %3485 = vmatpush1.msra.mxu0 0.0
  %3486 = vmatprep.subr.mxu0 0.0
  %3487 = vmatpush1.msra.mxu0 0.0
  %3488 = vmatprep.subr.mxu0 0.0
  %3489 = vmatpush1.msra.mxu0 0.0
  %3490 = vmatprep.subr.mxu0 0.0
  %3491 = vmatpush1.msra.mxu0 0.0
  %3492 = vmatprep.subr.mxu0 0.0
  %3493 = vmatpush1.msra.mxu0 0.0
  %3494 = vmatprep.subr.mxu0 0.0
  %3495 = vmatpush1.msra.mxu0 0.0
  %3496 = vmatprep.subr.mxu0 0.0
  %3497 = vmatpush1.msra.mxu0 0.0
  %3498 = vmatprep.mubr.f32.mxu0 0.0
  %3499 = vmatmul.mubr.f32.gmra.mrb[0].mxu0 %v3432
  %v3500 = vpop.f32.mrb[0].mxu0
  %v3501 = vadd.f32 %v180, %v3500
  %v3502 = vpop.f32.mrb[0].mxu0
  %3503 = vdwg.mxu0
  %v3504 = vxor.u32 %v3501, 2147483648
  %v3505 = vmul.f32 %v3504, 1.442695
  %v3506 = vpow.pop %v3505
  %v3507 = vadd.f32 %v3506, 1.0
  %v3508 = vrcp.pop %v3507
  %v3509 = vmul.f32 1.0, %v3508
  %3511 = vrot.lane.b32.xlu0 %v3501, 32
  %v3512 = vpop.permute.xlu0 %3511
  %v3514 = vmul.f32 %v3509, %v3512
  %3516 = vrot.lane.b32.xlu0 %v3514, 64
  %v3517 = vpop.permute.xlu0 %3516
  %v3519 = vadd.f32 %v3501, %v3517
  %v3520 = vtanh.pop %v3519
  %v3521 = vsub.f32 1.0, %v3509
  %3523 = vrot.lane.b32.xlu0 %v3520, 96
  %v3524 = vpop.permute.xlu0 %3523
  %v3526 = vmul.f32 %v3521, %v3524
  %v3527 = vmul.f32 %v3509, %v3325
  %v3528 = vadd.f32 %v3526, %v3527
  %s3529 = scalar_lea.vmem %s0, 136
  %v3530 = vld [vmem:[%s3529] sm:$0xff]
  %v3531 = vsel %vm64, %v3428, 0
  %3533 = vmatprep.subr.mxu0 0.0
  %3534 = vmatpush1.msra.mxu0 %v28
  %3535 = vmatprep.subr.mxu0 0.0
  %3536 = vmatpush1.msra.mxu0 %v29
  %3537 = vmatprep.subr.mxu0 0.0
  %3538 = vmatpush1.msra.mxu0 %v30
  %3539 = vmatprep.subr.mxu0 0.0
  %3540 = vmatpush1.msra.mxu0 %v31
  %3541 = vmatprep.subr.mxu0 0.0
  %3542 = vmatpush1.msra.mxu0 0.0
  %3543 = vmatprep.subr.mxu0 0.0
  %3544 = vmatpush1.msra.mxu0 0.0
  %3545 = vmatprep.subr.mxu0 0.0
  %3546 = vmatpush1.msra.mxu0 0.0
  %3547 = vmatprep.subr.mxu0 0.0
  %3548 = vmatpush1.msra.mxu0 0.0
  %3549 = vmatprep.subr.mxu0 0.0
  %3550 = vmatpush1.msra.mxu0 0.0
  %3551 = vmatprep.subr.mxu0 0.0
  %3552 = vmatpush1.msra.mxu0 0.0
  %3553 = vmatprep.subr.mxu0 0.0
  %3554 = vmatpush1.msra.mxu0 0.0
  %3555 = vmatprep.subr.mxu0 0.0
  %3556 = vmatpush1.msra.mxu0 0.0
  %3557 = vmatprep.subr.mxu0 0.0
  %3558 = vmatpush1.msra.mxu0 0.0
  %3559 = vmatprep.subr.mxu0 0.0
  %3560 = vmatpush1.msra.mxu0 0.0
  %3561 = vmatprep.subr.mxu0 0.0
  %3562 = vmatpush1.msra.mxu0 0.0
  %3563 = vmatprep.subr.mxu0 0.0
  %3564 = vmatpush1.msra.mxu0 0.0
  %3565 = vmatprep.subr.mxu0 0.0
  %3566 = vmatpush1.msra.mxu0 0.0
  %3567 = vmatprep.subr.mxu0 0.0
  %3568 = vmatpush1.msra.mxu0 0.0
  %3569 = vmatprep.subr.mxu0 0.0
  %3570 = vmatpush1.msra.mxu0 0.0
  %3571 = vmatprep.subr.mxu0 0.0
  %3572 = vmatpush1.msra.mxu0 0.0
  %3573 = vmatprep.subr.mxu0 0.0
  %3574 = vmatpush1.msra.mxu0 0.0
  %3575 = vmatprep.subr.mxu0 0.0
  %3576 = vmatpush1.msra.mxu0 0.0
  %3577 = vmatprep.subr.mxu0 0.0
  %3578 = vmatpush1.msra.mxu0 0.0
  %3579 = vmatprep.subr.mxu0 0.0
  %3580 = vmatpush1.msra.mxu0 0.0
  %3581 = vmatprep.subr.mxu0 0.0
  %3582 = vmatpush1.msra.mxu0 0.0
  %3583 = vmatprep.subr.mxu0 0.0
  %3584 = vmatpush1.msra.mxu0 0.0
  %3585 = vmatprep.subr.mxu0 0.0
  %3586 = vmatpush1.msra.mxu0 0.0
  %3587 = vmatprep.subr.mxu0 0.0
  %3588 = vmatpush1.msra.mxu0 0.0
  %3589 = vmatprep.subr.mxu0 0.0
  %3590 = vmatpush1.msra.mxu0 0.0
  %3591 = vmatprep.subr.mxu0 0.0
  %3592 = vmatpush1.msra.mxu0 0.0
  %3593 = vmatprep.subr.mxu0 0.0
  %3594 = vmatpush1.msra.mxu0 0.0
  %3595 = vmatprep.subr.mxu0 0.0
  %3596 = vmatpush1.msra.mxu0 0.0
  %3597 = vmatprep.mubr.f32.mxu0 0.0
  %3598 = vmatmul.mubr.f32.gmra.mrb[0].mxu0 %v3531
  %v3599 = vpop.f32.mrb[0].mxu0
  %v3600 = vadd.f32 %v62, %v3599
  %v3601 = vpop.f32.mrb[0].mxu0
  %3602 = vdwg.mxu0
  %v3603 = vadd.f32 %v3530, %v3600
  %v3604 = vxor.u32 %v3603, 2147483648
  %v3605 = vmul.f32 %v3604, 1.442695
  %v3606 = vpow.pop %v3605
  %v3607 = vadd.f32 %v3606, 1.0
  %v3608 = vrcp.pop %v3607
  %v3609 = vmul.f32 1.0, %v3608
  %3611 = vrot.lane.b32.xlu0 %v3600, 64
  %v3612 = vpop.permute.xlu0 %3611
  %v3614 = vmul.f32 %v3609, %v3612
  %3616 = vrot.lane.b32.xlu0 %v3614, 64
  %v3617 = vpop.permute.xlu0 %3616
  %v3619 = vadd.f32 %v3530, %v3617
  %v3620 = vtanh.pop %v3619
  %v3621 = vsub.f32 1.0, %v3609
  %3623 = vrot.lane.b32.xlu0 %v3620, 96
  %v3624 = vpop.permute.xlu0 %3623
  %v3626 = vmul.f32 %v3621, %v3624
  %v3627 = vmul.f32 %v3609, %v3425
  %v3628 = vadd.f32 %v3626, %v3627
  %3630 = vrot.lane.b32.xlu0 %v3628, 96
  %v3631 = vpop.permute.xlu0 %3630
  %v3633 = vsel %vm64, %v3631, %v3528
  %v3635 = vsel %vm182, %v3633, 0
  %3637 = vmatprep.subr.mxu0 0.0
  %3638 = vmatpush1.msra.mxu0 %v33
  %3639 = vmatprep.subr.mxu0 0.0
  %3640 = vmatpush1.msra.mxu0 %v34
  %3641 = vmatprep.subr.mxu0 0.0
  %3642 = vmatpush1.msra.mxu0 %v35
  %3643 = vmatprep.subr.mxu0 0.0
  %3644 = vmatpush1.msra.mxu0 %v36
  %3645 = vmatprep.subr.mxu0 0.0
  %3646 = vmatpush1.msra.mxu0 %v37
  %3647 = vmatprep.subr.mxu0 0.0
  %3648 = vmatpush1.msra.mxu0 %v38
  %3649 = vmatprep.subr.mxu0 0.0
  %3650 = vmatpush1.msra.mxu0 %v39
  %3651 = vmatprep.subr.mxu0 0.0
  %3652 = vmatpush1.msra.mxu0 %v40
  %3653 = vmatprep.subr.mxu0 0.0
  %3654 = vmatpush1.msra.mxu0 0.0
  %3655 = vmatprep.subr.mxu0 0.0
  %3656 = vmatpush1.msra.mxu0 0.0
  %3657 = vmatprep.subr.mxu0 0.0
  %3658 = vmatpush1.msra.mxu0 0.0
  %3659 = vmatprep.subr.mxu0 0.0
  %3660 = vmatpush1.msra.mxu0 0.0
  %3661 = vmatprep.subr.mxu0 0.0
  %3662 = vmatpush1.msra.mxu0 0.0
  %3663 = vmatprep.subr.mxu0 0.0
  %3664 = vmatpush1.msra.mxu0 0.0
  %3665 = vmatprep.subr.mxu0 0.0
  %3666 = vmatpush1.msra.mxu0 0.0
  %3667 = vmatprep.subr.mxu0 0.0
  %3668 = vmatpush1.msra.mxu0 0.0
  %3669 = vmatprep.subr.mxu0 0.0
  %3670 = vmatpush1.msra.mxu0 0.0
  %3671 = vmatprep.subr.mxu0 0.0
  %3672 = vmatpush1.msra.mxu0 0.0
  %3673 = vmatprep.subr.mxu0 0.0
  %3674 = vmatpush1.msra.mxu0 0.0
  %3675 = vmatprep.subr.mxu0 0.0
  %3676 = vmatpush1.msra.mxu0 0.0
  %3677 = vmatprep.subr.mxu0 0.0
  %3678 = vmatpush1.msra.mxu0 0.0
  %3679 = vmatprep.subr.mxu0 0.0
  %3680 = vmatpush1.msra.mxu0 0.0
  %3681 = vmatprep.subr.mxu0 0.0
  %3682 = vmatpush1.msra.mxu0 0.0
  %3683 = vmatprep.subr.mxu0 0.0
  %3684 = vmatpush1.msra.mxu0 0.0
  %3685 = vmatprep.subr.mxu0 0.0
  %3686 = vmatpush1.msra.mxu0 0.0
  %3687 = vmatprep.subr.mxu0 0.0
  %3688 = vmatpush1.msra.mxu0 0.0
  %3689 = vmatprep.subr.mxu0 0.0
  %3690 = vmatpush1.msra.mxu0 0.0
  %3691 = vmatprep.subr.mxu0 0.0
  %3692 = vmatpush1.msra.mxu0 0.0
  %3693 = vmatprep.subr.mxu0 0.0
  %3694 = vmatpush1.msra.mxu0 0.0
  %3695 = vmatprep.subr.mxu0 0.0
  %3696 = vmatpush1.msra.mxu0 0.0
  %3697 = vmatprep.subr.mxu0 0.0
  %3698 = vmatpush1.msra.mxu0 0.0
  %3699 = vmatprep.subr.mxu0 0.0
  %3700 = vmatpush1.msra.mxu0 0.0
  %3701 = vmatprep.mubr.f32.mxu0 0.0
  %3702 = vmatmul.mubr.f32.gmra.mrb[0].mxu0 %v3635
  %v3703 = vpop.f32.mrb[0].mxu0
  %v3704 = vadd.f32 %v180, %v3703
  %v3705 = vpop.f32.mrb[0].mxu0
  %3706 = vdwg.mxu0
  %v3707 = vxor.u32 %v3704, 2147483648
  %v3708 = vmul.f32 %v3707, 1.442695
  %v3709 = vpow.pop %v3708
  %v3710 = vadd.f32 %v3709, 1.0
  %v3711 = vrcp.pop %v3710
  %v3712 = vmul.f32 1.0, %v3711
  %3714 = vrot.lane.b32.xlu0 %v3704, 32
  %v3715 = vpop.permute.xlu0 %3714
  %v3717 = vmul.f32 %v3712, %v3715
  %3719 = vrot.lane.b32.xlu0 %v3717, 64
  %v3720 = vpop.permute.xlu0 %3719
  %v3722 = vadd.f32 %v3704, %v3720
  %v3723 = vtanh.pop %v3722
  %v3724 = vsub.f32 1.0, %v3712
  %3726 = vrot.lane.b32.xlu0 %v3723, 96
  %v3727 = vpop.permute.xlu0 %3726
  %v3729 = vmul.f32 %v3724, %v3727
  %v3730 = vmul.f32 %v3712, %v3528
  %v3731 = vadd.f32 %v3729, %v3730
  %s3732 = scalar_lea.vmem %s0, 144
  %v3733 = vld [vmem:[%s3732] sm:$0xff]
  %v3734 = vsel %vm64, %v3631, 0
  %3736 = vmatprep.subr.mxu0 0.0
  %3737 = vmatpush1.msra.mxu0 %v28
  %3738 = vmatprep.subr.mxu0 0.0
  %3739 = vmatpush1.msra.mxu0 %v29
  %3740 = vmatprep.subr.mxu0 0.0
  %3741 = vmatpush1.msra.mxu0 %v30
  %3742 = vmatprep.subr.mxu0 0.0
  %3743 = vmatpush1.msra.mxu0 %v31
  %3744 = vmatprep.subr.mxu0 0.0
  %3745 = vmatpush1.msra.mxu0 0.0
  %3746 = vmatprep.subr.mxu0 0.0
  %3747 = vmatpush1.msra.mxu0 0.0
  %3748 = vmatprep.subr.mxu0 0.0
  %3749 = vmatpush1.msra.mxu0 0.0
  %3750 = vmatprep.subr.mxu0 0.0
  %3751 = vmatpush1.msra.mxu0 0.0
  %3752 = vmatprep.subr.mxu0 0.0
  %3753 = vmatpush1.msra.mxu0 0.0
  %3754 = vmatprep.subr.mxu0 0.0
  %3755 = vmatpush1.msra.mxu0 0.0
  %3756 = vmatprep.subr.mxu0 0.0
  %3757 = vmatpush1.msra.mxu0 0.0
  %3758 = vmatprep.subr.mxu0 0.0
  %3759 = vmatpush1.msra.mxu0 0.0
  %3760 = vmatprep.subr.mxu0 0.0
  %3761 = vmatpush1.msra.mxu0 0.0
  %3762 = vmatprep.subr.mxu0 0.0
  %3763 = vmatpush1.msra.mxu0 0.0
  %3764 = vmatprep.subr.mxu0 0.0
  %3765 = vmatpush1.msra.mxu0 0.0
  %3766 = vmatprep.subr.mxu0 0.0
  %3767 = vmatpush1.msra.mxu0 0.0
  %3768 = vmatprep.subr.mxu0 0.0
  %3769 = vmatpush1.msra.mxu0 0.0
  %3770 = vmatprep.subr.mxu0 0.0
  %3771 = vmatpush1.msra.mxu0 0.0
  %3772 = vmatprep.subr.mxu0 0.0
  %3773 = vmatpush1.msra.mxu0 0.0
  %3774 = vmatprep.subr.mxu0 0.0
  %3775 = vmatpush1.msra.mxu0 0.0
  %3776 = vmatprep.subr.mxu0 0.0
  %3777 = vmatpush1.msra.mxu0 0.0
  %3778 = vmatprep.subr.mxu0 0.0
  %3779 = vmatpush1.msra.mxu0 0.0
  %3780 = vmatprep.subr.mxu0 0.0
  %3781 = vmatpush1.msra.mxu0 0.0
  %3782 = vmatprep.subr.mxu0 0.0
  %3783 = vmatpush1.msra.mxu0 0.0
  %3784 = vmatprep.subr.mxu0 0.0
  %3785 = vmatpush1.msra.mxu0 0.0
  %3786 = vmatprep.subr.mxu0 0.0
  %3787 = vmatpush1.msra.mxu0 0.0
  %3788 = vmatprep.subr.mxu0 0.0
  %3789 = vmatpush1.msra.mxu0 0.0
  %3790 = vmatprep.subr.mxu0 0.0
  %3791 = vmatpush1.msra.mxu0 0.0
  %3792 = vmatprep.subr.mxu0 0.0
  %3793 = vmatpush1.msra.mxu0 0.0
  %3794 = vmatprep.subr.mxu0 0.0
  %3795 = vmatpush1.msra.mxu0 0.0
  %3796 = vmatprep.subr.mxu0 0.0
  %3797 = vmatpush1.msra.mxu0 0.0
  %3798 = vmatprep.subr.mxu0 0.0
  %3799 = vmatpush1.msra.mxu0 0.0
  %3800 = vmatprep.mubr.f32.mxu0 0.0
  %3801 = vmatmul.mubr.f32.gmra.mrb[0].mxu0 %v3734
  %v3802 = vpop.f32.mrb[0].mxu0
  %v3803 = vadd.f32 %v62, %v3802
  %v3804 = vpop.f32.mrb[0].mxu0
  %3805 = vdwg.mxu0
  %v3806 = vadd.f32 %v3733, %v3803
  %v3807 = vxor.u32 %v3806, 2147483648
  %v3808 = vmul.f32 %v3807, 1.442695
  %v3809 = vpow.pop %v3808
  %v3810 = vadd.f32 %v3809, 1.0
  %v3811 = vrcp.pop %v3810
  %v3812 = vmul.f32 1.0, %v3811
  %3814 = vrot.lane.b32.xlu0 %v3803, 64
  %v3815 = vpop.permute.xlu0 %3814
  %v3817 = vmul.f32 %v3812, %v3815
  %3819 = vrot.lane.b32.xlu0 %v3817, 64
  %v3820 = vpop.permute.xlu0 %3819
  %v3822 = vadd.f32 %v3733, %v3820
  %v3823 = vtanh.pop %v3822
  %v3824 = vsub.f32 1.0, %v3812
  %3826 = vrot.lane.b32.xlu0 %v3823, 96
  %v3827 = vpop.permute.xlu0 %3826
  %v3829 = vmul.f32 %v3824, %v3827
  %v3830 = vmul.f32 %v3812, %v3628
  %v3831 = vadd.f32 %v3829, %v3830
  %3833 = vrot.lane.b32.xlu0 %v3831, 96
  %v3834 = vpop.permute.xlu0 %3833
  %v3836 = vsel %vm64, %v3834, %v3731
  %v3838 = vsel %vm182, %v3836, 0
  %3840 = vmatprep.subr.mxu0 0.0
  %3841 = vmatpush1.msra.mxu0 %v33
  %3842 = vmatprep.subr.mxu0 0.0
  %3843 = vmatpush1.msra.mxu0 %v34
  %3844 = vmatprep.subr.mxu0 0.0
  %3845 = vmatpush1.msra.mxu0 %v35
  %3846 = vmatprep.subr.mxu0 0.0
  %3847 = vmatpush1.msra.mxu0 %v36
  %3848 = vmatprep.subr.mxu0 0.0
  %3849 = vmatpush1.msra.mxu0 %v37
  %3850 = vmatprep.subr.mxu0 0.0
  %3851 = vmatpush1.msra.mxu0 %v38
  %3852 = vmatprep.subr.mxu0 0.0
  %3853 = vmatpush1.msra.mxu0 %v39
  %3854 = vmatprep.subr.mxu0 0.0
  %3855 = vmatpush1.msra.mxu0 %v40
  %3856 = vmatprep.subr.mxu0 0.0
  %3857 = vmatpush1.msra.mxu0 0.0
  %3858 = vmatprep.subr.mxu0 0.0
  %3859 = vmatpush1.msra.mxu0 0.0
  %3860 = vmatprep.subr.mxu0 0.0
  %3861 = vmatpush1.msra.mxu0 0.0
  %3862 = vmatprep.subr.mxu0 0.0
  %3863 = vmatpush1.msra.mxu0 0.0
  %3864 = vmatprep.subr.mxu0 0.0
  %3865 = vmatpush1.msra.mxu0 0.0
  %3866 = vmatprep.subr.mxu0 0.0
  %3867 = vmatpush1.msra.mxu0 0.0
  %3868 = vmatprep.subr.mxu0 0.0
  %3869 = vmatpush1.msra.mxu0 0.0
  %3870 = vmatprep.subr.mxu0 0.0
  %3871 = vmatpush1.msra.mxu0 0.0
  %3872 = vmatprep.subr.mxu0 0.0
  %3873 = vmatpush1.msra.mxu0 0.0
  %3874 = vmatprep.subr.mxu0 0.0
  %3875 = vmatpush1.msra.mxu0 0.0
  %3876 = vmatprep.subr.mxu0 0.0
  %3877 = vmatpush1.msra.mxu0 0.0
  %3878 = vmatprep.subr.mxu0 0.0
  %3879 = vmatpush1.msra.mxu0 0.0
  %3880 = vmatprep.subr.mxu0 0.0
  %3881 = vmatpush1.msra.mxu0 0.0
  %3882 = vmatprep.subr.mxu0 0.0
  %3883 = vmatpush1.msra.mxu0 0.0
  %3884 = vmatprep.subr.mxu0 0.0
  %3885 = vmatpush1.msra.mxu0 0.0
  %3886 = vmatprep.subr.mxu0 0.0
  %3887 = vmatpush1.msra.mxu0 0.0
  %3888 = vmatprep.subr.mxu0 0.0
  %3889 = vmatpush1.msra.mxu0 0.0
  %3890 = vmatprep.subr.mxu0 0.0
  %3891 = vmatpush1.msra.mxu0 0.0
  %3892 = vmatprep.subr.mxu0 0.0
  %3893 = vmatpush1.msra.mxu0 0.0
  %3894 = vmatprep.subr.mxu0 0.0
  %3895 = vmatpush1.msra.mxu0 0.0
  %3896 = vmatprep.subr.mxu0 0.0
  %3897 = vmatpush1.msra.mxu0 0.0
  %3898 = vmatprep.subr.mxu0 0.0
  %3899 = vmatpush1.msra.mxu0 0.0
  %3900 = vmatprep.subr.mxu0 0.0
  %3901 = vmatpush1.msra.mxu0 0.0
  %3902 = vmatprep.subr.mxu0 0.0
  %3903 = vmatpush1.msra.mxu0 0.0
  %3904 = vmatprep.mubr.f32.mxu0 0.0
  %3905 = vmatmul.mubr.f32.gmra.mrb[0].mxu0 %v3838
  %v3906 = vpop.f32.mrb[0].mxu0
  %v3907 = vadd.f32 %v180, %v3906
  %v3908 = vpop.f32.mrb[0].mxu0
  %3909 = vdwg.mxu0
  %v3910 = vxor.u32 %v3907, 2147483648
  %v3911 = vmul.f32 %v3910, 1.442695
  %v3912 = vpow.pop %v3911
  %v3913 = vadd.f32 %v3912, 1.0
  %v3914 = vrcp.pop %v3913
  %v3915 = vmul.f32 1.0, %v3914
  %3917 = vrot.lane.b32.xlu0 %v3907, 32
  %v3918 = vpop.permute.xlu0 %3917
  %v3920 = vmul.f32 %v3915, %v3918
  %3922 = vrot.lane.b32.xlu0 %v3920, 64
  %v3923 = vpop.permute.xlu0 %3922
  %v3925 = vadd.f32 %v3907, %v3923
  %v3926 = vtanh.pop %v3925
  %v3927 = vsub.f32 1.0, %v3915
  %3929 = vrot.lane.b32.xlu0 %v3926, 96
  %v3930 = vpop.permute.xlu0 %3929
  %v3932 = vmul.f32 %v3927, %v3930
  %v3933 = vmul.f32 %v3915, %v3731
  %v3934 = vadd.f32 %v3932, %v3933
  %s3935 = scalar_lea.vmem %s0, 152
  %v3936 = vld [vmem:[%s3935] sm:$0xff]
  %v3937 = vsel %vm64, %v3834, 0
  %3939 = vmatprep.subr.mxu0 0.0
  %3940 = vmatpush1.msra.mxu0 %v28
  %3941 = vmatprep.subr.mxu0 0.0
  %3942 = vmatpush1.msra.mxu0 %v29
  %3943 = vmatprep.subr.mxu0 0.0
  %3944 = vmatpush1.msra.mxu0 %v30
  %3945 = vmatprep.subr.mxu0 0.0
  %3946 = vmatpush1.msra.mxu0 %v31
  %3947 = vmatprep.subr.mxu0 0.0
  %3948 = vmatpush1.msra.mxu0 0.0
  %3949 = vmatprep.subr.mxu0 0.0
  %3950 = vmatpush1.msra.mxu0 0.0
  %3951 = vmatprep.subr.mxu0 0.0
  %3952 = vmatpush1.msra.mxu0 0.0
  %3953 = vmatprep.subr.mxu0 0.0
  %3954 = vmatpush1.msra.mxu0 0.0
  %3955 = vmatprep.subr.mxu0 0.0
  %3956 = vmatpush1.msra.mxu0 0.0
  %3957 = vmatprep.subr.mxu0 0.0
  %3958 = vmatpush1.msra.mxu0 0.0
  %3959 = vmatprep.subr.mxu0 0.0
  %3960 = vmatpush1.msra.mxu0 0.0
  %3961 = vmatprep.subr.mxu0 0.0
  %3962 = vmatpush1.msra.mxu0 0.0
  %3963 = vmatprep.subr.mxu0 0.0
  %3964 = vmatpush1.msra.mxu0 0.0
  %3965 = vmatprep.subr.mxu0 0.0
  %3966 = vmatpush1.msra.mxu0 0.0
  %3967 = vmatprep.subr.mxu0 0.0
  %3968 = vmatpush1.msra.mxu0 0.0
  %3969 = vmatprep.subr.mxu0 0.0
  %3970 = vmatpush1.msra.mxu0 0.0
  %3971 = vmatprep.subr.mxu0 0.0
  %3972 = vmatpush1.msra.mxu0 0.0
  %3973 = vmatprep.subr.mxu0 0.0
  %3974 = vmatpush1.msra.mxu0 0.0
  %3975 = vmatprep.subr.mxu0 0.0
  %3976 = vmatpush1.msra.mxu0 0.0
  %3977 = vmatprep.subr.mxu0 0.0
  %3978 = vmatpush1.msra.mxu0 0.0
  %3979 = vmatprep.subr.mxu0 0.0
  %3980 = vmatpush1.msra.mxu0 0.0
  %3981 = vmatprep.subr.mxu0 0.0
  %3982 = vmatpush1.msra.mxu0 0.0
  %3983 = vmatprep.subr.mxu0 0.0
  %3984 = vmatpush1.msra.mxu0 0.0
  %3985 = vmatprep.subr.mxu0 0.0
  %3986 = vmatpush1.msra.mxu0 0.0
  %3987 = vmatprep.subr.mxu0 0.0
  %3988 = vmatpush1.msra.mxu0 0.0
  %3989 = vmatprep.subr.mxu0 0.0
  %3990 = vmatpush1.msra.mxu0 0.0
  %3991 = vmatprep.subr.mxu0 0.0
  %3992 = vmatpush1.msra.mxu0 0.0
  %3993 = vmatprep.subr.mxu0 0.0
  %3994 = vmatpush1.msra.mxu0 0.0
  %3995 = vmatprep.subr.mxu0 0.0
  %3996 = vmatpush1.msra.mxu0 0.0
  %3997 = vmatprep.subr.mxu0 0.0
  %3998 = vmatpush1.msra.mxu0 0.0
  %3999 = vmatprep.subr.mxu0 0.0
  %4000 = vmatpush1.msra.mxu0 0.0
  %4001 = vmatprep.subr.mxu0 0.0
  %4002 = vmatpush1.msra.mxu0 0.0
  %4003 = vmatprep.mubr.f32.mxu0 0.0
  %4004 = vmatmul.mubr.f32.gmra.mrb[0].mxu0 %v3937
  %v4005 = vpop.f32.mrb[0].mxu0
  %v4006 = vadd.f32 %v62, %v4005
  %v4007 = vpop.f32.mrb[0].mxu0
  %4008 = vdwg.mxu0
  %v4009 = vadd.f32 %v3936, %v4006
  %v4010 = vxor.u32 %v4009, 2147483648
  %v4011 = vmul.f32 %v4010, 1.442695
  %v4012 = vpow.pop %v4011
  %v4013 = vadd.f32 %v4012, 1.0
  %v4014 = vrcp.pop %v4013
  %v4015 = vmul.f32 1.0, %v4014
  %4017 = vrot.lane.b32.xlu0 %v4006, 64
  %v4018 = vpop.permute.xlu0 %4017
  %v4020 = vmul.f32 %v4015, %v4018
  %4022 = vrot.lane.b32.xlu0 %v4020, 64
  %v4023 = vpop.permute.xlu0 %4022
  %v4025 = vadd.f32 %v3936, %v4023
  %v4026 = vtanh.pop %v4025
  %v4027 = vsub.f32 1.0, %v4015
  %4029 = vrot.lane.b32.xlu0 %v4026, 96
  %v4030 = vpop.permute.xlu0 %4029
  %v4032 = vmul.f32 %v4027, %v4030
  %v4033 = vmul.f32 %v4015, %v3831
  %v4034 = vadd.f32 %v4032, %v4033
  %4036 = vrot.lane.b32.xlu0 %v4034, 96
  %v4037 = vpop.permute.xlu0 %4036
  %v4039 = vsel %vm64, %v4037, %v3934
  %v4041 = vsel %vm182, %v4039, 0
  %4043 = vmatprep.subr.mxu0 0.0
  %4044 = vmatpush1.msra.mxu0 %v33
  %4045 = vmatprep.subr.mxu0 0.0
  %4046 = vmatpush1.msra.mxu0 %v34
  %4047 = vmatprep.subr.mxu0 0.0
  %4048 = vmatpush1.msra.mxu0 %v35
  %4049 = vmatprep.subr.mxu0 0.0
  %4050 = vmatpush1.msra.mxu0 %v36
  %4051 = vmatprep.subr.mxu0 0.0
  %4052 = vmatpush1.msra.mxu0 %v37
  %4053 = vmatprep.subr.mxu0 0.0
  %4054 = vmatpush1.msra.mxu0 %v38
  %4055 = vmatprep.subr.mxu0 0.0
  %4056 = vmatpush1.msra.mxu0 %v39
  %4057 = vmatprep.subr.mxu0 0.0
  %4058 = vmatpush1.msra.mxu0 %v40
  %4059 = vmatprep.subr.mxu0 0.0
  %4060 = vmatpush1.msra.mxu0 0.0
  %4061 = vmatprep.subr.mxu0 0.0
  %4062 = vmatpush1.msra.mxu0 0.0
  %4063 = vmatprep.subr.mxu0 0.0
  %4064 = vmatpush1.msra.mxu0 0.0
  %4065 = vmatprep.subr.mxu0 0.0
  %4066 = vmatpush1.msra.mxu0 0.0
  %4067 = vmatprep.subr.mxu0 0.0
  %4068 = vmatpush1.msra.mxu0 0.0
  %4069 = vmatprep.subr.mxu0 0.0
  %4070 = vmatpush1.msra.mxu0 0.0
  %4071 = vmatprep.subr.mxu0 0.0
  %4072 = vmatpush1.msra.mxu0 0.0
  %4073 = vmatprep.subr.mxu0 0.0
  %4074 = vmatpush1.msra.mxu0 0.0
  %4075 = vmatprep.subr.mxu0 0.0
  %4076 = vmatpush1.msra.mxu0 0.0
  %4077 = vmatprep.subr.mxu0 0.0
  %4078 = vmatpush1.msra.mxu0 0.0
  %4079 = vmatprep.subr.mxu0 0.0
  %4080 = vmatpush1.msra.mxu0 0.0
  %4081 = vmatprep.subr.mxu0 0.0
  %4082 = vmatpush1.msra.mxu0 0.0
  %4083 = vmatprep.subr.mxu0 0.0
  %4084 = vmatpush1.msra.mxu0 0.0
  %4085 = vmatprep.subr.mxu0 0.0
  %4086 = vmatpush1.msra.mxu0 0.0
  %4087 = vmatprep.subr.mxu0 0.0
  %4088 = vmatpush1.msra.mxu0 0.0
  %4089 = vmatprep.subr.mxu0 0.0
  %4090 = vmatpush1.msra.mxu0 0.0
  %4091 = vmatprep.subr.mxu0 0.0
  %4092 = vmatpush1.msra.mxu0 0.0
  %4093 = vmatprep.subr.mxu0 0.0
  %4094 = vmatpush1.msra.mxu0 0.0
  %4095 = vmatprep.subr.mxu0 0.0
  %4096 = vmatpush1.msra.mxu0 0.0
  %4097 = vmatprep.subr.mxu0 0.0
  %4098 = vmatpush1.msra.mxu0 0.0
  %4099 = vmatprep.subr.mxu0 0.0
  %4100 = vmatpush1.msra.mxu0 0.0
  %4101 = vmatprep.subr.mxu0 0.0
  %4102 = vmatpush1.msra.mxu0 0.0
  %4103 = vmatprep.subr.mxu0 0.0
  %4104 = vmatpush1.msra.mxu0 0.0
  %4105 = vmatprep.subr.mxu0 0.0
  %4106 = vmatpush1.msra.mxu0 0.0
  %4107 = vmatprep.mubr.f32.mxu0 0.0
  %4108 = vmatmul.mubr.f32.gmra.mrb[0].mxu0 %v4041
  %v4109 = vpop.f32.mrb[0].mxu0
  %v4110 = vadd.f32 %v180, %v4109
  %v4111 = vpop.f32.mrb[0].mxu0
  %4112 = vdwg.mxu0
  %v4113 = vxor.u32 %v4110, 2147483648
  %v4114 = vmul.f32 %v4113, 1.442695
  %v4115 = vpow.pop %v4114
  %v4116 = vadd.f32 %v4115, 1.0
  %v4117 = vrcp.pop %v4116
  %v4118 = vmul.f32 1.0, %v4117
  %4120 = vrot.lane.b32.xlu0 %v4110, 32
  %v4121 = vpop.permute.xlu0 %4120
  %v4123 = vmul.f32 %v4118, %v4121
  %4125 = vrot.lane.b32.xlu0 %v4123, 64
  %v4126 = vpop.permute.xlu0 %4125
  %v4128 = vadd.f32 %v4110, %v4126
  %v4129 = vtanh.pop %v4128
  %v4130 = vsub.f32 1.0, %v4118
  %4132 = vrot.lane.b32.xlu0 %v4129, 96
  %v4133 = vpop.permute.xlu0 %4132
  %v4135 = vmul.f32 %v4130, %v4133
  %v4136 = vmul.f32 %v4118, %v3934
  %v4137 = vadd.f32 %v4135, %v4136
  %s4138 = scalar_lea.vmem %s0, 160
  %v4139 = vld [vmem:[%s4138] sm:$0xff]
  %v4140 = vsel %vm64, %v4037, 0
  %4142 = vmatprep.subr.mxu0 0.0
  %4143 = vmatpush1.msra.mxu0 %v28
  %4144 = vmatprep.subr.mxu0 0.0
  %4145 = vmatpush1.msra.mxu0 %v29
  %4146 = vmatprep.subr.mxu0 0.0
  %4147 = vmatpush1.msra.mxu0 %v30
  %4148 = vmatprep.subr.mxu0 0.0
  %4149 = vmatpush1.msra.mxu0 %v31
  %4150 = vmatprep.subr.mxu0 0.0
  %4151 = vmatpush1.msra.mxu0 0.0
  %4152 = vmatprep.subr.mxu0 0.0
  %4153 = vmatpush1.msra.mxu0 0.0
  %4154 = vmatprep.subr.mxu0 0.0
  %4155 = vmatpush1.msra.mxu0 0.0
  %4156 = vmatprep.subr.mxu0 0.0
  %4157 = vmatpush1.msra.mxu0 0.0
  %4158 = vmatprep.subr.mxu0 0.0
  %4159 = vmatpush1.msra.mxu0 0.0
  %4160 = vmatprep.subr.mxu0 0.0
  %4161 = vmatpush1.msra.mxu0 0.0
  %4162 = vmatprep.subr.mxu0 0.0
  %4163 = vmatpush1.msra.mxu0 0.0
  %4164 = vmatprep.subr.mxu0 0.0
  %4165 = vmatpush1.msra.mxu0 0.0
  %4166 = vmatprep.subr.mxu0 0.0
  %4167 = vmatpush1.msra.mxu0 0.0
  %4168 = vmatprep.subr.mxu0 0.0
  %4169 = vmatpush1.msra.mxu0 0.0
  %4170 = vmatprep.subr.mxu0 0.0
  %4171 = vmatpush1.msra.mxu0 0.0
  %4172 = vmatprep.subr.mxu0 0.0
  %4173 = vmatpush1.msra.mxu0 0.0
  %4174 = vmatprep.subr.mxu0 0.0
  %4175 = vmatpush1.msra.mxu0 0.0
  %4176 = vmatprep.subr.mxu0 0.0
  %4177 = vmatpush1.msra.mxu0 0.0
  %4178 = vmatprep.subr.mxu0 0.0
  %4179 = vmatpush1.msra.mxu0 0.0
  %4180 = vmatprep.subr.mxu0 0.0
  %4181 = vmatpush1.msra.mxu0 0.0
  %4182 = vmatprep.subr.mxu0 0.0
  %4183 = vmatpush1.msra.mxu0 0.0
  %4184 = vmatprep.subr.mxu0 0.0
  %4185 = vmatpush1.msra.mxu0 0.0
  %4186 = vmatprep.subr.mxu0 0.0
  %4187 = vmatpush1.msra.mxu0 0.0
  %4188 = vmatprep.subr.mxu0 0.0
  %4189 = vmatpush1.msra.mxu0 0.0
  %4190 = vmatprep.subr.mxu0 0.0
  %4191 = vmatpush1.msra.mxu0 0.0
  %4192 = vmatprep.subr.mxu0 0.0
  %4193 = vmatpush1.msra.mxu0 0.0
  %4194 = vmatprep.subr.mxu0 0.0
  %4195 = vmatpush1.msra.mxu0 0.0
  %4196 = vmatprep.subr.mxu0 0.0
  %4197 = vmatpush1.msra.mxu0 0.0
  %4198 = vmatprep.subr.mxu0 0.0
  %4199 = vmatpush1.msra.mxu0 0.0
  %4200 = vmatprep.subr.mxu0 0.0
  %4201 = vmatpush1.msra.mxu0 0.0
  %4202 = vmatprep.subr.mxu0 0.0
  %4203 = vmatpush1.msra.mxu0 0.0
  %4204 = vmatprep.subr.mxu0 0.0
  %4205 = vmatpush1.msra.mxu0 0.0
  %4206 = vmatprep.mubr.f32.mxu0 0.0
  %4207 = vmatmul.mubr.f32.gmra.mrb[0].mxu0 %v4140
  %v4208 = vpop.f32.mrb[0].mxu0
  %v4209 = vadd.f32 %v62, %v4208
  %v4210 = vpop.f32.mrb[0].mxu0
  %4211 = vdwg.mxu0
  %v4212 = vadd.f32 %v4139, %v4209
  %v4213 = vxor.u32 %v4212, 2147483648
  %v4214 = vmul.f32 %v4213, 1.442695
  %v4215 = vpow.pop %v4214
  %v4216 = vadd.f32 %v4215, 1.0
  %v4217 = vrcp.pop %v4216
  %v4218 = vmul.f32 1.0, %v4217
  %4220 = vrot.lane.b32.xlu0 %v4209, 64
  %v4221 = vpop.permute.xlu0 %4220
  %v4223 = vmul.f32 %v4218, %v4221
  %4225 = vrot.lane.b32.xlu0 %v4223, 64
  %v4226 = vpop.permute.xlu0 %4225
  %v4228 = vadd.f32 %v4139, %v4226
  %v4229 = vtanh.pop %v4228
  %v4230 = vsub.f32 1.0, %v4218
  %4232 = vrot.lane.b32.xlu0 %v4229, 96
  %v4233 = vpop.permute.xlu0 %4232
  %v4235 = vmul.f32 %v4230, %v4233
  %v4236 = vmul.f32 %v4218, %v4034
  %v4237 = vadd.f32 %v4235, %v4236
  %4239 = vrot.lane.b32.xlu0 %v4237, 96
  %v4240 = vpop.permute.xlu0 %4239
  %v4242 = vsel %vm64, %v4240, %v4137
  %v4244 = vsel %vm182, %v4242, 0
  %4246 = vmatprep.subr.mxu0 0.0
  %4247 = vmatpush1.msra.mxu0 %v33
  %4248 = vmatprep.subr.mxu0 0.0
  %4249 = vmatpush1.msra.mxu0 %v34
  %4250 = vmatprep.subr.mxu0 0.0
  %4251 = vmatpush1.msra.mxu0 %v35
  %4252 = vmatprep.subr.mxu0 0.0
  %4253 = vmatpush1.msra.mxu0 %v36
  %4254 = vmatprep.subr.mxu0 0.0
  %4255 = vmatpush1.msra.mxu0 %v37
  %4256 = vmatprep.subr.mxu0 0.0
  %4257 = vmatpush1.msra.mxu0 %v38
  %4258 = vmatprep.subr.mxu0 0.0
  %4259 = vmatpush1.msra.mxu0 %v39
  %4260 = vmatprep.subr.mxu0 0.0
  %4261 = vmatpush1.msra.mxu0 %v40
  %4262 = vmatprep.subr.mxu0 0.0
  %4263 = vmatpush1.msra.mxu0 0.0
  %4264 = vmatprep.subr.mxu0 0.0
  %4265 = vmatpush1.msra.mxu0 0.0
  %4266 = vmatprep.subr.mxu0 0.0
  %4267 = vmatpush1.msra.mxu0 0.0
  %4268 = vmatprep.subr.mxu0 0.0
  %4269 = vmatpush1.msra.mxu0 0.0
  %4270 = vmatprep.subr.mxu0 0.0
  %4271 = vmatpush1.msra.mxu0 0.0
  %4272 = vmatprep.subr.mxu0 0.0
  %4273 = vmatpush1.msra.mxu0 0.0
  %4274 = vmatprep.subr.mxu0 0.0
  %4275 = vmatpush1.msra.mxu0 0.0
  %4276 = vmatprep.subr.mxu0 0.0
  %4277 = vmatpush1.msra.mxu0 0.0
  %4278 = vmatprep.subr.mxu0 0.0
  %4279 = vmatpush1.msra.mxu0 0.0
  %4280 = vmatprep.subr.mxu0 0.0
  %4281 = vmatpush1.msra.mxu0 0.0
  %4282 = vmatprep.subr.mxu0 0.0
  %4283 = vmatpush1.msra.mxu0 0.0
  %4284 = vmatprep.subr.mxu0 0.0
  %4285 = vmatpush1.msra.mxu0 0.0
  %4286 = vmatprep.subr.mxu0 0.0
  %4287 = vmatpush1.msra.mxu0 0.0
  %4288 = vmatprep.subr.mxu0 0.0
  %4289 = vmatpush1.msra.mxu0 0.0
  %4290 = vmatprep.subr.mxu0 0.0
  %4291 = vmatpush1.msra.mxu0 0.0
  %4292 = vmatprep.subr.mxu0 0.0
  %4293 = vmatpush1.msra.mxu0 0.0
  %4294 = vmatprep.subr.mxu0 0.0
  %4295 = vmatpush1.msra.mxu0 0.0
  %4296 = vmatprep.subr.mxu0 0.0
  %4297 = vmatpush1.msra.mxu0 0.0
  %4298 = vmatprep.subr.mxu0 0.0
  %4299 = vmatpush1.msra.mxu0 0.0
  %4300 = vmatprep.subr.mxu0 0.0
  %4301 = vmatpush1.msra.mxu0 0.0
  %4302 = vmatprep.subr.mxu0 0.0
  %4303 = vmatpush1.msra.mxu0 0.0
  %4304 = vmatprep.subr.mxu0 0.0
  %4305 = vmatpush1.msra.mxu0 0.0
  %4306 = vmatprep.subr.mxu0 0.0
  %4307 = vmatpush1.msra.mxu0 0.0
  %4308 = vmatprep.subr.mxu0 0.0
  %4309 = vmatpush1.msra.mxu0 0.0
  %4310 = vmatprep.mubr.f32.mxu0 0.0
  %4311 = vmatmul.mubr.f32.gmra.mrb[0].mxu0 %v4244
  %v4312 = vpop.f32.mrb[0].mxu0
  %v4313 = vadd.f32 %v180, %v4312
  %v4314 = vpop.f32.mrb[0].mxu0
  %4315 = vdwg.mxu0
  %v4316 = vxor.u32 %v4313, 2147483648
  %v4317 = vmul.f32 %v4316, 1.442695
  %v4318 = vpow.pop %v4317
  %v4319 = vadd.f32 %v4318, 1.0
  %v4320 = vrcp.pop %v4319
  %v4321 = vmul.f32 1.0, %v4320
  %4323 = vrot.lane.b32.xlu0 %v4313, 32
  %v4324 = vpop.permute.xlu0 %4323
  %v4326 = vmul.f32 %v4321, %v4324
  %4328 = vrot.lane.b32.xlu0 %v4326, 64
  %v4329 = vpop.permute.xlu0 %4328
  %v4331 = vadd.f32 %v4313, %v4329
  %v4332 = vtanh.pop %v4331
  %v4333 = vsub.f32 1.0, %v4321
  %4335 = vrot.lane.b32.xlu0 %v4332, 96
  %v4336 = vpop.permute.xlu0 %4335
  %v4338 = vmul.f32 %v4333, %v4336
  %v4339 = vmul.f32 %v4321, %v4137
  %v4340 = vadd.f32 %v4338, %v4339
  %s4341 = scalar_lea.vmem %s0, 168
  %v4342 = vld [vmem:[%s4341] sm:$0xff]
  %v4343 = vsel %vm64, %v4240, 0
  %4345 = vmatprep.subr.mxu0 0.0
  %4346 = vmatpush1.msra.mxu0 %v28
  %4347 = vmatprep.subr.mxu0 0.0
  %4348 = vmatpush1.msra.mxu0 %v29
  %4349 = vmatprep.subr.mxu0 0.0
  %4350 = vmatpush1.msra.mxu0 %v30
  %4351 = vmatprep.subr.mxu0 0.0
  %4352 = vmatpush1.msra.mxu0 %v31
  %4353 = vmatprep.subr.mxu0 0.0
  %4354 = vmatpush1.msra.mxu0 0.0
  %4355 = vmatprep.subr.mxu0 0.0
  %4356 = vmatpush1.msra.mxu0 0.0
  %4357 = vmatprep.subr.mxu0 0.0
  %4358 = vmatpush1.msra.mxu0 0.0
  %4359 = vmatprep.subr.mxu0 0.0
  %4360 = vmatpush1.msra.mxu0 0.0
  %4361 = vmatprep.subr.mxu0 0.0
  %4362 = vmatpush1.msra.mxu0 0.0
  %4363 = vmatprep.subr.mxu0 0.0
  %4364 = vmatpush1.msra.mxu0 0.0
  %4365 = vmatprep.subr.mxu0 0.0
  %4366 = vmatpush1.msra.mxu0 0.0
  %4367 = vmatprep.subr.mxu0 0.0
  %4368 = vmatpush1.msra.mxu0 0.0
  %4369 = vmatprep.subr.mxu0 0.0
  %4370 = vmatpush1.msra.mxu0 0.0
  %4371 = vmatprep.subr.mxu0 0.0
  %4372 = vmatpush1.msra.mxu0 0.0
  %4373 = vmatprep.subr.mxu0 0.0
  %4374 = vmatpush1.msra.mxu0 0.0
  %4375 = vmatprep.subr.mxu0 0.0
  %4376 = vmatpush1.msra.mxu0 0.0
  %4377 = vmatprep.subr.mxu0 0.0
  %4378 = vmatpush1.msra.mxu0 0.0
  %4379 = vmatprep.subr.mxu0 0.0
  %4380 = vmatpush1.msra.mxu0 0.0
  %4381 = vmatprep.subr.mxu0 0.0
  %4382 = vmatpush1.msra.mxu0 0.0
  %4383 = vmatprep.subr.mxu0 0.0
  %4384 = vmatpush1.msra.mxu0 0.0
  %4385 = vmatprep.subr.mxu0 0.0
  %4386 = vmatpush1.msra.mxu0 0.0
  %4387 = vmatprep.subr.mxu0 0.0
  %4388 = vmatpush1.msra.mxu0 0.0
  %4389 = vmatprep.subr.mxu0 0.0
  %4390 = vmatpush1.msra.mxu0 0.0
  %4391 = vmatprep.subr.mxu0 0.0
  %4392 = vmatpush1.msra.mxu0 0.0
  %4393 = vmatprep.subr.mxu0 0.0
  %4394 = vmatpush1.msra.mxu0 0.0
  %4395 = vmatprep.subr.mxu0 0.0
  %4396 = vmatpush1.msra.mxu0 0.0
  %4397 = vmatprep.subr.mxu0 0.0
  %4398 = vmatpush1.msra.mxu0 0.0
  %4399 = vmatprep.subr.mxu0 0.0
  %4400 = vmatpush1.msra.mxu0 0.0
  %4401 = vmatprep.subr.mxu0 0.0
  %4402 = vmatpush1.msra.mxu0 0.0
  %4403 = vmatprep.subr.mxu0 0.0
  %4404 = vmatpush1.msra.mxu0 0.0
  %4405 = vmatprep.subr.mxu0 0.0
  %4406 = vmatpush1.msra.mxu0 0.0
  %4407 = vmatprep.subr.mxu0 0.0
  %4408 = vmatpush1.msra.mxu0 0.0
  %4409 = vmatprep.mubr.f32.mxu0 0.0
  %4410 = vmatmul.mubr.f32.gmra.mrb[0].mxu0 %v4343
  %v4411 = vpop.f32.mrb[0].mxu0
  %v4412 = vadd.f32 %v62, %v4411
  %v4413 = vpop.f32.mrb[0].mxu0
  %4414 = vdwg.mxu0
  %v4415 = vadd.f32 %v4342, %v4412
  %v4416 = vxor.u32 %v4415, 2147483648
  %v4417 = vmul.f32 %v4416, 1.442695
  %v4418 = vpow.pop %v4417
  %v4419 = vadd.f32 %v4418, 1.0
  %v4420 = vrcp.pop %v4419
  %v4421 = vmul.f32 1.0, %v4420
  %4423 = vrot.lane.b32.xlu0 %v4412, 64
  %v4424 = vpop.permute.xlu0 %4423
  %v4426 = vmul.f32 %v4421, %v4424
  %4428 = vrot.lane.b32.xlu0 %v4426, 64
  %v4429 = vpop.permute.xlu0 %4428
  %v4431 = vadd.f32 %v4342, %v4429
  %v4432 = vtanh.pop %v4431
  %v4433 = vsub.f32 1.0, %v4421
  %4435 = vrot.lane.b32.xlu0 %v4432, 96
  %v4436 = vpop.permute.xlu0 %4435
  %v4438 = vmul.f32 %v4433, %v4436
  %v4439 = vmul.f32 %v4421, %v4237
  %v4440 = vadd.f32 %v4438, %v4439
  %4442 = vrot.lane.b32.xlu0 %v4440, 96
  %v4443 = vpop.permute.xlu0 %4442
  %v4445 = vsel %vm64, %v4443, %v4340
  %v4447 = vsel %vm182, %v4445, 0
  %4449 = vmatprep.subr.mxu0 0.0
  %4450 = vmatpush1.msra.mxu0 %v33
  %4451 = vmatprep.subr.mxu0 0.0
  %4452 = vmatpush1.msra.mxu0 %v34
  %4453 = vmatprep.subr.mxu0 0.0
  %4454 = vmatpush1.msra.mxu0 %v35
  %4455 = vmatprep.subr.mxu0 0.0
  %4456 = vmatpush1.msra.mxu0 %v36
  %4457 = vmatprep.subr.mxu0 0.0
  %4458 = vmatpush1.msra.mxu0 %v37
  %4459 = vmatprep.subr.mxu0 0.0
  %4460 = vmatpush1.msra.mxu0 %v38
  %4461 = vmatprep.subr.mxu0 0.0
  %4462 = vmatpush1.msra.mxu0 %v39
  %4463 = vmatprep.subr.mxu0 0.0
  %4464 = vmatpush1.msra.mxu0 %v40
  %4465 = vmatprep.subr.mxu0 0.0
  %4466 = vmatpush1.msra.mxu0 0.0
  %4467 = vmatprep.subr.mxu0 0.0
  %4468 = vmatpush1.msra.mxu0 0.0
  %4469 = vmatprep.subr.mxu0 0.0
  %4470 = vmatpush1.msra.mxu0 0.0
  %4471 = vmatprep.subr.mxu0 0.0
  %4472 = vmatpush1.msra.mxu0 0.0
  %4473 = vmatprep.subr.mxu0 0.0
  %4474 = vmatpush1.msra.mxu0 0.0
  %4475 = vmatprep.subr.mxu0 0.0
  %4476 = vmatpush1.msra.mxu0 0.0
  %4477 = vmatprep.subr.mxu0 0.0
  %4478 = vmatpush1.msra.mxu0 0.0
  %4479 = vmatprep.subr.mxu0 0.0
  %4480 = vmatpush1.msra.mxu0 0.0
  %4481 = vmatprep.subr.mxu0 0.0
  %4482 = vmatpush1.msra.mxu0 0.0
  %4483 = vmatprep.subr.mxu0 0.0
  %4484 = vmatpush1.msra.mxu0 0.0
  %4485 = vmatprep.subr.mxu0 0.0
  %4486 = vmatpush1.msra.mxu0 0.0
  %4487 = vmatprep.subr.mxu0 0.0
  %4488 = vmatpush1.msra.mxu0 0.0
  %4489 = vmatprep.subr.mxu0 0.0
  %4490 = vmatpush1.msra.mxu0 0.0
  %4491 = vmatprep.subr.mxu0 0.0
  %4492 = vmatpush1.msra.mxu0 0.0
  %4493 = vmatprep.subr.mxu0 0.0
  %4494 = vmatpush1.msra.mxu0 0.0
  %4495 = vmatprep.subr.mxu0 0.0
  %4496 = vmatpush1.msra.mxu0 0.0
  %4497 = vmatprep.subr.mxu0 0.0
  %4498 = vmatpush1.msra.mxu0 0.0
  %4499 = vmatprep.subr.mxu0 0.0
  %4500 = vmatpush1.msra.mxu0 0.0
  %4501 = vmatprep.subr.mxu0 0.0
  %4502 = vmatpush1.msra.mxu0 0.0
  %4503 = vmatprep.subr.mxu0 0.0
  %4504 = vmatpush1.msra.mxu0 0.0
  %4505 = vmatprep.subr.mxu0 0.0
  %4506 = vmatpush1.msra.mxu0 0.0
  %4507 = vmatprep.subr.mxu0 0.0
  %4508 = vmatpush1.msra.mxu0 0.0
  %4509 = vmatprep.subr.mxu0 0.0
  %4510 = vmatpush1.msra.mxu0 0.0
  %4511 = vmatprep.subr.mxu0 0.0
  %4512 = vmatpush1.msra.mxu0 0.0
  %4513 = vmatprep.mubr.f32.mxu0 0.0
  %4514 = vmatmul.mubr.f32.gmra.mrb[0].mxu0 %v4447
  %v4515 = vpop.f32.mrb[0].mxu0
  %v4516 = vadd.f32 %v180, %v4515
  %v4517 = vpop.f32.mrb[0].mxu0
  %4518 = vdwg.mxu0
  %v4519 = vxor.u32 %v4516, 2147483648
  %v4520 = vmul.f32 %v4519, 1.442695
  %v4521 = vpow.pop %v4520
  %v4522 = vadd.f32 %v4521, 1.0
  %v4523 = vrcp.pop %v4522
  %v4524 = vmul.f32 1.0, %v4523
  %4526 = vrot.lane.b32.xlu0 %v4516, 32
  %v4527 = vpop.permute.xlu0 %4526
  %v4529 = vmul.f32 %v4524, %v4527
  %4531 = vrot.lane.b32.xlu0 %v4529, 64
  %v4532 = vpop.permute.xlu0 %4531
  %v4534 = vadd.f32 %v4516, %v4532
  %v4535 = vtanh.pop %v4534
  %v4536 = vsub.f32 1.0, %v4524
  %4538 = vrot.lane.b32.xlu0 %v4535, 96
  %v4539 = vpop.permute.xlu0 %4538
  %v4541 = vmul.f32 %v4536, %v4539
  %v4542 = vmul.f32 %v4524, %v4340
  %v4543 = vadd.f32 %v4541, %v4542
  %s4544 = scalar_lea.vmem %s0, 176
  %v4545 = vld [vmem:[%s4544] sm:$0xff]
  %v4546 = vsel %vm64, %v4443, 0
  %4548 = vmatprep.subr.mxu0 0.0
  %4549 = vmatpush1.msra.mxu0 %v28
  %4550 = vmatprep.subr.mxu0 0.0
  %4551 = vmatpush1.msra.mxu0 %v29
  %4552 = vmatprep.subr.mxu0 0.0
  %4553 = vmatpush1.msra.mxu0 %v30
  %4554 = vmatprep.subr.mxu0 0.0
  %4555 = vmatpush1.msra.mxu0 %v31
  %4556 = vmatprep.subr.mxu0 0.0
  %4557 = vmatpush1.msra.mxu0 0.0
  %4558 = vmatprep.subr.mxu0 0.0
  %4559 = vmatpush1.msra.mxu0 0.0
  %4560 = vmatprep.subr.mxu0 0.0
  %4561 = vmatpush1.msra.mxu0 0.0
  %4562 = vmatprep.subr.mxu0 0.0
  %4563 = vmatpush1.msra.mxu0 0.0
  %4564 = vmatprep.subr.mxu0 0.0
  %4565 = vmatpush1.msra.mxu0 0.0
  %4566 = vmatprep.subr.mxu0 0.0
  %4567 = vmatpush1.msra.mxu0 0.0
  %4568 = vmatprep.subr.mxu0 0.0
  %4569 = vmatpush1.msra.mxu0 0.0
  %4570 = vmatprep.subr.mxu0 0.0
  %4571 = vmatpush1.msra.mxu0 0.0
  %4572 = vmatprep.subr.mxu0 0.0
  %4573 = vmatpush1.msra.mxu0 0.0
  %4574 = vmatprep.subr.mxu0 0.0
  %4575 = vmatpush1.msra.mxu0 0.0
  %4576 = vmatprep.subr.mxu0 0.0
  %4577 = vmatpush1.msra.mxu0 0.0
  %4578 = vmatprep.subr.mxu0 0.0
  %4579 = vmatpush1.msra.mxu0 0.0
  %4580 = vmatprep.subr.mxu0 0.0
  %4581 = vmatpush1.msra.mxu0 0.0
  %4582 = vmatprep.subr.mxu0 0.0
  %4583 = vmatpush1.msra.mxu0 0.0
  %4584 = vmatprep.subr.mxu0 0.0
  %4585 = vmatpush1.msra.mxu0 0.0
  %4586 = vmatprep.subr.mxu0 0.0
  %4587 = vmatpush1.msra.mxu0 0.0
  %4588 = vmatprep.subr.mxu0 0.0
  %4589 = vmatpush1.msra.mxu0 0.0
  %4590 = vmatprep.subr.mxu0 0.0
  %4591 = vmatpush1.msra.mxu0 0.0
  %4592 = vmatprep.subr.mxu0 0.0
  %4593 = vmatpush1.msra.mxu0 0.0
  %4594 = vmatprep.subr.mxu0 0.0
  %4595 = vmatpush1.msra.mxu0 0.0
  %4596 = vmatprep.subr.mxu0 0.0
  %4597 = vmatpush1.msra.mxu0 0.0
  %4598 = vmatprep.subr.mxu0 0.0
  %4599 = vmatpush1.msra.mxu0 0.0
  %4600 = vmatprep.subr.mxu0 0.0
  %4601 = vmatpush1.msra.mxu0 0.0
  %4602 = vmatprep.subr.mxu0 0.0
  %4603 = vmatpush1.msra.mxu0 0.0
  %4604 = vmatprep.subr.mxu0 0.0
  %4605 = vmatpush1.msra.mxu0 0.0
  %4606 = vmatprep.subr.mxu0 0.0
  %4607 = vmatpush1.msra.mxu0 0.0
  %4608 = vmatprep.subr.mxu0 0.0
  %4609 = vmatpush1.msra.mxu0 0.0
  %4610 = vmatprep.subr.mxu0 0.0
  %4611 = vmatpush1.msra.mxu0 0.0
  %4612 = vmatprep.mubr.f32.mxu0 0.0
  %4613 = vmatmul.mubr.f32.gmra.mrb[0].mxu0 %v4546
  %v4614 = vpop.f32.mrb[0].mxu0
  %v4615 = vadd.f32 %v62, %v4614
  %v4616 = vpop.f32.mrb[0].mxu0
  %4617 = vdwg.mxu0
  %v4618 = vadd.f32 %v4545, %v4615
  %v4619 = vxor.u32 %v4618, 2147483648
  %v4620 = vmul.f32 %v4619, 1.442695
  %v4621 = vpow.pop %v4620
  %v4622 = vadd.f32 %v4621, 1.0
  %v4623 = vrcp.pop %v4622
  %v4624 = vmul.f32 1.0, %v4623
  %4626 = vrot.lane.b32.xlu0 %v4615, 64
  %v4627 = vpop.permute.xlu0 %4626
  %v4629 = vmul.f32 %v4624, %v4627
  %4631 = vrot.lane.b32.xlu0 %v4629, 64
  %v4632 = vpop.permute.xlu0 %4631
  %v4634 = vadd.f32 %v4545, %v4632
  %v4635 = vtanh.pop %v4634
  %v4636 = vsub.f32 1.0, %v4624
  %4638 = vrot.lane.b32.xlu0 %v4635, 96
  %v4639 = vpop.permute.xlu0 %4638
  %v4641 = vmul.f32 %v4636, %v4639
  %v4642 = vmul.f32 %v4624, %v4440
  %v4643 = vadd.f32 %v4641, %v4642
  %4645 = vrot.lane.b32.xlu0 %v4643, 96
  %v4646 = vpop.permute.xlu0 %4645
  %v4648 = vsel %vm64, %v4646, %v4543
  %v4650 = vsel %vm182, %v4648, 0
  %4652 = vmatprep.subr.mxu0 0.0
  %4653 = vmatpush1.msra.mxu0 %v33
  %4654 = vmatprep.subr.mxu0 0.0
  %4655 = vmatpush1.msra.mxu0 %v34
  %4656 = vmatprep.subr.mxu0 0.0
  %4657 = vmatpush1.msra.mxu0 %v35
  %4658 = vmatprep.subr.mxu0 0.0
  %4659 = vmatpush1.msra.mxu0 %v36
  %4660 = vmatprep.subr.mxu0 0.0
  %4661 = vmatpush1.msra.mxu0 %v37
  %4662 = vmatprep.subr.mxu0 0.0
  %4663 = vmatpush1.msra.mxu0 %v38
  %4664 = vmatprep.subr.mxu0 0.0
  %4665 = vmatpush1.msra.mxu0 %v39
  %4666 = vmatprep.subr.mxu0 0.0
  %4667 = vmatpush1.msra.mxu0 %v40
  %4668 = vmatprep.subr.mxu0 0.0
  %4669 = vmatpush1.msra.mxu0 0.0
  %4670 = vmatprep.subr.mxu0 0.0
  %4671 = vmatpush1.msra.mxu0 0.0
  %4672 = vmatprep.subr.mxu0 0.0
  %4673 = vmatpush1.msra.mxu0 0.0
  %4674 = vmatprep.subr.mxu0 0.0
  %4675 = vmatpush1.msra.mxu0 0.0
  %4676 = vmatprep.subr.mxu0 0.0
  %4677 = vmatpush1.msra.mxu0 0.0
  %4678 = vmatprep.subr.mxu0 0.0
  %4679 = vmatpush1.msra.mxu0 0.0
  %4680 = vmatprep.subr.mxu0 0.0
  %4681 = vmatpush1.msra.mxu0 0.0
  %4682 = vmatprep.subr.mxu0 0.0
  %4683 = vmatpush1.msra.mxu0 0.0
  %4684 = vmatprep.subr.mxu0 0.0
  %4685 = vmatpush1.msra.mxu0 0.0
  %4686 = vmatprep.subr.mxu0 0.0
  %4687 = vmatpush1.msra.mxu0 0.0
  %4688 = vmatprep.subr.mxu0 0.0
  %4689 = vmatpush1.msra.mxu0 0.0
  %4690 = vmatprep.subr.mxu0 0.0
  %4691 = vmatpush1.msra.mxu0 0.0
  %4692 = vmatprep.subr.mxu0 0.0
  %4693 = vmatpush1.msra.mxu0 0.0
  %4694 = vmatprep.subr.mxu0 0.0
  %4695 = vmatpush1.msra.mxu0 0.0
  %4696 = vmatprep.subr.mxu0 0.0
  %4697 = vmatpush1.msra.mxu0 0.0
  %4698 = vmatprep.subr.mxu0 0.0
  %4699 = vmatpush1.msra.mxu0 0.0
  %4700 = vmatprep.subr.mxu0 0.0
  %4701 = vmatpush1.msra.mxu0 0.0
  %4702 = vmatprep.subr.mxu0 0.0
  %4703 = vmatpush1.msra.mxu0 0.0
  %4704 = vmatprep.subr.mxu0 0.0
  %4705 = vmatpush1.msra.mxu0 0.0
  %4706 = vmatprep.subr.mxu0 0.0
  %4707 = vmatpush1.msra.mxu0 0.0
  %4708 = vmatprep.subr.mxu0 0.0
  %4709 = vmatpush1.msra.mxu0 0.0
  %4710 = vmatprep.subr.mxu0 0.0
  %4711 = vmatpush1.msra.mxu0 0.0
  %4712 = vmatprep.subr.mxu0 0.0
  %4713 = vmatpush1.msra.mxu0 0.0
  %4714 = vmatprep.subr.mxu0 0.0
  %4715 = vmatpush1.msra.mxu0 0.0
  %4716 = vmatprep.mubr.f32.mxu0 0.0
  %4717 = vmatmul.mubr.f32.gmra.mrb[0].mxu0 %v4650
  %v4718 = vpop.f32.mrb[0].mxu0
  %v4719 = vadd.f32 %v180, %v4718
  %v4720 = vpop.f32.mrb[0].mxu0
  %4721 = vdwg.mxu0
  %v4722 = vxor.u32 %v4719, 2147483648
  %v4723 = vmul.f32 %v4722, 1.442695
  %v4724 = vpow.pop %v4723
  %v4725 = vadd.f32 %v4724, 1.0
  %v4726 = vrcp.pop %v4725
  %v4727 = vmul.f32 1.0, %v4726
  %4729 = vrot.lane.b32.xlu0 %v4719, 32
  %v4730 = vpop.permute.xlu0 %4729
  %v4732 = vmul.f32 %v4727, %v4730
  %4734 = vrot.lane.b32.xlu0 %v4732, 64
  %v4735 = vpop.permute.xlu0 %4734
  %v4737 = vadd.f32 %v4719, %v4735
  %v4738 = vtanh.pop %v4737
  %v4739 = vsub.f32 1.0, %v4727
  %4741 = vrot.lane.b32.xlu0 %v4738, 96
  %v4742 = vpop.permute.xlu0 %4741
  %v4744 = vmul.f32 %v4739, %v4742
  %v4745 = vmul.f32 %v4727, %v4543
  %v4746 = vadd.f32 %v4744, %v4745
  %s4747 = scalar_lea.vmem %s0, 184
  %v4748 = vld [vmem:[%s4747] sm:$0xff]
  %v4749 = vsel %vm64, %v4646, 0
  %4751 = vmatprep.subr.mxu0 0.0
  %4752 = vmatpush1.msra.mxu0 %v28
  %4753 = vmatprep.subr.mxu0 0.0
  %4754 = vmatpush1.msra.mxu0 %v29
  %4755 = vmatprep.subr.mxu0 0.0
  %4756 = vmatpush1.msra.mxu0 %v30
  %4757 = vmatprep.subr.mxu0 0.0
  %4758 = vmatpush1.msra.mxu0 %v31
  %4759 = vmatprep.subr.mxu0 0.0
  %4760 = vmatpush1.msra.mxu0 0.0
  %4761 = vmatprep.subr.mxu0 0.0
  %4762 = vmatpush1.msra.mxu0 0.0
  %4763 = vmatprep.subr.mxu0 0.0
  %4764 = vmatpush1.msra.mxu0 0.0
  %4765 = vmatprep.subr.mxu0 0.0
  %4766 = vmatpush1.msra.mxu0 0.0
  %4767 = vmatprep.subr.mxu0 0.0
  %4768 = vmatpush1.msra.mxu0 0.0
  %4769 = vmatprep.subr.mxu0 0.0
  %4770 = vmatpush1.msra.mxu0 0.0
  %4771 = vmatprep.subr.mxu0 0.0
  %4772 = vmatpush1.msra.mxu0 0.0
  %4773 = vmatprep.subr.mxu0 0.0
  %4774 = vmatpush1.msra.mxu0 0.0
  %4775 = vmatprep.subr.mxu0 0.0
  %4776 = vmatpush1.msra.mxu0 0.0
  %4777 = vmatprep.subr.mxu0 0.0
  %4778 = vmatpush1.msra.mxu0 0.0
  %4779 = vmatprep.subr.mxu0 0.0
  %4780 = vmatpush1.msra.mxu0 0.0
  %4781 = vmatprep.subr.mxu0 0.0
  %4782 = vmatpush1.msra.mxu0 0.0
  %4783 = vmatprep.subr.mxu0 0.0
  %4784 = vmatpush1.msra.mxu0 0.0
  %4785 = vmatprep.subr.mxu0 0.0
  %4786 = vmatpush1.msra.mxu0 0.0
  %4787 = vmatprep.subr.mxu0 0.0
  %4788 = vmatpush1.msra.mxu0 0.0
  %4789 = vmatprep.subr.mxu0 0.0
  %4790 = vmatpush1.msra.mxu0 0.0
  %4791 = vmatprep.subr.mxu0 0.0
  %4792 = vmatpush1.msra.mxu0 0.0
  %4793 = vmatprep.subr.mxu0 0.0
  %4794 = vmatpush1.msra.mxu0 0.0
  %4795 = vmatprep.subr.mxu0 0.0
  %4796 = vmatpush1.msra.mxu0 0.0
  %4797 = vmatprep.subr.mxu0 0.0
  %4798 = vmatpush1.msra.mxu0 0.0
  %4799 = vmatprep.subr.mxu0 0.0
  %4800 = vmatpush1.msra.mxu0 0.0
  %4801 = vmatprep.subr.mxu0 0.0
  %4802 = vmatpush1.msra.mxu0 0.0
  %4803 = vmatprep.subr.mxu0 0.0
  %4804 = vmatpush1.msra.mxu0 0.0
  %4805 = vmatprep.subr.mxu0 0.0
  %4806 = vmatpush1.msra.mxu0 0.0
  %4807 = vmatprep.subr.mxu0 0.0
  %4808 = vmatpush1.msra.mxu0 0.0
  %4809 = vmatprep.subr.mxu0 0.0
  %4810 = vmatpush1.msra.mxu0 0.0
  %4811 = vmatprep.subr.mxu0 0.0
  %4812 = vmatpush1.msra.mxu0 0.0
  %4813 = vmatprep.subr.mxu0 0.0
  %4814 = vmatpush1.msra.mxu0 0.0
  %4815 = vmatprep.mubr.f32.mxu0 0.0
  %4816 = vmatmul.mubr.f32.gmra.mrb[0].mxu0 %v4749
  %v4817 = vpop.f32.mrb[0].mxu0
  %v4818 = vadd.f32 %v62, %v4817
  %v4819 = vpop.f32.mrb[0].mxu0
  %4820 = vdwg.mxu0
  %v4821 = vadd.f32 %v4748, %v4818
  %v4822 = vxor.u32 %v4821, 2147483648
  %v4823 = vmul.f32 %v4822, 1.442695
  %v4824 = vpow.pop %v4823
  %v4825 = vadd.f32 %v4824, 1.0
  %v4826 = vrcp.pop %v4825
  %v4827 = vmul.f32 1.0, %v4826
  %4829 = vrot.lane.b32.xlu0 %v4818, 64
  %v4830 = vpop.permute.xlu0 %4829
  %v4832 = vmul.f32 %v4827, %v4830
  %4834 = vrot.lane.b32.xlu0 %v4832, 64
  %v4835 = vpop.permute.xlu0 %4834
  %v4837 = vadd.f32 %v4748, %v4835
  %v4838 = vtanh.pop %v4837
  %v4839 = vsub.f32 1.0, %v4827
  %4841 = vrot.lane.b32.xlu0 %v4838, 96
  %v4842 = vpop.permute.xlu0 %4841
  %v4844 = vmul.f32 %v4839, %v4842
  %v4845 = vmul.f32 %v4827, %v4643
  %v4846 = vadd.f32 %v4844, %v4845
  %4848 = vrot.lane.b32.xlu0 %v4846, 96
  %v4849 = vpop.permute.xlu0 %4848
  %v4851 = vsel %vm64, %v4849, %v4746
  %v4853 = vsel %vm182, %v4851, 0
  %4855 = vmatprep.subr.mxu0 0.0
  %4856 = vmatpush1.msra.mxu0 %v33
  %4857 = vmatprep.subr.mxu0 0.0
  %4858 = vmatpush1.msra.mxu0 %v34
  %4859 = vmatprep.subr.mxu0 0.0
  %4860 = vmatpush1.msra.mxu0 %v35
  %4861 = vmatprep.subr.mxu0 0.0
  %4862 = vmatpush1.msra.mxu0 %v36
  %4863 = vmatprep.subr.mxu0 0.0
  %4864 = vmatpush1.msra.mxu0 %v37
  %4865 = vmatprep.subr.mxu0 0.0
  %4866 = vmatpush1.msra.mxu0 %v38
  %4867 = vmatprep.subr.mxu0 0.0
  %4868 = vmatpush1.msra.mxu0 %v39
  %4869 = vmatprep.subr.mxu0 0.0
  %4870 = vmatpush1.msra.mxu0 %v40
  %4871 = vmatprep.subr.mxu0 0.0
  %4872 = vmatpush1.msra.mxu0 0.0
  %4873 = vmatprep.subr.mxu0 0.0
  %4874 = vmatpush1.msra.mxu0 0.0
  %4875 = vmatprep.subr.mxu0 0.0
  %4876 = vmatpush1.msra.mxu0 0.0
  %4877 = vmatprep.subr.mxu0 0.0
  %4878 = vmatpush1.msra.mxu0 0.0
  %4879 = vmatprep.subr.mxu0 0.0
  %4880 = vmatpush1.msra.mxu0 0.0
  %4881 = vmatprep.subr.mxu0 0.0
  %4882 = vmatpush1.msra.mxu0 0.0
  %4883 = vmatprep.subr.mxu0 0.0
  %4884 = vmatpush1.msra.mxu0 0.0
  %4885 = vmatprep.subr.mxu0 0.0
  %4886 = vmatpush1.msra.mxu0 0.0
  %4887 = vmatprep.subr.mxu0 0.0
  %4888 = vmatpush1.msra.mxu0 0.0
  %4889 = vmatprep.subr.mxu0 0.0
  %4890 = vmatpush1.msra.mxu0 0.0
  %4891 = vmatprep.subr.mxu0 0.0
  %4892 = vmatpush1.msra.mxu0 0.0
  %4893 = vmatprep.subr.mxu0 0.0
  %4894 = vmatpush1.msra.mxu0 0.0
  %4895 = vmatprep.subr.mxu0 0.0
  %4896 = vmatpush1.msra.mxu0 0.0
  %4897 = vmatprep.subr.mxu0 0.0
  %4898 = vmatpush1.msra.mxu0 0.0
  %4899 = vmatprep.subr.mxu0 0.0
  %4900 = vmatpush1.msra.mxu0 0.0
  %4901 = vmatprep.subr.mxu0 0.0
  %4902 = vmatpush1.msra.mxu0 0.0
  %4903 = vmatprep.subr.mxu0 0.0
  %4904 = vmatpush1.msra.mxu0 0.0
  %4905 = vmatprep.subr.mxu0 0.0
  %4906 = vmatpush1.msra.mxu0 0.0
  %4907 = vmatprep.subr.mxu0 0.0
  %4908 = vmatpush1.msra.mxu0 0.0
  %4909 = vmatprep.subr.mxu0 0.0
  %4910 = vmatpush1.msra.mxu0 0.0
  %4911 = vmatprep.subr.mxu0 0.0
  %4912 = vmatpush1.msra.mxu0 0.0
  %4913 = vmatprep.subr.mxu0 0.0
  %4914 = vmatpush1.msra.mxu0 0.0
  %4915 = vmatprep.subr.mxu0 0.0
  %4916 = vmatpush1.msra.mxu0 0.0
  %4917 = vmatprep.subr.mxu0 0.0
  %4918 = vmatpush1.msra.mxu0 0.0
  %4919 = vmatprep.mubr.f32.mxu0 0.0
  %4920 = vmatmul.mubr.f32.gmra.mrb[0].mxu0 %v4853
  %v4921 = vpop.f32.mrb[0].mxu0
  %v4922 = vadd.f32 %v180, %v4921
  %v4923 = vpop.f32.mrb[0].mxu0
  %4924 = vdwg.mxu0
  %v4925 = vxor.u32 %v4922, 2147483648
  %v4926 = vmul.f32 %v4925, 1.442695
  %v4927 = vpow.pop %v4926
  %v4928 = vadd.f32 %v4927, 1.0
  %v4929 = vrcp.pop %v4928
  %v4930 = vmul.f32 1.0, %v4929
  %4932 = vrot.lane.b32.xlu0 %v4922, 32
  %v4933 = vpop.permute.xlu0 %4932
  %v4935 = vmul.f32 %v4930, %v4933
  %4937 = vrot.lane.b32.xlu0 %v4935, 64
  %v4938 = vpop.permute.xlu0 %4937
  %v4940 = vadd.f32 %v4922, %v4938
  %v4941 = vtanh.pop %v4940
  %v4942 = vsub.f32 1.0, %v4930
  %4944 = vrot.lane.b32.xlu0 %v4941, 96
  %v4945 = vpop.permute.xlu0 %4944
  %v4947 = vmul.f32 %v4942, %v4945
  %v4948 = vmul.f32 %v4930, %v4746
  %v4949 = vadd.f32 %v4947, %v4948
  %s4950 = scalar_lea.vmem %s0, 192
  %v4951 = vld [vmem:[%s4950] sm:$0xff]
  %v4952 = vsel %vm64, %v4849, 0
  %4954 = vmatprep.subr.mxu0 0.0
  %4955 = vmatpush1.msra.mxu0 %v28
  %4956 = vmatprep.subr.mxu0 0.0
  %4957 = vmatpush1.msra.mxu0 %v29
  %4958 = vmatprep.subr.mxu0 0.0
  %4959 = vmatpush1.msra.mxu0 %v30
  %4960 = vmatprep.subr.mxu0 0.0
  %4961 = vmatpush1.msra.mxu0 %v31
  %4962 = vmatprep.subr.mxu0 0.0
  %4963 = vmatpush1.msra.mxu0 0.0
  %4964 = vmatprep.subr.mxu0 0.0
  %4965 = vmatpush1.msra.mxu0 0.0
  %4966 = vmatprep.subr.mxu0 0.0
  %4967 = vmatpush1.msra.mxu0 0.0
  %4968 = vmatprep.subr.mxu0 0.0
  %4969 = vmatpush1.msra.mxu0 0.0
  %4970 = vmatprep.subr.mxu0 0.0
  %4971 = vmatpush1.msra.mxu0 0.0
  %4972 = vmatprep.subr.mxu0 0.0
  %4973 = vmatpush1.msra.mxu0 0.0
  %4974 = vmatprep.subr.mxu0 0.0
  %4975 = vmatpush1.msra.mxu0 0.0
  %4976 = vmatprep.subr.mxu0 0.0
  %4977 = vmatpush1.msra.mxu0 0.0
  %4978 = vmatprep.subr.mxu0 0.0
  %4979 = vmatpush1.msra.mxu0 0.0
  %4980 = vmatprep.subr.mxu0 0.0
  %4981 = vmatpush1.msra.mxu0 0.0
  %4982 = vmatprep.subr.mxu0 0.0
  %4983 = vmatpush1.msra.mxu0 0.0
  %4984 = vmatprep.subr.mxu0 0.0
  %4985 = vmatpush1.msra.mxu0 0.0
  %4986 = vmatprep.subr.mxu0 0.0
  %4987 = vmatpush1.msra.mxu0 0.0
  %4988 = vmatprep.subr.mxu0 0.0
  %4989 = vmatpush1.msra.mxu0 0.0
  %4990 = vmatprep.subr.mxu0 0.0
  %4991 = vmatpush1.msra.mxu0 0.0
  %4992 = vmatprep.subr.mxu0 0.0
  %4993 = vmatpush1.msra.mxu0 0.0
  %4994 = vmatprep.subr.mxu0 0.0
  %4995 = vmatpush1.msra.mxu0 0.0
  %4996 = vmatprep.subr.mxu0 0.0
  %4997 = vmatpush1.msra.mxu0 0.0
  %4998 = vmatprep.subr.mxu0 0.0
  %4999 = vmatpush1.msra.mxu0 0.0
  %5000 = vmatprep.subr.mxu0 0.0
  %5001 = vmatpush1.msra.mxu0 0.0
  %5002 = vmatprep.subr.mxu0 0.0
  %5003 = vmatpush1.msra.mxu0 0.0
  %5004 = vmatprep.subr.mxu0 0.0
  %5005 = vmatpush1.msra.mxu0 0.0
  %5006 = vmatprep.subr.mxu0 0.0
  %5007 = vmatpush1.msra.mxu0 0.0
  %5008 = vmatprep.subr.mxu0 0.0
  %5009 = vmatpush1.msra.mxu0 0.0
  %5010 = vmatprep.subr.mxu0 0.0
  %5011 = vmatpush1.msra.mxu0 0.0
  %5012 = vmatprep.subr.mxu0 0.0
  %5013 = vmatpush1.msra.mxu0 0.0
  %5014 = vmatprep.subr.mxu0 0.0
  %5015 = vmatpush1.msra.mxu0 0.0
  %5016 = vmatprep.subr.mxu0 0.0
  %5017 = vmatpush1.msra.mxu0 0.0
  %5018 = vmatprep.mubr.f32.mxu0 0.0
  %5019 = vmatmul.mubr.f32.gmra.mrb[0].mxu0 %v4952
  %v5020 = vpop.f32.mrb[0].mxu0
  %v5021 = vadd.f32 %v62, %v5020
  %v5022 = vpop.f32.mrb[0].mxu0
  %5023 = vdwg.mxu0
  %v5024 = vadd.f32 %v4951, %v5021
  %v5025 = vxor.u32 %v5024, 2147483648
  %v5026 = vmul.f32 %v5025, 1.442695
  %v5027 = vpow.pop %v5026
  %v5028 = vadd.f32 %v5027, 1.0
  %v5029 = vrcp.pop %v5028
  %v5030 = vmul.f32 1.0, %v5029
  %5032 = vrot.lane.b32.xlu0 %v5021, 64
  %v5033 = vpop.permute.xlu0 %5032
  %v5035 = vmul.f32 %v5030, %v5033
  %5037 = vrot.lane.b32.xlu0 %v5035, 64
  %v5038 = vpop.permute.xlu0 %5037
  %v5040 = vadd.f32 %v4951, %v5038
  %v5041 = vtanh.pop %v5040
  %v5042 = vsub.f32 1.0, %v5030
  %5044 = vrot.lane.b32.xlu0 %v5041, 96
  %v5045 = vpop.permute.xlu0 %5044
  %v5047 = vmul.f32 %v5042, %v5045
  %v5048 = vmul.f32 %v5030, %v4846
  %v5049 = vadd.f32 %v5047, %v5048
  %5051 = vrot.lane.b32.xlu0 %v5049, 96
  %v5052 = vpop.permute.xlu0 %5051
  %v5054 = vsel %vm64, %v5052, %v4949
  %v5056 = vsel %vm182, %v5054, 0
  %5058 = vmatprep.subr.mxu0 0.0
  %5059 = vmatpush1.msra.mxu0 %v33
  %5060 = vmatprep.subr.mxu0 0.0
  %5061 = vmatpush1.msra.mxu0 %v34
  %5062 = vmatprep.subr.mxu0 0.0
  %5063 = vmatpush1.msra.mxu0 %v35
  %5064 = vmatprep.subr.mxu0 0.0
  %5065 = vmatpush1.msra.mxu0 %v36
  %5066 = vmatprep.subr.mxu0 0.0
  %5067 = vmatpush1.msra.mxu0 %v37
  %5068 = vmatprep.subr.mxu0 0.0
  %5069 = vmatpush1.msra.mxu0 %v38
  %5070 = vmatprep.subr.mxu0 0.0
  %5071 = vmatpush1.msra.mxu0 %v39
  %5072 = vmatprep.subr.mxu0 0.0
  %5073 = vmatpush1.msra.mxu0 %v40
  %5074 = vmatprep.subr.mxu0 0.0
  %5075 = vmatpush1.msra.mxu0 0.0
  %5076 = vmatprep.subr.mxu0 0.0
  %5077 = vmatpush1.msra.mxu0 0.0
  %5078 = vmatprep.subr.mxu0 0.0
  %5079 = vmatpush1.msra.mxu0 0.0
  %5080 = vmatprep.subr.mxu0 0.0
  %5081 = vmatpush1.msra.mxu0 0.0
  %5082 = vmatprep.subr.mxu0 0.0
  %5083 = vmatpush1.msra.mxu0 0.0
  %5084 = vmatprep.subr.mxu0 0.0
  %5085 = vmatpush1.msra.mxu0 0.0
  %5086 = vmatprep.subr.mxu0 0.0
  %5087 = vmatpush1.msra.mxu0 0.0
  %5088 = vmatprep.subr.mxu0 0.0
  %5089 = vmatpush1.msra.mxu0 0.0
  %5090 = vmatprep.subr.mxu0 0.0
  %5091 = vmatpush1.msra.mxu0 0.0
  %5092 = vmatprep.subr.mxu0 0.0
  %5093 = vmatpush1.msra.mxu0 0.0
  %5094 = vmatprep.subr.mxu0 0.0
  %5095 = vmatpush1.msra.mxu0 0.0
  %5096 = vmatprep.subr.mxu0 0.0
  %5097 = vmatpush1.msra.mxu0 0.0
  %5098 = vmatprep.subr.mxu0 0.0
  %5099 = vmatpush1.msra.mxu0 0.0
  %5100 = vmatprep.subr.mxu0 0.0
  %5101 = vmatpush1.msra.mxu0 0.0
  %5102 = vmatprep.subr.mxu0 0.0
  %5103 = vmatpush1.msra.mxu0 0.0
  %5104 = vmatprep.subr.mxu0 0.0
  %5105 = vmatpush1.msra.mxu0 0.0
  %5106 = vmatprep.subr.mxu0 0.0
  %5107 = vmatpush1.msra.mxu0 0.0
  %5108 = vmatprep.subr.mxu0 0.0
  %5109 = vmatpush1.msra.mxu0 0.0
  %5110 = vmatprep.subr.mxu0 0.0
  %5111 = vmatpush1.msra.mxu0 0.0
  %5112 = vmatprep.subr.mxu0 0.0
  %5113 = vmatpush1.msra.mxu0 0.0
  %5114 = vmatprep.subr.mxu0 0.0
  %5115 = vmatpush1.msra.mxu0 0.0
  %5116 = vmatprep.subr.mxu0 0.0
  %5117 = vmatpush1.msra.mxu0 0.0
  %5118 = vmatprep.subr.mxu0 0.0
  %5119 = vmatpush1.msra.mxu0 0.0
  %5120 = vmatprep.subr.mxu0 0.0
  %5121 = vmatpush1.msra.mxu0 0.0
  %5122 = vmatprep.mubr.f32.mxu0 0.0
  %5123 = vmatmul.mubr.f32.gmra.mrb[0].mxu0 %v5056
  %v5124 = vpop.f32.mrb[0].mxu0
  %v5125 = vadd.f32 %v180, %v5124
  %v5126 = vpop.f32.mrb[0].mxu0
  %5127 = vdwg.mxu0
  %v5128 = vxor.u32 %v5125, 2147483648
  %v5129 = vmul.f32 %v5128, 1.442695
  %v5130 = vpow.pop %v5129
  %v5131 = vadd.f32 %v5130, 1.0
  %v5132 = vrcp.pop %v5131
  %v5133 = vmul.f32 1.0, %v5132
  %5135 = vrot.lane.b32.xlu0 %v5125, 32
  %v5136 = vpop.permute.xlu0 %5135
  %v5138 = vmul.f32 %v5133, %v5136
  %5140 = vrot.lane.b32.xlu0 %v5138, 64
  %v5141 = vpop.permute.xlu0 %5140
  %v5143 = vadd.f32 %v5125, %v5141
  %v5144 = vtanh.pop %v5143
  %v5145 = vsub.f32 1.0, %v5133
  %5147 = vrot.lane.b32.xlu0 %v5144, 96
  %v5148 = vpop.permute.xlu0 %5147
  %v5150 = vmul.f32 %v5145, %v5148
  %v5151 = vmul.f32 %v5133, %v4949
  %v5152 = vadd.f32 %v5150, %v5151
  %s5153 = scalar_lea.vmem %s0, 200
  %v5154 = vld [vmem:[%s5153] sm:$0xff]
  %v5155 = vsel %vm64, %v5052, 0
  %5157 = vmatprep.subr.mxu0 0.0
  %5158 = vmatpush1.msra.mxu0 %v28
  %5159 = vmatprep.subr.mxu0 0.0
  %5160 = vmatpush1.msra.mxu0 %v29
  %5161 = vmatprep.subr.mxu0 0.0
  %5162 = vmatpush1.msra.mxu0 %v30
  %5163 = vmatprep.subr.mxu0 0.0
  %5164 = vmatpush1.msra.mxu0 %v31
  %5165 = vmatprep.subr.mxu0 0.0
  %5166 = vmatpush1.msra.mxu0 0.0
  %5167 = vmatprep.subr.mxu0 0.0
  %5168 = vmatpush1.msra.mxu0 0.0
  %5169 = vmatprep.subr.mxu0 0.0
  %5170 = vmatpush1.msra.mxu0 0.0
  %5171 = vmatprep.subr.mxu0 0.0
  %5172 = vmatpush1.msra.mxu0 0.0
  %5173 = vmatprep.subr.mxu0 0.0
  %5174 = vmatpush1.msra.mxu0 0.0
  %5175 = vmatprep.subr.mxu0 0.0
  %5176 = vmatpush1.msra.mxu0 0.0
  %5177 = vmatprep.subr.mxu0 0.0
  %5178 = vmatpush1.msra.mxu0 0.0
  %5179 = vmatprep.subr.mxu0 0.0
  %5180 = vmatpush1.msra.mxu0 0.0
  %5181 = vmatprep.subr.mxu0 0.0
  %5182 = vmatpush1.msra.mxu0 0.0
  %5183 = vmatprep.subr.mxu0 0.0
  %5184 = vmatpush1.msra.mxu0 0.0
  %5185 = vmatprep.subr.mxu0 0.0
  %5186 = vmatpush1.msra.mxu0 0.0
  %5187 = vmatprep.subr.mxu0 0.0
  %5188 = vmatpush1.msra.mxu0 0.0
  %5189 = vmatprep.subr.mxu0 0.0
  %5190 = vmatpush1.msra.mxu0 0.0
  %5191 = vmatprep.subr.mxu0 0.0
  %5192 = vmatpush1.msra.mxu0 0.0
  %5193 = vmatprep.subr.mxu0 0.0
  %5194 = vmatpush1.msra.mxu0 0.0
  %5195 = vmatprep.subr.mxu0 0.0
  %5196 = vmatpush1.msra.mxu0 0.0
  %5197 = vmatprep.subr.mxu0 0.0
  %5198 = vmatpush1.msra.mxu0 0.0
  %5199 = vmatprep.subr.mxu0 0.0
  %5200 = vmatpush1.msra.mxu0 0.0
  %5201 = vmatprep.subr.mxu0 0.0
  %5202 = vmatpush1.msra.mxu0 0.0
  %5203 = vmatprep.subr.mxu0 0.0
  %5204 = vmatpush1.msra.mxu0 0.0
  %5205 = vmatprep.subr.mxu0 0.0
  %5206 = vmatpush1.msra.mxu0 0.0
  %5207 = vmatprep.subr.mxu0 0.0
  %5208 = vmatpush1.msra.mxu0 0.0
  %5209 = vmatprep.subr.mxu0 0.0
  %5210 = vmatpush1.msra.mxu0 0.0
  %5211 = vmatprep.subr.mxu0 0.0
  %5212 = vmatpush1.msra.mxu0 0.0
  %5213 = vmatprep.subr.mxu0 0.0
  %5214 = vmatpush1.msra.mxu0 0.0
  %5215 = vmatprep.subr.mxu0 0.0
  %5216 = vmatpush1.msra.mxu0 0.0
  %5217 = vmatprep.subr.mxu0 0.0
  %5218 = vmatpush1.msra.mxu0 0.0
  %5219 = vmatprep.subr.mxu0 0.0
  %5220 = vmatpush1.msra.mxu0 0.0
  %5221 = vmatprep.mubr.f32.mxu0 0.0
  %5222 = vmatmul.mubr.f32.gmra.mrb[0].mxu0 %v5155
  %v5223 = vpop.f32.mrb[0].mxu0
  %v5224 = vadd.f32 %v62, %v5223
  %v5225 = vpop.f32.mrb[0].mxu0
  %5226 = vdwg.mxu0
  %v5227 = vadd.f32 %v5154, %v5224
  %v5228 = vxor.u32 %v5227, 2147483648
  %v5229 = vmul.f32 %v5228, 1.442695
  %v5230 = vpow.pop %v5229
  %v5231 = vadd.f32 %v5230, 1.0
  %v5232 = vrcp.pop %v5231
  %v5233 = vmul.f32 1.0, %v5232
  %5235 = vrot.lane.b32.xlu0 %v5224, 64
  %v5236 = vpop.permute.xlu0 %5235
  %v5238 = vmul.f32 %v5233, %v5236
  %5240 = vrot.lane.b32.xlu0 %v5238, 64
  %v5241 = vpop.permute.xlu0 %5240
  %v5243 = vadd.f32 %v5154, %v5241
  %v5244 = vtanh.pop %v5243
  %v5245 = vsub.f32 1.0, %v5233
  %5247 = vrot.lane.b32.xlu0 %v5244, 96
  %v5248 = vpop.permute.xlu0 %5247
  %v5250 = vmul.f32 %v5245, %v5248
  %v5251 = vmul.f32 %v5233, %v5049
  %v5252 = vadd.f32 %v5250, %v5251
  %5254 = vrot.lane.b32.xlu0 %v5252, 96
  %v5255 = vpop.permute.xlu0 %5254
  %v5257 = vsel %vm64, %v5255, %v5152
  %v5259 = vsel %vm182, %v5257, 0
  %5261 = vmatprep.subr.mxu0 0.0
  %5262 = vmatpush1.msra.mxu0 %v33
  %5263 = vmatprep.subr.mxu0 0.0
  %5264 = vmatpush1.msra.mxu0 %v34
  %5265 = vmatprep.subr.mxu0 0.0
  %5266 = vmatpush1.msra.mxu0 %v35
  %5267 = vmatprep.subr.mxu0 0.0
  %5268 = vmatpush1.msra.mxu0 %v36
  %5269 = vmatprep.subr.mxu0 0.0
  %5270 = vmatpush1.msra.mxu0 %v37
  %5271 = vmatprep.subr.mxu0 0.0
  %5272 = vmatpush1.msra.mxu0 %v38
  %5273 = vmatprep.subr.mxu0 0.0
  %5274 = vmatpush1.msra.mxu0 %v39
  %5275 = vmatprep.subr.mxu0 0.0
  %5276 = vmatpush1.msra.mxu0 %v40
  %5277 = vmatprep.subr.mxu0 0.0
  %5278 = vmatpush1.msra.mxu0 0.0
  %5279 = vmatprep.subr.mxu0 0.0
  %5280 = vmatpush1.msra.mxu0 0.0
  %5281 = vmatprep.subr.mxu0 0.0
  %5282 = vmatpush1.msra.mxu0 0.0
  %5283 = vmatprep.subr.mxu0 0.0
  %5284 = vmatpush1.msra.mxu0 0.0
  %5285 = vmatprep.subr.mxu0 0.0
  %5286 = vmatpush1.msra.mxu0 0.0
  %5287 = vmatprep.subr.mxu0 0.0
  %5288 = vmatpush1.msra.mxu0 0.0
  %5289 = vmatprep.subr.mxu0 0.0
  %5290 = vmatpush1.msra.mxu0 0.0
  %5291 = vmatprep.subr.mxu0 0.0
  %5292 = vmatpush1.msra.mxu0 0.0
  %5293 = vmatprep.subr.mxu0 0.0
  %5294 = vmatpush1.msra.mxu0 0.0
  %5295 = vmatprep.subr.mxu0 0.0
  %5296 = vmatpush1.msra.mxu0 0.0
  %5297 = vmatprep.subr.mxu0 0.0
  %5298 = vmatpush1.msra.mxu0 0.0
  %5299 = vmatprep.subr.mxu0 0.0
  %5300 = vmatpush1.msra.mxu0 0.0
  %5301 = vmatprep.subr.mxu0 0.0
  %5302 = vmatpush1.msra.mxu0 0.0
  %5303 = vmatprep.subr.mxu0 0.0
  %5304 = vmatpush1.msra.mxu0 0.0
  %5305 = vmatprep.subr.mxu0 0.0
  %5306 = vmatpush1.msra.mxu0 0.0
  %5307 = vmatprep.subr.mxu0 0.0
  %5308 = vmatpush1.msra.mxu0 0.0
  %5309 = vmatprep.subr.mxu0 0.0
  %5310 = vmatpush1.msra.mxu0 0.0
  %5311 = vmatprep.subr.mxu0 0.0
  %5312 = vmatpush1.msra.mxu0 0.0
  %5313 = vmatprep.subr.mxu0 0.0
  %5314 = vmatpush1.msra.mxu0 0.0
  %5315 = vmatprep.subr.mxu0 0.0
  %5316 = vmatpush1.msra.mxu0 0.0
  %5317 = vmatprep.subr.mxu0 0.0
  %5318 = vmatpush1.msra.mxu0 0.0
  %5319 = vmatprep.subr.mxu0 0.0
  %5320 = vmatpush1.msra.mxu0 0.0
  %5321 = vmatprep.subr.mxu0 0.0
  %5322 = vmatpush1.msra.mxu0 0.0
  %5323 = vmatprep.subr.mxu0 0.0
  %5324 = vmatpush1.msra.mxu0 0.0
  %5325 = vmatprep.mubr.f32.mxu0 0.0
  %5326 = vmatmul.mubr.f32.gmra.mrb[0].mxu0 %v5259
  %v5327 = vpop.f32.mrb[0].mxu0
  %v5328 = vadd.f32 %v180, %v5327
  %v5329 = vpop.f32.mrb[0].mxu0
  %5330 = vdwg.mxu0
  %v5331 = vxor.u32 %v5328, 2147483648
  %v5332 = vmul.f32 %v5331, 1.442695
  %v5333 = vpow.pop %v5332
  %v5334 = vadd.f32 %v5333, 1.0
  %v5335 = vrcp.pop %v5334
  %v5336 = vmul.f32 1.0, %v5335
  %5338 = vrot.lane.b32.xlu0 %v5328, 32
  %v5339 = vpop.permute.xlu0 %5338
  %v5341 = vmul.f32 %v5336, %v5339
  %5343 = vrot.lane.b32.xlu0 %v5341, 64
  %v5344 = vpop.permute.xlu0 %5343
  %v5346 = vadd.f32 %v5328, %v5344
  %v5347 = vtanh.pop %v5346
  %v5348 = vsub.f32 1.0, %v5336
  %5350 = vrot.lane.b32.xlu0 %v5347, 96
  %v5351 = vpop.permute.xlu0 %5350
  %v5353 = vmul.f32 %v5348, %v5351
  %v5354 = vmul.f32 %v5336, %v5152
  %v5355 = vadd.f32 %v5353, %v5354
  %s5356 = scalar_lea.vmem %s0, 208
  %v5357 = vld [vmem:[%s5356] sm:$0xff]
  %v5358 = vsel %vm64, %v5255, 0
  %5360 = vmatprep.subr.mxu0 0.0
  %5361 = vmatpush1.msra.mxu0 %v28
  %5362 = vmatprep.subr.mxu0 0.0
  %5363 = vmatpush1.msra.mxu0 %v29
  %5364 = vmatprep.subr.mxu0 0.0
  %5365 = vmatpush1.msra.mxu0 %v30
  %5366 = vmatprep.subr.mxu0 0.0
  %5367 = vmatpush1.msra.mxu0 %v31
  %5368 = vmatprep.subr.mxu0 0.0
  %5369 = vmatpush1.msra.mxu0 0.0
  %5370 = vmatprep.subr.mxu0 0.0
  %5371 = vmatpush1.msra.mxu0 0.0
  %5372 = vmatprep.subr.mxu0 0.0
  %5373 = vmatpush1.msra.mxu0 0.0
  %5374 = vmatprep.subr.mxu0 0.0
  %5375 = vmatpush1.msra.mxu0 0.0
  %5376 = vmatprep.subr.mxu0 0.0
  %5377 = vmatpush1.msra.mxu0 0.0
  %5378 = vmatprep.subr.mxu0 0.0
  %5379 = vmatpush1.msra.mxu0 0.0
  %5380 = vmatprep.subr.mxu0 0.0
  %5381 = vmatpush1.msra.mxu0 0.0
  %5382 = vmatprep.subr.mxu0 0.0
  %5383 = vmatpush1.msra.mxu0 0.0
  %5384 = vmatprep.subr.mxu0 0.0
  %5385 = vmatpush1.msra.mxu0 0.0
  %5386 = vmatprep.subr.mxu0 0.0
  %5387 = vmatpush1.msra.mxu0 0.0
  %5388 = vmatprep.subr.mxu0 0.0
  %5389 = vmatpush1.msra.mxu0 0.0
  %5390 = vmatprep.subr.mxu0 0.0
  %5391 = vmatpush1.msra.mxu0 0.0
  %5392 = vmatprep.subr.mxu0 0.0
  %5393 = vmatpush1.msra.mxu0 0.0
  %5394 = vmatprep.subr.mxu0 0.0
  %5395 = vmatpush1.msra.mxu0 0.0
  %5396 = vmatprep.subr.mxu0 0.0
  %5397 = vmatpush1.msra.mxu0 0.0
  %5398 = vmatprep.subr.mxu0 0.0
  %5399 = vmatpush1.msra.mxu0 0.0
  %5400 = vmatprep.subr.mxu0 0.0
  %5401 = vmatpush1.msra.mxu0 0.0
  %5402 = vmatprep.subr.mxu0 0.0
  %5403 = vmatpush1.msra.mxu0 0.0
  %5404 = vmatprep.subr.mxu0 0.0
  %5405 = vmatpush1.msra.mxu0 0.0
  %5406 = vmatprep.subr.mxu0 0.0
  %5407 = vmatpush1.msra.mxu0 0.0
  %5408 = vmatprep.subr.mxu0 0.0
  %5409 = vmatpush1.msra.mxu0 0.0
  %5410 = vmatprep.subr.mxu0 0.0
  %5411 = vmatpush1.msra.mxu0 0.0
  %5412 = vmatprep.subr.mxu0 0.0
  %5413 = vmatpush1.msra.mxu0 0.0
  %5414 = vmatprep.subr.mxu0 0.0
  %5415 = vmatpush1.msra.mxu0 0.0
  %5416 = vmatprep.subr.mxu0 0.0
  %5417 = vmatpush1.msra.mxu0 0.0
  %5418 = vmatprep.subr.mxu0 0.0
  %5419 = vmatpush1.msra.mxu0 0.0
  %5420 = vmatprep.subr.mxu0 0.0
  %5421 = vmatpush1.msra.mxu0 0.0
  %5422 = vmatprep.subr.mxu0 0.0
  %5423 = vmatpush1.msra.mxu0 0.0
  %5424 = vmatprep.mubr.f32.mxu0 0.0
  %5425 = vmatmul.mubr.f32.gmra.mrb[0].mxu0 %v5358
  %v5426 = vpop.f32.mrb[0].mxu0
  %v5427 = vadd.f32 %v62, %v5426
  %v5428 = vpop.f32.mrb[0].mxu0
  %5429 = vdwg.mxu0
  %v5430 = vadd.f32 %v5357, %v5427
  %v5431 = vxor.u32 %v5430, 2147483648
  %v5432 = vmul.f32 %v5431, 1.442695
  %v5433 = vpow.pop %v5432
  %v5434 = vadd.f32 %v5433, 1.0
  %v5435 = vrcp.pop %v5434
  %v5436 = vmul.f32 1.0, %v5435
  %5438 = vrot.lane.b32.xlu0 %v5427, 64
  %v5439 = vpop.permute.xlu0 %5438
  %v5441 = vmul.f32 %v5436, %v5439
  %5443 = vrot.lane.b32.xlu0 %v5441, 64
  %v5444 = vpop.permute.xlu0 %5443
  %v5446 = vadd.f32 %v5357, %v5444
  %v5447 = vtanh.pop %v5446
  %v5448 = vsub.f32 1.0, %v5436
  %5450 = vrot.lane.b32.xlu0 %v5447, 96
  %v5451 = vpop.permute.xlu0 %5450
  %v5453 = vmul.f32 %v5448, %v5451
  %v5454 = vmul.f32 %v5436, %v5252
  %v5455 = vadd.f32 %v5453, %v5454
  %5457 = vrot.lane.b32.xlu0 %v5455, 96
  %v5458 = vpop.permute.xlu0 %5457
  %v5460 = vsel %vm64, %v5458, %v5355
  %v5462 = vsel %vm182, %v5460, 0
  %5464 = vmatprep.subr.mxu0 0.0
  %5465 = vmatpush1.msra.mxu0 %v33
  %5466 = vmatprep.subr.mxu0 0.0
  %5467 = vmatpush1.msra.mxu0 %v34
  %5468 = vmatprep.subr.mxu0 0.0
  %5469 = vmatpush1.msra.mxu0 %v35
  %5470 = vmatprep.subr.mxu0 0.0
  %5471 = vmatpush1.msra.mxu0 %v36
  %5472 = vmatprep.subr.mxu0 0.0
  %5473 = vmatpush1.msra.mxu0 %v37
  %5474 = vmatprep.subr.mxu0 0.0
  %5475 = vmatpush1.msra.mxu0 %v38
  %5476 = vmatprep.subr.mxu0 0.0
  %5477 = vmatpush1.msra.mxu0 %v39
  %5478 = vmatprep.subr.mxu0 0.0
  %5479 = vmatpush1.msra.mxu0 %v40
  %5480 = vmatprep.subr.mxu0 0.0
  %5481 = vmatpush1.msra.mxu0 0.0
  %5482 = vmatprep.subr.mxu0 0.0
  %5483 = vmatpush1.msra.mxu0 0.0
  %5484 = vmatprep.subr.mxu0 0.0
  %5485 = vmatpush1.msra.mxu0 0.0
  %5486 = vmatprep.subr.mxu0 0.0
  %5487 = vmatpush1.msra.mxu0 0.0
  %5488 = vmatprep.subr.mxu0 0.0
  %5489 = vmatpush1.msra.mxu0 0.0
  %5490 = vmatprep.subr.mxu0 0.0
  %5491 = vmatpush1.msra.mxu0 0.0
  %5492 = vmatprep.subr.mxu0 0.0
  %5493 = vmatpush1.msra.mxu0 0.0
  %5494 = vmatprep.subr.mxu0 0.0
  %5495 = vmatpush1.msra.mxu0 0.0
  %5496 = vmatprep.subr.mxu0 0.0
  %5497 = vmatpush1.msra.mxu0 0.0
  %5498 = vmatprep.subr.mxu0 0.0
  %5499 = vmatpush1.msra.mxu0 0.0
  %5500 = vmatprep.subr.mxu0 0.0
  %5501 = vmatpush1.msra.mxu0 0.0
  %5502 = vmatprep.subr.mxu0 0.0
  %5503 = vmatpush1.msra.mxu0 0.0
  %5504 = vmatprep.subr.mxu0 0.0
  %5505 = vmatpush1.msra.mxu0 0.0
  %5506 = vmatprep.subr.mxu0 0.0
  %5507 = vmatpush1.msra.mxu0 0.0
  %5508 = vmatprep.subr.mxu0 0.0
  %5509 = vmatpush1.msra.mxu0 0.0
  %5510 = vmatprep.subr.mxu0 0.0
  %5511 = vmatpush1.msra.mxu0 0.0
  %5512 = vmatprep.subr.mxu0 0.0
  %5513 = vmatpush1.msra.mxu0 0.0
  %5514 = vmatprep.subr.mxu0 0.0
  %5515 = vmatpush1.msra.mxu0 0.0
  %5516 = vmatprep.subr.mxu0 0.0
  %5517 = vmatpush1.msra.mxu0 0.0
  %5518 = vmatprep.subr.mxu0 0.0
  %5519 = vmatpush1.msra.mxu0 0.0
  %5520 = vmatprep.subr.mxu0 0.0
  %5521 = vmatpush1.msra.mxu0 0.0
  %5522 = vmatprep.subr.mxu0 0.0
  %5523 = vmatpush1.msra.mxu0 0.0
  %5524 = vmatprep.subr.mxu0 0.0
  %5525 = vmatpush1.msra.mxu0 0.0
  %5526 = vmatprep.subr.mxu0 0.0
  %5527 = vmatpush1.msra.mxu0 0.0
  %5528 = vmatprep.mubr.f32.mxu0 0.0
  %5529 = vmatmul.mubr.f32.gmra.mrb[0].mxu0 %v5462
  %v5530 = vpop.f32.mrb[0].mxu0
  %v5531 = vadd.f32 %v180, %v5530
  %v5532 = vpop.f32.mrb[0].mxu0
  %5533 = vdwg.mxu0
  %v5534 = vxor.u32 %v5531, 2147483648
  %v5535 = vmul.f32 %v5534, 1.442695
  %v5536 = vpow.pop %v5535
  %v5537 = vadd.f32 %v5536, 1.0
  %v5538 = vrcp.pop %v5537
  %v5539 = vmul.f32 1.0, %v5538
  %5541 = vrot.lane.b32.xlu0 %v5531, 32
  %v5542 = vpop.permute.xlu0 %5541
  %v5544 = vmul.f32 %v5539, %v5542
  %5546 = vrot.lane.b32.xlu0 %v5544, 64
  %v5547 = vpop.permute.xlu0 %5546
  %v5549 = vadd.f32 %v5531, %v5547
  %v5550 = vtanh.pop %v5549
  %v5551 = vsub.f32 1.0, %v5539
  %5553 = vrot.lane.b32.xlu0 %v5550, 96
  %v5554 = vpop.permute.xlu0 %5553
  %v5556 = vmul.f32 %v5551, %v5554
  %v5557 = vmul.f32 %v5539, %v5355
  %v5558 = vadd.f32 %v5556, %v5557
  %s5559 = scalar_lea.vmem %s0, 216
  %v5560 = vld [vmem:[%s5559] sm:$0xff]
  %v5561 = vsel %vm64, %v5458, 0
  %5563 = vmatprep.subr.mxu0 0.0
  %5564 = vmatpush1.msra.mxu0 %v28
  %5565 = vmatprep.subr.mxu0 0.0
  %5566 = vmatpush1.msra.mxu0 %v29
  %5567 = vmatprep.subr.mxu0 0.0
  %5568 = vmatpush1.msra.mxu0 %v30
  %5569 = vmatprep.subr.mxu0 0.0
  %5570 = vmatpush1.msra.mxu0 %v31
  %5571 = vmatprep.subr.mxu0 0.0
  %5572 = vmatpush1.msra.mxu0 0.0
  %5573 = vmatprep.subr.mxu0 0.0
  %5574 = vmatpush1.msra.mxu0 0.0
  %5575 = vmatprep.subr.mxu0 0.0
  %5576 = vmatpush1.msra.mxu0 0.0
  %5577 = vmatprep.subr.mxu0 0.0
  %5578 = vmatpush1.msra.mxu0 0.0
  %5579 = vmatprep.subr.mxu0 0.0
  %5580 = vmatpush1.msra.mxu0 0.0
  %5581 = vmatprep.subr.mxu0 0.0
  %5582 = vmatpush1.msra.mxu0 0.0
  %5583 = vmatprep.subr.mxu0 0.0
  %5584 = vmatpush1.msra.mxu0 0.0
  %5585 = vmatprep.subr.mxu0 0.0
  %5586 = vmatpush1.msra.mxu0 0.0
  %5587 = vmatprep.subr.mxu0 0.0
  %5588 = vmatpush1.msra.mxu0 0.0
  %5589 = vmatprep.subr.mxu0 0.0
  %5590 = vmatpush1.msra.mxu0 0.0
  %5591 = vmatprep.subr.mxu0 0.0
  %5592 = vmatpush1.msra.mxu0 0.0
  %5593 = vmatprep.subr.mxu0 0.0
  %5594 = vmatpush1.msra.mxu0 0.0
  %5595 = vmatprep.subr.mxu0 0.0
  %5596 = vmatpush1.msra.mxu0 0.0
  %5597 = vmatprep.subr.mxu0 0.0
  %5598 = vmatpush1.msra.mxu0 0.0
  %5599 = vmatprep.subr.mxu0 0.0
  %5600 = vmatpush1.msra.mxu0 0.0
  %5601 = vmatprep.subr.mxu0 0.0
  %5602 = vmatpush1.msra.mxu0 0.0
  %5603 = vmatprep.subr.mxu0 0.0
  %5604 = vmatpush1.msra.mxu0 0.0
  %5605 = vmatprep.subr.mxu0 0.0
  %5606 = vmatpush1.msra.mxu0 0.0
  %5607 = vmatprep.subr.mxu0 0.0
  %5608 = vmatpush1.msra.mxu0 0.0
  %5609 = vmatprep.subr.mxu0 0.0
  %5610 = vmatpush1.msra.mxu0 0.0
  %5611 = vmatprep.subr.mxu0 0.0
  %5612 = vmatpush1.msra.mxu0 0.0
  %5613 = vmatprep.subr.mxu0 0.0
  %5614 = vmatpush1.msra.mxu0 0.0
  %5615 = vmatprep.subr.mxu0 0.0
  %5616 = vmatpush1.msra.mxu0 0.0
  %5617 = vmatprep.subr.mxu0 0.0
  %5618 = vmatpush1.msra.mxu0 0.0
  %5619 = vmatprep.subr.mxu0 0.0
  %5620 = vmatpush1.msra.mxu0 0.0
  %5621 = vmatprep.subr.mxu0 0.0
  %5622 = vmatpush1.msra.mxu0 0.0
  %5623 = vmatprep.subr.mxu0 0.0
  %5624 = vmatpush1.msra.mxu0 0.0
  %5625 = vmatprep.subr.mxu0 0.0
  %5626 = vmatpush1.msra.mxu0 0.0
  %5627 = vmatprep.mubr.f32.mxu0 0.0
  %5628 = vmatmul.mubr.f32.gmra.mrb[0].mxu0 %v5561
  %v5629 = vpop.f32.mrb[0].mxu0
  %v5630 = vadd.f32 %v62, %v5629
  %v5631 = vpop.f32.mrb[0].mxu0
  %5632 = vdwg.mxu0
  %v5633 = vadd.f32 %v5560, %v5630
  %v5634 = vxor.u32 %v5633, 2147483648
  %v5635 = vmul.f32 %v5634, 1.442695
  %v5636 = vpow.pop %v5635
  %v5637 = vadd.f32 %v5636, 1.0
  %v5638 = vrcp.pop %v5637
  %v5639 = vmul.f32 1.0, %v5638
  %5641 = vrot.lane.b32.xlu0 %v5630, 64
  %v5642 = vpop.permute.xlu0 %5641
  %v5644 = vmul.f32 %v5639, %v5642
  %5646 = vrot.lane.b32.xlu0 %v5644, 64
  %v5647 = vpop.permute.xlu0 %5646
  %v5649 = vadd.f32 %v5560, %v5647
  %v5650 = vtanh.pop %v5649
  %v5651 = vsub.f32 1.0, %v5639
  %5653 = vrot.lane.b32.xlu0 %v5650, 96
  %v5654 = vpop.permute.xlu0 %5653
  %v5656 = vmul.f32 %v5651, %v5654
  %v5657 = vmul.f32 %v5639, %v5455
  %v5658 = vadd.f32 %v5656, %v5657
  %5660 = vrot.lane.b32.xlu0 %v5658, 96
  %v5661 = vpop.permute.xlu0 %5660
  %v5663 = vsel %vm64, %v5661, %v5558
  %v5665 = vsel %vm182, %v5663, 0
  %5667 = vmatprep.subr.mxu0 0.0
  %5668 = vmatpush1.msra.mxu0 %v33
  %5669 = vmatprep.subr.mxu0 0.0
  %5670 = vmatpush1.msra.mxu0 %v34
  %5671 = vmatprep.subr.mxu0 0.0
  %5672 = vmatpush1.msra.mxu0 %v35
  %5673 = vmatprep.subr.mxu0 0.0
  %5674 = vmatpush1.msra.mxu0 %v36
  %5675 = vmatprep.subr.mxu0 0.0
  %5676 = vmatpush1.msra.mxu0 %v37
  %5677 = vmatprep.subr.mxu0 0.0
  %5678 = vmatpush1.msra.mxu0 %v38
  %5679 = vmatprep.subr.mxu0 0.0
  %5680 = vmatpush1.msra.mxu0 %v39
  %5681 = vmatprep.subr.mxu0 0.0
  %5682 = vmatpush1.msra.mxu0 %v40
  %5683 = vmatprep.subr.mxu0 0.0
  %5684 = vmatpush1.msra.mxu0 0.0
  %5685 = vmatprep.subr.mxu0 0.0
  %5686 = vmatpush1.msra.mxu0 0.0
  %5687 = vmatprep.subr.mxu0 0.0
  %5688 = vmatpush1.msra.mxu0 0.0
  %5689 = vmatprep.subr.mxu0 0.0
  %5690 = vmatpush1.msra.mxu0 0.0
  %5691 = vmatprep.subr.mxu0 0.0
  %5692 = vmatpush1.msra.mxu0 0.0
  %5693 = vmatprep.subr.mxu0 0.0
  %5694 = vmatpush1.msra.mxu0 0.0
  %5695 = vmatprep.subr.mxu0 0.0
  %5696 = vmatpush1.msra.mxu0 0.0
  %5697 = vmatprep.subr.mxu0 0.0
  %5698 = vmatpush1.msra.mxu0 0.0
  %5699 = vmatprep.subr.mxu0 0.0
  %5700 = vmatpush1.msra.mxu0 0.0
  %5701 = vmatprep.subr.mxu0 0.0
  %5702 = vmatpush1.msra.mxu0 0.0
  %5703 = vmatprep.subr.mxu0 0.0
  %5704 = vmatpush1.msra.mxu0 0.0
  %5705 = vmatprep.subr.mxu0 0.0
  %5706 = vmatpush1.msra.mxu0 0.0
  %5707 = vmatprep.subr.mxu0 0.0
  %5708 = vmatpush1.msra.mxu0 0.0
  %5709 = vmatprep.subr.mxu0 0.0
  %5710 = vmatpush1.msra.mxu0 0.0
  %5711 = vmatprep.subr.mxu0 0.0
  %5712 = vmatpush1.msra.mxu0 0.0
  %5713 = vmatprep.subr.mxu0 0.0
  %5714 = vmatpush1.msra.mxu0 0.0
  %5715 = vmatprep.subr.mxu0 0.0
  %5716 = vmatpush1.msra.mxu0 0.0
  %5717 = vmatprep.subr.mxu0 0.0
  %5718 = vmatpush1.msra.mxu0 0.0
  %5719 = vmatprep.subr.mxu0 0.0
  %5720 = vmatpush1.msra.mxu0 0.0
  %5721 = vmatprep.subr.mxu0 0.0
  %5722 = vmatpush1.msra.mxu0 0.0
  %5723 = vmatprep.subr.mxu0 0.0
  %5724 = vmatpush1.msra.mxu0 0.0
  %5725 = vmatprep.subr.mxu0 0.0
  %5726 = vmatpush1.msra.mxu0 0.0
  %5727 = vmatprep.subr.mxu0 0.0
  %5728 = vmatpush1.msra.mxu0 0.0
  %5729 = vmatprep.subr.mxu0 0.0
  %5730 = vmatpush1.msra.mxu0 0.0
  %5731 = vmatprep.mubr.f32.mxu0 0.0
  %5732 = vmatmul.mubr.f32.gmra.mrb[0].mxu0 %v5665
  %v5733 = vpop.f32.mrb[0].mxu0
  %v5734 = vadd.f32 %v180, %v5733
  %v5735 = vpop.f32.mrb[0].mxu0
  %5736 = vdwg.mxu0
  %v5737 = vxor.u32 %v5734, 2147483648
  %v5738 = vmul.f32 %v5737, 1.442695
  %v5739 = vpow.pop %v5738
  %v5740 = vadd.f32 %v5739, 1.0
  %v5741 = vrcp.pop %v5740
  %v5742 = vmul.f32 1.0, %v5741
  %5744 = vrot.lane.b32.xlu0 %v5734, 32
  %v5745 = vpop.permute.xlu0 %5744
  %v5747 = vmul.f32 %v5742, %v5745
  %5749 = vrot.lane.b32.xlu0 %v5747, 64
  %v5750 = vpop.permute.xlu0 %5749
  %v5752 = vadd.f32 %v5734, %v5750
  %v5753 = vtanh.pop %v5752
  %v5754 = vsub.f32 1.0, %v5742
  %5756 = vrot.lane.b32.xlu0 %v5753, 96
  %v5757 = vpop.permute.xlu0 %5756
  %v5759 = vmul.f32 %v5754, %v5757
  %v5760 = vmul.f32 %v5742, %v5558
  %v5761 = vadd.f32 %v5759, %v5760
  %s5762 = scalar_lea.vmem %s0, 224
  %v5763 = vld [vmem:[%s5762] sm:$0xff]
  %v5764 = vsel %vm64, %v5661, 0
  %5766 = vmatprep.subr.mxu0 0.0
  %5767 = vmatpush1.msra.mxu0 %v28
  %5768 = vmatprep.subr.mxu0 0.0
  %5769 = vmatpush1.msra.mxu0 %v29
  %5770 = vmatprep.subr.mxu0 0.0
  %5771 = vmatpush1.msra.mxu0 %v30
  %5772 = vmatprep.subr.mxu0 0.0
  %5773 = vmatpush1.msra.mxu0 %v31
  %5774 = vmatprep.subr.mxu0 0.0
  %5775 = vmatpush1.msra.mxu0 0.0
  %5776 = vmatprep.subr.mxu0 0.0
  %5777 = vmatpush1.msra.mxu0 0.0
  %5778 = vmatprep.subr.mxu0 0.0
  %5779 = vmatpush1.msra.mxu0 0.0
  %5780 = vmatprep.subr.mxu0 0.0
  %5781 = vmatpush1.msra.mxu0 0.0
  %5782 = vmatprep.subr.mxu0 0.0
  %5783 = vmatpush1.msra.mxu0 0.0
  %5784 = vmatprep.subr.mxu0 0.0
  %5785 = vmatpush1.msra.mxu0 0.0
  %5786 = vmatprep.subr.mxu0 0.0
  %5787 = vmatpush1.msra.mxu0 0.0
  %5788 = vmatprep.subr.mxu0 0.0
  %5789 = vmatpush1.msra.mxu0 0.0
  %5790 = vmatprep.subr.mxu0 0.0
  %5791 = vmatpush1.msra.mxu0 0.0
  %5792 = vmatprep.subr.mxu0 0.0
  %5793 = vmatpush1.msra.mxu0 0.0
  %5794 = vmatprep.subr.mxu0 0.0
  %5795 = vmatpush1.msra.mxu0 0.0
  %5796 = vmatprep.subr.mxu0 0.0
  %5797 = vmatpush1.msra.mxu0 0.0
  %5798 = vmatprep.subr.mxu0 0.0
  %5799 = vmatpush1.msra.mxu0 0.0
  %5800 = vmatprep.subr.mxu0 0.0
  %5801 = vmatpush1.msra.mxu0 0.0
  %5802 = vmatprep.subr.mxu0 0.0
  %5803 = vmatpush1.msra.mxu0 0.0
  %5804 = vmatprep.subr.mxu0 0.0
  %5805 = vmatpush1.msra.mxu0 0.0
  %5806 = vmatprep.subr.mxu0 0.0
  %5807 = vmatpush1.msra.mxu0 0.0
  %5808 = vmatprep.subr.mxu0 0.0
  %5809 = vmatpush1.msra.mxu0 0.0
  %5810 = vmatprep.subr.mxu0 0.0
  %5811 = vmatpush1.msra.mxu0 0.0
  %5812 = vmatprep.subr.mxu0 0.0
  %5813 = vmatpush1.msra.mxu0 0.0
  %5814 = vmatprep.subr.mxu0 0.0
  %5815 = vmatpush1.msra.mxu0 0.0
  %5816 = vmatprep.subr.mxu0 0.0
  %5817 = vmatpush1.msra.mxu0 0.0
  %5818 = vmatprep.subr.mxu0 0.0
  %5819 = vmatpush1.msra.mxu0 0.0
  %5820 = vmatprep.subr.mxu0 0.0
  %5821 = vmatpush1.msra.mxu0 0.0
  %5822 = vmatprep.subr.mxu0 0.0
  %5823 = vmatpush1.msra.mxu0 0.0
  %5824 = vmatprep.subr.mxu0 0.0
  %5825 = vmatpush1.msra.mxu0 0.0
  %5826 = vmatprep.subr.mxu0 0.0
  %5827 = vmatpush1.msra.mxu0 0.0
  %5828 = vmatprep.subr.mxu0 0.0
  %5829 = vmatpush1.msra.mxu0 0.0
  %5830 = vmatprep.mubr.f32.mxu0 0.0
  %5831 = vmatmul.mubr.f32.gmra.mrb[0].mxu0 %v5764
  %v5832 = vpop.f32.mrb[0].mxu0
  %v5833 = vadd.f32 %v62, %v5832
  %v5834 = vpop.f32.mrb[0].mxu0
  %5835 = vdwg.mxu0
  %v5836 = vadd.f32 %v5763, %v5833
  %v5837 = vxor.u32 %v5836, 2147483648
  %v5838 = vmul.f32 %v5837, 1.442695
  %v5839 = vpow.pop %v5838
  %v5840 = vadd.f32 %v5839, 1.0
  %v5841 = vrcp.pop %v5840
  %v5842 = vmul.f32 1.0, %v5841
  %5844 = vrot.lane.b32.xlu0 %v5833, 64
  %v5845 = vpop.permute.xlu0 %5844
  %v5847 = vmul.f32 %v5842, %v5845
  %5849 = vrot.lane.b32.xlu0 %v5847, 64
  %v5850 = vpop.permute.xlu0 %5849
  %v5852 = vadd.f32 %v5763, %v5850
  %v5853 = vtanh.pop %v5852
  %v5854 = vsub.f32 1.0, %v5842
  %5856 = vrot.lane.b32.xlu0 %v5853, 96
  %v5857 = vpop.permute.xlu0 %5856
  %v5859 = vmul.f32 %v5854, %v5857
  %v5860 = vmul.f32 %v5842, %v5658
  %v5861 = vadd.f32 %v5859, %v5860
  %5863 = vrot.lane.b32.xlu0 %v5861, 96
  %v5864 = vpop.permute.xlu0 %5863
  %v5866 = vsel %vm64, %v5864, %v5761
  %v5868 = vsel %vm182, %v5866, 0
  %5870 = vmatprep.subr.mxu0 0.0
  %5871 = vmatpush1.msra.mxu0 %v33
  %5872 = vmatprep.subr.mxu0 0.0
  %5873 = vmatpush1.msra.mxu0 %v34
  %5874 = vmatprep.subr.mxu0 0.0
  %5875 = vmatpush1.msra.mxu0 %v35
  %5876 = vmatprep.subr.mxu0 0.0
  %5877 = vmatpush1.msra.mxu0 %v36
  %5878 = vmatprep.subr.mxu0 0.0
  %5879 = vmatpush1.msra.mxu0 %v37
  %5880 = vmatprep.subr.mxu0 0.0
  %5881 = vmatpush1.msra.mxu0 %v38
  %5882 = vmatprep.subr.mxu0 0.0
  %5883 = vmatpush1.msra.mxu0 %v39
  %5884 = vmatprep.subr.mxu0 0.0
  %5885 = vmatpush1.msra.mxu0 %v40
  %5886 = vmatprep.subr.mxu0 0.0
  %5887 = vmatpush1.msra.mxu0 0.0
  %5888 = vmatprep.subr.mxu0 0.0
  %5889 = vmatpush1.msra.mxu0 0.0
  %5890 = vmatprep.subr.mxu0 0.0
  %5891 = vmatpush1.msra.mxu0 0.0
  %5892 = vmatprep.subr.mxu0 0.0
  %5893 = vmatpush1.msra.mxu0 0.0
  %5894 = vmatprep.subr.mxu0 0.0
  %5895 = vmatpush1.msra.mxu0 0.0
  %5896 = vmatprep.subr.mxu0 0.0
  %5897 = vmatpush1.msra.mxu0 0.0
  %5898 = vmatprep.subr.mxu0 0.0
  %5899 = vmatpush1.msra.mxu0 0.0
  %5900 = vmatprep.subr.mxu0 0.0
  %5901 = vmatpush1.msra.mxu0 0.0
  %5902 = vmatprep.subr.mxu0 0.0
  %5903 = vmatpush1.msra.mxu0 0.0
  %5904 = vmatprep.subr.mxu0 0.0
  %5905 = vmatpush1.msra.mxu0 0.0
  %5906 = vmatprep.subr.mxu0 0.0
  %5907 = vmatpush1.msra.mxu0 0.0
  %5908 = vmatprep.subr.mxu0 0.0
  %5909 = vmatpush1.msra.mxu0 0.0
  %5910 = vmatprep.subr.mxu0 0.0
  %5911 = vmatpush1.msra.mxu0 0.0
  %5912 = vmatprep.subr.mxu0 0.0
  %5913 = vmatpush1.msra.mxu0 0.0
  %5914 = vmatprep.subr.mxu0 0.0
  %5915 = vmatpush1.msra.mxu0 0.0
  %5916 = vmatprep.subr.mxu0 0.0
  %5917 = vmatpush1.msra.mxu0 0.0
  %5918 = vmatprep.subr.mxu0 0.0
  %5919 = vmatpush1.msra.mxu0 0.0
  %5920 = vmatprep.subr.mxu0 0.0
  %5921 = vmatpush1.msra.mxu0 0.0
  %5922 = vmatprep.subr.mxu0 0.0
  %5923 = vmatpush1.msra.mxu0 0.0
  %5924 = vmatprep.subr.mxu0 0.0
  %5925 = vmatpush1.msra.mxu0 0.0
  %5926 = vmatprep.subr.mxu0 0.0
  %5927 = vmatpush1.msra.mxu0 0.0
  %5928 = vmatprep.subr.mxu0 0.0
  %5929 = vmatpush1.msra.mxu0 0.0
  %5930 = vmatprep.subr.mxu0 0.0
  %5931 = vmatpush1.msra.mxu0 0.0
  %5932 = vmatprep.subr.mxu0 0.0
  %5933 = vmatpush1.msra.mxu0 0.0
  %5934 = vmatprep.mubr.f32.mxu0 0.0
  %5935 = vmatmul.mubr.f32.gmra.mrb[0].mxu0 %v5868
  %v5936 = vpop.f32.mrb[0].mxu0
  %v5937 = vadd.f32 %v180, %v5936
  %v5938 = vpop.f32.mrb[0].mxu0
  %5939 = vdwg.mxu0
  %v5940 = vxor.u32 %v5937, 2147483648
  %v5941 = vmul.f32 %v5940, 1.442695
  %v5942 = vpow.pop %v5941
  %v5943 = vadd.f32 %v5942, 1.0
  %v5944 = vrcp.pop %v5943
  %v5945 = vmul.f32 1.0, %v5944
  %5947 = vrot.lane.b32.xlu0 %v5937, 32
  %v5948 = vpop.permute.xlu0 %5947
  %v5950 = vmul.f32 %v5945, %v5948
  %5952 = vrot.lane.b32.xlu0 %v5950, 64
  %v5953 = vpop.permute.xlu0 %5952
  %v5955 = vadd.f32 %v5937, %v5953
  %v5956 = vtanh.pop %v5955
  %v5957 = vsub.f32 1.0, %v5945
  %5959 = vrot.lane.b32.xlu0 %v5956, 96
  %v5960 = vpop.permute.xlu0 %5959
  %v5962 = vmul.f32 %v5957, %v5960
  %v5963 = vmul.f32 %v5945, %v5761
  %v5964 = vadd.f32 %v5962, %v5963
  %s5965 = scalar_lea.vmem %s0, 232
  %v5966 = vld [vmem:[%s5965] sm:$0xff]
  %v5967 = vsel %vm64, %v5864, 0
  %5969 = vmatprep.subr.mxu0 0.0
  %5970 = vmatpush1.msra.mxu0 %v28
  %5971 = vmatprep.subr.mxu0 0.0
  %5972 = vmatpush1.msra.mxu0 %v29
  %5973 = vmatprep.subr.mxu0 0.0
  %5974 = vmatpush1.msra.mxu0 %v30
  %5975 = vmatprep.subr.mxu0 0.0
  %5976 = vmatpush1.msra.mxu0 %v31
  %5977 = vmatprep.subr.mxu0 0.0
  %5978 = vmatpush1.msra.mxu0 0.0
  %5979 = vmatprep.subr.mxu0 0.0
  %5980 = vmatpush1.msra.mxu0 0.0
  %5981 = vmatprep.subr.mxu0 0.0
  %5982 = vmatpush1.msra.mxu0 0.0
  %5983 = vmatprep.subr.mxu0 0.0
  %5984 = vmatpush1.msra.mxu0 0.0
  %5985 = vmatprep.subr.mxu0 0.0
  %5986 = vmatpush1.msra.mxu0 0.0
  %5987 = vmatprep.subr.mxu0 0.0
  %5988 = vmatpush1.msra.mxu0 0.0
  %5989 = vmatprep.subr.mxu0 0.0
  %5990 = vmatpush1.msra.mxu0 0.0
  %5991 = vmatprep.subr.mxu0 0.0
  %5992 = vmatpush1.msra.mxu0 0.0
  %5993 = vmatprep.subr.mxu0 0.0
  %5994 = vmatpush1.msra.mxu0 0.0
  %5995 = vmatprep.subr.mxu0 0.0
  %5996 = vmatpush1.msra.mxu0 0.0
  %5997 = vmatprep.subr.mxu0 0.0
  %5998 = vmatpush1.msra.mxu0 0.0
  %5999 = vmatprep.subr.mxu0 0.0
  %6000 = vmatpush1.msra.mxu0 0.0
  %6001 = vmatprep.subr.mxu0 0.0
  %6002 = vmatpush1.msra.mxu0 0.0
  %6003 = vmatprep.subr.mxu0 0.0
  %6004 = vmatpush1.msra.mxu0 0.0
  %6005 = vmatprep.subr.mxu0 0.0
  %6006 = vmatpush1.msra.mxu0 0.0
  %6007 = vmatprep.subr.mxu0 0.0
  %6008 = vmatpush1.msra.mxu0 0.0
  %6009 = vmatprep.subr.mxu0 0.0
  %6010 = vmatpush1.msra.mxu0 0.0
  %6011 = vmatprep.subr.mxu0 0.0
  %6012 = vmatpush1.msra.mxu0 0.0
  %6013 = vmatprep.subr.mxu0 0.0
  %6014 = vmatpush1.msra.mxu0 0.0
  %6015 = vmatprep.subr.mxu0 0.0
  %6016 = vmatpush1.msra.mxu0 0.0
  %6017 = vmatprep.subr.mxu0 0.0
  %6018 = vmatpush1.msra.mxu0 0.0
  %6019 = vmatprep.subr.mxu0 0.0
  %6020 = vmatpush1.msra.mxu0 0.0
  %6021 = vmatprep.subr.mxu0 0.0
  %6022 = vmatpush1.msra.mxu0 0.0
  %6023 = vmatprep.subr.mxu0 0.0
  %6024 = vmatpush1.msra.mxu0 0.0
  %6025 = vmatprep.subr.mxu0 0.0
  %6026 = vmatpush1.msra.mxu0 0.0
  %6027 = vmatprep.subr.mxu0 0.0
  %6028 = vmatpush1.msra.mxu0 0.0
  %6029 = vmatprep.subr.mxu0 0.0
  %6030 = vmatpush1.msra.mxu0 0.0
  %6031 = vmatprep.subr.mxu0 0.0
  %6032 = vmatpush1.msra.mxu0 0.0
  %6033 = vmatprep.mubr.f32.mxu0 0.0
  %6034 = vmatmul.mubr.f32.gmra.mrb[0].mxu0 %v5967
  %v6035 = vpop.f32.mrb[0].mxu0
  %v6036 = vadd.f32 %v62, %v6035
  %v6037 = vpop.f32.mrb[0].mxu0
  %6038 = vdwg.mxu0
  %v6039 = vadd.f32 %v5966, %v6036
  %v6040 = vxor.u32 %v6039, 2147483648
  %v6041 = vmul.f32 %v6040, 1.442695
  %v6042 = vpow.pop %v6041
  %v6043 = vadd.f32 %v6042, 1.0
  %v6044 = vrcp.pop %v6043
  %v6045 = vmul.f32 1.0, %v6044
  %6047 = vrot.lane.b32.xlu0 %v6036, 64
  %v6048 = vpop.permute.xlu0 %6047
  %v6050 = vmul.f32 %v6045, %v6048
  %6052 = vrot.lane.b32.xlu0 %v6050, 64
  %v6053 = vpop.permute.xlu0 %6052
  %v6055 = vadd.f32 %v5966, %v6053
  %v6056 = vtanh.pop %v6055
  %v6057 = vsub.f32 1.0, %v6045
  %6059 = vrot.lane.b32.xlu0 %v6056, 96
  %v6060 = vpop.permute.xlu0 %6059
  %v6062 = vmul.f32 %v6057, %v6060
  %v6063 = vmul.f32 %v6045, %v5861
  %v6064 = vadd.f32 %v6062, %v6063
  %6066 = vrot.lane.b32.xlu0 %v6064, 96
  %v6067 = vpop.permute.xlu0 %6066
  %v6069 = vsel %vm64, %v6067, %v5964
  %v6071 = vsel %vm182, %v6069, 0
  %6073 = vmatprep.subr.mxu0 0.0
  %6074 = vmatpush1.msra.mxu0 %v33
  %6075 = vmatprep.subr.mxu0 0.0
  %6076 = vmatpush1.msra.mxu0 %v34
  %6077 = vmatprep.subr.mxu0 0.0
  %6078 = vmatpush1.msra.mxu0 %v35
  %6079 = vmatprep.subr.mxu0 0.0
  %6080 = vmatpush1.msra.mxu0 %v36
  %6081 = vmatprep.subr.mxu0 0.0
  %6082 = vmatpush1.msra.mxu0 %v37
  %6083 = vmatprep.subr.mxu0 0.0
  %6084 = vmatpush1.msra.mxu0 %v38
  %6085 = vmatprep.subr.mxu0 0.0
  %6086 = vmatpush1.msra.mxu0 %v39
  %6087 = vmatprep.subr.mxu0 0.0
  %6088 = vmatpush1.msra.mxu0 %v40
  %6089 = vmatprep.subr.mxu0 0.0
  %6090 = vmatpush1.msra.mxu0 0.0
  %6091 = vmatprep.subr.mxu0 0.0
  %6092 = vmatpush1.msra.mxu0 0.0
  %6093 = vmatprep.subr.mxu0 0.0
  %6094 = vmatpush1.msra.mxu0 0.0
  %6095 = vmatprep.subr.mxu0 0.0
  %6096 = vmatpush1.msra.mxu0 0.0
  %6097 = vmatprep.subr.mxu0 0.0
  %6098 = vmatpush1.msra.mxu0 0.0
  %6099 = vmatprep.subr.mxu0 0.0
  %6100 = vmatpush1.msra.mxu0 0.0
  %6101 = vmatprep.subr.mxu0 0.0
  %6102 = vmatpush1.msra.mxu0 0.0
  %6103 = vmatprep.subr.mxu0 0.0
  %6104 = vmatpush1.msra.mxu0 0.0
  %6105 = vmatprep.subr.mxu0 0.0
  %6106 = vmatpush1.msra.mxu0 0.0
  %6107 = vmatprep.subr.mxu0 0.0
  %6108 = vmatpush1.msra.mxu0 0.0
  %6109 = vmatprep.subr.mxu0 0.0
  %6110 = vmatpush1.msra.mxu0 0.0
  %6111 = vmatprep.subr.mxu0 0.0
  %6112 = vmatpush1.msra.mxu0 0.0
  %6113 = vmatprep.subr.mxu0 0.0
  %6114 = vmatpush1.msra.mxu0 0.0
  %6115 = vmatprep.subr.mxu0 0.0
  %6116 = vmatpush1.msra.mxu0 0.0
  %6117 = vmatprep.subr.mxu0 0.0
  %6118 = vmatpush1.msra.mxu0 0.0
  %6119 = vmatprep.subr.mxu0 0.0
  %6120 = vmatpush1.msra.mxu0 0.0
  %6121 = vmatprep.subr.mxu0 0.0
  %6122 = vmatpush1.msra.mxu0 0.0
  %6123 = vmatprep.subr.mxu0 0.0
  %6124 = vmatpush1.msra.mxu0 0.0
  %6125 = vmatprep.subr.mxu0 0.0
  %6126 = vmatpush1.msra.mxu0 0.0
  %6127 = vmatprep.subr.mxu0 0.0
  %6128 = vmatpush1.msra.mxu0 0.0
  %6129 = vmatprep.subr.mxu0 0.0
  %6130 = vmatpush1.msra.mxu0 0.0
  %6131 = vmatprep.subr.mxu0 0.0
  %6132 = vmatpush1.msra.mxu0 0.0
  %6133 = vmatprep.subr.mxu0 0.0
  %6134 = vmatpush1.msra.mxu0 0.0
  %6135 = vmatprep.subr.mxu0 0.0
  %6136 = vmatpush1.msra.mxu0 0.0
  %6137 = vmatprep.mubr.f32.mxu0 0.0
  %6138 = vmatmul.mubr.f32.gmra.mrb[0].mxu0 %v6071
  %v6139 = vpop.f32.mrb[0].mxu0
  %v6140 = vadd.f32 %v180, %v6139
  %v6141 = vpop.f32.mrb[0].mxu0
  %6142 = vdwg.mxu0
  %v6143 = vxor.u32 %v6140, 2147483648
  %v6144 = vmul.f32 %v6143, 1.442695
  %v6145 = vpow.pop %v6144
  %v6146 = vadd.f32 %v6145, 1.0
  %v6147 = vrcp.pop %v6146
  %v6148 = vmul.f32 1.0, %v6147
  %6150 = vrot.lane.b32.xlu0 %v6140, 32
  %v6151 = vpop.permute.xlu0 %6150
  %v6153 = vmul.f32 %v6148, %v6151
  %6155 = vrot.lane.b32.xlu0 %v6153, 64
  %v6156 = vpop.permute.xlu0 %6155
  %v6158 = vadd.f32 %v6140, %v6156
  %v6159 = vtanh.pop %v6158
  %v6160 = vsub.f32 1.0, %v6148
  %6162 = vrot.lane.b32.xlu0 %v6159, 96
  %v6163 = vpop.permute.xlu0 %6162
  %v6165 = vmul.f32 %v6160, %v6163
  %v6166 = vmul.f32 %v6148, %v5964
  %v6167 = vadd.f32 %v6165, %v6166
  %s6168 = scalar_lea.vmem %s0, 240
  %v6169 = vld [vmem:[%s6168] sm:$0xff]
  %v6170 = vsel %vm64, %v6067, 0
  %6172 = vmatprep.subr.mxu0 0.0
  %6173 = vmatpush1.msra.mxu0 %v28
  %6174 = vmatprep.subr.mxu0 0.0
  %6175 = vmatpush1.msra.mxu0 %v29
  %6176 = vmatprep.subr.mxu0 0.0
  %6177 = vmatpush1.msra.mxu0 %v30
  %6178 = vmatprep.subr.mxu0 0.0
  %6179 = vmatpush1.msra.mxu0 %v31
  %6180 = vmatprep.subr.mxu0 0.0
  %6181 = vmatpush1.msra.mxu0 0.0
  %6182 = vmatprep.subr.mxu0 0.0
  %6183 = vmatpush1.msra.mxu0 0.0
  %6184 = vmatprep.subr.mxu0 0.0
  %6185 = vmatpush1.msra.mxu0 0.0
  %6186 = vmatprep.subr.mxu0 0.0
  %6187 = vmatpush1.msra.mxu0 0.0
  %6188 = vmatprep.subr.mxu0 0.0
  %6189 = vmatpush1.msra.mxu0 0.0
  %6190 = vmatprep.subr.mxu0 0.0
  %6191 = vmatpush1.msra.mxu0 0.0
  %6192 = vmatprep.subr.mxu0 0.0
  %6193 = vmatpush1.msra.mxu0 0.0
  %6194 = vmatprep.subr.mxu0 0.0
  %6195 = vmatpush1.msra.mxu0 0.0
  %6196 = vmatprep.subr.mxu0 0.0
  %6197 = vmatpush1.msra.mxu0 0.0
  %6198 = vmatprep.subr.mxu0 0.0
  %6199 = vmatpush1.msra.mxu0 0.0
  %6200 = vmatprep.subr.mxu0 0.0
  %6201 = vmatpush1.msra.mxu0 0.0
  %6202 = vmatprep.subr.mxu0 0.0
  %6203 = vmatpush1.msra.mxu0 0.0
  %6204 = vmatprep.subr.mxu0 0.0
  %6205 = vmatpush1.msra.mxu0 0.0
  %6206 = vmatprep.subr.mxu0 0.0
  %6207 = vmatpush1.msra.mxu0 0.0
  %6208 = vmatprep.subr.mxu0 0.0
  %6209 = vmatpush1.msra.mxu0 0.0
  %6210 = vmatprep.subr.mxu0 0.0
  %6211 = vmatpush1.msra.mxu0 0.0
  %6212 = vmatprep.subr.mxu0 0.0
  %6213 = vmatpush1.msra.mxu0 0.0
  %6214 = vmatprep.subr.mxu0 0.0
  %6215 = vmatpush1.msra.mxu0 0.0
  %6216 = vmatprep.subr.mxu0 0.0
  %6217 = vmatpush1.msra.mxu0 0.0
  %6218 = vmatprep.subr.mxu0 0.0
  %6219 = vmatpush1.msra.mxu0 0.0
  %6220 = vmatprep.subr.mxu0 0.0
  %6221 = vmatpush1.msra.mxu0 0.0
  %6222 = vmatprep.subr.mxu0 0.0
  %6223 = vmatpush1.msra.mxu0 0.0
  %6224 = vmatprep.subr.mxu0 0.0
  %6225 = vmatpush1.msra.mxu0 0.0
  %6226 = vmatprep.subr.mxu0 0.0
  %6227 = vmatpush1.msra.mxu0 0.0
  %6228 = vmatprep.subr.mxu0 0.0
  %6229 = vmatpush1.msra.mxu0 0.0
  %6230 = vmatprep.subr.mxu0 0.0
  %6231 = vmatpush1.msra.mxu0 0.0
  %6232 = vmatprep.subr.mxu0 0.0
  %6233 = vmatpush1.msra.mxu0 0.0
  %6234 = vmatprep.subr.mxu0 0.0
  %6235 = vmatpush1.msra.mxu0 0.0
  %6236 = vmatprep.mubr.f32.mxu0 0.0
  %6237 = vmatmul.mubr.f32.gmra.mrb[0].mxu0 %v6170
  %v6238 = vpop.f32.mrb[0].mxu0
  %v6239 = vadd.f32 %v62, %v6238
  %v6240 = vpop.f32.mrb[0].mxu0
  %6241 = vdwg.mxu0
  %v6242 = vadd.f32 %v6169, %v6239
  %v6243 = vxor.u32 %v6242, 2147483648
  %v6244 = vmul.f32 %v6243, 1.442695
  %v6245 = vpow.pop %v6244
  %v6246 = vadd.f32 %v6245, 1.0
  %v6247 = vrcp.pop %v6246
  %v6248 = vmul.f32 1.0, %v6247
  %6250 = vrot.lane.b32.xlu0 %v6239, 64
  %v6251 = vpop.permute.xlu0 %6250
  %v6253 = vmul.f32 %v6248, %v6251
  %6255 = vrot.lane.b32.xlu0 %v6253, 64
  %v6256 = vpop.permute.xlu0 %6255
  %v6258 = vadd.f32 %v6169, %v6256
  %v6259 = vtanh.pop %v6258
  %v6260 = vsub.f32 1.0, %v6248
  %6262 = vrot.lane.b32.xlu0 %v6259, 96
  %v6263 = vpop.permute.xlu0 %6262
  %v6265 = vmul.f32 %v6260, %v6263
  %v6266 = vmul.f32 %v6248, %v6064
  %v6267 = vadd.f32 %v6265, %v6266
  %6269 = vrot.lane.b32.xlu0 %v6267, 96
  %v6270 = vpop.permute.xlu0 %6269
  %v6272 = vsel %vm64, %v6270, %v6167
  %v6274 = vsel %vm182, %v6272, 0
  %6276 = vmatprep.subr.mxu0 0.0
  %6277 = vmatpush1.msra.mxu0 %v33
  %6278 = vmatprep.subr.mxu0 0.0
  %6279 = vmatpush1.msra.mxu0 %v34
  %6280 = vmatprep.subr.mxu0 0.0
  %6281 = vmatpush1.msra.mxu0 %v35
  %6282 = vmatprep.subr.mxu0 0.0
  %6283 = vmatpush1.msra.mxu0 %v36
  %6284 = vmatprep.subr.mxu0 0.0
  %6285 = vmatpush1.msra.mxu0 %v37
  %6286 = vmatprep.subr.mxu0 0.0
  %6287 = vmatpush1.msra.mxu0 %v38
  %6288 = vmatprep.subr.mxu0 0.0
  %6289 = vmatpush1.msra.mxu0 %v39
  %6290 = vmatprep.subr.mxu0 0.0
  %6291 = vmatpush1.msra.mxu0 %v40
  %6292 = vmatprep.subr.mxu0 0.0
  %6293 = vmatpush1.msra.mxu0 0.0
  %6294 = vmatprep.subr.mxu0 0.0
  %6295 = vmatpush1.msra.mxu0 0.0
  %6296 = vmatprep.subr.mxu0 0.0
  %6297 = vmatpush1.msra.mxu0 0.0
  %6298 = vmatprep.subr.mxu0 0.0
  %6299 = vmatpush1.msra.mxu0 0.0
  %6300 = vmatprep.subr.mxu0 0.0
  %6301 = vmatpush1.msra.mxu0 0.0
  %6302 = vmatprep.subr.mxu0 0.0
  %6303 = vmatpush1.msra.mxu0 0.0
  %6304 = vmatprep.subr.mxu0 0.0
  %6305 = vmatpush1.msra.mxu0 0.0
  %6306 = vmatprep.subr.mxu0 0.0
  %6307 = vmatpush1.msra.mxu0 0.0
  %6308 = vmatprep.subr.mxu0 0.0
  %6309 = vmatpush1.msra.mxu0 0.0
  %6310 = vmatprep.subr.mxu0 0.0
  %6311 = vmatpush1.msra.mxu0 0.0
  %6312 = vmatprep.subr.mxu0 0.0
  %6313 = vmatpush1.msra.mxu0 0.0
  %6314 = vmatprep.subr.mxu0 0.0
  %6315 = vmatpush1.msra.mxu0 0.0
  %6316 = vmatprep.subr.mxu0 0.0
  %6317 = vmatpush1.msra.mxu0 0.0
  %6318 = vmatprep.subr.mxu0 0.0
  %6319 = vmatpush1.msra.mxu0 0.0
  %6320 = vmatprep.subr.mxu0 0.0
  %6321 = vmatpush1.msra.mxu0 0.0
  %6322 = vmatprep.subr.mxu0 0.0
  %6323 = vmatpush1.msra.mxu0 0.0
  %6324 = vmatprep.subr.mxu0 0.0
  %6325 = vmatpush1.msra.mxu0 0.0
  %6326 = vmatprep.subr.mxu0 0.0
  %6327 = vmatpush1.msra.mxu0 0.0
  %6328 = vmatprep.subr.mxu0 0.0
  %6329 = vmatpush1.msra.mxu0 0.0
  %6330 = vmatprep.subr.mxu0 0.0
  %6331 = vmatpush1.msra.mxu0 0.0
  %6332 = vmatprep.subr.mxu0 0.0
  %6333 = vmatpush1.msra.mxu0 0.0
  %6334 = vmatprep.subr.mxu0 0.0
  %6335 = vmatpush1.msra.mxu0 0.0
  %6336 = vmatprep.subr.mxu0 0.0
  %6337 = vmatpush1.msra.mxu0 0.0
  %6338 = vmatprep.subr.mxu0 0.0
  %6339 = vmatpush1.msra.mxu0 0.0
  %6340 = vmatprep.mubr.f32.mxu0 0.0
  %6341 = vmatmul.mubr.f32.gmra.mrb[0].mxu0 %v6274
  %v6342 = vpop.f32.mrb[0].mxu0
  %v6343 = vadd.f32 %v180, %v6342
  %v6344 = vpop.f32.mrb[0].mxu0
  %6345 = vdwg.mxu0
  %v6346 = vxor.u32 %v6343, 2147483648
  %v6347 = vmul.f32 %v6346, 1.442695
  %v6348 = vpow.pop %v6347
  %v6349 = vadd.f32 %v6348, 1.0
  %v6350 = vrcp.pop %v6349
  %v6351 = vmul.f32 1.0, %v6350
  %6353 = vrot.lane.b32.xlu0 %v6343, 32
  %v6354 = vpop.permute.xlu0 %6353
  %v6356 = vmul.f32 %v6351, %v6354
  %6358 = vrot.lane.b32.xlu0 %v6356, 64
  %v6359 = vpop.permute.xlu0 %6358
  %v6361 = vadd.f32 %v6343, %v6359
  %v6362 = vtanh.pop %v6361
  %v6363 = vsub.f32 1.0, %v6351
  %6365 = vrot.lane.b32.xlu0 %v6362, 96
  %v6366 = vpop.permute.xlu0 %6365
  %v6368 = vmul.f32 %v6363, %v6366
  %v6369 = vmul.f32 %v6351, %v6167
  %v6370 = vadd.f32 %v6368, %v6369
  %s6371 = scalar_lea.vmem %s0, 248
  %v6372 = vld [vmem:[%s6371] sm:$0xff]
  %v6373 = vsel %vm64, %v6270, 0
  %6375 = vmatprep.subr.mxu0 0.0
  %6376 = vmatpush1.msra.mxu0 %v28
  %6377 = vmatprep.subr.mxu0 0.0
  %6378 = vmatpush1.msra.mxu0 %v29
  %6379 = vmatprep.subr.mxu0 0.0
  %6380 = vmatpush1.msra.mxu0 %v30
  %6381 = vmatprep.subr.mxu0 0.0
  %6382 = vmatpush1.msra.mxu0 %v31
  %6383 = vmatprep.subr.mxu0 0.0
  %6384 = vmatpush1.msra.mxu0 0.0
  %6385 = vmatprep.subr.mxu0 0.0
  %6386 = vmatpush1.msra.mxu0 0.0
  %6387 = vmatprep.subr.mxu0 0.0
  %6388 = vmatpush1.msra.mxu0 0.0
  %6389 = vmatprep.subr.mxu0 0.0
  %6390 = vmatpush1.msra.mxu0 0.0
  %6391 = vmatprep.subr.mxu0 0.0
  %6392 = vmatpush1.msra.mxu0 0.0
  %6393 = vmatprep.subr.mxu0 0.0
  %6394 = vmatpush1.msra.mxu0 0.0
  %6395 = vmatprep.subr.mxu0 0.0
  %6396 = vmatpush1.msra.mxu0 0.0
  %6397 = vmatprep.subr.mxu0 0.0
  %6398 = vmatpush1.msra.mxu0 0.0
  %6399 = vmatprep.subr.mxu0 0.0
  %6400 = vmatpush1.msra.mxu0 0.0
  %6401 = vmatprep.subr.mxu0 0.0
  %6402 = vmatpush1.msra.mxu0 0.0
  %6403 = vmatprep.subr.mxu0 0.0
  %6404 = vmatpush1.msra.mxu0 0.0
  %6405 = vmatprep.subr.mxu0 0.0
  %6406 = vmatpush1.msra.mxu0 0.0
  %6407 = vmatprep.subr.mxu0 0.0
  %6408 = vmatpush1.msra.mxu0 0.0
  %6409 = vmatprep.subr.mxu0 0.0
  %6410 = vmatpush1.msra.mxu0 0.0
  %6411 = vmatprep.subr.mxu0 0.0
  %6412 = vmatpush1.msra.mxu0 0.0
  %6413 = vmatprep.subr.mxu0 0.0
  %6414 = vmatpush1.msra.mxu0 0.0
  %6415 = vmatprep.subr.mxu0 0.0
  %6416 = vmatpush1.msra.mxu0 0.0
  %6417 = vmatprep.subr.mxu0 0.0
  %6418 = vmatpush1.msra.mxu0 0.0
  %6419 = vmatprep.subr.mxu0 0.0
  %6420 = vmatpush1.msra.mxu0 0.0
  %6421 = vmatprep.subr.mxu0 0.0
  %6422 = vmatpush1.msra.mxu0 0.0
  %6423 = vmatprep.subr.mxu0 0.0
  %6424 = vmatpush1.msra.mxu0 0.0
  %6425 = vmatprep.subr.mxu0 0.0
  %6426 = vmatpush1.msra.mxu0 0.0
  %6427 = vmatprep.subr.mxu0 0.0
  %6428 = vmatpush1.msra.mxu0 0.0
  %6429 = vmatprep.subr.mxu0 0.0
  %6430 = vmatpush1.msra.mxu0 0.0
  %6431 = vmatprep.subr.mxu0 0.0
  %6432 = vmatpush1.msra.mxu0 0.0
  %6433 = vmatprep.subr.mxu0 0.0
  %6434 = vmatpush1.msra.mxu0 0.0
  %6435 = vmatprep.subr.mxu0 0.0
  %6436 = vmatpush1.msra.mxu0 0.0
  %6437 = vmatprep.subr.mxu0 0.0
  %6438 = vmatpush1.msra.mxu0 0.0
  %6439 = vmatprep.mubr.f32.mxu0 0.0
  %6440 = vmatmul.mubr.f32.gmra.mrb[0].mxu0 %v6373
  %v6441 = vpop.f32.mrb[0].mxu0
  %v6442 = vadd.f32 %v62, %v6441
  %v6443 = vpop.f32.mrb[0].mxu0
  %6444 = vdwg.mxu0
  %v6445 = vadd.f32 %v6372, %v6442
  %v6446 = vxor.u32 %v6445, 2147483648
  %v6447 = vmul.f32 %v6446, 1.442695
  %v6448 = vpow.pop %v6447
  %v6449 = vadd.f32 %v6448, 1.0
  %v6450 = vrcp.pop %v6449
  %v6451 = vmul.f32 1.0, %v6450
  %6453 = vrot.lane.b32.xlu0 %v6442, 64
  %v6454 = vpop.permute.xlu0 %6453
  %v6456 = vmul.f32 %v6451, %v6454
  %6458 = vrot.lane.b32.xlu0 %v6456, 64
  %v6459 = vpop.permute.xlu0 %6458
  %v6461 = vadd.f32 %v6372, %v6459
  %v6462 = vtanh.pop %v6461
  %v6463 = vsub.f32 1.0, %v6451
  %6465 = vrot.lane.b32.xlu0 %v6462, 96
  %v6466 = vpop.permute.xlu0 %6465
  %v6468 = vmul.f32 %v6463, %v6466
  %v6469 = vmul.f32 %v6451, %v6267
  %v6470 = vadd.f32 %v6468, %v6469
  %6472 = vrot.lane.b32.xlu0 %v6470, 96
  %v6473 = vpop.permute.xlu0 %6472
  %v6475 = vsel %vm64, %v6473, %v6370
  %v6477 = vsel %vm182, %v6475, 0
  %6479 = vmatprep.subr.mxu0 0.0
  %6480 = vmatpush1.msra.mxu0 %v33
  %6481 = vmatprep.subr.mxu0 0.0
  %6482 = vmatpush1.msra.mxu0 %v34
  %6483 = vmatprep.subr.mxu0 0.0
  %6484 = vmatpush1.msra.mxu0 %v35
  %6485 = vmatprep.subr.mxu0 0.0
  %6486 = vmatpush1.msra.mxu0 %v36
  %6487 = vmatprep.subr.mxu0 0.0
  %6488 = vmatpush1.msra.mxu0 %v37
  %6489 = vmatprep.subr.mxu0 0.0
  %6490 = vmatpush1.msra.mxu0 %v38
  %6491 = vmatprep.subr.mxu0 0.0
  %6492 = vmatpush1.msra.mxu0 %v39
  %6493 = vmatprep.subr.mxu0 0.0
  %6494 = vmatpush1.msra.mxu0 %v40
  %6495 = vmatprep.subr.mxu0 0.0
  %6496 = vmatpush1.msra.mxu0 0.0
  %6497 = vmatprep.subr.mxu0 0.0
  %6498 = vmatpush1.msra.mxu0 0.0
  %6499 = vmatprep.subr.mxu0 0.0
  %6500 = vmatpush1.msra.mxu0 0.0
  %6501 = vmatprep.subr.mxu0 0.0
  %6502 = vmatpush1.msra.mxu0 0.0
  %6503 = vmatprep.subr.mxu0 0.0
  %6504 = vmatpush1.msra.mxu0 0.0
  %6505 = vmatprep.subr.mxu0 0.0
  %6506 = vmatpush1.msra.mxu0 0.0
  %6507 = vmatprep.subr.mxu0 0.0
  %6508 = vmatpush1.msra.mxu0 0.0
  %6509 = vmatprep.subr.mxu0 0.0
  %6510 = vmatpush1.msra.mxu0 0.0
  %6511 = vmatprep.subr.mxu0 0.0
  %6512 = vmatpush1.msra.mxu0 0.0
  %6513 = vmatprep.subr.mxu0 0.0
  %6514 = vmatpush1.msra.mxu0 0.0
  %6515 = vmatprep.subr.mxu0 0.0
  %6516 = vmatpush1.msra.mxu0 0.0
  %6517 = vmatprep.subr.mxu0 0.0
  %6518 = vmatpush1.msra.mxu0 0.0
  %6519 = vmatprep.subr.mxu0 0.0
  %6520 = vmatpush1.msra.mxu0 0.0
  %6521 = vmatprep.subr.mxu0 0.0
  %6522 = vmatpush1.msra.mxu0 0.0
  %6523 = vmatprep.subr.mxu0 0.0
  %6524 = vmatpush1.msra.mxu0 0.0
  %6525 = vmatprep.subr.mxu0 0.0
  %6526 = vmatpush1.msra.mxu0 0.0
  %6527 = vmatprep.subr.mxu0 0.0
  %6528 = vmatpush1.msra.mxu0 0.0
  %6529 = vmatprep.subr.mxu0 0.0
  %6530 = vmatpush1.msra.mxu0 0.0
  %6531 = vmatprep.subr.mxu0 0.0
  %6532 = vmatpush1.msra.mxu0 0.0
  %6533 = vmatprep.subr.mxu0 0.0
  %6534 = vmatpush1.msra.mxu0 0.0
  %6535 = vmatprep.subr.mxu0 0.0
  %6536 = vmatpush1.msra.mxu0 0.0
  %6537 = vmatprep.subr.mxu0 0.0
  %6538 = vmatpush1.msra.mxu0 0.0
  %6539 = vmatprep.subr.mxu0 0.0
  %6540 = vmatpush1.msra.mxu0 0.0
  %6541 = vmatprep.subr.mxu0 0.0
  %6542 = vmatpush1.msra.mxu0 0.0
  %6543 = vmatprep.mubr.f32.mxu0 0.0
  %6544 = vmatmul.mubr.f32.gmra.mrb[0].mxu0 %v6477
  %v6545 = vpop.f32.mrb[0].mxu0
  %v6546 = vadd.f32 %v180, %v6545
  %v6547 = vpop.f32.mrb[0].mxu0
  %6548 = vdwg.mxu0
  %v6549 = vxor.u32 %v6546, 2147483648
  %v6550 = vmul.f32 %v6549, 1.442695
  %v6551 = vpow.pop %v6550
  %v6552 = vadd.f32 %v6551, 1.0
  %v6553 = vrcp.pop %v6552
  %v6554 = vmul.f32 1.0, %v6553
  %6556 = vrot.lane.b32.xlu0 %v6546, 32
  %v6557 = vpop.permute.xlu0 %6556
  %v6559 = vmul.f32 %v6554, %v6557
  %6561 = vrot.lane.b32.xlu0 %v6559, 64
  %v6562 = vpop.permute.xlu0 %6561
  %v6564 = vadd.f32 %v6546, %v6562
  %v6565 = vtanh.pop %v6564
  %v6566 = vsub.f32 1.0, %v6554
  %6568 = vrot.lane.b32.xlu0 %v6565, 96
  %v6569 = vpop.permute.xlu0 %6568
  %v6571 = vmul.f32 %v6566, %v6569
  %v6572 = vmul.f32 %v6554, %v6370
  %v6573 = vadd.f32 %v6571, %v6572
  %6574 = vst.msk [vmem:[#allocation2] sm:$0xff] %vm64, %v6473
  %6576 = vrot.lane.b32.xlu0 %v6573, 96
  %v6577 = vpop.permute.xlu0 %6576
  %6579 = vst.msk [vmem:[%s55] sm:$0xff] %vm64, %v6577
  %v6581 = vlaneseq
  %v6582 = vshrl.u32 %v6581, 7
  %v6583 = vsub.s32 0, %v6582
  %v6584 = vrot.slane %v46, %v6583
  %6617 = vrot.lane.b32.xlu0 %v280, 96
  %v6618 = vpop.permute.xlu0 %6617
  %6619 = vrot.lane.b32.xlu0 %v483, 96
  %v6620 = vpop.permute.xlu0 %6619
  %6621 = vrot.lane.b32.xlu0 %v686, 96
  %v6622 = vpop.permute.xlu0 %6621
  %6623 = vrot.lane.b32.xlu0 %v889, 96
  %v6624 = vpop.permute.xlu0 %6623
  %6625 = vrot.lane.b32.xlu0 %v1092, 96
  %v6626 = vpop.permute.xlu0 %6625
  %6627 = vrot.lane.b32.xlu0 %v1295, 96
  %v6628 = vpop.permute.xlu0 %6627
  %6629 = vrot.lane.b32.xlu0 %v1498, 96
  %v6630 = vpop.permute.xlu0 %6629
  %6631 = vrot.lane.b32.xlu0 %v1701, 96
  %v6632 = vpop.permute.xlu0 %6631
  %6633 = vrot.lane.b32.xlu0 %v1904, 96
  %v6634 = vpop.permute.xlu0 %6633
  %6635 = vrot.lane.b32.xlu0 %v2107, 96
  %v6636 = vpop.permute.xlu0 %6635
  %6637 = vrot.lane.b32.xlu0 %v2310, 96
  %v6638 = vpop.permute.xlu0 %6637
  %6639 = vrot.lane.b32.xlu0 %v2513, 96
  %v6640 = vpop.permute.xlu0 %6639
  %6641 = vrot.lane.b32.xlu0 %v2716, 96
  %v6642 = vpop.permute.xlu0 %6641
  %6643 = vrot.lane.b32.xlu0 %v2919, 96
  %v6644 = vpop.permute.xlu0 %6643
  %6645 = vrot.lane.b32.xlu0 %v3122, 96
  %v6646 = vpop.permute.xlu0 %6645
  %6647 = vrot.lane.b32.xlu0 %v3325, 96
  %v6648 = vpop.permute.xlu0 %6647
  %6649 = vrot.lane.b32.xlu0 %v3528, 96
  %v6650 = vpop.permute.xlu0 %6649
  %6651 = vrot.lane.b32.xlu0 %v3731, 96
  %v6652 = vpop.permute.xlu0 %6651
  %6653 = vrot.lane.b32.xlu0 %v3934, 96
  %v6654 = vpop.permute.xlu0 %6653
  %6655 = vrot.lane.b32.xlu0 %v4137, 96
  %v6656 = vpop.permute.xlu0 %6655
  %6657 = vrot.lane.b32.xlu0 %v4340, 96
  %v6658 = vpop.permute.xlu0 %6657
  %6659 = vrot.lane.b32.xlu0 %v4543, 96
  %v6660 = vpop.permute.xlu0 %6659
  %6661 = vrot.lane.b32.xlu0 %v4746, 96
  %v6662 = vpop.permute.xlu0 %6661
  %6663 = vrot.lane.b32.xlu0 %v4949, 96
  %v6664 = vpop.permute.xlu0 %6663
  %6665 = vrot.lane.b32.xlu0 %v5152, 96
  %v6666 = vpop.permute.xlu0 %6665
  %6667 = vrot.lane.b32.xlu0 %v5355, 96
  %v6668 = vpop.permute.xlu0 %6667
  %6669 = vrot.lane.b32.xlu0 %v5558, 96
  %v6670 = vpop.permute.xlu0 %6669
  %6671 = vrot.lane.b32.xlu0 %v5761, 96
  %v6672 = vpop.permute.xlu0 %6671
  %6673 = vrot.lane.b32.xlu0 %v5964, 96
  %v6674 = vpop.permute.xlu0 %6673
  %6675 = vrot.lane.b32.xlu0 %v6167, 96
  %v6676 = vpop.permute.xlu0 %6675
  %6677 = vrot.lane.b32.xlu0 %v6370, 96
  %v6678 = vpop.permute.xlu0 %6677
  %v6679 = vsel %vm64, %v6618, 0
  %v6681 = vsel %vm64, %v6620, 0
  %v6683 = vsel %vm64, %v6622, 0
  %v6685 = vsel %vm64, %v6624, 0
  %v6687 = vsel %vm64, %v6626, 0
  %v6689 = vsel %vm64, %v6628, 0
  %v6691 = vsel %vm64, %v6630, 0
  %v6693 = vsel %vm64, %v6632, 0
  %v6695 = vsel %vm64, %v6634, 0
  %v6697 = vsel %vm64, %v6636, 0
  %v6699 = vsel %vm64, %v6638, 0
  %v6701 = vsel %vm64, %v6640, 0
  %v6703 = vsel %vm64, %v6642, 0
  %v6705 = vsel %vm64, %v6644, 0
  %v6707 = vsel %vm64, %v6646, 0
  %v6709 = vsel %vm64, %v6648, 0
  %v6711 = vsel %vm64, %v6650, 0
  %v6713 = vsel %vm64, %v6652, 0
  %v6715 = vsel %vm64, %v6654, 0
  %v6717 = vsel %vm64, %v6656, 0
  %v6719 = vsel %vm64, %v6658, 0
  %v6721 = vsel %vm64, %v6660, 0
  %v6723 = vsel %vm64, %v6662, 0
  %v6725 = vsel %vm64, %v6664, 0
  %v6727 = vsel %vm64, %v6666, 0
  %v6729 = vsel %vm64, %v6668, 0
  %v6731 = vsel %vm64, %v6670, 0
  %v6733 = vsel %vm64, %v6672, 0
  %v6735 = vsel %vm64, %v6674, 0
  %v6737 = vsel %vm64, %v6676, 0
  %v6739 = vsel %vm64, %v6678, 0
  %v6741 = vsel %vm64, %v6577, 0
  %6743 = vmatprep.subr.mxu0 0.0
  %6744 = vmatpush1.msra.mxu0 %v42
  %6745 = vmatprep.subr.mxu0 0.0
  %6746 = vmatpush1.msra.mxu0 %v43
  %6747 = vmatprep.subr.mxu0 0.0
  %6748 = vmatpush1.msra.mxu0 %v44
  %6749 = vmatprep.subr.mxu0 0.0
  %6750 = vmatpush1.msra.mxu0 %v45
  %6751 = vmatprep.subr.mxu0 0.0
  %6752 = vmatpush1.msra.mxu0 0.0
  %6753 = vmatprep.subr.mxu0 0.0
  %6754 = vmatpush1.msra.mxu0 0.0
  %6755 = vmatprep.subr.mxu0 0.0
  %6756 = vmatpush1.msra.mxu0 0.0
  %6757 = vmatprep.subr.mxu0 0.0
  %6758 = vmatpush1.msra.mxu0 0.0
  %6759 = vmatprep.subr.mxu0 0.0
  %6760 = vmatpush1.msra.mxu0 0.0
  %6761 = vmatprep.subr.mxu0 0.0
  %6762 = vmatpush1.msra.mxu0 0.0
  %6763 = vmatprep.subr.mxu0 0.0
  %6764 = vmatpush1.msra.mxu0 0.0
  %6765 = vmatprep.subr.mxu0 0.0
  %6766 = vmatpush1.msra.mxu0 0.0
  %6767 = vmatprep.subr.mxu0 0.0
  %6768 = vmatpush1.msra.mxu0 0.0
  %6769 = vmatprep.subr.mxu0 0.0
  %6770 = vmatpush1.msra.mxu0 0.0
  %6771 = vmatprep.subr.mxu0 0.0
  %6772 = vmatpush1.msra.mxu0 0.0
  %6773 = vmatprep.subr.mxu0 0.0
  %6774 = vmatpush1.msra.mxu0 0.0
  %6775 = vmatprep.subr.mxu0 0.0
  %6776 = vmatpush1.msra.mxu0 0.0
  %6777 = vmatprep.subr.mxu0 0.0
  %6778 = vmatpush1.msra.mxu0 0.0
  %6779 = vmatprep.subr.mxu0 0.0
  %6780 = vmatpush1.msra.mxu0 0.0
  %6781 = vmatprep.subr.mxu0 0.0
  %6782 = vmatpush1.msra.mxu0 0.0
  %6783 = vmatprep.subr.mxu0 0.0
  %6784 = vmatpush1.msra.mxu0 0.0
  %6785 = vmatprep.subr.mxu0 0.0
  %6786 = vmatpush1.msra.mxu0 0.0
  %6787 = vmatprep.subr.mxu0 0.0
  %6788 = vmatpush1.msra.mxu0 0.0
  %6789 = vmatprep.subr.mxu0 0.0
  %6790 = vmatpush1.msra.mxu0 0.0
  %6791 = vmatprep.subr.mxu0 0.0
  %6792 = vmatpush1.msra.mxu0 0.0
  %6793 = vmatprep.subr.mxu0 0.0
  %6794 = vmatpush1.msra.mxu0 0.0
  %6795 = vmatprep.subr.mxu0 0.0
  %6796 = vmatpush1.msra.mxu0 0.0
  %6797 = vmatprep.subr.mxu0 0.0
  %6798 = vmatpush1.msra.mxu0 0.0
  %6799 = vmatprep.subr.mxu0 0.0
  %6800 = vmatpush1.msra.mxu0 0.0
  %6801 = vmatprep.subr.mxu0 0.0
  %6802 = vmatpush1.msra.mxu0 0.0
  %6803 = vmatprep.subr.mxu0 0.0
  %6804 = vmatpush1.msra.mxu0 0.0
  %6805 = vmatprep.subr.mxu0 0.0
  %6806 = vmatpush1.msra.mxu0 0.0
  %6807 = vmatprep.mubr.f32.mxu0 0.0
  %6808 = vmatmul.mubr.f32.gmra.mrb[0].mxu0 %v6679
  %v6809 = vpop.f32.mrb[0].mxu0
  %v6810 = vadd.f32 %v6584, %v6809
  %v6811 = vpop.f32.mrb[0].mxu0
  %6812 = vmatprep.mubr.f32.mxu0 0.0
  %6813 = vmatmul.mubr.f32.gmra.mrb[0].mxu0 %v6681
  %v6814 = vpop.f32.mrb[0].mxu0
  %v6815 = vadd.f32 %v6584, %v6814
  %v6816 = vpop.f32.mrb[0].mxu0
  %6817 = vmatprep.mubr.f32.mxu0 0.0
  %6818 = vmatmul.mubr.f32.gmra.mrb[0].mxu0 %v6683
  %v6819 = vpop.f32.mrb[0].mxu0
  %v6820 = vadd.f32 %v6584, %v6819
  %v6821 = vpop.f32.mrb[0].mxu0
  %6822 = vmatprep.mubr.f32.mxu0 0.0
  %6823 = vmatmul.mubr.f32.gmra.mrb[0].mxu0 %v6685
  %v6824 = vpop.f32.mrb[0].mxu0
  %v6825 = vadd.f32 %v6584, %v6824
  %v6826 = vpop.f32.mrb[0].mxu0
  %6827 = vmatprep.mubr.f32.mxu0 0.0
  %6828 = vmatmul.mubr.f32.gmra.mrb[0].mxu0 %v6687
  %v6829 = vpop.f32.mrb[0].mxu0
  %v6830 = vadd.f32 %v6584, %v6829
  %v6831 = vpop.f32.mrb[0].mxu0
  %6832 = vmatprep.mubr.f32.mxu0 0.0
  %6833 = vmatmul.mubr.f32.gmra.mrb[0].mxu0 %v6689
  %v6834 = vpop.f32.mrb[0].mxu0
  %v6835 = vadd.f32 %v6584, %v6834
  %v6836 = vpop.f32.mrb[0].mxu0
  %6837 = vmatprep.mubr.f32.mxu0 0.0
  %6838 = vmatmul.mubr.f32.gmra.mrb[0].mxu0 %v6691
  %v6839 = vpop.f32.mrb[0].mxu0
  %v6840 = vadd.f32 %v6584, %v6839
  %v6841 = vpop.f32.mrb[0].mxu0
  %6842 = vmatprep.mubr.f32.mxu0 0.0
  %6843 = vmatmul.mubr.f32.gmra.mrb[0].mxu0 %v6693
  %v6844 = vpop.f32.mrb[0].mxu0
  %v6845 = vadd.f32 %v6584, %v6844
  %v6846 = vpop.f32.mrb[0].mxu0
  %6847 = vmatprep.mubr.f32.mxu0 0.0
  %6848 = vmatmul.mubr.f32.gmra.mrb[0].mxu0 %v6695
  %v6849 = vpop.f32.mrb[0].mxu0
  %v6850 = vadd.f32 %v6584, %v6849
  %v6851 = vpop.f32.mrb[0].mxu0
  %6852 = vmatprep.mubr.f32.mxu0 0.0
  %6853 = vmatmul.mubr.f32.gmra.mrb[0].mxu0 %v6697
  %v6854 = vpop.f32.mrb[0].mxu0
  %v6855 = vadd.f32 %v6584, %v6854
  %v6856 = vpop.f32.mrb[0].mxu0
  %6857 = vmatprep.mubr.f32.mxu0 0.0
  %6858 = vmatmul.mubr.f32.gmra.mrb[0].mxu0 %v6699
  %v6859 = vpop.f32.mrb[0].mxu0
  %v6860 = vadd.f32 %v6584, %v6859
  %v6861 = vpop.f32.mrb[0].mxu0
  %6862 = vmatprep.mubr.f32.mxu0 0.0
  %6863 = vmatmul.mubr.f32.gmra.mrb[0].mxu0 %v6701
  %v6864 = vpop.f32.mrb[0].mxu0
  %v6865 = vadd.f32 %v6584, %v6864
  %v6866 = vpop.f32.mrb[0].mxu0
  %6867 = vmatprep.mubr.f32.mxu0 0.0
  %6868 = vmatmul.mubr.f32.gmra.mrb[0].mxu0 %v6703
  %v6869 = vpop.f32.mrb[0].mxu0
  %v6870 = vadd.f32 %v6584, %v6869
  %v6871 = vpop.f32.mrb[0].mxu0
  %6872 = vmatprep.mubr.f32.mxu0 0.0
  %6873 = vmatmul.mubr.f32.gmra.mrb[0].mxu0 %v6705
  %v6874 = vpop.f32.mrb[0].mxu0
  %v6875 = vadd.f32 %v6584, %v6874
  %v6876 = vpop.f32.mrb[0].mxu0
  %6877 = vmatprep.mubr.f32.mxu0 0.0
  %6878 = vmatmul.mubr.f32.gmra.mrb[0].mxu0 %v6707
  %v6879 = vpop.f32.mrb[0].mxu0
  %v6880 = vadd.f32 %v6584, %v6879
  %v6881 = vpop.f32.mrb[0].mxu0
  %6882 = vmatprep.mubr.f32.mxu0 0.0
  %6883 = vmatmul.mubr.f32.gmra.mrb[0].mxu0 %v6709
  %v6884 = vpop.f32.mrb[0].mxu0
  %v6885 = vadd.f32 %v6584, %v6884
  %v6886 = vpop.f32.mrb[0].mxu0
  %6887 = vmatprep.mubr.f32.mxu0 0.0
  %6888 = vmatmul.mubr.f32.gmra.mrb[0].mxu0 %v6711
  %v6889 = vpop.f32.mrb[0].mxu0
  %v6890 = vadd.f32 %v6584, %v6889
  %v6891 = vpop.f32.mrb[0].mxu0
  %6892 = vmatprep.mubr.f32.mxu0 0.0
  %6893 = vmatmul.mubr.f32.gmra.mrb[0].mxu0 %v6713
  %v6894 = vpop.f32.mrb[0].mxu0
  %v6895 = vadd.f32 %v6584, %v6894
  %v6896 = vpop.f32.mrb[0].mxu0
  %6897 = vmatprep.mubr.f32.mxu0 0.0
  %6898 = vmatmul.mubr.f32.gmra.mrb[0].mxu0 %v6715
  %v6899 = vpop.f32.mrb[0].mxu0
  %v6900 = vadd.f32 %v6584, %v6899
  %v6901 = vpop.f32.mrb[0].mxu0
  %6902 = vmatprep.mubr.f32.mxu0 0.0
  %6903 = vmatmul.mubr.f32.gmra.mrb[0].mxu0 %v6717
  %v6904 = vpop.f32.mrb[0].mxu0
  %v6905 = vadd.f32 %v6584, %v6904
  %v6906 = vpop.f32.mrb[0].mxu0
  %6907 = vmatprep.mubr.f32.mxu0 0.0
  %6908 = vmatmul.mubr.f32.gmra.mrb[0].mxu0 %v6719
  %v6909 = vpop.f32.mrb[0].mxu0
  %v6910 = vadd.f32 %v6584, %v6909
  %v6911 = vpop.f32.mrb[0].mxu0
  %6912 = vmatprep.mubr.f32.mxu0 0.0
  %6913 = vmatmul.mubr.f32.gmra.mrb[0].mxu0 %v6721
  %v6914 = vpop.f32.mrb[0].mxu0
  %v6915 = vadd.f32 %v6584, %v6914
  %v6916 = vpop.f32.mrb[0].mxu0
  %6917 = vmatprep.mubr.f32.mxu0 0.0
  %6918 = vmatmul.mubr.f32.gmra.mrb[0].mxu0 %v6723
  %v6919 = vpop.f32.mrb[0].mxu0
  %v6920 = vadd.f32 %v6584, %v6919
  %v6921 = vpop.f32.mrb[0].mxu0
  %6922 = vmatprep.mubr.f32.mxu0 0.0
  %6923 = vmatmul.mubr.f32.gmra.mrb[0].mxu0 %v6725
  %v6924 = vpop.f32.mrb[0].mxu0
  %v6925 = vadd.f32 %v6584, %v6924
  %v6926 = vpop.f32.mrb[0].mxu0
  %6927 = vmatprep.mubr.f32.mxu0 0.0
  %6928 = vmatmul.mubr.f32.gmra.mrb[0].mxu0 %v6727
  %v6929 = vpop.f32.mrb[0].mxu0
  %v6930 = vadd.f32 %v6584, %v6929
  %v6931 = vpop.f32.mrb[0].mxu0
  %6932 = vmatprep.mubr.f32.mxu0 0.0
  %6933 = vmatmul.mubr.f32.gmra.mrb[0].mxu0 %v6729
  %v6934 = vpop.f32.mrb[0].mxu0
  %v6935 = vadd.f32 %v6584, %v6934
  %v6936 = vpop.f32.mrb[0].mxu0
  %6937 = vmatprep.mubr.f32.mxu0 0.0
  %6938 = vmatmul.mubr.f32.gmra.mrb[0].mxu0 %v6731
  %v6939 = vpop.f32.mrb[0].mxu0
  %v6940 = vadd.f32 %v6584, %v6939
  %v6941 = vpop.f32.mrb[0].mxu0
  %6942 = vmatprep.mubr.f32.mxu0 0.0
  %6943 = vmatmul.mubr.f32.gmra.mrb[0].mxu0 %v6733
  %v6944 = vpop.f32.mrb[0].mxu0
  %v6945 = vadd.f32 %v6584, %v6944
  %v6946 = vpop.f32.mrb[0].mxu0
  %6947 = vmatprep.mubr.f32.mxu0 0.0
  %6948 = vmatmul.mubr.f32.gmra.mrb[0].mxu0 %v6735
  %v6949 = vpop.f32.mrb[0].mxu0
  %v6950 = vadd.f32 %v6584, %v6949
  %v6951 = vpop.f32.mrb[0].mxu0
  %6952 = vmatprep.mubr.f32.mxu0 0.0
  %6953 = vmatmul.mubr.f32.gmra.mrb[0].mxu0 %v6737
  %v6954 = vpop.f32.mrb[0].mxu0
  %v6955 = vadd.f32 %v6584, %v6954
  %v6956 = vpop.f32.mrb[0].mxu0
  %6957 = vmatprep.mubr.f32.mxu0 0.0
  %6958 = vmatmul.mubr.f32.gmra.mrb[0].mxu0 %v6739
  %v6959 = vpop.f32.mrb[0].mxu0
  %v6960 = vadd.f32 %v6584, %v6959
  %v6961 = vpop.f32.mrb[0].mxu0
  %6962 = vmatprep.mubr.f32.mxu0 0.0
  %6963 = vmatmul.mubr.f32.gmra.mrb[0].mxu0 %v6741
  %v6964 = vpop.f32.mrb[0].mxu0
  %v6965 = vadd.f32 %v6584, %v6964
  %v6966 = vpop.f32.mrb[0].mxu0
  %6967 = vdwg.mxu0
  %vm6968 = vcmask 39936
  %v6969 = vsel %vm6968, %v6810, -inf
  %6970 = vmax.xlane.f32.xlu0 %v6969
  %v6971 = vpop.xlane.xlu0 %6970
  %v6972 = vsel %vm6968, %v6815, -inf
  %6973 = vmax.xlane.f32.xlu0 %v6972
  %v6974 = vpop.xlane.xlu0 %6973
  %v6975 = vsel %vm6968, %v6820, -inf
  %6976 = vmax.xlane.f32.xlu0 %v6975
  %v6977 = vpop.xlane.xlu0 %6976
  %v6978 = vsel %vm6968, %v6825, -inf
  %6979 = vmax.xlane.f32.xlu0 %v6978
  %v6980 = vpop.xlane.xlu0 %6979
  %v6981 = vsel %vm6968, %v6830, -inf
  %6982 = vmax.xlane.f32.xlu0 %v6981
  %v6983 = vpop.xlane.xlu0 %6982
  %v6984 = vsel %vm6968, %v6835, -inf
  %6985 = vmax.xlane.f32.xlu0 %v6984
  %v6986 = vpop.xlane.xlu0 %6985
  %v6987 = vsel %vm6968, %v6840, -inf
  %6988 = vmax.xlane.f32.xlu0 %v6987
  %v6989 = vpop.xlane.xlu0 %6988
  %v6990 = vsel %vm6968, %v6845, -inf
  %6991 = vmax.xlane.f32.xlu0 %v6990
  %v6992 = vpop.xlane.xlu0 %6991
  %v6993 = vsel %vm6968, %v6850, -inf
  %6994 = vmax.xlane.f32.xlu0 %v6993
  %v6995 = vpop.xlane.xlu0 %6994
  %v6996 = vsel %vm6968, %v6855, -inf
  %6997 = vmax.xlane.f32.xlu0 %v6996
  %v6998 = vpop.xlane.xlu0 %6997
  %v6999 = vsel %vm6968, %v6860, -inf
  %7000 = vmax.xlane.f32.xlu0 %v6999
  %v7001 = vpop.xlane.xlu0 %7000
  %v7002 = vsel %vm6968, %v6865, -inf
  %7003 = vmax.xlane.f32.xlu0 %v7002
  %v7004 = vpop.xlane.xlu0 %7003
  %v7005 = vsel %vm6968, %v6870, -inf
  %7006 = vmax.xlane.f32.xlu0 %v7005
  %v7007 = vpop.xlane.xlu0 %7006
  %v7008 = vsel %vm6968, %v6875, -inf
  %7009 = vmax.xlane.f32.xlu0 %v7008
  %v7010 = vpop.xlane.xlu0 %7009
  %v7011 = vsel %vm6968, %v6880, -inf
  %7012 = vmax.xlane.f32.xlu0 %v7011
  %v7013 = vpop.xlane.xlu0 %7012
  %v7014 = vsel %vm6968, %v6885, -inf
  %7015 = vmax.xlane.f32.xlu0 %v7014
  %v7016 = vpop.xlane.xlu0 %7015
  %v7017 = vsel %vm6968, %v6890, -inf
  %7018 = vmax.xlane.f32.xlu0 %v7017
  %v7019 = vpop.xlane.xlu0 %7018
  %v7020 = vsel %vm6968, %v6895, -inf
  %7021 = vmax.xlane.f32.xlu0 %v7020
  %v7022 = vpop.xlane.xlu0 %7021
  %v7023 = vsel %vm6968, %v6900, -inf
  %7024 = vmax.xlane.f32.xlu0 %v7023
  %v7025 = vpop.xlane.xlu0 %7024
  %v7026 = vsel %vm6968, %v6905, -inf
  %7027 = vmax.xlane.f32.xlu0 %v7026
  %v7028 = vpop.xlane.xlu0 %7027
  %v7029 = vsel %vm6968, %v6910, -inf
  %7030 = vmax.xlane.f32.xlu0 %v7029
  %v7031 = vpop.xlane.xlu0 %7030
  %v7032 = vsel %vm6968, %v6915, -inf
  %7033 = vmax.xlane.f32.xlu0 %v7032
  %v7034 = vpop.xlane.xlu0 %7033
  %v7035 = vsel %vm6968, %v6920, -inf
  %7036 = vmax.xlane.f32.xlu0 %v7035
  %v7037 = vpop.xlane.xlu0 %7036
  %v7038 = vsel %vm6968, %v6925, -inf
  %7039 = vmax.xlane.f32.xlu0 %v7038
  %v7040 = vpop.xlane.xlu0 %7039
  %v7041 = vsel %vm6968, %v6930, -inf
  %7042 = vmax.xlane.f32.xlu0 %v7041
  %v7043 = vpop.xlane.xlu0 %7042
  %v7044 = vsel %vm6968, %v6935, -inf
  %7045 = vmax.xlane.f32.xlu0 %v7044
  %v7046 = vpop.xlane.xlu0 %7045
  %v7047 = vsel %vm6968, %v6940, -inf
  %7048 = vmax.xlane.f32.xlu0 %v7047
  %v7049 = vpop.xlane.xlu0 %7048
  %v7050 = vsel %vm6968, %v6945, -inf
  %7051 = vmax.xlane.f32.xlu0 %v7050
  %v7052 = vpop.xlane.xlu0 %7051
  %v7053 = vsel %vm6968, %v6950, -inf
  %7054 = vmax.xlane.f32.xlu0 %v7053
  %v7055 = vpop.xlane.xlu0 %7054
  %v7056 = vsel %vm6968, %v6955, -inf
  %7057 = vmax.xlane.f32.xlu0 %v7056
  %v7058 = vpop.xlane.xlu0 %7057
  %v7059 = vsel %vm6968, %v6960, -inf
  %7060 = vmax.xlane.f32.xlu0 %v7059
  %v7061 = vpop.xlane.xlu0 %7060
  %v7062 = vsel %vm6968, %v6965, -inf
  %7063 = vmax.xlane.f32.xlu0 %v7062
  %v7064 = vpop.xlane.xlu0 %7063
  %v7065 = vsub.f32 %v6810, %v6971
  %v7066 = vsub.f32 %v6815, %v6974
  %v7067 = vsub.f32 %v6820, %v6977
  %v7068 = vsub.f32 %v6825, %v6980
  %v7069 = vsub.f32 %v6830, %v6983
  %v7070 = vsub.f32 %v6835, %v6986
  %v7071 = vsub.f32 %v6840, %v6989
  %v7072 = vsub.f32 %v6845, %v6992
  %v7073 = vsub.f32 %v6850, %v6995
  %v7074 = vsub.f32 %v6855, %v6998
  %v7075 = vsub.f32 %v6860, %v7001
  %v7076 = vsub.f32 %v6865, %v7004
  %v7077 = vsub.f32 %v6870, %v7007
  %v7078 = vsub.f32 %v6875, %v7010
  %v7079 = vsub.f32 %v6880, %v7013
  %v7080 = vsub.f32 %v6885, %v7016
  %v7081 = vsub.f32 %v6890, %v7019
  %v7082 = vsub.f32 %v6895, %v7022
  %v7083 = vsub.f32 %v6900, %v7025
  %v7084 = vsub.f32 %v6905, %v7028
  %v7085 = vsub.f32 %v6910, %v7031
  %v7086 = vsub.f32 %v6915, %v7034
  %v7087 = vsub.f32 %v6920, %v7037
  %v7088 = vsub.f32 %v6925, %v7040
  %v7089 = vsub.f32 %v6930, %v7043
  %v7090 = vsub.f32 %v6935, %v7046
  %v7091 = vsub.f32 %v6940, %v7049
  %v7092 = vsub.f32 %v6945, %v7052
  %v7093 = vsub.f32 %v6950, %v7055
  %v7094 = vsub.f32 %v6955, %v7058
  %v7095 = vsub.f32 %v6960, %v7061
  %v7096 = vsub.f32 %v6965, %v7064
  %v7097 = vmul.f32 %v7065, 1.442695
  %v7098 = vpow.pop %v7097
  %v7099 = vmul.f32 %v7066, 1.442695
  %v7100 = vpow.pop %v7099
  %v7101 = vmul.f32 %v7067, 1.442695
  %v7102 = vpow.pop %v7101
  %v7103 = vmul.f32 %v7068, 1.442695
  %v7104 = vpow.pop %v7103
  %v7105 = vmul.f32 %v7069, 1.442695
  %v7106 = vpow.pop %v7105
  %v7107 = vmul.f32 %v7070, 1.442695
  %v7108 = vpow.pop %v7107
  %v7109 = vmul.f32 %v7071, 1.442695
  %v7110 = vpow.pop %v7109
  %v7111 = vmul.f32 %v7072, 1.442695
  %v7112 = vpow.pop %v7111
  %v7113 = vmul.f32 %v7073, 1.442695
  %v7114 = vpow.pop %v7113
  %v7115 = vmul.f32 %v7074, 1.442695
  %v7116 = vpow.pop %v7115
  %v7117 = vmul.f32 %v7075, 1.442695
  %v7118 = vpow.pop %v7117
  %v7119 = vmul.f32 %v7076, 1.442695
  %v7120 = vpow.pop %v7119
  %v7121 = vmul.f32 %v7077, 1.442695
  %v7122 = vpow.pop %v7121
  %v7123 = vmul.f32 %v7078, 1.442695
  %v7124 = vpow.pop %v7123
  %v7125 = vmul.f32 %v7079, 1.442695
  %v7126 = vpow.pop %v7125
  %v7127 = vmul.f32 %v7080, 1.442695
  %v7128 = vpow.pop %v7127
  %v7129 = vmul.f32 %v7081, 1.442695
  %v7130 = vpow.pop %v7129
  %v7131 = vmul.f32 %v7082, 1.442695
  %v7132 = vpow.pop %v7131
  %v7133 = vmul.f32 %v7083, 1.442695
  %v7134 = vpow.pop %v7133
  %v7135 = vmul.f32 %v7084, 1.442695
  %v7136 = vpow.pop %v7135
  %v7137 = vmul.f32 %v7085, 1.442695
  %v7138 = vpow.pop %v7137
  %v7139 = vmul.f32 %v7086, 1.442695
  %v7140 = vpow.pop %v7139
  %v7141 = vmul.f32 %v7087, 1.442695
  %v7142 = vpow.pop %v7141
  %v7143 = vmul.f32 %v7088, 1.442695
  %v7144 = vpow.pop %v7143
  %v7145 = vmul.f32 %v7089, 1.442695
  %v7146 = vpow.pop %v7145
  %v7147 = vmul.f32 %v7090, 1.442695
  %v7148 = vpow.pop %v7147
  %v7149 = vmul.f32 %v7091, 1.442695
  %v7150 = vpow.pop %v7149
  %v7151 = vmul.f32 %v7092, 1.442695
  %v7152 = vpow.pop %v7151
  %v7153 = vmul.f32 %v7093, 1.442695
  %v7154 = vpow.pop %v7153
  %v7155 = vmul.f32 %v7094, 1.442695
  %v7156 = vpow.pop %v7155
  %v7157 = vmul.f32 %v7095, 1.442695
  %v7158 = vpow.pop %v7157
  %v7159 = vmul.f32 %v7096, 1.442695
  %v7160 = vpow.pop %v7159
  %v7161 = vsel %vm6968, %v7098, 0.0
  %7162 = vadd.xlane.f32.xlu0 %v7161
  %v7163 = vpop.xlane.xlu0 %7162
  %v7164 = vsel %vm6968, %v7100, 0.0
  %7165 = vadd.xlane.f32.xlu0 %v7164
  %v7166 = vpop.xlane.xlu0 %7165
  %v7167 = vsel %vm6968, %v7102, 0.0
  %7168 = vadd.xlane.f32.xlu0 %v7167
  %v7169 = vpop.xlane.xlu0 %7168
  %v7170 = vsel %vm6968, %v7104, 0.0
  %7171 = vadd.xlane.f32.xlu0 %v7170
  %v7172 = vpop.xlane.xlu0 %7171
  %v7173 = vsel %vm6968, %v7106, 0.0
  %7174 = vadd.xlane.f32.xlu0 %v7173
  %v7175 = vpop.xlane.xlu0 %7174
  %v7176 = vsel %vm6968, %v7108, 0.0
  %7177 = vadd.xlane.f32.xlu0 %v7176
  %v7178 = vpop.xlane.xlu0 %7177
  %v7179 = vsel %vm6968, %v7110, 0.0
  %7180 = vadd.xlane.f32.xlu0 %v7179
  %v7181 = vpop.xlane.xlu0 %7180
  %v7182 = vsel %vm6968, %v7112, 0.0
  %7183 = vadd.xlane.f32.xlu0 %v7182
  %v7184 = vpop.xlane.xlu0 %7183
  %v7185 = vsel %vm6968, %v7114, 0.0
  %7186 = vadd.xlane.f32.xlu0 %v7185
  %v7187 = vpop.xlane.xlu0 %7186
  %v7188 = vsel %vm6968, %v7116, 0.0
  %7189 = vadd.xlane.f32.xlu0 %v7188
  %v7190 = vpop.xlane.xlu0 %7189
  %v7191 = vsel %vm6968, %v7118, 0.0
  %7192 = vadd.xlane.f32.xlu0 %v7191
  %v7193 = vpop.xlane.xlu0 %7192
  %v7194 = vsel %vm6968, %v7120, 0.0
  %7195 = vadd.xlane.f32.xlu0 %v7194
  %v7196 = vpop.xlane.xlu0 %7195
  %v7197 = vsel %vm6968, %v7122, 0.0
  %7198 = vadd.xlane.f32.xlu0 %v7197
  %v7199 = vpop.xlane.xlu0 %7198
  %v7200 = vsel %vm6968, %v7124, 0.0
  %7201 = vadd.xlane.f32.xlu0 %v7200
  %v7202 = vpop.xlane.xlu0 %7201
  %v7203 = vsel %vm6968, %v7126, 0.0
  %7204 = vadd.xlane.f32.xlu0 %v7203
  %v7205 = vpop.xlane.xlu0 %7204
  %v7206 = vsel %vm6968, %v7128, 0.0
  %7207 = vadd.xlane.f32.xlu0 %v7206
  %v7208 = vpop.xlane.xlu0 %7207
  %v7209 = vsel %vm6968, %v7130, 0.0
  %7210 = vadd.xlane.f32.xlu0 %v7209
  %v7211 = vpop.xlane.xlu0 %7210
  %v7212 = vsel %vm6968, %v7132, 0.0
  %7213 = vadd.xlane.f32.xlu0 %v7212
  %v7214 = vpop.xlane.xlu0 %7213
  %v7215 = vsel %vm6968, %v7134, 0.0
  %7216 = vadd.xlane.f32.xlu0 %v7215
  %v7217 = vpop.xlane.xlu0 %7216
  %v7218 = vsel %vm6968, %v7136, 0.0
  %7219 = vadd.xlane.f32.xlu0 %v7218
  %v7220 = vpop.xlane.xlu0 %7219
  %v7221 = vsel %vm6968, %v7138, 0.0
  %7222 = vadd.xlane.f32.xlu0 %v7221
  %v7223 = vpop.xlane.xlu0 %7222
  %v7224 = vsel %vm6968, %v7140, 0.0
  %7225 = vadd.xlane.f32.xlu0 %v7224
  %v7226 = vpop.xlane.xlu0 %7225
  %v7227 = vsel %vm6968, %v7142, 0.0
  %7228 = vadd.xlane.f32.xlu0 %v7227
  %v7229 = vpop.xlane.xlu0 %7228
  %v7230 = vsel %vm6968, %v7144, 0.0
  %7231 = vadd.xlane.f32.xlu0 %v7230
  %v7232 = vpop.xlane.xlu0 %7231
  %v7233 = vsel %vm6968, %v7146, 0.0
  %7234 = vadd.xlane.f32.xlu0 %v7233
  %v7235 = vpop.xlane.xlu0 %7234
  %v7236 = vsel %vm6968, %v7148, 0.0
  %7237 = vadd.xlane.f32.xlu0 %v7236
  %v7238 = vpop.xlane.xlu0 %7237
  %v7239 = vsel %vm6968, %v7150, 0.0
  %7240 = vadd.xlane.f32.xlu0 %v7239
  %v7241 = vpop.xlane.xlu0 %7240
  %v7242 = vsel %vm6968, %v7152, 0.0
  %7243 = vadd.xlane.f32.xlu0 %v7242
  %v7244 = vpop.xlane.xlu0 %7243
  %v7245 = vsel %vm6968, %v7154, 0.0
  %7246 = vadd.xlane.f32.xlu0 %v7245
  %v7247 = vpop.xlane.xlu0 %7246
  %v7248 = vsel %vm6968, %v7156, 0.0
  %7249 = vadd.xlane.f32.xlu0 %v7248
  %v7250 = vpop.xlane.xlu0 %7249
  %v7251 = vsel %vm6968, %v7158, 0.0
  %7252 = vadd.xlane.f32.xlu0 %v7251
  %v7253 = vpop.xlane.xlu0 %7252
  %v7254 = vsel %vm6968, %v7160, 0.0
  %7255 = vadd.xlane.f32.xlu0 %v7254
  %v7256 = vpop.xlane.xlu0 %7255
  %v7257 = vrcp.pop %v7163
  %v7258 = vrcp.pop %v7166
  %v7259 = vrcp.pop %v7169
  %v7260 = vrcp.pop %v7172
  %v7261 = vrcp.pop %v7175
  %v7262 = vrcp.pop %v7178
  %v7263 = vrcp.pop %v7181
  %v7264 = vrcp.pop %v7184
  %v7265 = vrcp.pop %v7187
  %v7266 = vrcp.pop %v7190
  %v7267 = vrcp.pop %v7193
  %v7268 = vrcp.pop %v7196
  %v7269 = vrcp.pop %v7199
  %v7270 = vrcp.pop %v7202
  %v7271 = vrcp.pop %v7205
  %v7272 = vrcp.pop %v7208
  %v7273 = vrcp.pop %v7211
  %v7274 = vrcp.pop %v7214
  %v7275 = vrcp.pop %v7217
  %v7276 = vrcp.pop %v7220
  %v7277 = vrcp.pop %v7223
  %v7278 = vrcp.pop %v7226
  %v7279 = vrcp.pop %v7229
  %v7280 = vrcp.pop %v7232
  %v7281 = vrcp.pop %v7235
  %v7282 = vrcp.pop %v7238
  %v7283 = vrcp.pop %v7241
  %v7284 = vrcp.pop %v7244
  %v7285 = vrcp.pop %v7247
  %v7286 = vrcp.pop %v7250
  %v7287 = vrcp.pop %v7253
  %v7288 = vrcp.pop %v7256
  %v7289 = vmul.f32 %v7098, %v7257
  %v7290 = vmul.f32 %v7100, %v7258
  %v7291 = vmul.f32 %v7102, %v7259
  %v7292 = vmul.f32 %v7104, %v7260
  %v7293 = vmul.f32 %v7106, %v7261
  %v7294 = vmul.f32 %v7108, %v7262
  %v7295 = vmul.f32 %v7110, %v7263
  %v7296 = vmul.f32 %v7112, %v7264
  %v7297 = vmul.f32 %v7114, %v7265
  %v7298 = vmul.f32 %v7116, %v7266
  %v7299 = vmul.f32 %v7118, %v7267
  %v7300 = vmul.f32 %v7120, %v7268
  %v7301 = vmul.f32 %v7122, %v7269
  %v7302 = vmul.f32 %v7124, %v7270
  %v7303 = vmul.f32 %v7126, %v7271
  %v7304 = vmul.f32 %v7128, %v7272
  %v7305 = vmul.f32 %v7130, %v7273
  %v7306 = vmul.f32 %v7132, %v7274
  %v7307 = vmul.f32 %v7134, %v7275
  %v7308 = vmul.f32 %v7136, %v7276
  %v7309 = vmul.f32 %v7138, %v7277
  %v7310 = vmul.f32 %v7140, %v7278
  %v7311 = vmul.f32 %v7142, %v7279
  %v7312 = vmul.f32 %v7144, %v7280
  %v7313 = vmul.f32 %v7146, %v7281
  %v7314 = vmul.f32 %v7148, %v7282
  %v7315 = vmul.f32 %v7150, %v7283
  %v7316 = vmul.f32 %v7152, %v7284
  %v7317 = vmul.f32 %v7154, %v7285
  %v7318 = vmul.f32 %v7156, %v7286
  %v7319 = vmul.f32 %v7158, %v7287
  %v7320 = vmul.f32 %v7160, %v7288
  %v7321 = vmul.f32 %v7289, %v7289
  %v7322 = vmul.f32 %v7290, %v7290
  %v7323 = vmul.f32 %v7291, %v7291
  %v7324 = vmul.f32 %v7292, %v7292
  %v7325 = vmul.f32 %v7293, %v7293
  %v7326 = vmul.f32 %v7294, %v7294
  %v7327 = vmul.f32 %v7295, %v7295
  %v7328 = vmul.f32 %v7296, %v7296
  %v7329 = vmul.f32 %v7297, %v7297
  %v7330 = vmul.f32 %v7298, %v7298
  %v7331 = vmul.f32 %v7299, %v7299
  %v7332 = vmul.f32 %v7300, %v7300
  %v7333 = vmul.f32 %v7301, %v7301
  %v7334 = vmul.f32 %v7302, %v7302
  %v7335 = vmul.f32 %v7303, %v7303
  %v7336 = vmul.f32 %v7304, %v7304
  %v7337 = vmul.f32 %v7305, %v7305
  %v7338 = vmul.f32 %v7306, %v7306
  %v7339 = vmul.f32 %v7307, %v7307
  %v7340 = vmul.f32 %v7308, %v7308
  %v7341 = vmul.f32 %v7309, %v7309
  %v7342 = vmul.f32 %v7310, %v7310
  %v7343 = vmul.f32 %v7311, %v7311
  %v7344 = vmul.f32 %v7312, %v7312
  %v7345 = vmul.f32 %v7313, %v7313
  %v7346 = vmul.f32 %v7314, %v7314
  %v7347 = vmul.f32 %v7315, %v7315
  %v7348 = vmul.f32 %v7316, %v7316
  %v7349 = vmul.f32 %v7317, %v7317
  %v7350 = vmul.f32 %v7318, %v7318
  %v7351 = vmul.f32 %v7319, %v7319
  %v7352 = vmul.f32 %v7320, %v7320
  %v7353 = vsel %vm6968, %v7321, 0.0
  %7354 = vadd.xlane.f32.xlu0 %v7353
  %v7355 = vpop.xlane.xlu0 %7354
  %v7356 = vsel %vm6968, %v7322, 0.0
  %7357 = vadd.xlane.f32.xlu0 %v7356
  %v7358 = vpop.xlane.xlu0 %7357
  %v7359 = vsel %vm6968, %v7323, 0.0
  %7360 = vadd.xlane.f32.xlu0 %v7359
  %v7361 = vpop.xlane.xlu0 %7360
  %v7362 = vsel %vm6968, %v7324, 0.0
  %7363 = vadd.xlane.f32.xlu0 %v7362
  %v7364 = vpop.xlane.xlu0 %7363
  %v7365 = vsel %vm6968, %v7325, 0.0
  %7366 = vadd.xlane.f32.xlu0 %v7365
  %v7367 = vpop.xlane.xlu0 %7366
  %v7368 = vsel %vm6968, %v7326, 0.0
  %7369 = vadd.xlane.f32.xlu0 %v7368
  %v7370 = vpop.xlane.xlu0 %7369
  %v7371 = vsel %vm6968, %v7327, 0.0
  %7372 = vadd.xlane.f32.xlu0 %v7371
  %v7373 = vpop.xlane.xlu0 %7372
  %v7374 = vsel %vm6968, %v7328, 0.0
  %7375 = vadd.xlane.f32.xlu0 %v7374
  %v7376 = vpop.xlane.xlu0 %7375
  %v7377 = vsel %vm6968, %v7329, 0.0
  %7378 = vadd.xlane.f32.xlu0 %v7377
  %v7379 = vpop.xlane.xlu0 %7378
  %v7380 = vsel %vm6968, %v7330, 0.0
  %7381 = vadd.xlane.f32.xlu0 %v7380
  %v7382 = vpop.xlane.xlu0 %7381
  %v7383 = vsel %vm6968, %v7331, 0.0
  %7384 = vadd.xlane.f32.xlu0 %v7383
  %v7385 = vpop.xlane.xlu0 %7384
  %v7386 = vsel %vm6968, %v7332, 0.0
  %7387 = vadd.xlane.f32.xlu0 %v7386
  %v7388 = vpop.xlane.xlu0 %7387
  %v7389 = vsel %vm6968, %v7333, 0.0
  %7390 = vadd.xlane.f32.xlu0 %v7389
  %v7391 = vpop.xlane.xlu0 %7390
  %v7392 = vsel %vm6968, %v7334, 0.0
  %7393 = vadd.xlane.f32.xlu0 %v7392
  %v7394 = vpop.xlane.xlu0 %7393
  %v7395 = vsel %vm6968, %v7335, 0.0
  %7396 = vadd.xlane.f32.xlu0 %v7395
  %v7397 = vpop.xlane.xlu0 %7396
  %v7398 = vsel %vm6968, %v7336, 0.0
  %7399 = vadd.xlane.f32.xlu0 %v7398
  %v7400 = vpop.xlane.xlu0 %7399
  %v7401 = vsel %vm6968, %v7337, 0.0
  %7402 = vadd.xlane.f32.xlu0 %v7401
  %v7403 = vpop.xlane.xlu0 %7402
  %v7404 = vsel %vm6968, %v7338, 0.0
  %7405 = vadd.xlane.f32.xlu0 %v7404
  %v7406 = vpop.xlane.xlu0 %7405
  %v7407 = vsel %vm6968, %v7339, 0.0
  %7408 = vadd.xlane.f32.xlu0 %v7407
  %v7409 = vpop.xlane.xlu0 %7408
  %v7410 = vsel %vm6968, %v7340, 0.0
  %7411 = vadd.xlane.f32.xlu0 %v7410
  %v7412 = vpop.xlane.xlu0 %7411
  %v7413 = vsel %vm6968, %v7341, 0.0
  %7414 = vadd.xlane.f32.xlu0 %v7413
  %v7415 = vpop.xlane.xlu0 %7414
  %v7416 = vsel %vm6968, %v7342, 0.0
  %7417 = vadd.xlane.f32.xlu0 %v7416
  %v7418 = vpop.xlane.xlu0 %7417
  %v7419 = vsel %vm6968, %v7343, 0.0
  %7420 = vadd.xlane.f32.xlu0 %v7419
  %v7421 = vpop.xlane.xlu0 %7420
  %v7422 = vsel %vm6968, %v7344, 0.0
  %7423 = vadd.xlane.f32.xlu0 %v7422
  %v7424 = vpop.xlane.xlu0 %7423
  %v7425 = vsel %vm6968, %v7345, 0.0
  %7426 = vadd.xlane.f32.xlu0 %v7425
  %v7427 = vpop.xlane.xlu0 %7426
  %v7428 = vsel %vm6968, %v7346, 0.0
  %7429 = vadd.xlane.f32.xlu0 %v7428
  %v7430 = vpop.xlane.xlu0 %7429
  %v7431 = vsel %vm6968, %v7347, 0.0
  %7432 = vadd.xlane.f32.xlu0 %v7431
  %v7433 = vpop.xlane.xlu0 %7432
  %v7434 = vsel %vm6968, %v7348, 0.0
  %7435 = vadd.xlane.f32.xlu0 %v7434
  %v7436 = vpop.xlane.xlu0 %7435
  %v7437 = vsel %vm6968, %v7349, 0.0
  %7438 = vadd.xlane.f32.xlu0 %v7437
  %v7439 = vpop.xlane.xlu0 %7438
  %v7440 = vsel %vm6968, %v7350, 0.0
  %7441 = vadd.xlane.f32.xlu0 %v7440
  %v7442 = vpop.xlane.xlu0 %7441
  %v7443 = vsel %vm6968, %v7351, 0.0
  %7444 = vadd.xlane.f32.xlu0 %v7443
  %v7445 = vpop.xlane.xlu0 %7444
  %v7446 = vsel %vm6968, %v7352, 0.0
  %7447 = vadd.xlane.f32.xlu0 %v7446
  %v7448 = vpop.xlane.xlu0 %7447
  %vm7449 = vcmask 7168
  %7450 = vst.msk [vmem:[%s8] sm:$0xff] %vm7449, %v7355
  %7451 = vst.msk [vmem:[%s8 + $0x8] sm:$0xff] %vm7449, %v7358
  %7452 = vst.msk [vmem:[%s8 + $0x10] sm:$0xff] %vm7449, %v7361
  %7453 = vst.msk [vmem:[%s8 + $0x18] sm:$0xff] %vm7449, %v7364
  %7454 = vst.msk [vmem:[%s8 + $0x20] sm:$0xff] %vm7449, %v7367
  %7455 = vst.msk [vmem:[%s8 + $0x28] sm:$0xff] %vm7449, %v7370
  %7456 = vst.msk [vmem:[%s8 + $0x30] sm:$0xff] %vm7449, %v7373
  %7457 = vst.msk [vmem:[%s8 + $0x38] sm:$0xff] %vm7449, %v7376
  %7458 = vst.msk [vmem:[%s8 + $0x40] sm:$0xff] %vm7449, %v7379
  %7459 = vst.msk [vmem:[%s8 + $0x48] sm:$0xff] %vm7449, %v7382
  %7460 = vst.msk [vmem:[%s8 + $0x50] sm:$0xff] %vm7449, %v7385
  %7461 = vst.msk [vmem:[%s8 + $0x58] sm:$0xff] %vm7449, %v7388
  %7462 = vst.msk [vmem:[%s8 + $0x60] sm:$0xff] %vm7449, %v7391
  %7463 = vst.msk [vmem:[%s8 + $0x68] sm:$0xff] %vm7449, %v7394
  %7464 = vst.msk [vmem:[%s8 + $0x70] sm:$0xff] %vm7449, %v7397
  %7465 = vst.msk [vmem:[%s8 + $0x78] sm:$0xff] %vm7449, %v7400
  %7466 = vst.msk [vmem:[%s8 + $0x80] sm:$0xff] %vm7449, %v7403
  %7467 = vst.msk [vmem:[%s8 + $0x88] sm:$0xff] %vm7449, %v7406
  %7468 = vst.msk [vmem:[%s8 + $0x90] sm:$0xff] %vm7449, %v7409
  %7469 = vst.msk [vmem:[%s8 + $0x98] sm:$0xff] %vm7449, %v7412
  %7470 = vst.msk [vmem:[%s8 + $0xa0] sm:$0xff] %vm7449, %v7415
  %7471 = vst.msk [vmem:[%s8 + $0xa8] sm:$0xff] %vm7449, %v7418
  %7472 = vst.msk [vmem:[%s8 + $0xb0] sm:$0xff] %vm7449, %v7421
  %7473 = vst.msk [vmem:[%s8 + $0xb8] sm:$0xff] %vm7449, %v7424
  %7474 = vst.msk [vmem:[%s8 + $0xc0] sm:$0xff] %vm7449, %v7427
  %7475 = vst.msk [vmem:[%s8 + $0xc8] sm:$0xff] %vm7449, %v7430
  %7476 = vst.msk [vmem:[%s8 + $0xd0] sm:$0xff] %vm7449, %v7433
  %7477 = vst.msk [vmem:[%s8 + $0xd8] sm:$0xff] %vm7449, %v7436
  %7478 = vst.msk [vmem:[%s8 + $0xe0] sm:$0xff] %vm7449, %v7439
  %7479 = vst.msk [vmem:[%s8 + $0xe8] sm:$0xff] %vm7449, %v7442
  %7480 = vst.msk [vmem:[%s8 + $0xf0] sm:$0xff] %vm7449, %v7445
  %7481 = vst.msk [vmem:[%s8 + $0xf8] sm:$0xff] %vm7449, %v7448
  %7482 = vst.msk [vmem:[%s7] sm:$0xff] %vm6968, %v6825
  %7483 = vst.msk [vmem:[%s7 + $0x8] sm:$0xff] %vm6968, %v6845
  %7484 = vst.msk [vmem:[%s7 + $0x10] sm:$0xff] %vm6968, %v6865
  %7485 = vst.msk [vmem:[%s7 + $0x18] sm:$0xff] %vm6968, %v6885
  %7486 = vst.msk [vmem:[%s7 + $0x20] sm:$0xff] %vm6968, %v6905
  %7487 = vst.msk [vmem:[%s7 + $0x28] sm:$0xff] %vm6968, %v6925
  %7488 = vst.msk [vmem:[%s7 + $0x30] sm:$0xff] %vm6968, %v6945
  %7489 = vst.msk [vmem:[%s7 + $0x38] sm:$0xff] %vm6968, %v6965
  // Predicated region
  $region34: #{freq_unroll_block_forward.1} parent=0 // pred_check
    _
  $region35: #{freq_unroll_block_forward.1} parent=0 // pred_check_branch
    %7491 = sbr.rel (0) target = $region37
  $region36: #{freq_unroll_block_forward.1} parent=0 // pred_region
    _
  $region37: #{freq_unroll_block_forward.1} parent=0 // pred_fallthru
    _
  // Predicated region
  $region38: #{freq_unroll_block_forward.1} parent=0 // pred_check
    _
  $region39: #{freq_unroll_block_forward.1} parent=0 // pred_check_branch
    %7493 = sbr.rel (0) target = $region41
  $region40: #{freq_unroll_block_forward.1} parent=0 // pred_region
    _
  $region41: #{freq_unroll_block_forward.1} parent=0 // pred_fallthru
    _
  // Predicated region
  $region42: #{freq_unroll_block_forward.1} parent=0 // pred_check
    _
  $region43: #{freq_unroll_block_forward.1} parent=0 // pred_check_branch
    %7495 = sbr.rel (0) target = $region45
  $region44: #{freq_unroll_block_forward.1} parent=0 // pred_region
    _
  $region45: #{freq_unroll_block_forward.1} parent=0 // pred_fallthru
    _
  // Predicated region
  $region46: #{freq_unroll_block_forward.1} parent=0 // pred_check
    _
  $region47: #{freq_unroll_block_forward.1} parent=0 // pred_check_branch
    %7497 = sbr.rel (0) target = $region49
  $region48: #{freq_unroll_block_forward.1} parent=0 // pred_region
    _
  $region49: #{freq_unroll_block_forward.1} parent=0 // pred_fallthru
    _

</llo_original>
